<compile_context>
chip_gen: v7x
topology: tpu7x:2x2x1
jax: 0.10.0
libtpu: 0.0.40
codegen_flags: <defaults>
</compile_context>

<pallas_src>
import functools
import math

import jax
import jax.numpy as jnp
from jax.experimental import pallas as pl
from jax.experimental.pallas import tpu as pltpu

# ----- module-consistent constants -----
BETA = 0.95
THRESHOLD = 0.5
N_STEPS = 5
N_OUTPUT = 11
N_LAYERS = 10          # 1 input layer + 8 hidden layers + 1 output layer

# ----- small demo shapes -----
BATCH = 8
N_INPUT = 256          # stands in for image_size*image_size = 50176
N_HIDDEN = 128         # stands in for n_hidden = 1000 (pad to 1024 at real scale)

LANE = 128


def _round_up(n, m):
    return ((n + m - 1) // m) * m


def snn_kernel(z1_ref, *refs, n_layers, n_steps, beta, threshold):
    """All n_steps time steps of layers 1..n_layers for one batch block.

    z1_ref: (bb, n_hidden) f32 -- hoisted, time-invariant layer-1 pre-activation.
    refs = 2*(n_layers-1) param refs (w2,b2,...,wN,bN)   [w bf16, b f32 (bb, out)]
         + spk_out_ref (n_steps, bb, out_pad) f32
         + mem_out_ref (n_steps, bb, out_pad) f32
    """
    n_lin = n_layers - 1                         # Linear layers done in-kernel
    param_refs = refs[:2 * n_lin]
    spk_out_ref = refs[2 * n_lin]
    mem_out_ref = refs[2 * n_lin + 1]

    z1 = z1_ref[...]                             # identical every time step
    bb = z1.shape[0]
    dims = [z1.shape[1]] + [param_refs[2 * i].shape[1] for i in range(n_lin)]

    def leaky(z, m_prev):
        # snntorch Leaky, reset-by-subtraction; all state math in f32.
        reset = (m_prev > threshold).astype(jnp.float32)
        m_new = beta * m_prev + z - reset * threshold
        # spikes are exactly 0/1 -> emit bf16 directly for the next MXU matmul
        spk = (m_new > threshold).astype(jnp.bfloat16)
        return spk, m_new

    # init_hidden=True -> membranes start at zero; carried as f32 values.
    mems = [jnp.zeros((bb, d), jnp.float32) for d in dims]

    for t in range(n_steps):                     # fully unrolled time loop
        spk, mems[0] = leaky(z1, mems[0])
        for li in range(n_lin):
            w = param_refs[2 * li][...]          # bf16 (in, out), out lane-dense
            b = param_refs[2 * li + 1][...]      # f32  (bb, out), pre-broadcast
            z = jnp.dot(spk, w, preferred_element_type=jnp.float32) + b
            spk, mems[li + 1] = leaky(z, mems[li + 1])
            # nn.Dropout(0.3) after hidden Leaky layers: identity in eval mode.
        # output layer has output=True -> record (spk, mem) for this time step
        spk_out_ref[t, :, :] = spk.astype(jnp.float32)   # bf16 0/1 -> f32 exact
        mem_out_ref[t, :, :] = mems[-1]


def make_params(key):
    """PyTorch-style Linear init: U(-1/sqrt(fan_in), 1/sqrt(fan_in)), f32.

    Weights are stored as (in_features, out_features) = W.T of PyTorch layout
    so the output-feature axis is lane-dense.
    """
    dims = [N_INPUT] + [N_HIDDEN] * (N_LAYERS - 1) + [N_OUTPUT]
    params = []
    for i in range(N_LAYERS):
        key, kw, kb = jax.random.split(key, 3)
        fan_in = dims[i]
        bound = 1.0 / math.sqrt(fan_in)
        w = jax.random.uniform(kw, (dims[i], dims[i + 1]), jnp.float32, -bound, bound)
        b = jax.random.uniform(kb, (1, dims[i + 1]), jnp.float32, -bound, bound)
        params += [w, b]
    return params


def deep_snn_forward(x, params, *, n_steps=N_STEPS, beta=BETA, threshold=THRESHOLD):
    B, _ = x.shape
    n_layers = len(params) // 2
    n_hidden = params[0].shape[1]
    n_output = params[2 * (n_layers - 1)].shape[1]
    out_pad = _round_up(n_output, LANE)

    # ---- layer 1 hoisted out of the kernel (time-invariant), exact f32 ----
    w1, b1 = params[0], params[1]
    z1 = jnp.dot(x, w1, preferred_element_type=jnp.float32) + b1     # (B, n_hidden)

    # ---- pad batch to a multiple of 8, pick a parallel batch block ----
    b_pad = _round_up(B, 8)
    if b_pad != B:
        z1 = jnp.pad(z1, ((0, b_pad - B), (0, 0)))
    bb = min(b_pad, 128)
    while b_pad % bb:
        bb -= 8
    n_blocks = b_pad // bb

    # ---- in-kernel params (layers 2..n): bf16 weights (lane-dense out),
    #      f32 biases pre-broadcast to the batch block ----
    kparams = []
    for li in range(1, n_layers):
        w = params[2 * li]
        b = params[2 * li + 1]
        if li == n_layers - 1:
            w = jnp.pad(w, ((0, 0), (0, out_pad - n_output)))
            b = jnp.pad(b, ((0, 0), (0, out_pad - n_output)))
        kparams.append(w.astype(jnp.bfloat16))
        kparams.append(jnp.broadcast_to(b.astype(jnp.float32), (bb, w.shape[1])))

    in_specs = [pl.BlockSpec((bb, n_hidden), lambda i: (i, 0))]      # batch-blocked
    for p in kparams:
        in_specs.append(pl.BlockSpec(p.shape, lambda i: (0, 0)))     # grid-invariant

    out_shape = (
        jax.ShapeDtypeStruct((n_steps, b_pad, out_pad), jnp.float32),  # spk_rec
        jax.ShapeDtypeStruct((n_steps, b_pad, out_pad), jnp.float32),  # mem_rec
    )
    out_specs = (
        pl.BlockSpec((n_steps, bb, out_pad), lambda i: (0, i, 0)),
        pl.BlockSpec((n_steps, bb, out_pad), lambda i: (0, i, 0)),
    )

    # VMEM budget: grid-invariant weights/biases once, grid-varying z1 and
    # output blocks double-buffered, plus headroom for compiler scratch.
    invariant_bytes = sum(int(p.size) * p.dtype.itemsize for p in kparams)
    z1_block_bytes = bb * n_hidden * 4
    out_block_bytes = 2 * n_steps * bb * out_pad * 4
    vmem_limit = int(invariant_bytes + 2 * z1_block_bytes + 2 * out_block_bytes
                     + (8 << 20))

    kernel = functools.partial(
        snn_kernel, n_layers=n_layers, n_steps=n_steps, beta=beta, threshold=threshold
    )

    spk_rec, mem_rec = pl.pallas_call(
        kernel,
        grid=(n_blocks,),
        in_specs=in_specs,
        out_specs=out_specs,
        out_shape=out_shape,
        compiler_params=pltpu.CompilerParams(
            dimension_semantics=("parallel",),   # batch blocks are independent
            vmem_limit_bytes=vmem_limit,
        ),
    )(z1, *kparams)

    # slice padded batch rows / output lanes back to the true sizes
    return spk_rec[:, :B, :n_output], mem_rec[:, :B, :n_output]


if __name__ == "__main__":
    key = jax.random.PRNGKey(0)
    key, kx, kp = jax.random.split(key, 3)

    # synthetic "flattened image" input, (B, n_input)
    x = jax.random.uniform(kx, (BATCH, N_INPUT), jnp.float32)
    params = make_params(kp)

    spk_rec, mem_rec = deep_snn_forward(x, params)
    jax.block_until_ready((spk_rec, mem_rec))

    assert spk_rec.shape == (N_STEPS, BATCH, N_OUTPUT)
    assert mem_rec.shape == (N_STEPS, BATCH, N_OUTPUT)
    # spikes must be exactly binary, membranes finite
    assert bool(jnp.all((spk_rec == 0.0) | (spk_rec == 1.0)))
    assert bool(jnp.all(jnp.isfinite(mem_rec)))
    print("KERNEL_OK")
</pallas_src>

<mosaic_0001>
module attributes {stable_mosaic.version = 11 : i64} {
  func.func @snn_kernel(%arg0: i32, %arg1: memref<8x128xf32, #tpu.memory_space<vmem>>, %arg2: memref<128x128xbf16, #tpu.memory_space<vmem>>, %arg3: memref<8x128xf32, #tpu.memory_space<vmem>>, %arg4: memref<128x128xbf16, #tpu.memory_space<vmem>>, %arg5: memref<8x128xf32, #tpu.memory_space<vmem>>, %arg6: memref<128x128xbf16, #tpu.memory_space<vmem>>, %arg7: memref<8x128xf32, #tpu.memory_space<vmem>>, %arg8: memref<128x128xbf16, #tpu.memory_space<vmem>>, %arg9: memref<8x128xf32, #tpu.memory_space<vmem>>, %arg10: memref<128x128xbf16, #tpu.memory_space<vmem>>, %arg11: memref<8x128xf32, #tpu.memory_space<vmem>>, %arg12: memref<128x128xbf16, #tpu.memory_space<vmem>>, %arg13: memref<8x128xf32, #tpu.memory_space<vmem>>, %arg14: memref<128x128xbf16, #tpu.memory_space<vmem>>, %arg15: memref<8x128xf32, #tpu.memory_space<vmem>>, %arg16: memref<128x128xbf16, #tpu.memory_space<vmem>>, %arg17: memref<8x128xf32, #tpu.memory_space<vmem>>, %arg18: memref<128x128xbf16, #tpu.memory_space<vmem>>, %arg19: memref<8x128xf32, #tpu.memory_space<vmem>>, %arg20: memref<5x8x128xf32, #tpu.memory_space<vmem>>, %arg21: memref<5x8x128xf32, #tpu.memory_space<vmem>>) attributes {dimension_semantics = [#tpu.dimension_semantics<parallel>], iteration_bounds = array<i64: 1>, scalar_prefetch = 0 : i64, scratch_operands = 0 : i64, tpu.core_type = #tpu.core_type<tc>, window_params = [{transform_indices = @transform_0, window_bounds = array<i64: 8, 128>}, {pipeline_mode = #tpu.pipeline_mode<synchronous>, transform_indices = @transform_1, window_bounds = array<i64: 128, 128>}, {pipeline_mode = #tpu.pipeline_mode<synchronous>, transform_indices = @transform_2, window_bounds = array<i64: 8, 128>}, {pipeline_mode = #tpu.pipeline_mode<synchronous>, transform_indices = @transform_3, window_bounds = array<i64: 128, 128>}, {pipeline_mode = #tpu.pipeline_mode<synchronous>, transform_indices = @transform_4, window_bounds = array<i64: 8, 128>}, {pipeline_mode = #tpu.pipeline_mode<synchronous>, transform_indices = @transform_5, window_bounds = array<i64: 128, 128>}, {pipeline_mode = #tpu.pipeline_mode<synchronous>, transform_indices = @transform_6, window_bounds = array<i64: 8, 128>}, {pipeline_mode = #tpu.pipeline_mode<synchronous>, transform_indices = @transform_7, window_bounds = array<i64: 128, 128>}, {pipeline_mode = #tpu.pipeline_mode<synchronous>, transform_indices = @transform_8, window_bounds = array<i64: 8, 128>}, {pipeline_mode = #tpu.pipeline_mode<synchronous>, transform_indices = @transform_9, window_bounds = array<i64: 128, 128>}, {pipeline_mode = #tpu.pipeline_mode<synchronous>, transform_indices = @transform_10, window_bounds = array<i64: 8, 128>}, {pipeline_mode = #tpu.pipeline_mode<synchronous>, transform_indices = @transform_11, window_bounds = array<i64: 128, 128>}, {pipeline_mode = #tpu.pipeline_mode<synchronous>, transform_indices = @transform_12, window_bounds = array<i64: 8, 128>}, {pipeline_mode = #tpu.pipeline_mode<synchronous>, transform_indices = @transform_13, window_bounds = array<i64: 128, 128>}, {pipeline_mode = #tpu.pipeline_mode<synchronous>, transform_indices = @transform_14, window_bounds = array<i64: 8, 128>}, {pipeline_mode = #tpu.pipeline_mode<synchronous>, transform_indices = @transform_15, window_bounds = array<i64: 128, 128>}, {pipeline_mode = #tpu.pipeline_mode<synchronous>, transform_indices = @transform_16, window_bounds = array<i64: 8, 128>}, {pipeline_mode = #tpu.pipeline_mode<synchronous>, transform_indices = @transform_17, window_bounds = array<i64: 128, 128>}, {pipeline_mode = #tpu.pipeline_mode<synchronous>, transform_indices = @transform_18, window_bounds = array<i64: 8, 128>}, {transform_indices = @transform_19, window_bounds = array<i64: 5, 8, 128>}, {transform_indices = @transform_20, window_bounds = array<i64: 5, 8, 128>}]} {
    %c0 = arith.constant 0 : index
    %c0_0 = arith.constant 0 : index
    %0 = vector.load %arg1[%c0, %c0_0] : memref<8x128xf32, #tpu.memory_space<vmem>>, vector<8x128xf32>
    %cst = arith.constant 0.000000e+00 : f32
    %1 = vector.broadcast %cst : f32 to vector<8x128xf32>
    %cst_1 = arith.constant 0.000000e+00 : f32
    %2 = vector.broadcast %cst_1 : f32 to vector<8x128xf32>
    %cst_2 = arith.constant 0.000000e+00 : f32
    %3 = vector.broadcast %cst_2 : f32 to vector<8x128xf32>
    %cst_3 = arith.constant 0.000000e+00 : f32
    %4 = vector.broadcast %cst_3 : f32 to vector<8x128xf32>
    %cst_4 = arith.constant 0.000000e+00 : f32
    %5 = vector.broadcast %cst_4 : f32 to vector<8x128xf32>
    %cst_5 = arith.constant 0.000000e+00 : f32
    %6 = vector.broadcast %cst_5 : f32 to vector<8x128xf32>
    %cst_6 = arith.constant 0.000000e+00 : f32
    %7 = vector.broadcast %cst_6 : f32 to vector<8x128xf32>
    %cst_7 = arith.constant 0.000000e+00 : f32
    %8 = vector.broadcast %cst_7 : f32 to vector<8x128xf32>
    %cst_8 = arith.constant 0.000000e+00 : f32
    %9 = vector.broadcast %cst_8 : f32 to vector<8x128xf32>
    %cst_9 = arith.constant 0.000000e+00 : f32
    %10 = vector.broadcast %cst_9 : f32 to vector<8x128xf32>
    %cst_10 = arith.constant 5.000000e-01 : f32
    %11 = vector.broadcast %cst_10 : f32 to vector<8x128xf32>
    %12 = arith.cmpf ogt, %1, %11 : vector<8x128xf32>
    %13 = arith.extui %12 : vector<8x128xi1> to vector<8x128xi32>
    %14 = arith.sitofp %13 : vector<8x128xi32> to vector<8x128xf32>
    %cst_11 = arith.constant 0.949999988 : f32
    %15 = vector.broadcast %cst_11 : f32 to vector<8x128xf32>
    %16 = arith.mulf %15, %1 : vector<8x128xf32>
    %17 = arith.addf %16, %0 : vector<8x128xf32>
    %cst_12 = arith.constant 5.000000e-01 : f32
    %18 = vector.broadcast %cst_12 : f32 to vector<8x128xf32>
    %19 = arith.mulf %14, %18 : vector<8x128xf32>
    %20 = arith.subf %17, %19 : vector<8x128xf32>
    %cst_13 = arith.constant 5.000000e-01 : f32
    %21 = vector.broadcast %cst_13 : f32 to vector<8x128xf32>
    %22 = arith.cmpf ogt, %20, %21 : vector<8x128xf32>
    %23 = arith.extui %22 : vector<8x128xi1> to vector<8x128xi32>
    %24 = arith.sitofp %23 : vector<8x128xi32> to vector<8x128xf32>
    %25 = arith.truncf %24 : vector<8x128xf32> to vector<8x128xbf16>
    %c0_14 = arith.constant 0 : index
    %c0_15 = arith.constant 0 : index
    %26 = vector.load %arg2[%c0_14, %c0_15] : memref<128x128xbf16, #tpu.memory_space<vmem>>, vector<128x128xbf16>
    %c0_16 = arith.constant 0 : index
    %c0_17 = arith.constant 0 : index
    %27 = vector.load %arg3[%c0_16, %c0_17] : memref<8x128xf32, #tpu.memory_space<vmem>>, vector<8x128xf32>
    %cst_18 = arith.constant dense<0.000000e+00> : vector<8x128xf32>
    %28 = tpu.matmul %25, %26, %cst_18 {dimension_numbers = #tpu.dot_dimension_numbers<[1], [0], [0], [1], [0, 0, 1, 1], [], []>} : vector<8x128xbf16>, vector<128x128xbf16>, vector<8x128xf32> -> vector<8x128xf32>
    %29 = arith.addf %28, %27 : vector<8x128xf32>
    %cst_19 = arith.constant 5.000000e-01 : f32
    %30 = vector.broadcast %cst_19 : f32 to vector<8x128xf32>
    %31 = arith.cmpf ogt, %2, %30 : vector<8x128xf32>
    %32 = arith.extui %31 : vector<8x128xi1> to vector<8x128xi32>
    %33 = arith.sitofp %32 : vector<8x128xi32> to vector<8x128xf32>
    %cst_20 = arith.constant 0.949999988 : f32
    %34 = vector.broadcast %cst_20 : f32 to vector<8x128xf32>
    %35 = arith.mulf %34, %2 : vector<8x128xf32>
    %36 = arith.addf %35, %29 : vector<8x128xf32>
    %cst_21 = arith.constant 5.000000e-01 : f32
    %37 = vector.broadcast %cst_21 : f32 to vector<8x128xf32>
    %38 = arith.mulf %33, %37 : vector<8x128xf32>
    %39 = arith.subf %36, %38 : vector<8x128xf32>
    %cst_22 = arith.constant 5.000000e-01 : f32
    %40 = vector.broadcast %cst_22 : f32 to vector<8x128xf32>
    %41 = arith.cmpf ogt, %39, %40 : vector<8x128xf32>
    %42 = arith.extui %41 : vector<8x128xi1> to vector<8x128xi32>
    %43 = arith.sitofp %42 : vector<8x128xi32> to vector<8x128xf32>
    %44 = arith.truncf %43 : vector<8x128xf32> to vector<8x128xbf16>
    %c0_23 = arith.constant 0 : index
    %c0_24 = arith.constant 0 : index
    %45 = vector.load %arg4[%c0_23, %c0_24] : memref<128x128xbf16, #tpu.memory_space<vmem>>, vector<128x128xbf16>
    %c0_25 = arith.constant 0 : index
    %c0_26 = arith.constant 0 : index
    %46 = vector.load %arg5[%c0_25, %c0_26] : memref<8x128xf32, #tpu.memory_space<vmem>>, vector<8x128xf32>
    %cst_27 = arith.constant dense<0.000000e+00> : vector<8x128xf32>
    %47 = tpu.matmul %44, %45, %cst_27 {dimension_numbers = #tpu.dot_dimension_numbers<[1], [0], [0], [1], [0, 0, 1, 1], [], []>} : vector<8x128xbf16>, vector<128x128xbf16>, vector<8x128xf32> -> vector<8x128xf32>
    %48 = arith.addf %47, %46 : vector<8x128xf32>
    %cst_28 = arith.constant 5.000000e-01 : f32
    %49 = vector.broadcast %cst_28 : f32 to vector<8x128xf32>
    %50 = arith.cmpf ogt, %3, %49 : vector<8x128xf32>
    %51 = arith.extui %50 : vector<8x128xi1> to vector<8x128xi32>
    %52 = arith.sitofp %51 : vector<8x128xi32> to vector<8x128xf32>
    %cst_29 = arith.constant 0.949999988 : f32
    %53 = vector.broadcast %cst_29 : f32 to vector<8x128xf32>
    %54 = arith.mulf %53, %3 : vector<8x128xf32>
    %55 = arith.addf %54, %48 : vector<8x128xf32>
    %cst_30 = arith.constant 5.000000e-01 : f32
    %56 = vector.broadcast %cst_30 : f32 to vector<8x128xf32>
    %57 = arith.mulf %52, %56 : vector<8x128xf32>
    %58 = arith.subf %55, %57 : vector<8x128xf32>
    %cst_31 = arith.constant 5.000000e-01 : f32
    %59 = vector.broadcast %cst_31 : f32 to vector<8x128xf32>
    %60 = arith.cmpf ogt, %58, %59 : vector<8x128xf32>
    %61 = arith.extui %60 : vector<8x128xi1> to vector<8x128xi32>
    %62 = arith.sitofp %61 : vector<8x128xi32> to vector<8x128xf32>
    %63 = arith.truncf %62 : vector<8x128xf32> to vector<8x128xbf16>
    %c0_32 = arith.constant 0 : index
    %c0_33 = arith.constant 0 : index
    %64 = vector.load %arg6[%c0_32, %c0_33] : memref<128x128xbf16, #tpu.memory_space<vmem>>, vector<128x128xbf16>
    %c0_34 = arith.constant 0 : index
    %c0_35 = arith.constant 0 : index
    %65 = vector.load %arg7[%c0_34, %c0_35] : memref<8x128xf32, #tpu.memory_space<vmem>>, vector<8x128xf32>
    %cst_36 = arith.constant dense<0.000000e+00> : vector<8x128xf32>
    %66 = tpu.matmul %63, %64, %cst_36 {dimension_numbers = #tpu.dot_dimension_numbers<[1], [0], [0], [1], [0, 0, 1, 1], [], []>} : vector<8x128xbf16>, vector<128x128xbf16>, vector<8x128xf32> -> vector<8x128xf32>
    %67 = arith.addf %66, %65 : vector<8x128xf32>
    %cst_37 = arith.constant 5.000000e-01 : f32
    %68 = vector.broadcast %cst_37 : f32 to vector<8x128xf32>
    %69 = arith.cmpf ogt, %4, %68 : vector<8x128xf32>
    %70 = arith.extui %69 : vector<8x128xi1> to vector<8x128xi32>
    %71 = arith.sitofp %70 : vector<8x128xi32> to vector<8x128xf32>
    %cst_38 = arith.constant 0.949999988 : f32
    %72 = vector.broadcast %cst_38 : f32 to vector<8x128xf32>
    %73 = arith.mulf %72, %4 : vector<8x128xf32>
    %74 = arith.addf %73, %67 : vector<8x128xf32>
    %cst_39 = arith.constant 5.000000e-01 : f32
    %75 = vector.broadcast %cst_39 : f32 to vector<8x128xf32>
    %76 = arith.mulf %71, %75 : vector<8x128xf32>
    %77 = arith.subf %74, %76 : vector<8x128xf32>
    %cst_40 = arith.constant 5.000000e-01 : f32
    %78 = vector.broadcast %cst_40 : f32 to vector<8x128xf32>
    %79 = arith.cmpf ogt, %77, %78 : vector<8x128xf32>
    %80 = arith.extui %79 : vector<8x128xi1> to vector<8x128xi32>
    %81 = arith.sitofp %80 : vector<8x128xi32> to vector<8x128xf32>
    %82 = arith.truncf %81 : vector<8x128xf32> to vector<8x128xbf16>
    %c0_41 = arith.constant 0 : index
    %c0_42 = arith.constant 0 : index
    %83 = vector.load %arg8[%c0_41, %c0_42] : memref<128x128xbf16, #tpu.memory_space<vmem>>, vector<128x128xbf16>
    %c0_43 = arith.constant 0 : index
    %c0_44 = arith.constant 0 : index
    %84 = vector.load %arg9[%c0_43, %c0_44] : memref<8x128xf32, #tpu.memory_space<vmem>>, vector<8x128xf32>
    %cst_45 = arith.constant dense<0.000000e+00> : vector<8x128xf32>
    %85 = tpu.matmul %82, %83, %cst_45 {dimension_numbers = #tpu.dot_dimension_numbers<[1], [0], [0], [1], [0, 0, 1, 1], [], []>} : vector<8x128xbf16>, vector<128x128xbf16>, vector<8x128xf32> -> vector<8x128xf32>
    %86 = arith.addf %85, %84 : vector<8x128xf32>
    %cst_46 = arith.constant 5.000000e-01 : f32
    %87 = vector.broadcast %cst_46 : f32 to vector<8x128xf32>
    %88 = arith.cmpf ogt, %5, %87 : vector<8x128xf32>
    %89 = arith.extui %88 : vector<8x128xi1> to vector<8x128xi32>
    %90 = arith.sitofp %89 : vector<8x128xi32> to vector<8x128xf32>
    %cst_47 = arith.constant 0.949999988 : f32
    %91 = vector.broadcast %cst_47 : f32 to vector<8x128xf32>
    %92 = arith.mulf %91, %5 : vector<8x128xf32>
    %93 = arith.addf %92, %86 : vector<8x128xf32>
    %cst_48 = arith.constant 5.000000e-01 : f32
    %94 = vector.broadcast %cst_48 : f32 to vector<8x128xf32>
    %95 = arith.mulf %90, %94 : vector<8x128xf32>
    %96 = arith.subf %93, %95 : vector<8x128xf32>
    %cst_49 = arith.constant 5.000000e-01 : f32
    %97 = vector.broadcast %cst_49 : f32 to vector<8x128xf32>
    %98 = arith.cmpf ogt, %96, %97 : vector<8x128xf32>
    %99 = arith.extui %98 : vector<8x128xi1> to vector<8x128xi32>
    %100 = arith.sitofp %99 : vector<8x128xi32> to vector<8x128xf32>
    %101 = arith.truncf %100 : vector<8x128xf32> to vector<8x128xbf16>
    %c0_50 = arith.constant 0 : index
    %c0_51 = arith.constant 0 : index
    %102 = vector.load %arg10[%c0_50, %c0_51] : memref<128x128xbf16, #tpu.memory_space<vmem>>, vector<128x128xbf16>
    %c0_52 = arith.constant 0 : index
    %c0_53 = arith.constant 0 : index
    %103 = vector.load %arg11[%c0_52, %c0_53] : memref<8x128xf32, #tpu.memory_space<vmem>>, vector<8x128xf32>
    %cst_54 = arith.constant dense<0.000000e+00> : vector<8x128xf32>
    %104 = tpu.matmul %101, %102, %cst_54 {dimension_numbers = #tpu.dot_dimension_numbers<[1], [0], [0], [1], [0, 0, 1, 1], [], []>} : vector<8x128xbf16>, vector<128x128xbf16>, vector<8x128xf32> -> vector<8x128xf32>
    %105 = arith.addf %104, %103 : vector<8x128xf32>
    %cst_55 = arith.constant 5.000000e-01 : f32
    %106 = vector.broadcast %cst_55 : f32 to vector<8x128xf32>
    %107 = arith.cmpf ogt, %6, %106 : vector<8x128xf32>
    %108 = arith.extui %107 : vector<8x128xi1> to vector<8x128xi32>
    %109 = arith.sitofp %108 : vector<8x128xi32> to vector<8x128xf32>
    %cst_56 = arith.constant 0.949999988 : f32
    %110 = vector.broadcast %cst_56 : f32 to vector<8x128xf32>
    %111 = arith.mulf %110, %6 : vector<8x128xf32>
    %112 = arith.addf %111, %105 : vector<8x128xf32>
    %cst_57 = arith.constant 5.000000e-01 : f32
    %113 = vector.broadcast %cst_57 : f32 to vector<8x128xf32>
    %114 = arith.mulf %109, %113 : vector<8x128xf32>
    %115 = arith.subf %112, %114 : vector<8x128xf32>
    %cst_58 = arith.constant 5.000000e-01 : f32
    %116 = vector.broadcast %cst_58 : f32 to vector<8x128xf32>
    %117 = arith.cmpf ogt, %115, %116 : vector<8x128xf32>
    %118 = arith.extui %117 : vector<8x128xi1> to vector<8x128xi32>
    %119 = arith.sitofp %118 : vector<8x128xi32> to vector<8x128xf32>
    %120 = arith.truncf %119 : vector<8x128xf32> to vector<8x128xbf16>
    %c0_59 = arith.constant 0 : index
    %c0_60 = arith.constant 0 : index
    %121 = vector.load %arg12[%c0_59, %c0_60] : memref<128x128xbf16, #tpu.memory_space<vmem>>, vector<128x128xbf16>
    %c0_61 = arith.constant 0 : index
    %c0_62 = arith.constant 0 : index
    %122 = vector.load %arg13[%c0_61, %c0_62] : memref<8x128xf32, #tpu.memory_space<vmem>>, vector<8x128xf32>
    %cst_63 = arith.constant dense<0.000000e+00> : vector<8x128xf32>
    %123 = tpu.matmul %120, %121, %cst_63 {dimension_numbers = #tpu.dot_dimension_numbers<[1], [0], [0], [1], [0, 0, 1, 1], [], []>} : vector<8x128xbf16>, vector<128x128xbf16>, vector<8x128xf32> -> vector<8x128xf32>
    %124 = arith.addf %123, %122 : vector<8x128xf32>
    %cst_64 = arith.constant 5.000000e-01 : f32
    %125 = vector.broadcast %cst_64 : f32 to vector<8x128xf32>
    %126 = arith.cmpf ogt, %7, %125 : vector<8x128xf32>
    %127 = arith.extui %126 : vector<8x128xi1> to vector<8x128xi32>
    %128 = arith.sitofp %127 : vector<8x128xi32> to vector<8x128xf32>
    %cst_65 = arith.constant 0.949999988 : f32
    %129 = vector.broadcast %cst_65 : f32 to vector<8x128xf32>
    %130 = arith.mulf %129, %7 : vector<8x128xf32>
    %131 = arith.addf %130, %124 : vector<8x128xf32>
    %cst_66 = arith.constant 5.000000e-01 : f32
    %132 = vector.broadcast %cst_66 : f32 to vector<8x128xf32>
    %133 = arith.mulf %128, %132 : vector<8x128xf32>
    %134 = arith.subf %131, %133 : vector<8x128xf32>
    %cst_67 = arith.constant 5.000000e-01 : f32
    %135 = vector.broadcast %cst_67 : f32 to vector<8x128xf32>
    %136 = arith.cmpf ogt, %134, %135 : vector<8x128xf32>
    %137 = arith.extui %136 : vector<8x128xi1> to vector<8x128xi32>
    %138 = arith.sitofp %137 : vector<8x128xi32> to vector<8x128xf32>
    %139 = arith.truncf %138 : vector<8x128xf32> to vector<8x128xbf16>
    %c0_68 = arith.constant 0 : index
    %c0_69 = arith.constant 0 : index
    %140 = vector.load %arg14[%c0_68, %c0_69] : memref<128x128xbf16, #tpu.memory_space<vmem>>, vector<128x128xbf16>
    %c0_70 = arith.constant 0 : index
    %c0_71 = arith.constant 0 : index
    %141 = vector.load %arg15[%c0_70, %c0_71] : memref<8x128xf32, #tpu.memory_space<vmem>>, vector<8x128xf32>
    %cst_72 = arith.constant dense<0.000000e+00> : vector<8x128xf32>
    %142 = tpu.matmul %139, %140, %cst_72 {dimension_numbers = #tpu.dot_dimension_numbers<[1], [0], [0], [1], [0, 0, 1, 1], [], []>} : vector<8x128xbf16>, vector<128x128xbf16>, vector<8x128xf32> -> vector<8x128xf32>
    %143 = arith.addf %142, %141 : vector<8x128xf32>
    %cst_73 = arith.constant 5.000000e-01 : f32
    %144 = vector.broadcast %cst_73 : f32 to vector<8x128xf32>
    %145 = arith.cmpf ogt, %8, %144 : vector<8x128xf32>
    %146 = arith.extui %145 : vector<8x128xi1> to vector<8x128xi32>
    %147 = arith.sitofp %146 : vector<8x128xi32> to vector<8x128xf32>
    %cst_74 = arith.constant 0.949999988 : f32
    %148 = vector.broadcast %cst_74 : f32 to vector<8x128xf32>
    %149 = arith.mulf %148, %8 : vector<8x128xf32>
    %150 = arith.addf %149, %143 : vector<8x128xf32>
    %cst_75 = arith.constant 5.000000e-01 : f32
    %151 = vector.broadcast %cst_75 : f32 to vector<8x128xf32>
    %152 = arith.mulf %147, %151 : vector<8x128xf32>
    %153 = arith.subf %150, %152 : vector<8x128xf32>
    %cst_76 = arith.constant 5.000000e-01 : f32
    %154 = vector.broadcast %cst_76 : f32 to vector<8x128xf32>
    %155 = arith.cmpf ogt, %153, %154 : vector<8x128xf32>
    %156 = arith.extui %155 : vector<8x128xi1> to vector<8x128xi32>
    %157 = arith.sitofp %156 : vector<8x128xi32> to vector<8x128xf32>
    %158 = arith.truncf %157 : vector<8x128xf32> to vector<8x128xbf16>
    %c0_77 = arith.constant 0 : index
    %c0_78 = arith.constant 0 : index
    %159 = vector.load %arg16[%c0_77, %c0_78] : memref<128x128xbf16, #tpu.memory_space<vmem>>, vector<128x128xbf16>
    %c0_79 = arith.constant 0 : index
    %c0_80 = arith.constant 0 : index
    %160 = vector.load %arg17[%c0_79, %c0_80] : memref<8x128xf32, #tpu.memory_space<vmem>>, vector<8x128xf32>
    %cst_81 = arith.constant dense<0.000000e+00> : vector<8x128xf32>
    %161 = tpu.matmul %158, %159, %cst_81 {dimension_numbers = #tpu.dot_dimension_numbers<[1], [0], [0], [1], [0, 0, 1, 1], [], []>} : vector<8x128xbf16>, vector<128x128xbf16>, vector<8x128xf32> -> vector<8x128xf32>
    %162 = arith.addf %161, %160 : vector<8x128xf32>
    %cst_82 = arith.constant 5.000000e-01 : f32
    %163 = vector.broadcast %cst_82 : f32 to vector<8x128xf32>
    %164 = arith.cmpf ogt, %9, %163 : vector<8x128xf32>
    %165 = arith.extui %164 : vector<8x128xi1> to vector<8x128xi32>
    %166 = arith.sitofp %165 : vector<8x128xi32> to vector<8x128xf32>
    %cst_83 = arith.constant 0.949999988 : f32
    %167 = vector.broadcast %cst_83 : f32 to vector<8x128xf32>
    %168 = arith.mulf %167, %9 : vector<8x128xf32>
    %169 = arith.addf %168, %162 : vector<8x128xf32>
    %cst_84 = arith.constant 5.000000e-01 : f32
    %170 = vector.broadcast %cst_84 : f32 to vector<8x128xf32>
    %171 = arith.mulf %166, %170 : vector<8x128xf32>
    %172 = arith.subf %169, %171 : vector<8x128xf32>
    %cst_85 = arith.constant 5.000000e-01 : f32
    %173 = vector.broadcast %cst_85 : f32 to vector<8x128xf32>
    %174 = arith.cmpf ogt, %172, %173 : vector<8x128xf32>
    %175 = arith.extui %174 : vector<8x128xi1> to vector<8x128xi32>
    %176 = arith.sitofp %175 : vector<8x128xi32> to vector<8x128xf32>
    %177 = arith.truncf %176 : vector<8x128xf32> to vector<8x128xbf16>
    %c0_86 = arith.constant 0 : index
    %c0_87 = arith.constant 0 : index
    %178 = vector.load %arg18[%c0_86, %c0_87] : memref<128x128xbf16, #tpu.memory_space<vmem>>, vector<128x128xbf16>
    %c0_88 = arith.constant 0 : index
    %c0_89 = arith.constant 0 : index
    %179 = vector.load %arg19[%c0_88, %c0_89] : memref<8x128xf32, #tpu.memory_space<vmem>>, vector<8x128xf32>
    %cst_90 = arith.constant dense<0.000000e+00> : vector<8x128xf32>
    %180 = tpu.matmul %177, %178, %cst_90 {dimension_numbers = #tpu.dot_dimension_numbers<[1], [0], [0], [1], [0, 0, 1, 1], [], []>} : vector<8x128xbf16>, vector<128x128xbf16>, vector<8x128xf32> -> vector<8x128xf32>
    %181 = arith.addf %180, %179 : vector<8x128xf32>
    %cst_91 = arith.constant 5.000000e-01 : f32
    %182 = vector.broadcast %cst_91 : f32 to vector<8x128xf32>
    %183 = arith.cmpf ogt, %10, %182 : vector<8x128xf32>
    %184 = arith.extui %183 : vector<8x128xi1> to vector<8x128xi32>
    %185 = arith.sitofp %184 : vector<8x128xi32> to vector<8x128xf32>
    %cst_92 = arith.constant 0.949999988 : f32
    %186 = vector.broadcast %cst_92 : f32 to vector<8x128xf32>
    %187 = arith.mulf %186, %10 : vector<8x128xf32>
    %188 = arith.addf %187, %181 : vector<8x128xf32>
    %cst_93 = arith.constant 5.000000e-01 : f32
    %189 = vector.broadcast %cst_93 : f32 to vector<8x128xf32>
    %190 = arith.mulf %185, %189 : vector<8x128xf32>
    %191 = arith.subf %188, %190 : vector<8x128xf32>
    %cst_94 = arith.constant 5.000000e-01 : f32
    %192 = vector.broadcast %cst_94 : f32 to vector<8x128xf32>
    %193 = arith.cmpf ogt, %191, %192 : vector<8x128xf32>
    %194 = arith.extui %193 : vector<8x128xi1> to vector<8x128xi32>
    %195 = arith.sitofp %194 : vector<8x128xi32> to vector<8x128xf32>
    %196 = arith.truncf %195 : vector<8x128xf32> to vector<8x128xbf16>
    %197 = arith.extf %196 : vector<8x128xbf16> to vector<8x128xf32>
    %c0_95 = arith.constant 0 : index
    %c0_96 = arith.constant 0 : index
    %c0_97 = arith.constant 0 : index
    %198 = vector.load %arg20[%c0_95, %c0_96, %c0_97] : memref<5x8x128xf32, #tpu.memory_space<vmem>>, vector<1x8x128xf32>
    %199 = vector.shape_cast %198 : vector<1x8x128xf32> to vector<8x128xf32>
    %200 = vector.shape_cast %197 : vector<8x128xf32> to vector<1x8x128xf32>
    tpu.vector_store %arg20[%c0_95, %c0_96, %c0_97], %200 {strides = array<i32>} : memref<5x8x128xf32, #tpu.memory_space<vmem>>, vector<1x8x128xf32>,
    %c0_98 = arith.constant 0 : index
    %c0_99 = arith.constant 0 : index
    %c0_100 = arith.constant 0 : index
    %201 = vector.load %arg21[%c0_98, %c0_99, %c0_100] : memref<5x8x128xf32, #tpu.memory_space<vmem>>, vector<1x8x128xf32>
    %202 = vector.shape_cast %201 : vector<1x8x128xf32> to vector<8x128xf32>
    %203 = vector.shape_cast %191 : vector<8x128xf32> to vector<1x8x128xf32>
    tpu.vector_store %arg21[%c0_98, %c0_99, %c0_100], %203 {strides = array<i32>} : memref<5x8x128xf32, #tpu.memory_space<vmem>>, vector<1x8x128xf32>,
    %cst_101 = arith.constant 5.000000e-01 : f32
    %204 = vector.broadcast %cst_101 : f32 to vector<8x128xf32>
    %205 = arith.cmpf ogt, %20, %204 : vector<8x128xf32>
    %206 = arith.extui %205 : vector<8x128xi1> to vector<8x128xi32>
    %207 = arith.sitofp %206 : vector<8x128xi32> to vector<8x128xf32>
    %cst_102 = arith.constant 0.949999988 : f32
    %208 = vector.broadcast %cst_102 : f32 to vector<8x128xf32>
    %209 = arith.mulf %208, %20 : vector<8x128xf32>
    %210 = arith.addf %209, %0 : vector<8x128xf32>
    %cst_103 = arith.constant 5.000000e-01 : f32
    %211 = vector.broadcast %cst_103 : f32 to vector<8x128xf32>
    %212 = arith.mulf %207, %211 : vector<8x128xf32>
    %213 = arith.subf %210, %212 : vector<8x128xf32>
    %cst_104 = arith.constant 5.000000e-01 : f32
    %214 = vector.broadcast %cst_104 : f32 to vector<8x128xf32>
    %215 = arith.cmpf ogt, %213, %214 : vector<8x128xf32>
    %216 = arith.extui %215 : vector<8x128xi1> to vector<8x128xi32>
    %217 = arith.sitofp %216 : vector<8x128xi32> to vector<8x128xf32>
    %218 = arith.truncf %217 : vector<8x128xf32> to vector<8x128xbf16>
    %c0_105 = arith.constant 0 : index
    %c0_106 = arith.constant 0 : index
    %219 = vector.load %arg2[%c0_105, %c0_106] : memref<128x128xbf16, #tpu.memory_space<vmem>>, vector<128x128xbf16>
    %c0_107 = arith.constant 0 : index
    %c0_108 = arith.constant 0 : index
    %220 = vector.load %arg3[%c0_107, %c0_108] : memref<8x128xf32, #tpu.memory_space<vmem>>, vector<8x128xf32>
    %cst_109 = arith.constant dense<0.000000e+00> : vector<8x128xf32>
    %221 = tpu.matmul %218, %219, %cst_109 {dimension_numbers = #tpu.dot_dimension_numbers<[1], [0], [0], [1], [0, 0, 1, 1], [], []>} : vector<8x128xbf16>, vector<128x128xbf16>, vector<8x128xf32> -> vector<8x128xf32>
    %222 = arith.addf %221, %220 : vector<8x128xf32>
    %cst_110 = arith.constant 5.000000e-01 : f32
    %223 = vector.broadcast %cst_110 : f32 to vector<8x128xf32>
    %224 = arith.cmpf ogt, %39, %223 : vector<8x128xf32>
    %225 = arith.extui %224 : vector<8x128xi1> to vector<8x128xi32>
    %226 = arith.sitofp %225 : vector<8x128xi32> to vector<8x128xf32>
    %cst_111 = arith.constant 0.949999988 : f32
    %227 = vector.broadcast %cst_111 : f32 to vector<8x128xf32>
    %228 = arith.mulf %227, %39 : vector<8x128xf32>
    %229 = arith.addf %228, %222 : vector<8x128xf32>
    %cst_112 = arith.constant 5.000000e-01 : f32
    %230 = vector.broadcast %cst_112 : f32 to vector<8x128xf32>
    %231 = arith.mulf %226, %230 : vector<8x128xf32>
    %232 = arith.subf %229, %231 : vector<8x128xf32>
    %cst_113 = arith.constant 5.000000e-01 : f32
    %233 = vector.broadcast %cst_113 : f32 to vector<8x128xf32>
    %234 = arith.cmpf ogt, %232, %233 : vector<8x128xf32>
    %235 = arith.extui %234 : vector<8x128xi1> to vector<8x128xi32>
    %236 = arith.sitofp %235 : vector<8x128xi32> to vector<8x128xf32>
    %237 = arith.truncf %236 : vector<8x128xf32> to vector<8x128xbf16>
    %c0_114 = arith.constant 0 : index
    %c0_115 = arith.constant 0 : index
    %238 = vector.load %arg4[%c0_114, %c0_115] : memref<128x128xbf16, #tpu.memory_space<vmem>>, vector<128x128xbf16>
    %c0_116 = arith.constant 0 : index
    %c0_117 = arith.constant 0 : index
    %239 = vector.load %arg5[%c0_116, %c0_117] : memref<8x128xf32, #tpu.memory_space<vmem>>, vector<8x128xf32>
    %cst_118 = arith.constant dense<0.000000e+00> : vector<8x128xf32>
    %240 = tpu.matmul %237, %238, %cst_118 {dimension_numbers = #tpu.dot_dimension_numbers<[1], [0], [0], [1], [0, 0, 1, 1], [], []>} : vector<8x128xbf16>, vector<128x128xbf16>, vector<8x128xf32> -> vector<8x128xf32>
    %241 = arith.addf %240, %239 : vector<8x128xf32>
    %cst_119 = arith.constant 5.000000e-01 : f32
    %242 = vector.broadcast %cst_119 : f32 to vector<8x128xf32>
    %243 = arith.cmpf ogt, %58, %242 : vector<8x128xf32>
    %244 = arith.extui %243 : vector<8x128xi1> to vector<8x128xi32>
    %245 = arith.sitofp %244 : vector<8x128xi32> to vector<8x128xf32>
    %cst_120 = arith.constant 0.949999988 : f32
    %246 = vector.broadcast %cst_120 : f32 to vector<8x128xf32>
    %247 = arith.mulf %246, %58 : vector<8x128xf32>
    %248 = arith.addf %247, %241 : vector<8x128xf32>
    %cst_121 = arith.constant 5.000000e-01 : f32
    %249 = vector.broadcast %cst_121 : f32 to vector<8x128xf32>
    %250 = arith.mulf %245, %249 : vector<8x128xf32>
    %251 = arith.subf %248, %250 : vector<8x128xf32>
    %cst_122 = arith.constant 5.000000e-01 : f32
    %252 = vector.broadcast %cst_122 : f32 to vector<8x128xf32>
    %253 = arith.cmpf ogt, %251, %252 : vector<8x128xf32>
    %254 = arith.extui %253 : vector<8x128xi1> to vector<8x128xi32>
    %255 = arith.sitofp %254 : vector<8x128xi32> to vector<8x128xf32>
    %256 = arith.truncf %255 : vector<8x128xf32> to vector<8x128xbf16>
    %c0_123 = arith.constant 0 : index
    %c0_124 = arith.constant 0 : index
    %257 = vector.load %arg6[%c0_123, %c0_124] : memref<128x128xbf16, #tpu.memory_space<vmem>>, vector<128x128xbf16>
    %c0_125 = arith.constant 0 : index
    %c0_126 = arith.constant 0 : index
    %258 = vector.load %arg7[%c0_125, %c0_126] : memref<8x128xf32, #tpu.memory_space<vmem>>, vector<8x128xf32>
    %cst_127 = arith.constant dense<0.000000e+00> : vector<8x128xf32>
    %259 = tpu.matmul %256, %257, %cst_127 {dimension_numbers = #tpu.dot_dimension_numbers<[1], [0], [0], [1], [0, 0, 1, 1], [], []>} : vector<8x128xbf16>, vector<128x128xbf16>, vector<8x128xf32> -> vector<8x128xf32>
    %260 = arith.addf %259, %258 : vector<8x128xf32>
    %cst_128 = arith.constant 5.000000e-01 : f32
    %261 = vector.broadcast %cst_128 : f32 to vector<8x128xf32>
    %262 = arith.cmpf ogt, %77, %261 : vector<8x128xf32>
    %263 = arith.extui %262 : vector<8x128xi1> to vector<8x128xi32>
    %264 = arith.sitofp %263 : vector<8x128xi32> to vector<8x128xf32>
    %cst_129 = arith.constant 0.949999988 : f32
    %265 = vector.broadcast %cst_129 : f32 to vector<8x128xf32>
    %266 = arith.mulf %265, %77 : vector<8x128xf32>
    %267 = arith.addf %266, %260 : vector<8x128xf32>
    %cst_130 = arith.constant 5.000000e-01 : f32
    %268 = vector.broadcast %cst_130 : f32 to vector<8x128xf32>
    %269 = arith.mulf %264, %268 : vector<8x128xf32>
    %270 = arith.subf %267, %269 : vector<8x128xf32>
    %cst_131 = arith.constant 5.000000e-01 : f32
    %271 = vector.broadcast %cst_131 : f32 to vector<8x128xf32>
    %272 = arith.cmpf ogt, %270, %271 : vector<8x128xf32>
    %273 = arith.extui %272 : vector<8x128xi1> to vector<8x128xi32>
    %274 = arith.sitofp %273 : vector<8x128xi32> to vector<8x128xf32>
    %275 = arith.truncf %274 : vector<8x128xf32> to vector<8x128xbf16>
    %c0_132 = arith.constant 0 : index
    %c0_133 = arith.constant 0 : index
    %276 = vector.load %arg8[%c0_132, %c0_133] : memref<128x128xbf16, #tpu.memory_space<vmem>>, vector<128x128xbf16>
    %c0_134 = arith.constant 0 : index
    %c0_135 = arith.constant 0 : index
    %277 = vector.load %arg9[%c0_134, %c0_135] : memref<8x128xf32, #tpu.memory_space<vmem>>, vector<8x128xf32>
    %cst_136 = arith.constant dense<0.000000e+00> : vector<8x128xf32>
    %278 = tpu.matmul %275, %276, %cst_136 {dimension_numbers = #tpu.dot_dimension_numbers<[1], [0], [0], [1], [0, 0, 1, 1], [], []>} : vector<8x128xbf16>, vector<128x128xbf16>, vector<8x128xf32> -> vector<8x128xf32>
    %279 = arith.addf %278, %277 : vector<8x128xf32>
    %cst_137 = arith.constant 5.000000e-01 : f32
    %280 = vector.broadcast %cst_137 : f32 to vector<8x128xf32>
    %281 = arith.cmpf ogt, %96, %280 : vector<8x128xf32>
    %282 = arith.extui %281 : vector<8x128xi1> to vector<8x128xi32>
    %283 = arith.sitofp %282 : vector<8x128xi32> to vector<8x128xf32>
    %cst_138 = arith.constant 0.949999988 : f32
    %284 = vector.broadcast %cst_138 : f32 to vector<8x128xf32>
    %285 = arith.mulf %284, %96 : vector<8x128xf32>
    %286 = arith.addf %285, %279 : vector<8x128xf32>
    %cst_139 = arith.constant 5.000000e-01 : f32
    %287 = vector.broadcast %cst_139 : f32 to vector<8x128xf32>
    %288 = arith.mulf %283, %287 : vector<8x128xf32>
    %289 = arith.subf %286, %288 : vector<8x128xf32>
    %cst_140 = arith.constant 5.000000e-01 : f32
    %290 = vector.broadcast %cst_140 : f32 to vector<8x128xf32>
    %291 = arith.cmpf ogt, %289, %290 : vector<8x128xf32>
    %292 = arith.extui %291 : vector<8x128xi1> to vector<8x128xi32>
    %293 = arith.sitofp %292 : vector<8x128xi32> to vector<8x128xf32>
    %294 = arith.truncf %293 : vector<8x128xf32> to vector<8x128xbf16>
    %c0_141 = arith.constant 0 : index
    %c0_142 = arith.constant 0 : index
    %295 = vector.load %arg10[%c0_141, %c0_142] : memref<128x128xbf16, #tpu.memory_space<vmem>>, vector<128x128xbf16>
    %c0_143 = arith.constant 0 : index
    %c0_144 = arith.constant 0 : index
    %296 = vector.load %arg11[%c0_143, %c0_144] : memref<8x128xf32, #tpu.memory_space<vmem>>, vector<8x128xf32>
    %cst_145 = arith.constant dense<0.000000e+00> : vector<8x128xf32>
    %297 = tpu.matmul %294, %295, %cst_145 {dimension_numbers = #tpu.dot_dimension_numbers<[1], [0], [0], [1], [0, 0, 1, 1], [], []>} : vector<8x128xbf16>, vector<128x128xbf16>, vector<8x128xf32> -> vector<8x128xf32>
    %298 = arith.addf %297, %296 : vector<8x128xf32>
    %cst_146 = arith.constant 5.000000e-01 : f32
    %299 = vector.broadcast %cst_146 : f32 to vector<8x128xf32>
    %300 = arith.cmpf ogt, %115, %299 : vector<8x128xf32>
    %301 = arith.extui %300 : vector<8x128xi1> to vector<8x128xi32>
    %302 = arith.sitofp %301 : vector<8x128xi32> to vector<8x128xf32>
    %cst_147 = arith.constant 0.949999988 : f32
    %303 = vector.broadcast %cst_147 : f32 to vector<8x128xf32>
    %304 = arith.mulf %303, %115 : vector<8x128xf32>
    %305 = arith.addf %304, %298 : vector<8x128xf32>
    %cst_148 = arith.constant 5.000000e-01 : f32
    %306 = vector.broadcast %cst_148 : f32 to vector<8x128xf32>
    %307 = arith.mulf %302, %306 : vector<8x128xf32>
    %308 = arith.subf %305, %307 : vector<8x128xf32>
    %cst_149 = arith.constant 5.000000e-01 : f32
    %309 = vector.broadcast %cst_149 : f32 to vector<8x128xf32>
    %310 = arith.cmpf ogt, %308, %309 : vector<8x128xf32>
    %311 = arith.extui %310 : vector<8x128xi1> to vector<8x128xi32>
    %312 = arith.sitofp %311 : vector<8x128xi32> to vector<8x128xf32>
    %313 = arith.truncf %312 : vector<8x128xf32> to vector<8x128xbf16>
    %c0_150 = arith.constant 0 : index
    %c0_151 = arith.constant 0 : index
    %314 = vector.load %arg12[%c0_150, %c0_151] : memref<128x128xbf16, #tpu.memory_space<vmem>>, vector<128x128xbf16>
    %c0_152 = arith.constant 0 : index
    %c0_153 = arith.constant 0 : index
    %315 = vector.load %arg13[%c0_152, %c0_153] : memref<8x128xf32, #tpu.memory_space<vmem>>, vector<8x128xf32>
    %cst_154 = arith.constant dense<0.000000e+00> : vector<8x128xf32>
    %316 = tpu.matmul %313, %314, %cst_154 {dimension_numbers = #tpu.dot_dimension_numbers<[1], [0], [0], [1], [0, 0, 1, 1], [], []>} : vector<8x128xbf16>, vector<128x128xbf16>, vector<8x128xf32> -> vector<8x128xf32>
    %317 = arith.addf %316, %315 : vector<8x128xf32>
    %cst_155 = arith.constant 5.000000e-01 : f32
    %318 = vector.broadcast %cst_155 : f32 to vector<8x128xf32>
    %319 = arith.cmpf ogt, %134, %318 : vector<8x128xf32>
    %320 = arith.extui %319 : vector<8x128xi1> to vector<8x128xi32>
    %321 = arith.sitofp %320 : vector<8x128xi32> to vector<8x128xf32>
    %cst_156 = arith.constant 0.949999988 : f32
    %322 = vector.broadcast %cst_156 : f32 to vector<8x128xf32>
    %323 = arith.mulf %322, %134 : vector<8x128xf32>
    %324 = arith.addf %323, %317 : vector<8x128xf32>
    %cst_157 = arith.constant 5.000000e-01 : f32
    %325 = vector.broadcast %cst_157 : f32 to vector<8x128xf32>
    %326 = arith.mulf %321, %325 : vector<8x128xf32>
    %327 = arith.subf %324, %326 : vector<8x128xf32>
    %cst_158 = arith.constant 5.000000e-01 : f32
    %328 = vector.broadcast %cst_158 : f32 to vector<8x128xf32>
    %329 = arith.cmpf ogt, %327, %328 : vector<8x128xf32>
    %330 = arith.extui %329 : vector<8x128xi1> to vector<8x128xi32>
    %331 = arith.sitofp %330 : vector<8x128xi32> to vector<8x128xf32>
    %332 = arith.truncf %331 : vector<8x128xf32> to vector<8x128xbf16>
    %c0_159 = arith.constant 0 : index
    %c0_160 = arith.constant 0 : index
    %333 = vector.load %arg14[%c0_159, %c0_160] : memref<128x128xbf16, #tpu.memory_space<vmem>>, vector<128x128xbf16>
    %c0_161 = arith.constant 0 : index
    %c0_162 = arith.constant 0 : index
    %334 = vector.load %arg15[%c0_161, %c0_162] : memref<8x128xf32, #tpu.memory_space<vmem>>, vector<8x128xf32>
    %cst_163 = arith.constant dense<0.000000e+00> : vector<8x128xf32>
    %335 = tpu.matmul %332, %333, %cst_163 {dimension_numbers = #tpu.dot_dimension_numbers<[1], [0], [0], [1], [0, 0, 1, 1], [], []>} : vector<8x128xbf16>, vector<128x128xbf16>, vector<8x128xf32> -> vector<8x128xf32>
    %336 = arith.addf %335, %334 : vector<8x128xf32>
    %cst_164 = arith.constant 5.000000e-01 : f32
    %337 = vector.broadcast %cst_164 : f32 to vector<8x128xf32>
    %338 = arith.cmpf ogt, %153, %337 : vector<8x128xf32>
    %339 = arith.extui %338 : vector<8x128xi1> to vector<8x128xi32>
    %340 = arith.sitofp %339 : vector<8x128xi32> to vector<8x128xf32>
    %cst_165 = arith.constant 0.949999988 : f32
    %341 = vector.broadcast %cst_165 : f32 to vector<8x128xf32>
    %342 = arith.mulf %341, %153 : vector<8x128xf32>
    %343 = arith.addf %342, %336 : vector<8x128xf32>
    %cst_166 = arith.constant 5.000000e-01 : f32
    %344 = vector.broadcast %cst_166 : f32 to vector<8x128xf32>
    %345 = arith.mulf %340, %344 : vector<8x128xf32>
    %346 = arith.subf %343, %345 : vector<8x128xf32>
    %cst_167 = arith.constant 5.000000e-01 : f32
    %347 = vector.broadcast %cst_167 : f32 to vector<8x128xf32>
    %348 = arith.cmpf ogt, %346, %347 : vector<8x128xf32>
    %349 = arith.extui %348 : vector<8x128xi1> to vector<8x128xi32>
    %350 = arith.sitofp %349 : vector<8x128xi32> to vector<8x128xf32>
    %351 = arith.truncf %350 : vector<8x128xf32> to vector<8x128xbf16>
    %c0_168 = arith.constant 0 : index
    %c0_169 = arith.constant 0 : index
    %352 = vector.load %arg16[%c0_168, %c0_169] : memref<128x128xbf16, #tpu.memory_space<vmem>>, vector<128x128xbf16>
    %c0_170 = arith.constant 0 : index
    %c0_171 = arith.constant 0 : index
    %353 = vector.load %arg17[%c0_170, %c0_171] : memref<8x128xf32, #tpu.memory_space<vmem>>, vector<8x128xf32>
    %cst_172 = arith.constant dense<0.000000e+00> : vector<8x128xf32>
    %354 = tpu.matmul %351, %352, %cst_172 {dimension_numbers = #tpu.dot_dimension_numbers<[1], [0], [0], [1], [0, 0, 1, 1], [], []>} : vector<8x128xbf16>, vector<128x128xbf16>, vector<8x128xf32> -> vector<8x128xf32>
    %355 = arith.addf %354, %353 : vector<8x128xf32>
    %cst_173 = arith.constant 5.000000e-01 : f32
    %356 = vector.broadcast %cst_173 : f32 to vector<8x128xf32>
    %357 = arith.cmpf ogt, %172, %356 : vector<8x128xf32>
    %358 = arith.extui %357 : vector<8x128xi1> to vector<8x128xi32>
    %359 = arith.sitofp %358 : vector<8x128xi32> to vector<8x128xf32>
    %cst_174 = arith.constant 0.949999988 : f32
    %360 = vector.broadcast %cst_174 : f32 to vector<8x128xf32>
    %361 = arith.mulf %360, %172 : vector<8x128xf32>
    %362 = arith.addf %361, %355 : vector<8x128xf32>
    %cst_175 = arith.constant 5.000000e-01 : f32
    %363 = vector.broadcast %cst_175 : f32 to vector<8x128xf32>
    %364 = arith.mulf %359, %363 : vector<8x128xf32>
    %365 = arith.subf %362, %364 : vector<8x128xf32>
    %cst_176 = arith.constant 5.000000e-01 : f32
    %366 = vector.broadcast %cst_176 : f32 to vector<8x128xf32>
    %367 = arith.cmpf ogt, %365, %366 : vector<8x128xf32>
    %368 = arith.extui %367 : vector<8x128xi1> to vector<8x128xi32>
    %369 = arith.sitofp %368 : vector<8x128xi32> to vector<8x128xf32>
    %370 = arith.truncf %369 : vector<8x128xf32> to vector<8x128xbf16>
    %c0_177 = arith.constant 0 : index
    %c0_178 = arith.constant 0 : index
    %371 = vector.load %arg18[%c0_177, %c0_178] : memref<128x128xbf16, #tpu.memory_space<vmem>>, vector<128x128xbf16>
    %c0_179 = arith.constant 0 : index
    %c0_180 = arith.constant 0 : index
    %372 = vector.load %arg19[%c0_179, %c0_180] : memref<8x128xf32, #tpu.memory_space<vmem>>, vector<8x128xf32>
    %cst_181 = arith.constant dense<0.000000e+00> : vector<8x128xf32>
    %373 = tpu.matmul %370, %371, %cst_181 {dimension_numbers = #tpu.dot_dimension_numbers<[1], [0], [0], [1], [0, 0, 1, 1], [], []>} : vector<8x128xbf16>, vector<128x128xbf16>, vector<8x128xf32> -> vector<8x128xf32>
    %374 = arith.addf %373, %372 : vector<8x128xf32>
    %cst_182 = arith.constant 5.000000e-01 : f32
    %375 = vector.broadcast %cst_182 : f32 to vector<8x128xf32>
    %376 = arith.cmpf ogt, %191, %375 : vector<8x128xf32>
    %377 = arith.extui %376 : vector<8x128xi1> to vector<8x128xi32>
    %378 = arith.sitofp %377 : vector<8x128xi32> to vector<8x128xf32>
    %cst_183 = arith.constant 0.949999988 : f32
    %379 = vector.broadcast %cst_183 : f32 to vector<8x128xf32>
    %380 = arith.mulf %379, %191 : vector<8x128xf32>
    %381 = arith.addf %380, %374 : vector<8x128xf32>
    %cst_184 = arith.constant 5.000000e-01 : f32
    %382 = vector.broadcast %cst_184 : f32 to vector<8x128xf32>
    %383 = arith.mulf %378, %382 : vector<8x128xf32>
    %384 = arith.subf %381, %383 : vector<8x128xf32>
    %cst_185 = arith.constant 5.000000e-01 : f32
    %385 = vector.broadcast %cst_185 : f32 to vector<8x128xf32>
    %386 = arith.cmpf ogt, %384, %385 : vector<8x128xf32>
    %387 = arith.extui %386 : vector<8x128xi1> to vector<8x128xi32>
    %388 = arith.sitofp %387 : vector<8x128xi32> to vector<8x128xf32>
    %389 = arith.truncf %388 : vector<8x128xf32> to vector<8x128xbf16>
    %390 = arith.extf %389 : vector<8x128xbf16> to vector<8x128xf32>
    %c1 = arith.constant 1 : index
    %c0_186 = arith.constant 0 : index
    %c0_187 = arith.constant 0 : index
    %391 = vector.load %arg20[%c1, %c0_186, %c0_187] : memref<5x8x128xf32, #tpu.memory_space<vmem>>, vector<1x8x128xf32>
    %392 = vector.shape_cast %391 : vector<1x8x128xf32> to vector<8x128xf32>
    %393 = vector.shape_cast %390 : vector<8x128xf32> to vector<1x8x128xf32>
    tpu.vector_store %arg20[%c1, %c0_186, %c0_187], %393 {strides = array<i32>} : memref<5x8x128xf32, #tpu.memory_space<vmem>>, vector<1x8x128xf32>,
    %c1_188 = arith.constant 1 : index
    %c0_189 = arith.constant 0 : index
    %c0_190 = arith.constant 0 : index
    %394 = vector.load %arg21[%c1_188, %c0_189, %c0_190] : memref<5x8x128xf32, #tpu.memory_space<vmem>>, vector<1x8x128xf32>
    %395 = vector.shape_cast %394 : vector<1x8x128xf32> to vector<8x128xf32>
    %396 = vector.shape_cast %384 : vector<8x128xf32> to vector<1x8x128xf32>
    tpu.vector_store %arg21[%c1_188, %c0_189, %c0_190], %396 {strides = array<i32>} : memref<5x8x128xf32, #tpu.memory_space<vmem>>, vector<1x8x128xf32>,
    %cst_191 = arith.constant 5.000000e-01 : f32
    %397 = vector.broadcast %cst_191 : f32 to vector<8x128xf32>
    %398 = arith.cmpf ogt, %213, %397 : vector<8x128xf32>
    %399 = arith.extui %398 : vector<8x128xi1> to vector<8x128xi32>
    %400 = arith.sitofp %399 : vector<8x128xi32> to vector<8x128xf32>
    %cst_192 = arith.constant 0.949999988 : f32
    %401 = vector.broadcast %cst_192 : f32 to vector<8x128xf32>
    %402 = arith.mulf %401, %213 : vector<8x128xf32>
    %403 = arith.addf %402, %0 : vector<8x128xf32>
    %cst_193 = arith.constant 5.000000e-01 : f32
    %404 = vector.broadcast %cst_193 : f32 to vector<8x128xf32>
    %405 = arith.mulf %400, %404 : vector<8x128xf32>
    %406 = arith.subf %403, %405 : vector<8x128xf32>
    %cst_194 = arith.constant 5.000000e-01 : f32
    %407 = vector.broadcast %cst_194 : f32 to vector<8x128xf32>
    %408 = arith.cmpf ogt, %406, %407 : vector<8x128xf32>
    %409 = arith.extui %408 : vector<8x128xi1> to vector<8x128xi32>
    %410 = arith.sitofp %409 : vector<8x128xi32> to vector<8x128xf32>
    %411 = arith.truncf %410 : vector<8x128xf32> to vector<8x128xbf16>
    %c0_195 = arith.constant 0 : index
    %c0_196 = arith.constant 0 : index
    %412 = vector.load %arg2[%c0_195, %c0_196] : memref<128x128xbf16, #tpu.memory_space<vmem>>, vector<128x128xbf16>
    %c0_197 = arith.constant 0 : index
    %c0_198 = arith.constant 0 : index
    %413 = vector.load %arg3[%c0_197, %c0_198] : memref<8x128xf32, #tpu.memory_space<vmem>>, vector<8x128xf32>
    %cst_199 = arith.constant dense<0.000000e+00> : vector<8x128xf32>
    %414 = tpu.matmul %411, %412, %cst_199 {dimension_numbers = #tpu.dot_dimension_numbers<[1], [0], [0], [1], [0, 0, 1, 1], [], []>} : vector<8x128xbf16>, vector<128x128xbf16>, vector<8x128xf32> -> vector<8x128xf32>
    %415 = arith.addf %414, %413 : vector<8x128xf32>
    %cst_200 = arith.constant 5.000000e-01 : f32
    %416 = vector.broadcast %cst_200 : f32 to vector<8x128xf32>
    %417 = arith.cmpf ogt, %232, %416 : vector<8x128xf32>
    %418 = arith.extui %417 : vector<8x128xi1> to vector<8x128xi32>
    %419 = arith.sitofp %418 : vector<8x128xi32> to vector<8x128xf32>
    %cst_201 = arith.constant 0.949999988 : f32
    %420 = vector.broadcast %cst_201 : f32 to vector<8x128xf32>
    %421 = arith.mulf %420, %232 : vector<8x128xf32>
    %422 = arith.addf %421, %415 : vector<8x128xf32>
    %cst_202 = arith.constant 5.000000e-01 : f32
    %423 = vector.broadcast %cst_202 : f32 to vector<8x128xf32>
    %424 = arith.mulf %419, %423 : vector<8x128xf32>
    %425 = arith.subf %422, %424 : vector<8x128xf32>
    %cst_203 = arith.constant 5.000000e-01 : f32
    %426 = vector.broadcast %cst_203 : f32 to vector<8x128xf32>
    %427 = arith.cmpf ogt, %425, %426 : vector<8x128xf32>
    %428 = arith.extui %427 : vector<8x128xi1> to vector<8x128xi32>
    %429 = arith.sitofp %428 : vector<8x128xi32> to vector<8x128xf32>
    %430 = arith.truncf %429 : vector<8x128xf32> to vector<8x128xbf16>
    %c0_204 = arith.constant 0 : index
    %c0_205 = arith.constant 0 : index
    %431 = vector.load %arg4[%c0_204, %c0_205] : memref<128x128xbf16, #tpu.memory_space<vmem>>, vector<128x128xbf16>
    %c0_206 = arith.constant 0 : index
    %c0_207 = arith.constant 0 : index
    %432 = vector.load %arg5[%c0_206, %c0_207] : memref<8x128xf32, #tpu.memory_space<vmem>>, vector<8x128xf32>
    %cst_208 = arith.constant dense<0.000000e+00> : vector<8x128xf32>
    %433 = tpu.matmul %430, %431, %cst_208 {dimension_numbers = #tpu.dot_dimension_numbers<[1], [0], [0], [1], [0, 0, 1, 1], [], []>} : vector<8x128xbf16>, vector<128x128xbf16>, vector<8x128xf32> -> vector<8x128xf32>
    %434 = arith.addf %433, %432 : vector<8x128xf32>
    %cst_209 = arith.constant 5.000000e-01 : f32
    %435 = vector.broadcast %cst_209 : f32 to vector<8x128xf32>
    %436 = arith.cmpf ogt, %251, %435 : vector<8x128xf32>
    %437 = arith.extui %436 : vector<8x128xi1> to vector<8x128xi32>
    %438 = arith.sitofp %437 : vector<8x128xi32> to vector<8x128xf32>
    %cst_210 = arith.constant 0.949999988 : f32
    %439 = vector.broadcast %cst_210 : f32 to vector<8x128xf32>
    %440 = arith.mulf %439, %251 : vector<8x128xf32>
    %441 = arith.addf %440, %434 : vector<8x128xf32>
    %cst_211 = arith.constant 5.000000e-01 : f32
    %442 = vector.broadcast %cst_211 : f32 to vector<8x128xf32>
    %443 = arith.mulf %438, %442 : vector<8x128xf32>
    %444 = arith.subf %441, %443 : vector<8x128xf32>
    %cst_212 = arith.constant 5.000000e-01 : f32
    %445 = vector.broadcast %cst_212 : f32 to vector<8x128xf32>
    %446 = arith.cmpf ogt, %444, %445 : vector<8x128xf32>
    %447 = arith.extui %446 : vector<8x128xi1> to vector<8x128xi32>
    %448 = arith.sitofp %447 : vector<8x128xi32> to vector<8x128xf32>
    %449 = arith.truncf %448 : vector<8x128xf32> to vector<8x128xbf16>
    %c0_213 = arith.constant 0 : index
    %c0_214 = arith.constant 0 : index
    %450 = vector.load %arg6[%c0_213, %c0_214] : memref<128x128xbf16, #tpu.memory_space<vmem>>, vector<128x128xbf16>
    %c0_215 = arith.constant 0 : index
    %c0_216 = arith.constant 0 : index
    %451 = vector.load %arg7[%c0_215, %c0_216] : memref<8x128xf32, #tpu.memory_space<vmem>>, vector<8x128xf32>
    %cst_217 = arith.constant dense<0.000000e+00> : vector<8x128xf32>
    %452 = tpu.matmul %449, %450, %cst_217 {dimension_numbers = #tpu.dot_dimension_numbers<[1], [0], [0], [1], [0, 0, 1, 1], [], []>} : vector<8x128xbf16>, vector<128x128xbf16>, vector<8x128xf32> -> vector<8x128xf32>
    %453 = arith.addf %452, %451 : vector<8x128xf32>
    %cst_218 = arith.constant 5.000000e-01 : f32
    %454 = vector.broadcast %cst_218 : f32 to vector<8x128xf32>
    %455 = arith.cmpf ogt, %270, %454 : vector<8x128xf32>
    %456 = arith.extui %455 : vector<8x128xi1> to vector<8x128xi32>
    %457 = arith.sitofp %456 : vector<8x128xi32> to vector<8x128xf32>
    %cst_219 = arith.constant 0.949999988 : f32
    %458 = vector.broadcast %cst_219 : f32 to vector<8x128xf32>
    %459 = arith.mulf %458, %270 : vector<8x128xf32>
    %460 = arith.addf %459, %453 : vector<8x128xf32>
    %cst_220 = arith.constant 5.000000e-01 : f32
    %461 = vector.broadcast %cst_220 : f32 to vector<8x128xf32>
    %462 = arith.mulf %457, %461 : vector<8x128xf32>
    %463 = arith.subf %460, %462 : vector<8x128xf32>
    %cst_221 = arith.constant 5.000000e-01 : f32
    %464 = vector.broadcast %cst_221 : f32 to vector<8x128xf32>
    %465 = arith.cmpf ogt, %463, %464 : vector<8x128xf32>
    %466 = arith.extui %465 : vector<8x128xi1> to vector<8x128xi32>
    %467 = arith.sitofp %466 : vector<8x128xi32> to vector<8x128xf32>
    %468 = arith.truncf %467 : vector<8x128xf32> to vector<8x128xbf16>
    %c0_222 = arith.constant 0 : index
    %c0_223 = arith.constant 0 : index
    %469 = vector.load %arg8[%c0_222, %c0_223] : memref<128x128xbf16, #tpu.memory_space<vmem>>, vector<128x128xbf16>
    %c0_224 = arith.constant 0 : index
    %c0_225 = arith.constant 0 : index
    %470 = vector.load %arg9[%c0_224, %c0_225] : memref<8x128xf32, #tpu.memory_space<vmem>>, vector<8x128xf32>
    %cst_226 = arith.constant dense<0.000000e+00> : vector<8x128xf32>
    %471 = tpu.matmul %468, %469, %cst_226 {dimension_numbers = #tpu.dot_dimension_numbers<[1], [0], [0], [1], [0, 0, 1, 1], [], []>} : vector<8x128xbf16>, vector<128x128xbf16>, vector<8x128xf32> -> vector<8x128xf32>
    %472 = arith.addf %471, %470 : vector<8x128xf32>
    %cst_227 = arith.constant 5.000000e-01 : f32
    %473 = vector.broadcast %cst_227 : f32 to vector<8x128xf32>
    %474 = arith.cmpf ogt, %289, %473 : vector<8x128xf32>
    %475 = arith.extui %474 : vector<8x128xi1> to vector<8x128xi32>
    %476 = arith.sitofp %475 : vector<8x128xi32> to vector<8x128xf32>
    %cst_228 = arith.constant 0.949999988 : f32
    %477 = vector.broadcast %cst_228 : f32 to vector<8x128xf32>
    %478 = arith.mulf %477, %289 : vector<8x128xf32>
    %479 = arith.addf %478, %472 : vector<8x128xf32>
    %cst_229 = arith.constant 5.000000e-01 : f32
    %480 = vector.broadcast %cst_229 : f32 to vector<8x128xf32>
    %481 = arith.mulf %476, %480 : vector<8x128xf32>
    %482 = arith.subf %479, %481 : vector<8x128xf32>
    %cst_230 = arith.constant 5.000000e-01 : f32
    %483 = vector.broadcast %cst_230 : f32 to vector<8x128xf32>
    %484 = arith.cmpf ogt, %482, %483 : vector<8x128xf32>
    %485 = arith.extui %484 : vector<8x128xi1> to vector<8x128xi32>
    %486 = arith.sitofp %485 : vector<8x128xi32> to vector<8x128xf32>
    %487 = arith.truncf %486 : vector<8x128xf32> to vector<8x128xbf16>
    %c0_231 = arith.constant 0 : index
    %c0_232 = arith.constant 0 : index
    %488 = vector.load %arg10[%c0_231, %c0_232] : memref<128x128xbf16, #tpu.memory_space<vmem>>, vector<128x128xbf16>
    %c0_233 = arith.constant 0 : index
    %c0_234 = arith.constant 0 : index
    %489 = vector.load %arg11[%c0_233, %c0_234] : memref<8x128xf32, #tpu.memory_space<vmem>>, vector<8x128xf32>
    %cst_235 = arith.constant dense<0.000000e+00> : vector<8x128xf32>
    %490 = tpu.matmul %487, %488, %cst_235 {dimension_numbers = #tpu.dot_dimension_numbers<[1], [0], [0], [1], [0, 0, 1, 1], [], []>} : vector<8x128xbf16>, vector<128x128xbf16>, vector<8x128xf32> -> vector<8x128xf32>
    %491 = arith.addf %490, %489 : vector<8x128xf32>
    %cst_236 = arith.constant 5.000000e-01 : f32
    %492 = vector.broadcast %cst_236 : f32 to vector<8x128xf32>
    %493 = arith.cmpf ogt, %308, %492 : vector<8x128xf32>
    %494 = arith.extui %493 : vector<8x128xi1> to vector<8x128xi32>
    %495 = arith.sitofp %494 : vector<8x128xi32> to vector<8x128xf32>
    %cst_237 = arith.constant 0.949999988 : f32
    %496 = vector.broadcast %cst_237 : f32 to vector<8x128xf32>
    %497 = arith.mulf %496, %308 : vector<8x128xf32>
    %498 = arith.addf %497, %491 : vector<8x128xf32>
    %cst_238 = arith.constant 5.000000e-01 : f32
    %499 = vector.broadcast %cst_238 : f32 to vector<8x128xf32>
    %500 = arith.mulf %495, %499 : vector<8x128xf32>
    %501 = arith.subf %498, %500 : vector<8x128xf32>
    %cst_239 = arith.constant 5.000000e-01 : f32
    %502 = vector.broadcast %cst_239 : f32 to vector<8x128xf32>
    %503 = arith.cmpf ogt, %501, %502 : vector<8x128xf32>
    %504 = arith.extui %503 : vector<8x128xi1> to vector<8x128xi32>
    %505 = arith.sitofp %504 : vector<8x128xi32> to vector<8x128xf32>
    %506 = arith.truncf %505 : vector<8x128xf32> to vector<8x128xbf16>
    %c0_240 = arith.constant 0 : index
    %c0_241 = arith.constant 0 : index
    %507 = vector.load %arg12[%c0_240, %c0_241] : memref<128x128xbf16, #tpu.memory_space<vmem>>, vector<128x128xbf16>
    %c0_242 = arith.constant 0 : index
    %c0_243 = arith.constant 0 : index
    %508 = vector.load %arg13[%c0_242, %c0_243] : memref<8x128xf32, #tpu.memory_space<vmem>>, vector<8x128xf32>
    %cst_244 = arith.constant dense<0.000000e+00> : vector<8x128xf32>
    %509 = tpu.matmul %506, %507, %cst_244 {dimension_numbers = #tpu.dot_dimension_numbers<[1], [0], [0], [1], [0, 0, 1, 1], [], []>} : vector<8x128xbf16>, vector<128x128xbf16>, vector<8x128xf32> -> vector<8x128xf32>
    %510 = arith.addf %509, %508 : vector<8x128xf32>
    %cst_245 = arith.constant 5.000000e-01 : f32
    %511 = vector.broadcast %cst_245 : f32 to vector<8x128xf32>
    %512 = arith.cmpf ogt, %327, %511 : vector<8x128xf32>
    %513 = arith.extui %512 : vector<8x128xi1> to vector<8x128xi32>
    %514 = arith.sitofp %513 : vector<8x128xi32> to vector<8x128xf32>
    %cst_246 = arith.constant 0.949999988 : f32
    %515 = vector.broadcast %cst_246 : f32 to vector<8x128xf32>
    %516 = arith.mulf %515, %327 : vector<8x128xf32>
    %517 = arith.addf %516, %510 : vector<8x128xf32>
    %cst_247 = arith.constant 5.000000e-01 : f32
    %518 = vector.broadcast %cst_247 : f32 to vector<8x128xf32>
    %519 = arith.mulf %514, %518 : vector<8x128xf32>
    %520 = arith.subf %517, %519 : vector<8x128xf32>
    %cst_248 = arith.constant 5.000000e-01 : f32
    %521 = vector.broadcast %cst_248 : f32 to vector<8x128xf32>
    %522 = arith.cmpf ogt, %520, %521 : vector<8x128xf32>
    %523 = arith.extui %522 : vector<8x128xi1> to vector<8x128xi32>
    %524 = arith.sitofp %523 : vector<8x128xi32> to vector<8x128xf32>
    %525 = arith.truncf %524 : vector<8x128xf32> to vector<8x128xbf16>
    %c0_249 = arith.constant 0 : index
    %c0_250 = arith.constant 0 : index
    %526 = vector.load %arg14[%c0_249, %c0_250] : memref<128x128xbf16, #tpu.memory_space<vmem>>, vector<128x128xbf16>
    %c0_251 = arith.constant 0 : index
    %c0_252 = arith.constant 0 : index
    %527 = vector.load %arg15[%c0_251, %c0_252] : memref<8x128xf32, #tpu.memory_space<vmem>>, vector<8x128xf32>
    %cst_253 = arith.constant dense<0.000000e+00> : vector<8x128xf32>
    %528 = tpu.matmul %525, %526, %cst_253 {dimension_numbers = #tpu.dot_dimension_numbers<[1], [0], [0], [1], [0, 0, 1, 1], [], []>} : vector<8x128xbf16>, vector<128x128xbf16>, vector<8x128xf32> -> vector<8x128xf32>
    %529 = arith.addf %528, %527 : vector<8x128xf32>
    %cst_254 = arith.constant 5.000000e-01 : f32
    %530 = vector.broadcast %cst_254 : f32 to vector<8x128xf32>
    %531 = arith.cmpf ogt, %346, %530 : vector<8x128xf32>
    %532 = arith.extui %531 : vector<8x128xi1> to vector<8x128xi32>
    %533 = arith.sitofp %532 : vector<8x128xi32> to vector<8x128xf32>
    %cst_255 = arith.constant 0.949999988 : f32
    %534 = vector.broadcast %cst_255 : f32 to vector<8x128xf32>
    %535 = arith.mulf %534, %346 : vector<8x128xf32>
    %536 = arith.addf %535, %529 : vector<8x128xf32>
    %cst_256 = arith.constant 5.000000e-01 : f32
    %537 = vector.broadcast %cst_256 : f32 to vector<8x128xf32>
    %538 = arith.mulf %533, %537 : vector<8x128xf32>
    %539 = arith.subf %536, %538 : vector<8x128xf32>
    %cst_257 = arith.constant 5.000000e-01 : f32
    %540 = vector.broadcast %cst_257 : f32 to vector<8x128xf32>
    %541 = arith.cmpf ogt, %539, %540 : vector<8x128xf32>
    %542 = arith.extui %541 : vector<8x128xi1> to vector<8x128xi32>
    %543 = arith.sitofp %542 : vector<8x128xi32> to vector<8x128xf32>
    %544 = arith.truncf %543 : vector<8x128xf32> to vector<8x128xbf16>
    %c0_258 = arith.constant 0 : index
    %c0_259 = arith.constant 0 : index
    %545 = vector.load %arg16[%c0_258, %c0_259] : memref<128x128xbf16, #tpu.memory_space<vmem>>, vector<128x128xbf16>
    %c0_260 = arith.constant 0 : index
    %c0_261 = arith.constant 0 : index
    %546 = vector.load %arg17[%c0_260, %c0_261] : memref<8x128xf32, #tpu.memory_space<vmem>>, vector<8x128xf32>
    %cst_262 = arith.constant dense<0.000000e+00> : vector<8x128xf32>
    %547 = tpu.matmul %544, %545, %cst_262 {dimension_numbers = #tpu.dot_dimension_numbers<[1], [0], [0], [1], [0, 0, 1, 1], [], []>} : vector<8x128xbf16>, vector<128x128xbf16>, vector<8x128xf32> -> vector<8x128xf32>
    %548 = arith.addf %547, %546 : vector<8x128xf32>
    %cst_263 = arith.constant 5.000000e-01 : f32
    %549 = vector.broadcast %cst_263 : f32 to vector<8x128xf32>
    %550 = arith.cmpf ogt, %365, %549 : vector<8x128xf32>
    %551 = arith.extui %550 : vector<8x128xi1> to vector<8x128xi32>
    %552 = arith.sitofp %551 : vector<8x128xi32> to vector<8x128xf32>
    %cst_264 = arith.constant 0.949999988 : f32
    %553 = vector.broadcast %cst_264 : f32 to vector<8x128xf32>
    %554 = arith.mulf %553, %365 : vector<8x128xf32>
    %555 = arith.addf %554, %548 : vector<8x128xf32>
    %cst_265 = arith.constant 5.000000e-01 : f32
    %556 = vector.broadcast %cst_265 : f32 to vector<8x128xf32>
    %557 = arith.mulf %552, %556 : vector<8x128xf32>
    %558 = arith.subf %555, %557 : vector<8x128xf32>
    %cst_266 = arith.constant 5.000000e-01 : f32
    %559 = vector.broadcast %cst_266 : f32 to vector<8x128xf32>
    %560 = arith.cmpf ogt, %558, %559 : vector<8x128xf32>
    %561 = arith.extui %560 : vector<8x128xi1> to vector<8x128xi32>
    %562 = arith.sitofp %561 : vector<8x128xi32> to vector<8x128xf32>
    %563 = arith.truncf %562 : vector<8x128xf32> to vector<8x128xbf16>
    %c0_267 = arith.constant 0 : index
    %c0_268 = arith.constant 0 : index
    %564 = vector.load %arg18[%c0_267, %c0_268] : memref<128x128xbf16, #tpu.memory_space<vmem>>, vector<128x128xbf16>
    %c0_269 = arith.constant 0 : index
    %c0_270 = arith.constant 0 : index
    %565 = vector.load %arg19[%c0_269, %c0_270] : memref<8x128xf32, #tpu.memory_space<vmem>>, vector<8x128xf32>
    %cst_271 = arith.constant dense<0.000000e+00> : vector<8x128xf32>
    %566 = tpu.matmul %563, %564, %cst_271 {dimension_numbers = #tpu.dot_dimension_numbers<[1], [0], [0], [1], [0, 0, 1, 1], [], []>} : vector<8x128xbf16>, vector<128x128xbf16>, vector<8x128xf32> -> vector<8x128xf32>
    %567 = arith.addf %566, %565 : vector<8x128xf32>
    %cst_272 = arith.constant 5.000000e-01 : f32
    %568 = vector.broadcast %cst_272 : f32 to vector<8x128xf32>
    %569 = arith.cmpf ogt, %384, %568 : vector<8x128xf32>
    %570 = arith.extui %569 : vector<8x128xi1> to vector<8x128xi32>
    %571 = arith.sitofp %570 : vector<8x128xi32> to vector<8x128xf32>
    %cst_273 = arith.constant 0.949999988 : f32
    %572 = vector.broadcast %cst_273 : f32 to vector<8x128xf32>
    %573 = arith.mulf %572, %384 : vector<8x128xf32>
    %574 = arith.addf %573, %567 : vector<8x128xf32>
    %cst_274 = arith.constant 5.000000e-01 : f32
    %575 = vector.broadcast %cst_274 : f32 to vector<8x128xf32>
    %576 = arith.mulf %571, %575 : vector<8x128xf32>
    %577 = arith.subf %574, %576 : vector<8x128xf32>
    %cst_275 = arith.constant 5.000000e-01 : f32
    %578 = vector.broadcast %cst_275 : f32 to vector<8x128xf32>
    %579 = arith.cmpf ogt, %577, %578 : vector<8x128xf32>
    %580 = arith.extui %579 : vector<8x128xi1> to vector<8x128xi32>
    %581 = arith.sitofp %580 : vector<8x128xi32> to vector<8x128xf32>
    %582 = arith.truncf %581 : vector<8x128xf32> to vector<8x128xbf16>
    %583 = arith.extf %582 : vector<8x128xbf16> to vector<8x128xf32>
    %c2 = arith.constant 2 : index
    %c0_276 = arith.constant 0 : index
    %c0_277 = arith.constant 0 : index
    %584 = vector.load %arg20[%c2, %c0_276, %c0_277] : memref<5x8x128xf32, #tpu.memory_space<vmem>>, vector<1x8x128xf32>
    %585 = vector.shape_cast %584 : vector<1x8x128xf32> to vector<8x128xf32>
    %586 = vector.shape_cast %583 : vector<8x128xf32> to vector<1x8x128xf32>
    tpu.vector_store %arg20[%c2, %c0_276, %c0_277], %586 {strides = array<i32>} : memref<5x8x128xf32, #tpu.memory_space<vmem>>, vector<1x8x128xf32>,
    %c2_278 = arith.constant 2 : index
    %c0_279 = arith.constant 0 : index
    %c0_280 = arith.constant 0 : index
    %587 = vector.load %arg21[%c2_278, %c0_279, %c0_280] : memref<5x8x128xf32, #tpu.memory_space<vmem>>, vector<1x8x128xf32>
    %588 = vector.shape_cast %587 : vector<1x8x128xf32> to vector<8x128xf32>
    %589 = vector.shape_cast %577 : vector<8x128xf32> to vector<1x8x128xf32>
    tpu.vector_store %arg21[%c2_278, %c0_279, %c0_280], %589 {strides = array<i32>} : memref<5x8x128xf32, #tpu.memory_space<vmem>>, vector<1x8x128xf32>,
    %cst_281 = arith.constant 5.000000e-01 : f32
    %590 = vector.broadcast %cst_281 : f32 to vector<8x128xf32>
    %591 = arith.cmpf ogt, %406, %590 : vector<8x128xf32>
    %592 = arith.extui %591 : vector<8x128xi1> to vector<8x128xi32>
    %593 = arith.sitofp %592 : vector<8x128xi32> to vector<8x128xf32>
    %cst_282 = arith.constant 0.949999988 : f32
    %594 = vector.broadcast %cst_282 : f32 to vector<8x128xf32>
    %595 = arith.mulf %594, %406 : vector<8x128xf32>
    %596 = arith.addf %595, %0 : vector<8x128xf32>
    %cst_283 = arith.constant 5.000000e-01 : f32
    %597 = vector.broadcast %cst_283 : f32 to vector<8x128xf32>
    %598 = arith.mulf %593, %597 : vector<8x128xf32>
    %599 = arith.subf %596, %598 : vector<8x128xf32>
    %cst_284 = arith.constant 5.000000e-01 : f32
    %600 = vector.broadcast %cst_284 : f32 to vector<8x128xf32>
    %601 = arith.cmpf ogt, %599, %600 : vector<8x128xf32>
    %602 = arith.extui %601 : vector<8x128xi1> to vector<8x128xi32>
    %603 = arith.sitofp %602 : vector<8x128xi32> to vector<8x128xf32>
    %604 = arith.truncf %603 : vector<8x128xf32> to vector<8x128xbf16>
    %c0_285 = arith.constant 0 : index
    %c0_286 = arith.constant 0 : index
    %605 = vector.load %arg2[%c0_285, %c0_286] : memref<128x128xbf16, #tpu.memory_space<vmem>>, vector<128x128xbf16>
    %c0_287 = arith.constant 0 : index
    %c0_288 = arith.constant 0 : index
    %606 = vector.load %arg3[%c0_287, %c0_288] : memref<8x128xf32, #tpu.memory_space<vmem>>, vector<8x128xf32>
    %cst_289 = arith.constant dense<0.000000e+00> : vector<8x128xf32>
    %607 = tpu.matmul %604, %605, %cst_289 {dimension_numbers = #tpu.dot_dimension_numbers<[1], [0], [0], [1], [0, 0, 1, 1], [], []>} : vector<8x128xbf16>, vector<128x128xbf16>, vector<8x128xf32> -> vector<8x128xf32>
    %608 = arith.addf %607, %606 : vector<8x128xf32>
    %cst_290 = arith.constant 5.000000e-01 : f32
    %609 = vector.broadcast %cst_290 : f32 to vector<8x128xf32>
    %610 = arith.cmpf ogt, %425, %609 : vector<8x128xf32>
    %611 = arith.extui %610 : vector<8x128xi1> to vector<8x128xi32>
    %612 = arith.sitofp %611 : vector<8x128xi32> to vector<8x128xf32>
    %cst_291 = arith.constant 0.949999988 : f32
    %613 = vector.broadcast %cst_291 : f32 to vector<8x128xf32>
    %614 = arith.mulf %613, %425 : vector<8x128xf32>
    %615 = arith.addf %614, %608 : vector<8x128xf32>
    %cst_292 = arith.constant 5.000000e-01 : f32
    %616 = vector.broadcast %cst_292 : f32 to vector<8x128xf32>
    %617 = arith.mulf %612, %616 : vector<8x128xf32>
    %618 = arith.subf %615, %617 : vector<8x128xf32>
    %cst_293 = arith.constant 5.000000e-01 : f32
    %619 = vector.broadcast %cst_293 : f32 to vector<8x128xf32>
    %620 = arith.cmpf ogt, %618, %619 : vector<8x128xf32>
    %621 = arith.extui %620 : vector<8x128xi1> to vector<8x128xi32>
    %622 = arith.sitofp %621 : vector<8x128xi32> to vector<8x128xf32>
    %623 = arith.truncf %622 : vector<8x128xf32> to vector<8x128xbf16>
    %c0_294 = arith.constant 0 : index
    %c0_295 = arith.constant 0 : index
    %624 = vector.load %arg4[%c0_294, %c0_295] : memref<128x128xbf16, #tpu.memory_space<vmem>>, vector<128x128xbf16>
    %c0_296 = arith.constant 0 : index
    %c0_297 = arith.constant 0 : index
    %625 = vector.load %arg5[%c0_296, %c0_297] : memref<8x128xf32, #tpu.memory_space<vmem>>, vector<8x128xf32>
    %cst_298 = arith.constant dense<0.000000e+00> : vector<8x128xf32>
    %626 = tpu.matmul %623, %624, %cst_298 {dimension_numbers = #tpu.dot_dimension_numbers<[1], [0], [0], [1], [0, 0, 1, 1], [], []>} : vector<8x128xbf16>, vector<128x128xbf16>, vector<8x128xf32> -> vector<8x128xf32>
    %627 = arith.addf %626, %625 : vector<8x128xf32>
    %cst_299 = arith.constant 5.000000e-01 : f32
    %628 = vector.broadcast %cst_299 : f32 to vector<8x128xf32>
    %629 = arith.cmpf ogt, %444, %628 : vector<8x128xf32>
    %630 = arith.extui %629 : vector<8x128xi1> to vector<8x128xi32>
    %631 = arith.sitofp %630 : vector<8x128xi32> to vector<8x128xf32>
    %cst_300 = arith.constant 0.949999988 : f32
    %632 = vector.broadcast %cst_300 : f32 to vector<8x128xf32>
    %633 = arith.mulf %632, %444 : vector<8x128xf32>
    %634 = arith.addf %633, %627 : vector<8x128xf32>
    %cst_301 = arith.constant 5.000000e-01 : f32
    %635 = vector.broadcast %cst_301 : f32 to vector<8x128xf32>
    %636 = arith.mulf %631, %635 : vector<8x128xf32>
    %637 = arith.subf %634, %636 : vector<8x128xf32>
    %cst_302 = arith.constant 5.000000e-01 : f32
    %638 = vector.broadcast %cst_302 : f32 to vector<8x128xf32>
    %639 = arith.cmpf ogt, %637, %638 : vector<8x128xf32>
    %640 = arith.extui %639 : vector<8x128xi1> to vector<8x128xi32>
    %641 = arith.sitofp %640 : vector<8x128xi32> to vector<8x128xf32>
    %642 = arith.truncf %641 : vector<8x128xf32> to vector<8x128xbf16>
    %c0_303 = arith.constant 0 : index
    %c0_304 = arith.constant 0 : index
    %643 = vector.load %arg6[%c0_303, %c0_304] : memref<128x128xbf16, #tpu.memory_space<vmem>>, vector<128x128xbf16>
    %c0_305 = arith.constant 0 : index
    %c0_306 = arith.constant 0 : index
    %644 = vector.load %arg7[%c0_305, %c0_306] : memref<8x128xf32, #tpu.memory_space<vmem>>, vector<8x128xf32>
    %cst_307 = arith.constant dense<0.000000e+00> : vector<8x128xf32>
    %645 = tpu.matmul %642, %643, %cst_307 {dimension_numbers = #tpu.dot_dimension_numbers<[1], [0], [0], [1], [0, 0, 1, 1], [], []>} : vector<8x128xbf16>, vector<128x128xbf16>, vector<8x128xf32> -> vector<8x128xf32>
    %646 = arith.addf %645, %644 : vector<8x128xf32>
    %cst_308 = arith.constant 5.000000e-01 : f32
    %647 = vector.broadcast %cst_308 : f32 to vector<8x128xf32>
    %648 = arith.cmpf ogt, %463, %647 : vector<8x128xf32>
    %649 = arith.extui %648 : vector<8x128xi1> to vector<8x128xi32>
    %650 = arith.sitofp %649 : vector<8x128xi32> to vector<8x128xf32>
    %cst_309 = arith.constant 0.949999988 : f32
    %651 = vector.broadcast %cst_309 : f32 to vector<8x128xf32>
    %652 = arith.mulf %651, %463 : vector<8x128xf32>
    %653 = arith.addf %652, %646 : vector<8x128xf32>
    %cst_310 = arith.constant 5.000000e-01 : f32
    %654 = vector.broadcast %cst_310 : f32 to vector<8x128xf32>
    %655 = arith.mulf %650, %654 : vector<8x128xf32>
    %656 = arith.subf %653, %655 : vector<8x128xf32>
    %cst_311 = arith.constant 5.000000e-01 : f32
    %657 = vector.broadcast %cst_311 : f32 to vector<8x128xf32>
    %658 = arith.cmpf ogt, %656, %657 : vector<8x128xf32>
    %659 = arith.extui %658 : vector<8x128xi1> to vector<8x128xi32>
    %660 = arith.sitofp %659 : vector<8x128xi32> to vector<8x128xf32>
    %661 = arith.truncf %660 : vector<8x128xf32> to vector<8x128xbf16>
    %c0_312 = arith.constant 0 : index
    %c0_313 = arith.constant 0 : index
    %662 = vector.load %arg8[%c0_312, %c0_313] : memref<128x128xbf16, #tpu.memory_space<vmem>>, vector<128x128xbf16>
    %c0_314 = arith.constant 0 : index
    %c0_315 = arith.constant 0 : index
    %663 = vector.load %arg9[%c0_314, %c0_315] : memref<8x128xf32, #tpu.memory_space<vmem>>, vector<8x128xf32>
    %cst_316 = arith.constant dense<0.000000e+00> : vector<8x128xf32>
    %664 = tpu.matmul %661, %662, %cst_316 {dimension_numbers = #tpu.dot_dimension_numbers<[1], [0], [0], [1], [0, 0, 1, 1], [], []>} : vector<8x128xbf16>, vector<128x128xbf16>, vector<8x128xf32> -> vector<8x128xf32>
    %665 = arith.addf %664, %663 : vector<8x128xf32>
    %cst_317 = arith.constant 5.000000e-01 : f32
    %666 = vector.broadcast %cst_317 : f32 to vector<8x128xf32>
    %667 = arith.cmpf ogt, %482, %666 : vector<8x128xf32>
    %668 = arith.extui %667 : vector<8x128xi1> to vector<8x128xi32>
    %669 = arith.sitofp %668 : vector<8x128xi32> to vector<8x128xf32>
    %cst_318 = arith.constant 0.949999988 : f32
    %670 = vector.broadcast %cst_318 : f32 to vector<8x128xf32>
    %671 = arith.mulf %670, %482 : vector<8x128xf32>
    %672 = arith.addf %671, %665 : vector<8x128xf32>
    %cst_319 = arith.constant 5.000000e-01 : f32
    %673 = vector.broadcast %cst_319 : f32 to vector<8x128xf32>
    %674 = arith.mulf %669, %673 : vector<8x128xf32>
    %675 = arith.subf %672, %674 : vector<8x128xf32>
    %cst_320 = arith.constant 5.000000e-01 : f32
    %676 = vector.broadcast %cst_320 : f32 to vector<8x128xf32>
    %677 = arith.cmpf ogt, %675, %676 : vector<8x128xf32>
    %678 = arith.extui %677 : vector<8x128xi1> to vector<8x128xi32>
    %679 = arith.sitofp %678 : vector<8x128xi32> to vector<8x128xf32>
    %680 = arith.truncf %679 : vector<8x128xf32> to vector<8x128xbf16>
    %c0_321 = arith.constant 0 : index
    %c0_322 = arith.constant 0 : index
    %681 = vector.load %arg10[%c0_321, %c0_322] : memref<128x128xbf16, #tpu.memory_space<vmem>>, vector<128x128xbf16>
    %c0_323 = arith.constant 0 : index
    %c0_324 = arith.constant 0 : index
    %682 = vector.load %arg11[%c0_323, %c0_324] : memref<8x128xf32, #tpu.memory_space<vmem>>, vector<8x128xf32>
    %cst_325 = arith.constant dense<0.000000e+00> : vector<8x128xf32>
    %683 = tpu.matmul %680, %681, %cst_325 {dimension_numbers = #tpu.dot_dimension_numbers<[1], [0], [0], [1], [0, 0, 1, 1], [], []>} : vector<8x128xbf16>, vector<128x128xbf16>, vector<8x128xf32> -> vector<8x128xf32>
    %684 = arith.addf %683, %682 : vector<8x128xf32>
    %cst_326 = arith.constant 5.000000e-01 : f32
    %685 = vector.broadcast %cst_326 : f32 to vector<8x128xf32>
    %686 = arith.cmpf ogt, %501, %685 : vector<8x128xf32>
    %687 = arith.extui %686 : vector<8x128xi1> to vector<8x128xi32>
    %688 = arith.sitofp %687 : vector<8x128xi32> to vector<8x128xf32>
    %cst_327 = arith.constant 0.949999988 : f32
    %689 = vector.broadcast %cst_327 : f32 to vector<8x128xf32>
    %690 = arith.mulf %689, %501 : vector<8x128xf32>
    %691 = arith.addf %690, %684 : vector<8x128xf32>
    %cst_328 = arith.constant 5.000000e-01 : f32
    %692 = vector.broadcast %cst_328 : f32 to vector<8x128xf32>
    %693 = arith.mulf %688, %692 : vector<8x128xf32>
    %694 = arith.subf %691, %693 : vector<8x128xf32>
    %cst_329 = arith.constant 5.000000e-01 : f32
    %695 = vector.broadcast %cst_329 : f32 to vector<8x128xf32>
    %696 = arith.cmpf ogt, %694, %695 : vector<8x128xf32>
    %697 = arith.extui %696 : vector<8x128xi1> to vector<8x128xi32>
    %698 = arith.sitofp %697 : vector<8x128xi32> to vector<8x128xf32>
    %699 = arith.truncf %698 : vector<8x128xf32> to vector<8x128xbf16>
    %c0_330 = arith.constant 0 : index
    %c0_331 = arith.constant 0 : index
    %700 = vector.load %arg12[%c0_330, %c0_331] : memref<128x128xbf16, #tpu.memory_space<vmem>>, vector<128x128xbf16>
    %c0_332 = arith.constant 0 : index
    %c0_333 = arith.constant 0 : index
    %701 = vector.load %arg13[%c0_332, %c0_333] : memref<8x128xf32, #tpu.memory_space<vmem>>, vector<8x128xf32>
    %cst_334 = arith.constant dense<0.000000e+00> : vector<8x128xf32>
    %702 = tpu.matmul %699, %700, %cst_334 {dimension_numbers = #tpu.dot_dimension_numbers<[1], [0], [0], [1], [0, 0, 1, 1], [], []>} : vector<8x128xbf16>, vector<128x128xbf16>, vector<8x128xf32> -> vector<8x128xf32>
    %703 = arith.addf %702, %701 : vector<8x128xf32>
    %cst_335 = arith.constant 5.000000e-01 : f32
    %704 = vector.broadcast %cst_335 : f32 to vector<8x128xf32>
    %705 = arith.cmpf ogt, %520, %704 : vector<8x128xf32>
    %706 = arith.extui %705 : vector<8x128xi1> to vector<8x128xi32>
    %707 = arith.sitofp %706 : vector<8x128xi32> to vector<8x128xf32>
    %cst_336 = arith.constant 0.949999988 : f32
    %708 = vector.broadcast %cst_336 : f32 to vector<8x128xf32>
    %709 = arith.mulf %708, %520 : vector<8x128xf32>
    %710 = arith.addf %709, %703 : vector<8x128xf32>
    %cst_337 = arith.constant 5.000000e-01 : f32
    %711 = vector.broadcast %cst_337 : f32 to vector<8x128xf32>
    %712 = arith.mulf %707, %711 : vector<8x128xf32>
    %713 = arith.subf %710, %712 : vector<8x128xf32>
    %cst_338 = arith.constant 5.000000e-01 : f32
    %714 = vector.broadcast %cst_338 : f32 to vector<8x128xf32>
    %715 = arith.cmpf ogt, %713, %714 : vector<8x128xf32>
    %716 = arith.extui %715 : vector<8x128xi1> to vector<8x128xi32>
    %717 = arith.sitofp %716 : vector<8x128xi32> to vector<8x128xf32>
    %718 = arith.truncf %717 : vector<8x128xf32> to vector<8x128xbf16>
    %c0_339 = arith.constant 0 : index
    %c0_340 = arith.constant 0 : index
    %719 = vector.load %arg14[%c0_339, %c0_340] : memref<128x128xbf16, #tpu.memory_space<vmem>>, vector<128x128xbf16>
    %c0_341 = arith.constant 0 : index
    %c0_342 = arith.constant 0 : index
    %720 = vector.load %arg15[%c0_341, %c0_342] : memref<8x128xf32, #tpu.memory_space<vmem>>, vector<8x128xf32>
    %cst_343 = arith.constant dense<0.000000e+00> : vector<8x128xf32>
    %721 = tpu.matmul %718, %719, %cst_343 {dimension_numbers = #tpu.dot_dimension_numbers<[1], [0], [0], [1], [0, 0, 1, 1], [], []>} : vector<8x128xbf16>, vector<128x128xbf16>, vector<8x128xf32> -> vector<8x128xf32>
    %722 = arith.addf %721, %720 : vector<8x128xf32>
    %cst_344 = arith.constant 5.000000e-01 : f32
    %723 = vector.broadcast %cst_344 : f32 to vector<8x128xf32>
    %724 = arith.cmpf ogt, %539, %723 : vector<8x128xf32>
    %725 = arith.extui %724 : vector<8x128xi1> to vector<8x128xi32>
    %726 = arith.sitofp %725 : vector<8x128xi32> to vector<8x128xf32>
    %cst_345 = arith.constant 0.949999988 : f32
    %727 = vector.broadcast %cst_345 : f32 to vector<8x128xf32>
    %728 = arith.mulf %727, %539 : vector<8x128xf32>
    %729 = arith.addf %728, %722 : vector<8x128xf32>
    %cst_346 = arith.constant 5.000000e-01 : f32
    %730 = vector.broadcast %cst_346 : f32 to vector<8x128xf32>
    %731 = arith.mulf %726, %730 : vector<8x128xf32>
    %732 = arith.subf %729, %731 : vector<8x128xf32>
    %cst_347 = arith.constant 5.000000e-01 : f32
    %733 = vector.broadcast %cst_347 : f32 to vector<8x128xf32>
    %734 = arith.cmpf ogt, %732, %733 : vector<8x128xf32>
    %735 = arith.extui %734 : vector<8x128xi1> to vector<8x128xi32>
    %736 = arith.sitofp %735 : vector<8x128xi32> to vector<8x128xf32>
    %737 = arith.truncf %736 : vector<8x128xf32> to vector<8x128xbf16>
    %c0_348 = arith.constant 0 : index
    %c0_349 = arith.constant 0 : index
    %738 = vector.load %arg16[%c0_348, %c0_349] : memref<128x128xbf16, #tpu.memory_space<vmem>>, vector<128x128xbf16>
    %c0_350 = arith.constant 0 : index
    %c0_351 = arith.constant 0 : index
    %739 = vector.load %arg17[%c0_350, %c0_351] : memref<8x128xf32, #tpu.memory_space<vmem>>, vector<8x128xf32>
    %cst_352 = arith.constant dense<0.000000e+00> : vector<8x128xf32>
    %740 = tpu.matmul %737, %738, %cst_352 {dimension_numbers = #tpu.dot_dimension_numbers<[1], [0], [0], [1], [0, 0, 1, 1], [], []>} : vector<8x128xbf16>, vector<128x128xbf16>, vector<8x128xf32> -> vector<8x128xf32>
    %741 = arith.addf %740, %739 : vector<8x128xf32>
    %cst_353 = arith.constant 5.000000e-01 : f32
    %742 = vector.broadcast %cst_353 : f32 to vector<8x128xf32>
    %743 = arith.cmpf ogt, %558, %742 : vector<8x128xf32>
    %744 = arith.extui %743 : vector<8x128xi1> to vector<8x128xi32>
    %745 = arith.sitofp %744 : vector<8x128xi32> to vector<8x128xf32>
    %cst_354 = arith.constant 0.949999988 : f32
    %746 = vector.broadcast %cst_354 : f32 to vector<8x128xf32>
    %747 = arith.mulf %746, %558 : vector<8x128xf32>
    %748 = arith.addf %747, %741 : vector<8x128xf32>
    %cst_355 = arith.constant 5.000000e-01 : f32
    %749 = vector.broadcast %cst_355 : f32 to vector<8x128xf32>
    %750 = arith.mulf %745, %749 : vector<8x128xf32>
    %751 = arith.subf %748, %750 : vector<8x128xf32>
    %cst_356 = arith.constant 5.000000e-01 : f32
    %752 = vector.broadcast %cst_356 : f32 to vector<8x128xf32>
    %753 = arith.cmpf ogt, %751, %752 : vector<8x128xf32>
    %754 = arith.extui %753 : vector<8x128xi1> to vector<8x128xi32>
    %755 = arith.sitofp %754 : vector<8x128xi32> to vector<8x128xf32>
    %756 = arith.truncf %755 : vector<8x128xf32> to vector<8x128xbf16>
    %c0_357 = arith.constant 0 : index
    %c0_358 = arith.constant 0 : index
    %757 = vector.load %arg18[%c0_357, %c0_358] : memref<128x128xbf16, #tpu.memory_space<vmem>>, vector<128x128xbf16>
    %c0_359 = arith.constant 0 : index
    %c0_360 = arith.constant 0 : index
    %758 = vector.load %arg19[%c0_359, %c0_360] : memref<8x128xf32, #tpu.memory_space<vmem>>, vector<8x128xf32>
    %cst_361 = arith.constant dense<0.000000e+00> : vector<8x128xf32>
    %759 = tpu.matmul %756, %757, %cst_361 {dimension_numbers = #tpu.dot_dimension_numbers<[1], [0], [0], [1], [0, 0, 1, 1], [], []>} : vector<8x128xbf16>, vector<128x128xbf16>, vector<8x128xf32> -> vector<8x128xf32>
    %760 = arith.addf %759, %758 : vector<8x128xf32>
    %cst_362 = arith.constant 5.000000e-01 : f32
    %761 = vector.broadcast %cst_362 : f32 to vector<8x128xf32>
    %762 = arith.cmpf ogt, %577, %761 : vector<8x128xf32>
    %763 = arith.extui %762 : vector<8x128xi1> to vector<8x128xi32>
    %764 = arith.sitofp %763 : vector<8x128xi32> to vector<8x128xf32>
    %cst_363 = arith.constant 0.949999988 : f32
    %765 = vector.broadcast %cst_363 : f32 to vector<8x128xf32>
    %766 = arith.mulf %765, %577 : vector<8x128xf32>
    %767 = arith.addf %766, %760 : vector<8x128xf32>
    %cst_364 = arith.constant 5.000000e-01 : f32
    %768 = vector.broadcast %cst_364 : f32 to vector<8x128xf32>
    %769 = arith.mulf %764, %768 : vector<8x128xf32>
    %770 = arith.subf %767, %769 : vector<8x128xf32>
    %cst_365 = arith.constant 5.000000e-01 : f32
    %771 = vector.broadcast %cst_365 : f32 to vector<8x128xf32>
    %772 = arith.cmpf ogt, %770, %771 : vector<8x128xf32>
    %773 = arith.extui %772 : vector<8x128xi1> to vector<8x128xi32>
    %774 = arith.sitofp %773 : vector<8x128xi32> to vector<8x128xf32>
    %775 = arith.truncf %774 : vector<8x128xf32> to vector<8x128xbf16>
    %776 = arith.extf %775 : vector<8x128xbf16> to vector<8x128xf32>
    %c3 = arith.constant 3 : index
    %c0_366 = arith.constant 0 : index
    %c0_367 = arith.constant 0 : index
    %777 = vector.load %arg20[%c3, %c0_366, %c0_367] : memref<5x8x128xf32, #tpu.memory_space<vmem>>, vector<1x8x128xf32>
    %778 = vector.shape_cast %777 : vector<1x8x128xf32> to vector<8x128xf32>
    %779 = vector.shape_cast %776 : vector<8x128xf32> to vector<1x8x128xf32>
    tpu.vector_store %arg20[%c3, %c0_366, %c0_367], %779 {strides = array<i32>} : memref<5x8x128xf32, #tpu.memory_space<vmem>>, vector<1x8x128xf32>,
    %c3_368 = arith.constant 3 : index
    %c0_369 = arith.constant 0 : index
    %c0_370 = arith.constant 0 : index
    %780 = vector.load %arg21[%c3_368, %c0_369, %c0_370] : memref<5x8x128xf32, #tpu.memory_space<vmem>>, vector<1x8x128xf32>
    %781 = vector.shape_cast %780 : vector<1x8x128xf32> to vector<8x128xf32>
    %782 = vector.shape_cast %770 : vector<8x128xf32> to vector<1x8x128xf32>
    tpu.vector_store %arg21[%c3_368, %c0_369, %c0_370], %782 {strides = array<i32>} : memref<5x8x128xf32, #tpu.memory_space<vmem>>, vector<1x8x128xf32>,
    %cst_371 = arith.constant 5.000000e-01 : f32
    %783 = vector.broadcast %cst_371 : f32 to vector<8x128xf32>
    %784 = arith.cmpf ogt, %599, %783 : vector<8x128xf32>
    %785 = arith.extui %784 : vector<8x128xi1> to vector<8x128xi32>
    %786 = arith.sitofp %785 : vector<8x128xi32> to vector<8x128xf32>
    %cst_372 = arith.constant 0.949999988 : f32
    %787 = vector.broadcast %cst_372 : f32 to vector<8x128xf32>
    %788 = arith.mulf %787, %599 : vector<8x128xf32>
    %789 = arith.addf %788, %0 : vector<8x128xf32>
    %cst_373 = arith.constant 5.000000e-01 : f32
    %790 = vector.broadcast %cst_373 : f32 to vector<8x128xf32>
    %791 = arith.mulf %786, %790 : vector<8x128xf32>
    %792 = arith.subf %789, %791 : vector<8x128xf32>
    %cst_374 = arith.constant 5.000000e-01 : f32
    %793 = vector.broadcast %cst_374 : f32 to vector<8x128xf32>
    %794 = arith.cmpf ogt, %792, %793 : vector<8x128xf32>
    %795 = arith.extui %794 : vector<8x128xi1> to vector<8x128xi32>
    %796 = arith.sitofp %795 : vector<8x128xi32> to vector<8x128xf32>
    %797 = arith.truncf %796 : vector<8x128xf32> to vector<8x128xbf16>
    %c0_375 = arith.constant 0 : index
    %c0_376 = arith.constant 0 : index
    %798 = vector.load %arg2[%c0_375, %c0_376] : memref<128x128xbf16, #tpu.memory_space<vmem>>, vector<128x128xbf16>
    %c0_377 = arith.constant 0 : index
    %c0_378 = arith.constant 0 : index
    %799 = vector.load %arg3[%c0_377, %c0_378] : memref<8x128xf32, #tpu.memory_space<vmem>>, vector<8x128xf32>
    %cst_379 = arith.constant dense<0.000000e+00> : vector<8x128xf32>
    %800 = tpu.matmul %797, %798, %cst_379 {dimension_numbers = #tpu.dot_dimension_numbers<[1], [0], [0], [1], [0, 0, 1, 1], [], []>} : vector<8x128xbf16>, vector<128x128xbf16>, vector<8x128xf32> -> vector<8x128xf32>
    %801 = arith.addf %800, %799 : vector<8x128xf32>
    %cst_380 = arith.constant 5.000000e-01 : f32
    %802 = vector.broadcast %cst_380 : f32 to vector<8x128xf32>
    %803 = arith.cmpf ogt, %618, %802 : vector<8x128xf32>
    %804 = arith.extui %803 : vector<8x128xi1> to vector<8x128xi32>
    %805 = arith.sitofp %804 : vector<8x128xi32> to vector<8x128xf32>
    %cst_381 = arith.constant 0.949999988 : f32
    %806 = vector.broadcast %cst_381 : f32 to vector<8x128xf32>
    %807 = arith.mulf %806, %618 : vector<8x128xf32>
    %808 = arith.addf %807, %801 : vector<8x128xf32>
    %cst_382 = arith.constant 5.000000e-01 : f32
    %809 = vector.broadcast %cst_382 : f32 to vector<8x128xf32>
    %810 = arith.mulf %805, %809 : vector<8x128xf32>
    %811 = arith.subf %808, %810 : vector<8x128xf32>
    %cst_383 = arith.constant 5.000000e-01 : f32
    %812 = vector.broadcast %cst_383 : f32 to vector<8x128xf32>
    %813 = arith.cmpf ogt, %811, %812 : vector<8x128xf32>
    %814 = arith.extui %813 : vector<8x128xi1> to vector<8x128xi32>
    %815 = arith.sitofp %814 : vector<8x128xi32> to vector<8x128xf32>
    %816 = arith.truncf %815 : vector<8x128xf32> to vector<8x128xbf16>
    %c0_384 = arith.constant 0 : index
    %c0_385 = arith.constant 0 : index
    %817 = vector.load %arg4[%c0_384, %c0_385] : memref<128x128xbf16, #tpu.memory_space<vmem>>, vector<128x128xbf16>
    %c0_386 = arith.constant 0 : index
    %c0_387 = arith.constant 0 : index
    %818 = vector.load %arg5[%c0_386, %c0_387] : memref<8x128xf32, #tpu.memory_space<vmem>>, vector<8x128xf32>
    %cst_388 = arith.constant dense<0.000000e+00> : vector<8x128xf32>
    %819 = tpu.matmul %816, %817, %cst_388 {dimension_numbers = #tpu.dot_dimension_numbers<[1], [0], [0], [1], [0, 0, 1, 1], [], []>} : vector<8x128xbf16>, vector<128x128xbf16>, vector<8x128xf32> -> vector<8x128xf32>
    %820 = arith.addf %819, %818 : vector<8x128xf32>
    %cst_389 = arith.constant 5.000000e-01 : f32
    %821 = vector.broadcast %cst_389 : f32 to vector<8x128xf32>
    %822 = arith.cmpf ogt, %637, %821 : vector<8x128xf32>
    %823 = arith.extui %822 : vector<8x128xi1> to vector<8x128xi32>
    %824 = arith.sitofp %823 : vector<8x128xi32> to vector<8x128xf32>
    %cst_390 = arith.constant 0.949999988 : f32
    %825 = vector.broadcast %cst_390 : f32 to vector<8x128xf32>
    %826 = arith.mulf %825, %637 : vector<8x128xf32>
    %827 = arith.addf %826, %820 : vector<8x128xf32>
    %cst_391 = arith.constant 5.000000e-01 : f32
    %828 = vector.broadcast %cst_391 : f32 to vector<8x128xf32>
    %829 = arith.mulf %824, %828 : vector<8x128xf32>
    %830 = arith.subf %827, %829 : vector<8x128xf32>
    %cst_392 = arith.constant 5.000000e-01 : f32
    %831 = vector.broadcast %cst_392 : f32 to vector<8x128xf32>
    %832 = arith.cmpf ogt, %830, %831 : vector<8x128xf32>
    %833 = arith.extui %832 : vector<8x128xi1> to vector<8x128xi32>
    %834 = arith.sitofp %833 : vector<8x128xi32> to vector<8x128xf32>
    %835 = arith.truncf %834 : vector<8x128xf32> to vector<8x128xbf16>
    %c0_393 = arith.constant 0 : index
    %c0_394 = arith.constant 0 : index
    %836 = vector.load %arg6[%c0_393, %c0_394] : memref<128x128xbf16, #tpu.memory_space<vmem>>, vector<128x128xbf16>
    %c0_395 = arith.constant 0 : index
    %c0_396 = arith.constant 0 : index
    %837 = vector.load %arg7[%c0_395, %c0_396] : memref<8x128xf32, #tpu.memory_space<vmem>>, vector<8x128xf32>
    %cst_397 = arith.constant dense<0.000000e+00> : vector<8x128xf32>
    %838 = tpu.matmul %835, %836, %cst_397 {dimension_numbers = #tpu.dot_dimension_numbers<[1], [0], [0], [1], [0, 0, 1, 1], [], []>} : vector<8x128xbf16>, vector<128x128xbf16>, vector<8x128xf32> -> vector<8x128xf32>
    %839 = arith.addf %838, %837 : vector<8x128xf32>
    %cst_398 = arith.constant 5.000000e-01 : f32
    %840 = vector.broadcast %cst_398 : f32 to vector<8x128xf32>
    %841 = arith.cmpf ogt, %656, %840 : vector<8x128xf32>
    %842 = arith.extui %841 : vector<8x128xi1> to vector<8x128xi32>
    %843 = arith.sitofp %842 : vector<8x128xi32> to vector<8x128xf32>
    %cst_399 = arith.constant 0.949999988 : f32
    %844 = vector.broadcast %cst_399 : f32 to vector<8x128xf32>
    %845 = arith.mulf %844, %656 : vector<8x128xf32>
    %846 = arith.addf %845, %839 : vector<8x128xf32>
    %cst_400 = arith.constant 5.000000e-01 : f32
    %847 = vector.broadcast %cst_400 : f32 to vector<8x128xf32>
    %848 = arith.mulf %843, %847 : vector<8x128xf32>
    %849 = arith.subf %846, %848 : vector<8x128xf32>
    %cst_401 = arith.constant 5.000000e-01 : f32
    %850 = vector.broadcast %cst_401 : f32 to vector<8x128xf32>
    %851 = arith.cmpf ogt, %849, %850 : vector<8x128xf32>
    %852 = arith.extui %851 : vector<8x128xi1> to vector<8x128xi32>
    %853 = arith.sitofp %852 : vector<8x128xi32> to vector<8x128xf32>
    %854 = arith.truncf %853 : vector<8x128xf32> to vector<8x128xbf16>
    %c0_402 = arith.constant 0 : index
    %c0_403 = arith.constant 0 : index
    %855 = vector.load %arg8[%c0_402, %c0_403] : memref<128x128xbf16, #tpu.memory_space<vmem>>, vector<128x128xbf16>
    %c0_404 = arith.constant 0 : index
    %c0_405 = arith.constant 0 : index
    %856 = vector.load %arg9[%c0_404, %c0_405] : memref<8x128xf32, #tpu.memory_space<vmem>>, vector<8x128xf32>
    %cst_406 = arith.constant dense<0.000000e+00> : vector<8x128xf32>
    %857 = tpu.matmul %854, %855, %cst_406 {dimension_numbers = #tpu.dot_dimension_numbers<[1], [0], [0], [1], [0, 0, 1, 1], [], []>} : vector<8x128xbf16>, vector<128x128xbf16>, vector<8x128xf32> -> vector<8x128xf32>
    %858 = arith.addf %857, %856 : vector<8x128xf32>
    %cst_407 = arith.constant 5.000000e-01 : f32
    %859 = vector.broadcast %cst_407 : f32 to vector<8x128xf32>
    %860 = arith.cmpf ogt, %675, %859 : vector<8x128xf32>
    %861 = arith.extui %860 : vector<8x128xi1> to vector<8x128xi32>
    %862 = arith.sitofp %861 : vector<8x128xi32> to vector<8x128xf32>
    %cst_408 = arith.constant 0.949999988 : f32
    %863 = vector.broadcast %cst_408 : f32 to vector<8x128xf32>
    %864 = arith.mulf %863, %675 : vector<8x128xf32>
    %865 = arith.addf %864, %858 : vector<8x128xf32>
    %cst_409 = arith.constant 5.000000e-01 : f32
    %866 = vector.broadcast %cst_409 : f32 to vector<8x128xf32>
    %867 = arith.mulf %862, %866 : vector<8x128xf32>
    %868 = arith.subf %865, %867 : vector<8x128xf32>
    %cst_410 = arith.constant 5.000000e-01 : f32
    %869 = vector.broadcast %cst_410 : f32 to vector<8x128xf32>
    %870 = arith.cmpf ogt, %868, %869 : vector<8x128xf32>
    %871 = arith.extui %870 : vector<8x128xi1> to vector<8x128xi32>
    %872 = arith.sitofp %871 : vector<8x128xi32> to vector<8x128xf32>
    %873 = arith.truncf %872 : vector<8x128xf32> to vector<8x128xbf16>
    %c0_411 = arith.constant 0 : index
    %c0_412 = arith.constant 0 : index
    %874 = vector.load %arg10[%c0_411, %c0_412] : memref<128x128xbf16, #tpu.memory_space<vmem>>, vector<128x128xbf16>
    %c0_413 = arith.constant 0 : index
    %c0_414 = arith.constant 0 : index
    %875 = vector.load %arg11[%c0_413, %c0_414] : memref<8x128xf32, #tpu.memory_space<vmem>>, vector<8x128xf32>
    %cst_415 = arith.constant dense<0.000000e+00> : vector<8x128xf32>
    %876 = tpu.matmul %873, %874, %cst_415 {dimension_numbers = #tpu.dot_dimension_numbers<[1], [0], [0], [1], [0, 0, 1, 1], [], []>} : vector<8x128xbf16>, vector<128x128xbf16>, vector<8x128xf32> -> vector<8x128xf32>
    %877 = arith.addf %876, %875 : vector<8x128xf32>
    %cst_416 = arith.constant 5.000000e-01 : f32
    %878 = vector.broadcast %cst_416 : f32 to vector<8x128xf32>
    %879 = arith.cmpf ogt, %694, %878 : vector<8x128xf32>
    %880 = arith.extui %879 : vector<8x128xi1> to vector<8x128xi32>
    %881 = arith.sitofp %880 : vector<8x128xi32> to vector<8x128xf32>
    %cst_417 = arith.constant 0.949999988 : f32
    %882 = vector.broadcast %cst_417 : f32 to vector<8x128xf32>
    %883 = arith.mulf %882, %694 : vector<8x128xf32>
    %884 = arith.addf %883, %877 : vector<8x128xf32>
    %cst_418 = arith.constant 5.000000e-01 : f32
    %885 = vector.broadcast %cst_418 : f32 to vector<8x128xf32>
    %886 = arith.mulf %881, %885 : vector<8x128xf32>
    %887 = arith.subf %884, %886 : vector<8x128xf32>
    %cst_419 = arith.constant 5.000000e-01 : f32
    %888 = vector.broadcast %cst_419 : f32 to vector<8x128xf32>
    %889 = arith.cmpf ogt, %887, %888 : vector<8x128xf32>
    %890 = arith.extui %889 : vector<8x128xi1> to vector<8x128xi32>
    %891 = arith.sitofp %890 : vector<8x128xi32> to vector<8x128xf32>
    %892 = arith.truncf %891 : vector<8x128xf32> to vector<8x128xbf16>
    %c0_420 = arith.constant 0 : index
    %c0_421 = arith.constant 0 : index
    %893 = vector.load %arg12[%c0_420, %c0_421] : memref<128x128xbf16, #tpu.memory_space<vmem>>, vector<128x128xbf16>
    %c0_422 = arith.constant 0 : index
    %c0_423 = arith.constant 0 : index
    %894 = vector.load %arg13[%c0_422, %c0_423] : memref<8x128xf32, #tpu.memory_space<vmem>>, vector<8x128xf32>
    %cst_424 = arith.constant dense<0.000000e+00> : vector<8x128xf32>
    %895 = tpu.matmul %892, %893, %cst_424 {dimension_numbers = #tpu.dot_dimension_numbers<[1], [0], [0], [1], [0, 0, 1, 1], [], []>} : vector<8x128xbf16>, vector<128x128xbf16>, vector<8x128xf32> -> vector<8x128xf32>
    %896 = arith.addf %895, %894 : vector<8x128xf32>
    %cst_425 = arith.constant 5.000000e-01 : f32
    %897 = vector.broadcast %cst_425 : f32 to vector<8x128xf32>
    %898 = arith.cmpf ogt, %713, %897 : vector<8x128xf32>
    %899 = arith.extui %898 : vector<8x128xi1> to vector<8x128xi32>
    %900 = arith.sitofp %899 : vector<8x128xi32> to vector<8x128xf32>
    %cst_426 = arith.constant 0.949999988 : f32
    %901 = vector.broadcast %cst_426 : f32 to vector<8x128xf32>
    %902 = arith.mulf %901, %713 : vector<8x128xf32>
    %903 = arith.addf %902, %896 : vector<8x128xf32>
    %cst_427 = arith.constant 5.000000e-01 : f32
    %904 = vector.broadcast %cst_427 : f32 to vector<8x128xf32>
    %905 = arith.mulf %900, %904 : vector<8x128xf32>
    %906 = arith.subf %903, %905 : vector<8x128xf32>
    %cst_428 = arith.constant 5.000000e-01 : f32
    %907 = vector.broadcast %cst_428 : f32 to vector<8x128xf32>
    %908 = arith.cmpf ogt, %906, %907 : vector<8x128xf32>
    %909 = arith.extui %908 : vector<8x128xi1> to vector<8x128xi32>
    %910 = arith.sitofp %909 : vector<8x128xi32> to vector<8x128xf32>
    %911 = arith.truncf %910 : vector<8x128xf32> to vector<8x128xbf16>
    %c0_429 = arith.constant 0 : index
    %c0_430 = arith.constant 0 : index
    %912 = vector.load %arg14[%c0_429, %c0_430] : memref<128x128xbf16, #tpu.memory_space<vmem>>, vector<128x128xbf16>
    %c0_431 = arith.constant 0 : index
    %c0_432 = arith.constant 0 : index
    %913 = vector.load %arg15[%c0_431, %c0_432] : memref<8x128xf32, #tpu.memory_space<vmem>>, vector<8x128xf32>
    %cst_433 = arith.constant dense<0.000000e+00> : vector<8x128xf32>
    %914 = tpu.matmul %911, %912, %cst_433 {dimension_numbers = #tpu.dot_dimension_numbers<[1], [0], [0], [1], [0, 0, 1, 1], [], []>} : vector<8x128xbf16>, vector<128x128xbf16>, vector<8x128xf32> -> vector<8x128xf32>
    %915 = arith.addf %914, %913 : vector<8x128xf32>
    %cst_434 = arith.constant 5.000000e-01 : f32
    %916 = vector.broadcast %cst_434 : f32 to vector<8x128xf32>
    %917 = arith.cmpf ogt, %732, %916 : vector<8x128xf32>
    %918 = arith.extui %917 : vector<8x128xi1> to vector<8x128xi32>
    %919 = arith.sitofp %918 : vector<8x128xi32> to vector<8x128xf32>
    %cst_435 = arith.constant 0.949999988 : f32
    %920 = vector.broadcast %cst_435 : f32 to vector<8x128xf32>
    %921 = arith.mulf %920, %732 : vector<8x128xf32>
    %922 = arith.addf %921, %915 : vector<8x128xf32>
    %cst_436 = arith.constant 5.000000e-01 : f32
    %923 = vector.broadcast %cst_436 : f32 to vector<8x128xf32>
    %924 = arith.mulf %919, %923 : vector<8x128xf32>
    %925 = arith.subf %922, %924 : vector<8x128xf32>
    %cst_437 = arith.constant 5.000000e-01 : f32
    %926 = vector.broadcast %cst_437 : f32 to vector<8x128xf32>
    %927 = arith.cmpf ogt, %925, %926 : vector<8x128xf32>
    %928 = arith.extui %927 : vector<8x128xi1> to vector<8x128xi32>
    %929 = arith.sitofp %928 : vector<8x128xi32> to vector<8x128xf32>
    %930 = arith.truncf %929 : vector<8x128xf32> to vector<8x128xbf16>
    %c0_438 = arith.constant 0 : index
    %c0_439 = arith.constant 0 : index
    %931 = vector.load %arg16[%c0_438, %c0_439] : memref<128x128xbf16, #tpu.memory_space<vmem>>, vector<128x128xbf16>
    %c0_440 = arith.constant 0 : index
    %c0_441 = arith.constant 0 : index
    %932 = vector.load %arg17[%c0_440, %c0_441] : memref<8x128xf32, #tpu.memory_space<vmem>>, vector<8x128xf32>
    %cst_442 = arith.constant dense<0.000000e+00> : vector<8x128xf32>
    %933 = tpu.matmul %930, %931, %cst_442 {dimension_numbers = #tpu.dot_dimension_numbers<[1], [0], [0], [1], [0, 0, 1, 1], [], []>} : vector<8x128xbf16>, vector<128x128xbf16>, vector<8x128xf32> -> vector<8x128xf32>
    %934 = arith.addf %933, %932 : vector<8x128xf32>
    %cst_443 = arith.constant 5.000000e-01 : f32
    %935 = vector.broadcast %cst_443 : f32 to vector<8x128xf32>
    %936 = arith.cmpf ogt, %751, %935 : vector<8x128xf32>
    %937 = arith.extui %936 : vector<8x128xi1> to vector<8x128xi32>
    %938 = arith.sitofp %937 : vector<8x128xi32> to vector<8x128xf32>
    %cst_444 = arith.constant 0.949999988 : f32
    %939 = vector.broadcast %cst_444 : f32 to vector<8x128xf32>
    %940 = arith.mulf %939, %751 : vector<8x128xf32>
    %941 = arith.addf %940, %934 : vector<8x128xf32>
    %cst_445 = arith.constant 5.000000e-01 : f32
    %942 = vector.broadcast %cst_445 : f32 to vector<8x128xf32>
    %943 = arith.mulf %938, %942 : vector<8x128xf32>
    %944 = arith.subf %941, %943 : vector<8x128xf32>
    %cst_446 = arith.constant 5.000000e-01 : f32
    %945 = vector.broadcast %cst_446 : f32 to vector<8x128xf32>
    %946 = arith.cmpf ogt, %944, %945 : vector<8x128xf32>
    %947 = arith.extui %946 : vector<8x128xi1> to vector<8x128xi32>
    %948 = arith.sitofp %947 : vector<8x128xi32> to vector<8x128xf32>
    %949 = arith.truncf %948 : vector<8x128xf32> to vector<8x128xbf16>
    %c0_447 = arith.constant 0 : index
    %c0_448 = arith.constant 0 : index
    %950 = vector.load %arg18[%c0_447, %c0_448] : memref<128x128xbf16, #tpu.memory_space<vmem>>, vector<128x128xbf16>
    %c0_449 = arith.constant 0 : index
    %c0_450 = arith.constant 0 : index
    %951 = vector.load %arg19[%c0_449, %c0_450] : memref<8x128xf32, #tpu.memory_space<vmem>>, vector<8x128xf32>
    %cst_451 = arith.constant dense<0.000000e+00> : vector<8x128xf32>
    %952 = tpu.matmul %949, %950, %cst_451 {dimension_numbers = #tpu.dot_dimension_numbers<[1], [0], [0], [1], [0, 0, 1, 1], [], []>} : vector<8x128xbf16>, vector<128x128xbf16>, vector<8x128xf32> -> vector<8x128xf32>
    %953 = arith.addf %952, %951 : vector<8x128xf32>
    %cst_452 = arith.constant 5.000000e-01 : f32
    %954 = vector.broadcast %cst_452 : f32 to vector<8x128xf32>
    %955 = arith.cmpf ogt, %770, %954 : vector<8x128xf32>
    %956 = arith.extui %955 : vector<8x128xi1> to vector<8x128xi32>
    %957 = arith.sitofp %956 : vector<8x128xi32> to vector<8x128xf32>
    %cst_453 = arith.constant 0.949999988 : f32
    %958 = vector.broadcast %cst_453 : f32 to vector<8x128xf32>
    %959 = arith.mulf %958, %770 : vector<8x128xf32>
    %960 = arith.addf %959, %953 : vector<8x128xf32>
    %cst_454 = arith.constant 5.000000e-01 : f32
    %961 = vector.broadcast %cst_454 : f32 to vector<8x128xf32>
    %962 = arith.mulf %957, %961 : vector<8x128xf32>
    %963 = arith.subf %960, %962 : vector<8x128xf32>
    %cst_455 = arith.constant 5.000000e-01 : f32
    %964 = vector.broadcast %cst_455 : f32 to vector<8x128xf32>
    %965 = arith.cmpf ogt, %963, %964 : vector<8x128xf32>
    %966 = arith.extui %965 : vector<8x128xi1> to vector<8x128xi32>
    %967 = arith.sitofp %966 : vector<8x128xi32> to vector<8x128xf32>
    %968 = arith.truncf %967 : vector<8x128xf32> to vector<8x128xbf16>
    %969 = arith.extf %968 : vector<8x128xbf16> to vector<8x128xf32>
    %c4 = arith.constant 4 : index
    %c0_456 = arith.constant 0 : index
    %c0_457 = arith.constant 0 : index
    %970 = vector.load %arg20[%c4, %c0_456, %c0_457] : memref<5x8x128xf32, #tpu.memory_space<vmem>>, vector<1x8x128xf32>
    %971 = vector.shape_cast %970 : vector<1x8x128xf32> to vector<8x128xf32>
    %972 = vector.shape_cast %969 : vector<8x128xf32> to vector<1x8x128xf32>
    tpu.vector_store %arg20[%c4, %c0_456, %c0_457], %972 {strides = array<i32>} : memref<5x8x128xf32, #tpu.memory_space<vmem>>, vector<1x8x128xf32>,
    %c4_458 = arith.constant 4 : index
    %c0_459 = arith.constant 0 : index
    %c0_460 = arith.constant 0 : index
    %973 = vector.load %arg21[%c4_458, %c0_459, %c0_460] : memref<5x8x128xf32, #tpu.memory_space<vmem>>, vector<1x8x128xf32>
    %974 = vector.shape_cast %973 : vector<1x8x128xf32> to vector<8x128xf32>
    %975 = vector.shape_cast %963 : vector<8x128xf32> to vector<1x8x128xf32>
    tpu.vector_store %arg21[%c4_458, %c0_459, %c0_460], %975 {strides = array<i32>} : memref<5x8x128xf32, #tpu.memory_space<vmem>>, vector<1x8x128xf32>,
    return
  }
  func.func @transform_0(%arg0: i32) -> (i32, i32) {
    %c0_i32 = arith.constant 0 : i32
    %c0_i32_0 = arith.constant 0 : i32
    return %arg0, %c0_i32 : i32, i32
  }
  func.func @transform_1(%arg0: i32) -> (i32, i32) {
    %c0_i32 = arith.constant 0 : i32
    %c0_i32_0 = arith.constant 0 : i32
    %c0_i32_1 = arith.constant 0 : i32
    return %c0_i32, %c0_i32_0 : i32, i32
  }
  func.func @transform_2(%arg0: i32) -> (i32, i32) {
    %c0_i32 = arith.constant 0 : i32
    %c0_i32_0 = arith.constant 0 : i32
    %c0_i32_1 = arith.constant 0 : i32
    return %c0_i32, %c0_i32_0 : i32, i32
  }
  func.func @transform_3(%arg0: i32) -> (i32, i32) {
    %c0_i32 = arith.constant 0 : i32
    %c0_i32_0 = arith.constant 0 : i32
    %c0_i32_1 = arith.constant 0 : i32
    return %c0_i32, %c0_i32_0 : i32, i32
  }
  func.func @transform_4(%arg0: i32) -> (i32, i32) {
    %c0_i32 = arith.constant 0 : i32
    %c0_i32_0 = arith.constant 0 : i32
    %c0_i32_1 = arith.constant 0 : i32
    return %c0_i32, %c0_i32_0 : i32, i32
  }
  func.func @transform_5(%arg0: i32) -> (i32, i32) {
    %c0_i32 = arith.constant 0 : i32
    %c0_i32_0 = arith.constant 0 : i32
    %c0_i32_1 = arith.constant 0 : i32
    return %c0_i32, %c0_i32_0 : i32, i32
  }
  func.func @transform_6(%arg0: i32) -> (i32, i32) {
    %c0_i32 = arith.constant 0 : i32
    %c0_i32_0 = arith.constant 0 : i32
    %c0_i32_1 = arith.constant 0 : i32
    return %c0_i32, %c0_i32_0 : i32, i32
  }
  func.func @transform_7(%arg0: i32) -> (i32, i32) {
    %c0_i32 = arith.constant 0 : i32
    %c0_i32_0 = arith.constant 0 : i32
    %c0_i32_1 = arith.constant 0 : i32
    return %c0_i32, %c0_i32_0 : i32, i32
  }
  func.func @transform_8(%arg0: i32) -> (i32, i32) {
    %c0_i32 = arith.constant 0 : i32
    %c0_i32_0 = arith.constant 0 : i32
    %c0_i32_1 = arith.constant 0 : i32
    return %c0_i32, %c0_i32_0 : i32, i32
  }
  func.func @transform_9(%arg0: i32) -> (i32, i32) {
    %c0_i32 = arith.constant 0 : i32
    %c0_i32_0 = arith.constant 0 : i32
    %c0_i32_1 = arith.constant 0 : i32
    return %c0_i32, %c0_i32_0 : i32, i32
  }
  func.func @transform_10(%arg0: i32) -> (i32, i32) {
    %c0_i32 = arith.constant 0 : i32
    %c0_i32_0 = arith.constant 0 : i32
    %c0_i32_1 = arith.constant 0 : i32
    return %c0_i32, %c0_i32_0 : i32, i32
  }
  func.func @transform_11(%arg0: i32) -> (i32, i32) {
    %c0_i32 = arith.constant 0 : i32
    %c0_i32_0 = arith.constant 0 : i32
    %c0_i32_1 = arith.constant 0 : i32
    return %c0_i32, %c0_i32_0 : i32, i32
  }
  func.func @transform_12(%arg0: i32) -> (i32, i32) {
    %c0_i32 = arith.constant 0 : i32
    %c0_i32_0 = arith.constant 0 : i32
    %c0_i32_1 = arith.constant 0 : i32
    return %c0_i32, %c0_i32_0 : i32, i32
  }
  func.func @transform_13(%arg0: i32) -> (i32, i32) {
    %c0_i32 = arith.constant 0 : i32
    %c0_i32_0 = arith.constant 0 : i32
    %c0_i32_1 = arith.constant 0 : i32
    return %c0_i32, %c0_i32_0 : i32, i32
  }
  func.func @transform_14(%arg0: i32) -> (i32, i32) {
    %c0_i32 = arith.constant 0 : i32
    %c0_i32_0 = arith.constant 0 : i32
    %c0_i32_1 = arith.constant 0 : i32
    return %c0_i32, %c0_i32_0 : i32, i32
  }
  func.func @transform_15(%arg0: i32) -> (i32, i32) {
    %c0_i32 = arith.constant 0 : i32
    %c0_i32_0 = arith.constant 0 : i32
    %c0_i32_1 = arith.constant 0 : i32
    return %c0_i32, %c0_i32_0 : i32, i32
  }
  func.func @transform_16(%arg0: i32) -> (i32, i32) {
    %c0_i32 = arith.constant 0 : i32
    %c0_i32_0 = arith.constant 0 : i32
    %c0_i32_1 = arith.constant 0 : i32
    return %c0_i32, %c0_i32_0 : i32, i32
  }
  func.func @transform_17(%arg0: i32) -> (i32, i32) {
    %c0_i32 = arith.constant 0 : i32
    %c0_i32_0 = arith.constant 0 : i32
    %c0_i32_1 = arith.constant 0 : i32
    return %c0_i32, %c0_i32_0 : i32, i32
  }
  func.func @transform_18(%arg0: i32) -> (i32, i32) {
    %c0_i32 = arith.constant 0 : i32
    %c0_i32_0 = arith.constant 0 : i32
    %c0_i32_1 = arith.constant 0 : i32
    return %c0_i32, %c0_i32_0 : i32, i32
  }
  func.func @transform_19(%arg0: i32) -> (i32, i32, i32) {
    %c0_i32 = arith.constant 0 : i32
    %c0_i32_0 = arith.constant 0 : i32
    %c0_i32_1 = arith.constant 0 : i32
    return %c0_i32, %arg0, %c0_i32_0 : i32, i32, i32
  }
  func.func @transform_20(%arg0: i32) -> (i32, i32, i32) {
    %c0_i32 = arith.constant 0 : i32
    %c0_i32_0 = arith.constant 0 : i32
    %c0_i32_1 = arith.constant 0 : i32
    return %c0_i32, %arg0, %c0_i32_0 : i32, i32, i32
  }
}

</mosaic_0001>

<llo_original>
// kernel: tpu_custom_call.1
$region0: #{tpu_custom_call.1}
  #allocation0 [shape = 'u32[]', space=smem, size = 0x4, offset = 0x4, fixed_abs, tag = 'smem constant byte address 0x4 - core index']
  #allocation1 [shape = 'u32[144,128]{1,0:T(1,128)}', space=vmem, size = 0x12000, scoped, tag = 'internal scratch']
  %s0 = inlined_call_operand.hbm [shape: f32[8,128], index: 0, kind: input, shape index: {}]
  %s1 = inlined_call_operand.hbm [shape: bf16[128,128], index: 1, kind: input, shape index: {}]
  %s2 = inlined_call_operand.hbm [shape: f32[8,128], index: 2, kind: input, shape index: {}]
  %s3 = inlined_call_operand.hbm [shape: bf16[128,128], index: 3, kind: input, shape index: {}]
  %s4 = inlined_call_operand.hbm [shape: f32[8,128], index: 4, kind: input, shape index: {}]
  %s5 = inlined_call_operand.hbm [shape: bf16[128,128], index: 5, kind: input, shape index: {}]
  %s6 = inlined_call_operand.hbm [shape: f32[8,128], index: 6, kind: input, shape index: {}]
  %s7 = inlined_call_operand.hbm [shape: bf16[128,128], index: 7, kind: input, shape index: {}]
  %s8 = inlined_call_operand.hbm [shape: f32[8,128], index: 8, kind: input, shape index: {}]
  %s9 = inlined_call_operand.hbm [shape: bf16[128,128], index: 9, kind: input, shape index: {}]
  %s10 = inlined_call_operand.hbm [shape: f32[8,128], index: 10, kind: input, shape index: {}]
  %s11 = inlined_call_operand.hbm [shape: bf16[128,128], index: 11, kind: input, shape index: {}]
  %s12 = inlined_call_operand.hbm [shape: f32[8,128], index: 12, kind: input, shape index: {}]
  %s13 = inlined_call_operand.hbm [shape: bf16[128,128], index: 13, kind: input, shape index: {}]
  %s14 = inlined_call_operand.hbm [shape: f32[8,128], index: 14, kind: input, shape index: {}]
  %s15 = inlined_call_operand.hbm [shape: bf16[128,128], index: 15, kind: input, shape index: {}]
  %s16 = inlined_call_operand.hbm [shape: f32[8,128], index: 16, kind: input, shape index: {}]
  %s17 = inlined_call_operand.vmem [shape: bf16[128,128], index: 17, kind: input, shape index: {}]
  %s18 = inlined_call_operand.hbm [shape: f32[8,128], index: 18, kind: input, shape index: {}]
  %s19 = inlined_call_operand.hbm [shape: f32[5,8,128], index: 19, kind: output, shape index: {0}]
  %s20 = inlined_call_operand.hbm [shape: f32[5,8,128], index: 20, kind: output, shape index: {1}]
  %21 = xla_tuple %s19, %s20
  %s22 = sld [smem:[#allocation0]]
  $region166: #{tpu_custom_call.1} parent=0
    _
  %s24 = ssub.s32 1, %s22
  %s25 = scalar_select 0, %s24, %s22
  $region1: #{tpu_custom_call.1} parent=0
    #allocation2 [shape = 'u8[4096]{0}', space=vmem, size = 0x1000, scoped, tag = 'input window, operand 0, single buffered']
    #allocation3 [shape = 's32[1]{0}', space=sflag, size = 0x4, scoped, tag = 'scoped memory for tpu_custom_call.1']
    #allocation4 [shape = 's32[1]{0}', space=sflag, size = 0x4, scoped, tag = 'scoped memory for tpu_custom_call.1']
    #allocation5 [shape = 'u8[32768]{0}', space=vmem, size = 0x8000, scoped, tag = 'input window, operand 1, single buffered']
    #allocation6 [shape = 's32[1]{0}', space=sflag, size = 0x4, scoped, tag = 'scoped memory for tpu_custom_call.1']
    #allocation7 [shape = 'u8[4096]{0}', space=vmem, size = 0x1000, scoped, tag = 'input window, operand 2, single buffered']
    #allocation8 [shape = 'u8[32768]{0}', space=vmem, size = 0x8000, scoped, tag = 'input window, operand 3, single buffered']
    #allocation9 [shape = 's32[1]{0}', space=sflag, size = 0x4, scoped, tag = 'scoped memory for tpu_custom_call.1']
    #allocation10 [shape = 'u8[4096]{0}', space=vmem, size = 0x1000, scoped, tag = 'input window, operand 4, single buffered']
    #allocation11 [shape = 'u8[32768]{0}', space=vmem, size = 0x8000, scoped, tag = 'input window, operand 5, single buffered']
    #allocation12 [shape = 's32[1]{0}', space=sflag, size = 0x4, scoped, tag = 'scoped memory for tpu_custom_call.1']
    #allocation13 [shape = 'u8[4096]{0}', space=vmem, size = 0x1000, scoped, tag = 'input window, operand 6, single buffered']
    #allocation14 [shape = 'u8[32768]{0}', space=vmem, size = 0x8000, scoped, tag = 'input window, operand 7, single buffered']
    #allocation15 [shape = 's32[1]{0}', space=sflag, size = 0x4, scoped, tag = 'scoped memory for tpu_custom_call.1']
    #allocation16 [shape = 'u8[4096]{0}', space=vmem, size = 0x1000, scoped, tag = 'input window, operand 8, single buffered']
    #allocation17 [shape = 'u8[32768]{0}', space=vmem, size = 0x8000, scoped, tag = 'input window, operand 9, single buffered']
    #allocation18 [shape = 's32[1]{0}', space=sflag, size = 0x4, scoped, tag = 'scoped memory for tpu_custom_call.1']
    #allocation19 [shape = 'u8[4096]{0}', space=vmem, size = 0x1000, scoped, tag = 'input window, operand 10, single buffered']
    #allocation20 [shape = 'u8[32768]{0}', space=vmem, size = 0x8000, scoped, tag = 'input window, operand 11, single buffered']
    #allocation21 [shape = 's32[1]{0}', space=sflag, size = 0x4, scoped, tag = 'scoped memory for tpu_custom_call.1']
    #allocation22 [shape = 'u8[4096]{0}', space=vmem, size = 0x1000, scoped, tag = 'input window, operand 12, single buffered']
    #allocation23 [shape = 'u8[32768]{0}', space=vmem, size = 0x8000, scoped, tag = 'input window, operand 13, single buffered']
    #allocation24 [shape = 's32[1]{0}', space=sflag, size = 0x4, scoped, tag = 'scoped memory for tpu_custom_call.1']
    #allocation25 [shape = 'u8[4096]{0}', space=vmem, size = 0x1000, scoped, tag = 'input window, operand 14, single buffered']
    #allocation26 [shape = 'u8[32768]{0}', space=vmem, size = 0x8000, scoped, tag = 'input window, operand 15, single buffered']
    #allocation27 [shape = 's32[1]{0}', space=sflag, size = 0x4, scoped, tag = 'scoped memory for tpu_custom_call.1']
    #allocation28 [shape = 'u8[4096]{0}', space=vmem, size = 0x1000, scoped, tag = 'input window, operand 16, single buffered']
    #allocation29 [shape = 'u8[4096]{0}', space=vmem, size = 0x1000, scoped, tag = 'input window, operand 18, single buffered']
    #allocation30 [shape = 's32[1]{0}', space=sflag, size = 0x4, scoped, tag = 'scoped memory for tpu_custom_call.1']
    #allocation31 [shape = 'u8[20480]{0}', space=vmem, size = 0x5000, scoped, tag = 'output window, operand 0, single buffered']
    #allocation32 [shape = 'u8[20480]{0}', space=vmem, size = 0x5000, scoped, tag = 'output window, operand 1, single buffered']
    #allocation33 [shape = 's32[1]{0}', space=sflag, size = 0x4, scoped, tag = 'scoped memory for tpu_custom_call.1']
    %26 = vsyncpa [#allocation3], 0
    %27 = vsyncpa [#allocation6], 0
    %28 = vsyncpa [#allocation9], 0
    %29 = vsyncpa [#allocation12], 0
    %30 = vsyncpa [#allocation15], 0
    %31 = vsyncpa [#allocation18], 0
    %32 = vsyncpa [#allocation21], 0
    %33 = vsyncpa [#allocation24], 0
    %34 = vsyncpa [#allocation27], 0
    %35 = vsyncpa [#allocation30], 0
    %36 = vsyncpa [#allocation4], 0
    %37 = vsyncpa [#allocation33], 0
    // Predicated region
    $region2: #{tpu_custom_call.1} parent=1 // pred_check
      _
    $region3: #{tpu_custom_call.1} parent=1 // pred_check_branch
      %39 = sbr.rel (0) target = $region5
    $region4: #{tpu_custom_call.1} parent=1 // pred_region
      %s41 = ssub.s32 128, 128
      %42 = vsyncadd [#allocation3], %s41
      %s44 = sshll.u32 [#allocation2], 4
      %s45 = int_to_ptr.vmem [resolvable:$true] %s44
      %47 = dma.hbm_to_vmem [thread:$0]  %s0, 128, %s45, [#allocation3]
    $region5: #{tpu_custom_call.1} parent=1 // pred_fallthru
      _
    // Predicated region
    $region6: #{tpu_custom_call.1} parent=1 // pred_check
      _
    $region7: #{tpu_custom_call.1} parent=1 // pred_check_branch
      %49 = sbr.rel (0) target = $region9
    $region8: #{tpu_custom_call.1} parent=1 // pred_region
      %s51 = ssub.s32 1024, 1024
      %52 = vsyncadd [#allocation6], %s51
      %s53 = sshll.u32 [#allocation5], 4
      %s54 = int_to_ptr.vmem [resolvable:$true] %s53
      %59 = dma.hbm_to_vmem [thread:$0]  %s1, 1024, %s54, [#allocation6], 64, 64, 4
    $region9: #{tpu_custom_call.1} parent=1 // pred_fallthru
      _
    // Predicated region
    $region10: #{tpu_custom_call.1} parent=1 // pred_check
      _
    $region11: #{tpu_custom_call.1} parent=1 // pred_check_branch
      %61 = sbr.rel (0) target = $region13
    $region12: #{tpu_custom_call.1} parent=1 // pred_region
      %s63 = ssub.s32 128, 128
      %64 = vsyncadd [#allocation6], %s63
      %s66 = sshll.u32 [#allocation7], 4
      %s67 = int_to_ptr.vmem [resolvable:$true] %s66
      %69 = dma.hbm_to_vmem [thread:$0]  %s2, 128, %s67, [#allocation6]
    $region13: #{tpu_custom_call.1} parent=1 // pred_fallthru
      _
    // Predicated region
    $region14: #{tpu_custom_call.1} parent=1 // pred_check
      _
    $region15: #{tpu_custom_call.1} parent=1 // pred_check_branch
      %71 = sbr.rel (0) target = $region17
    $region16: #{tpu_custom_call.1} parent=1 // pred_region
      %s73 = ssub.s32 1024, 1024
      %74 = vsyncadd [#allocation9], %s73
      %s75 = sshll.u32 [#allocation8], 4
      %s76 = int_to_ptr.vmem [resolvable:$true] %s75
      %81 = dma.hbm_to_vmem [thread:$0]  %s3, 1024, %s76, [#allocation9], 64, 64, 4
    $region17: #{tpu_custom_call.1} parent=1 // pred_fallthru
      _
    // Predicated region
    $region18: #{tpu_custom_call.1} parent=1 // pred_check
      _
    $region19: #{tpu_custom_call.1} parent=1 // pred_check_branch
      %83 = sbr.rel (0) target = $region21
    $region20: #{tpu_custom_call.1} parent=1 // pred_region
      %s85 = ssub.s32 128, 128
      %86 = vsyncadd [#allocation9], %s85
      %s88 = sshll.u32 [#allocation10], 4
      %s89 = int_to_ptr.vmem [resolvable:$true] %s88
      %91 = dma.hbm_to_vmem [thread:$0]  %s4, 128, %s89, [#allocation9]
    $region21: #{tpu_custom_call.1} parent=1 // pred_fallthru
      _
    // Predicated region
    $region22: #{tpu_custom_call.1} parent=1 // pred_check
      _
    $region23: #{tpu_custom_call.1} parent=1 // pred_check_branch
      %93 = sbr.rel (0) target = $region25
    $region24: #{tpu_custom_call.1} parent=1 // pred_region
      %s95 = ssub.s32 1024, 1024
      %96 = vsyncadd [#allocation12], %s95
      %s97 = sshll.u32 [#allocation11], 4
      %s98 = int_to_ptr.vmem [resolvable:$true] %s97
      %103 = dma.hbm_to_vmem [thread:$0]  %s5, 1024, %s98, [#allocation12], 64, 64, 4
    $region25: #{tpu_custom_call.1} parent=1 // pred_fallthru
      _
    // Predicated region
    $region26: #{tpu_custom_call.1} parent=1 // pred_check
      _
    $region27: #{tpu_custom_call.1} parent=1 // pred_check_branch
      %105 = sbr.rel (0) target = $region29
    $region28: #{tpu_custom_call.1} parent=1 // pred_region
      %s107 = ssub.s32 128, 128
      %108 = vsyncadd [#allocation12], %s107
      %s110 = sshll.u32 [#allocation13], 4
      %s111 = int_to_ptr.vmem [resolvable:$true] %s110
      %113 = dma.hbm_to_vmem [thread:$0]  %s6, 128, %s111, [#allocation12]
    $region29: #{tpu_custom_call.1} parent=1 // pred_fallthru
      _
    // Predicated region
    $region30: #{tpu_custom_call.1} parent=1 // pred_check
      _
    $region31: #{tpu_custom_call.1} parent=1 // pred_check_branch
      %115 = sbr.rel (0) target = $region33
    $region32: #{tpu_custom_call.1} parent=1 // pred_region
      %s117 = ssub.s32 1024, 1024
      %118 = vsyncadd [#allocation15], %s117
      %s119 = sshll.u32 [#allocation14], 4
      %s120 = int_to_ptr.vmem [resolvable:$true] %s119
      %125 = dma.hbm_to_vmem [thread:$0]  %s7, 1024, %s120, [#allocation15], 64, 64, 4
    $region33: #{tpu_custom_call.1} parent=1 // pred_fallthru
      _
    // Predicated region
    $region34: #{tpu_custom_call.1} parent=1 // pred_check
      _
    $region35: #{tpu_custom_call.1} parent=1 // pred_check_branch
      %127 = sbr.rel (0) target = $region37
    $region36: #{tpu_custom_call.1} parent=1 // pred_region
      %s129 = ssub.s32 128, 128
      %130 = vsyncadd [#allocation15], %s129
      %s132 = sshll.u32 [#allocation16], 4
      %s133 = int_to_ptr.vmem [resolvable:$true] %s132
      %135 = dma.hbm_to_vmem [thread:$0]  %s8, 128, %s133, [#allocation15]
    $region37: #{tpu_custom_call.1} parent=1 // pred_fallthru
      _
    // Predicated region
    $region38: #{tpu_custom_call.1} parent=1 // pred_check
      _
    $region39: #{tpu_custom_call.1} parent=1 // pred_check_branch
      %137 = sbr.rel (0) target = $region41
    $region40: #{tpu_custom_call.1} parent=1 // pred_region
      %s139 = ssub.s32 1024, 1024
      %140 = vsyncadd [#allocation18], %s139
      %s141 = sshll.u32 [#allocation17], 4
      %s142 = int_to_ptr.vmem [resolvable:$true] %s141
      %147 = dma.hbm_to_vmem [thread:$0]  %s9, 1024, %s142, [#allocation18], 64, 64, 4
    $region41: #{tpu_custom_call.1} parent=1 // pred_fallthru
      _
    // Predicated region
    $region42: #{tpu_custom_call.1} parent=1 // pred_check
      _
    $region43: #{tpu_custom_call.1} parent=1 // pred_check_branch
      %149 = sbr.rel (0) target = $region45
    $region44: #{tpu_custom_call.1} parent=1 // pred_region
      %s151 = ssub.s32 128, 128
      %152 = vsyncadd [#allocation18], %s151
      %s154 = sshll.u32 [#allocation19], 4
      %s155 = int_to_ptr.vmem [resolvable:$true] %s154
      %157 = dma.hbm_to_vmem [thread:$0]  %s10, 128, %s155, [#allocation18]
    $region45: #{tpu_custom_call.1} parent=1 // pred_fallthru
      _
    // Predicated region
    $region46: #{tpu_custom_call.1} parent=1 // pred_check
      _
    $region47: #{tpu_custom_call.1} parent=1 // pred_check_branch
      %159 = sbr.rel (0) target = $region49
    $region48: #{tpu_custom_call.1} parent=1 // pred_region
      %s161 = ssub.s32 1024, 1024
      %162 = vsyncadd [#allocation21], %s161
      %s163 = sshll.u32 [#allocation20], 4
      %s164 = int_to_ptr.vmem [resolvable:$true] %s163
      %169 = dma.hbm_to_vmem [thread:$0]  %s11, 1024, %s164, [#allocation21], 64, 64, 4
    $region49: #{tpu_custom_call.1} parent=1 // pred_fallthru
      _
    // Predicated region
    $region50: #{tpu_custom_call.1} parent=1 // pred_check
      _
    $region51: #{tpu_custom_call.1} parent=1 // pred_check_branch
      %171 = sbr.rel (0) target = $region53
    $region52: #{tpu_custom_call.1} parent=1 // pred_region
      %s173 = ssub.s32 128, 128
      %174 = vsyncadd [#allocation21], %s173
      %s176 = sshll.u32 [#allocation22], 4
      %s177 = int_to_ptr.vmem [resolvable:$true] %s176
      %179 = dma.hbm_to_vmem [thread:$0]  %s12, 128, %s177, [#allocation21]
    $region53: #{tpu_custom_call.1} parent=1 // pred_fallthru
      _
    // Predicated region
    $region54: #{tpu_custom_call.1} parent=1 // pred_check
      _
    $region55: #{tpu_custom_call.1} parent=1 // pred_check_branch
      %181 = sbr.rel (0) target = $region57
    $region56: #{tpu_custom_call.1} parent=1 // pred_region
      %s183 = ssub.s32 1024, 1024
      %184 = vsyncadd [#allocation24], %s183
      %s185 = sshll.u32 [#allocation23], 4
      %s186 = int_to_ptr.vmem [resolvable:$true] %s185
      %191 = dma.hbm_to_vmem [thread:$0]  %s13, 1024, %s186, [#allocation24], 64, 64, 4
    $region57: #{tpu_custom_call.1} parent=1 // pred_fallthru
      _
    // Predicated region
    $region58: #{tpu_custom_call.1} parent=1 // pred_check
      _
    $region59: #{tpu_custom_call.1} parent=1 // pred_check_branch
      %193 = sbr.rel (0) target = $region61
    $region60: #{tpu_custom_call.1} parent=1 // pred_region
      %s195 = ssub.s32 128, 128
      %196 = vsyncadd [#allocation24], %s195
      %s198 = sshll.u32 [#allocation25], 4
      %s199 = int_to_ptr.vmem [resolvable:$true] %s198
      %201 = dma.hbm_to_vmem [thread:$0]  %s14, 128, %s199, [#allocation24]
    $region61: #{tpu_custom_call.1} parent=1 // pred_fallthru
      _
    // Predicated region
    $region62: #{tpu_custom_call.1} parent=1 // pred_check
      _
    $region63: #{tpu_custom_call.1} parent=1 // pred_check_branch
      %203 = sbr.rel (0) target = $region65
    $region64: #{tpu_custom_call.1} parent=1 // pred_region
      %s205 = ssub.s32 1024, 1024
      %206 = vsyncadd [#allocation27], %s205
      %s207 = sshll.u32 [#allocation26], 4
      %s208 = int_to_ptr.vmem [resolvable:$true] %s207
      %213 = dma.hbm_to_vmem [thread:$0]  %s15, 1024, %s208, [#allocation27], 64, 64, 4
    $region65: #{tpu_custom_call.1} parent=1 // pred_fallthru
      _
    // Predicated region
    $region66: #{tpu_custom_call.1} parent=1 // pred_check
      _
    $region67: #{tpu_custom_call.1} parent=1 // pred_check_branch
      %215 = sbr.rel (0) target = $region69
    $region68: #{tpu_custom_call.1} parent=1 // pred_region
      %s217 = ssub.s32 128, 128
      %218 = vsyncadd [#allocation27], %s217
      %s220 = sshll.u32 [#allocation28], 4
      %s221 = int_to_ptr.vmem [resolvable:$true] %s220
      %223 = dma.hbm_to_vmem [thread:$0]  %s16, 128, %s221, [#allocation27]
    $region69: #{tpu_custom_call.1} parent=1 // pred_fallthru
      _
    // Predicated region
    $region70: #{tpu_custom_call.1} parent=1 // pred_check
      _
    $region71: #{tpu_custom_call.1} parent=1 // pred_check_branch
      %225 = sbr.rel (0) target = $region73
    $region72: #{tpu_custom_call.1} parent=1 // pred_region
      _
    $region73: #{tpu_custom_call.1} parent=1 // pred_fallthru
      _
    // Predicated region
    $region74: #{tpu_custom_call.1} parent=1 // pred_check
      _
    $region75: #{tpu_custom_call.1} parent=1 // pred_check_branch
      %227 = sbr.rel (0) target = $region77
    $region76: #{tpu_custom_call.1} parent=1 // pred_region
      %s229 = ssub.s32 128, 128
      %230 = vsyncadd [#allocation30], %s229
      %s232 = sshll.u32 [#allocation29], 4
      %s233 = int_to_ptr.vmem [resolvable:$true] %s232
      %235 = dma.hbm_to_vmem [thread:$0]  %s18, 128, %s233, [#allocation30]
    $region77: #{tpu_custom_call.1} parent=1 // pred_fallthru
      _
    // Predicated region
    $region78: #{tpu_custom_call.1} parent=1 // pred_check
      _
    $region79: #{tpu_custom_call.1} parent=1 // pred_check_branch
      %237 = sbr.rel (0) target = $region81
    $region80: #{tpu_custom_call.1} parent=1 // pred_region
      %238 = dma.done [#allocation3], 128
    $region81: #{tpu_custom_call.1} parent=1 // pred_fallthru
      _
    // Predicated region
    $region82: #{tpu_custom_call.1} parent=1 // pred_check
      _
    $region83: #{tpu_custom_call.1} parent=1 // pred_check_branch
      %240 = sbr.rel (0) target = $region85
    $region84: #{tpu_custom_call.1} parent=1 // pred_region
      %241 = dma.done [#allocation6], 1024
    $region85: #{tpu_custom_call.1} parent=1 // pred_fallthru
      _
    // Predicated region
    $region86: #{tpu_custom_call.1} parent=1 // pred_check
      _
    $region87: #{tpu_custom_call.1} parent=1 // pred_check_branch
      %243 = sbr.rel (0) target = $region89
    $region88: #{tpu_custom_call.1} parent=1 // pred_region
      %244 = dma.done [#allocation6], 128
    $region89: #{tpu_custom_call.1} parent=1 // pred_fallthru
      _
    // Predicated region
    $region90: #{tpu_custom_call.1} parent=1 // pred_check
      _
    $region91: #{tpu_custom_call.1} parent=1 // pred_check_branch
      %246 = sbr.rel (0) target = $region93
    $region92: #{tpu_custom_call.1} parent=1 // pred_region
      %247 = dma.done [#allocation9], 1024
    $region93: #{tpu_custom_call.1} parent=1 // pred_fallthru
      _
    // Predicated region
    $region94: #{tpu_custom_call.1} parent=1 // pred_check
      _
    $region95: #{tpu_custom_call.1} parent=1 // pred_check_branch
      %249 = sbr.rel (0) target = $region97
    $region96: #{tpu_custom_call.1} parent=1 // pred_region
      %250 = dma.done [#allocation9], 128
    $region97: #{tpu_custom_call.1} parent=1 // pred_fallthru
      _
    // Predicated region
    $region98: #{tpu_custom_call.1} parent=1 // pred_check
      _
    $region99: #{tpu_custom_call.1} parent=1 // pred_check_branch
      %252 = sbr.rel (0) target = $region101
    $region100: #{tpu_custom_call.1} parent=1 // pred_region
      %253 = dma.done [#allocation12], 1024
    $region101: #{tpu_custom_call.1} parent=1 // pred_fallthru
      _
    // Predicated region
    $region102: #{tpu_custom_call.1} parent=1 // pred_check
      _
    $region103: #{tpu_custom_call.1} parent=1 // pred_check_branch
      %255 = sbr.rel (0) target = $region105
    $region104: #{tpu_custom_call.1} parent=1 // pred_region
      %256 = dma.done [#allocation12], 128
    $region105: #{tpu_custom_call.1} parent=1 // pred_fallthru
      _
    // Predicated region
    $region106: #{tpu_custom_call.1} parent=1 // pred_check
      _
    $region107: #{tpu_custom_call.1} parent=1 // pred_check_branch
      %258 = sbr.rel (0) target = $region109
    $region108: #{tpu_custom_call.1} parent=1 // pred_region
      %259 = dma.done [#allocation15], 1024
    $region109: #{tpu_custom_call.1} parent=1 // pred_fallthru
      _
    // Predicated region
    $region110: #{tpu_custom_call.1} parent=1 // pred_check
      _
    $region111: #{tpu_custom_call.1} parent=1 // pred_check_branch
      %261 = sbr.rel (0) target = $region113
    $region112: #{tpu_custom_call.1} parent=1 // pred_region
      %262 = dma.done [#allocation15], 128
    $region113: #{tpu_custom_call.1} parent=1 // pred_fallthru
      _
    // Predicated region
    $region114: #{tpu_custom_call.1} parent=1 // pred_check
      _
    $region115: #{tpu_custom_call.1} parent=1 // pred_check_branch
      %264 = sbr.rel (0) target = $region117
    $region116: #{tpu_custom_call.1} parent=1 // pred_region
      %265 = dma.done [#allocation18], 1024
    $region117: #{tpu_custom_call.1} parent=1 // pred_fallthru
      _
    // Predicated region
    $region118: #{tpu_custom_call.1} parent=1 // pred_check
      _
    $region119: #{tpu_custom_call.1} parent=1 // pred_check_branch
      %267 = sbr.rel (0) target = $region121
    $region120: #{tpu_custom_call.1} parent=1 // pred_region
      %268 = dma.done [#allocation18], 128
    $region121: #{tpu_custom_call.1} parent=1 // pred_fallthru
      _
    // Predicated region
    $region122: #{tpu_custom_call.1} parent=1 // pred_check
      _
    $region123: #{tpu_custom_call.1} parent=1 // pred_check_branch
      %270 = sbr.rel (0) target = $region125
    $region124: #{tpu_custom_call.1} parent=1 // pred_region
      %271 = dma.done [#allocation21], 1024
    $region125: #{tpu_custom_call.1} parent=1 // pred_fallthru
      _
    // Predicated region
    $region126: #{tpu_custom_call.1} parent=1 // pred_check
      _
    $region127: #{tpu_custom_call.1} parent=1 // pred_check_branch
      %273 = sbr.rel (0) target = $region129
    $region128: #{tpu_custom_call.1} parent=1 // pred_region
      %274 = dma.done [#allocation21], 128
    $region129: #{tpu_custom_call.1} parent=1 // pred_fallthru
      _
    // Predicated region
    $region130: #{tpu_custom_call.1} parent=1 // pred_check
      _
    $region131: #{tpu_custom_call.1} parent=1 // pred_check_branch
      %276 = sbr.rel (0) target = $region133
    $region132: #{tpu_custom_call.1} parent=1 // pred_region
      %277 = dma.done [#allocation24], 1024
    $region133: #{tpu_custom_call.1} parent=1 // pred_fallthru
      _
    // Predicated region
    $region134: #{tpu_custom_call.1} parent=1 // pred_check
      _
    $region135: #{tpu_custom_call.1} parent=1 // pred_check_branch
      %279 = sbr.rel (0) target = $region137
    $region136: #{tpu_custom_call.1} parent=1 // pred_region
      %280 = dma.done [#allocation24], 128
    $region137: #{tpu_custom_call.1} parent=1 // pred_fallthru
      _
    // Predicated region
    $region138: #{tpu_custom_call.1} parent=1 // pred_check
      _
    $region139: #{tpu_custom_call.1} parent=1 // pred_check_branch
      %282 = sbr.rel (0) target = $region141
    $region140: #{tpu_custom_call.1} parent=1 // pred_region
      %283 = dma.done [#allocation27], 1024
    $region141: #{tpu_custom_call.1} parent=1 // pred_fallthru
      _
    // Predicated region
    $region142: #{tpu_custom_call.1} parent=1 // pred_check
      _
    $region143: #{tpu_custom_call.1} parent=1 // pred_check_branch
      %285 = sbr.rel (0) target = $region145
    $region144: #{tpu_custom_call.1} parent=1 // pred_region
      %286 = dma.done [#allocation27], 128
    $region145: #{tpu_custom_call.1} parent=1 // pred_fallthru
      _
    // Predicated region
    $region146: #{tpu_custom_call.1} parent=1 // pred_check
      _
    $region147: #{tpu_custom_call.1} parent=1 // pred_check_branch
      %288 = sbr.rel (0) target = $region149
    $region148: #{tpu_custom_call.1} parent=1 // pred_region
      %289 = dma.done [#allocation30], 128
    $region149: #{tpu_custom_call.1} parent=1 // pred_fallthru
      _
    %v291 = vld [vmem:[#allocation2] sm:$0xff]
    %vm292 = vcmp.gt.f32.partialorder 0.0, 0.5
    %v293 = vsel %vm292, 1, 0
    %v294 = vcvt.s32.f32 %v293
    %v295 = vadd.f32 %v291, 0.0
    %v296 = vmul.f32 %v294, 0.5
    %v297 = vsub.f32 %v295, %v296
    %vm298 = vcmp.gt.f32.partialorder %v297, 0.5
    %v299 = vsel %vm298, 1, 0
    %v300 = vcvt.s32.f32 %v299
    %v301 = vpack.c.bf16 %v300, %v300
    %v302 = vld [vmem:[#allocation5] sm:$0xf]
    %v303 = vld [vmem:[#allocation5 + $0x4] sm:$0xf]
    %v304 = vld [vmem:[#allocation5 + $0x8] sm:$0xf]
    %v305 = vld [vmem:[#allocation5 + $0xc] sm:$0xf]
    %v306 = vld [vmem:[#allocation5 + $0x10] sm:$0xf]
    %v307 = vld [vmem:[#allocation5 + $0x14] sm:$0xf]
    %v308 = vld [vmem:[#allocation5 + $0x18] sm:$0xf]
    %v309 = vld [vmem:[#allocation5 + $0x1c] sm:$0xf]
    %v310 = vld [vmem:[#allocation5 + $0x20] sm:$0xf]
    %v311 = vld [vmem:[#allocation5 + $0x24] sm:$0xf]
    %v312 = vld [vmem:[#allocation5 + $0x28] sm:$0xf]
    %v313 = vld [vmem:[#allocation5 + $0x2c] sm:$0xf]
    %v314 = vld [vmem:[#allocation5 + $0x30] sm:$0xf]
    %v315 = vld [vmem:[#allocation5 + $0x34] sm:$0xf]
    %v316 = vld [vmem:[#allocation5 + $0x38] sm:$0xf]
    %v317 = vld [vmem:[#allocation5 + $0x3c] sm:$0xf]
    %v318 = vld [vmem:[#allocation7] sm:$0xff]
    %v335 = vunpack.c.l.b16 %v302
    %v336 = vunpack.c.l.b16 %v303
    %v337 = vunpack.c.l.b16 %v304
    %v338 = vunpack.c.l.b16 %v305
    %v339 = vunpack.c.l.b16 %v306
    %v340 = vunpack.c.l.b16 %v307
    %v341 = vunpack.c.l.b16 %v308
    %v342 = vunpack.c.l.b16 %v309
    %v343 = vunpack.c.l.b16 %v310
    %v344 = vunpack.c.l.b16 %v311
    %v345 = vunpack.c.l.b16 %v312
    %v346 = vunpack.c.l.b16 %v313
    %v347 = vunpack.c.l.b16 %v314
    %v348 = vunpack.c.l.b16 %v315
    %v349 = vunpack.c.l.b16 %v316
    %v350 = vunpack.c.l.b16 %v317
    %v351 = vpack.c.b16 %v336, %v335
    %v352 = vpack.c.b16 %v338, %v337
    %v353 = vpack.c.b16 %v340, %v339
    %v354 = vpack.c.b16 %v342, %v341
    %v355 = vpack.c.b16 %v344, %v343
    %v356 = vpack.c.b16 %v346, %v345
    %v357 = vpack.c.b16 %v348, %v347
    %v358 = vpack.c.b16 %v350, %v349
    %367 = vmatprep.subr.bf16.mxu0 0
    %368 = vmatpush1.bf16.msra.mxu0 %v351
    %369 = vmatprep.subr.bf16.mxu0 0
    %370 = vmatpush1.bf16.msra.mxu0 %v352
    %371 = vmatprep.subr.bf16.mxu0 0
    %372 = vmatpush1.bf16.msra.mxu0 %v353
    %373 = vmatprep.subr.bf16.mxu0 0
    %374 = vmatpush1.bf16.msra.mxu0 %v354
    %375 = vmatprep.subr.bf16.mxu0 0
    %376 = vmatpush1.bf16.msra.mxu0 %v355
    %377 = vmatprep.subr.bf16.mxu0 0
    %378 = vmatpush1.bf16.msra.mxu0 %v356
    %379 = vmatprep.subr.bf16.mxu0 0
    %380 = vmatpush1.bf16.msra.mxu0 %v357
    %381 = vmatprep.subr.bf16.mxu0 0
    %382 = vmatpush1.bf16.msra.mxu0 %v358
    %383 = vmatprep.subr.bf16.mxu0 0
    %384 = vmatpush1.bf16.msra.mxu0 0
    %385 = vmatprep.subr.bf16.mxu0 0
    %386 = vmatpush1.bf16.msra.mxu0 0
    %387 = vmatprep.subr.bf16.mxu0 0
    %388 = vmatpush1.bf16.msra.mxu0 0
    %389 = vmatprep.subr.bf16.mxu0 0
    %390 = vmatpush1.bf16.msra.mxu0 0
    %391 = vmatprep.subr.bf16.mxu0 0
    %392 = vmatpush1.bf16.msra.mxu0 0
    %393 = vmatprep.subr.bf16.mxu0 0
    %394 = vmatpush1.bf16.msra.mxu0 0
    %395 = vmatprep.subr.bf16.mxu0 0
    %396 = vmatpush1.bf16.msra.mxu0 0
    %397 = vmatprep.subr.bf16.mxu0 0
    %398 = vmatpush1.bf16.msra.mxu0 0
    %399 = vmatprep.mubr.bf16.mxu0 0
    %400 = vmatmul.mubr.bf16.gmra.mrb[0].mxu0 %v301
    %v401 = vpop.f32.mrb[0].mxu0
    %v402 = vadd.f32 %v318, %v401
    %v403 = vpop.f32.mrb[0].mxu0
    %v404 = vpop.f32.mrb[0].mxu0
    %v405 = vpop.f32.mrb[0].mxu0
    %406 = vdwg.mxu0
    %v407 = vadd.f32 %v402, 0.0
    %v408 = vsub.f32 %v407, %v296
    %vm409 = vcmp.gt.f32.partialorder %v408, 0.5
    %v410 = vsel %vm409, 1, 0
    %v411 = vcvt.s32.f32 %v410
    %v412 = vpack.c.bf16 %v411, %v411
    %v413 = vld [vmem:[#allocation8] sm:$0xf]
    %v414 = vld [vmem:[#allocation8 + $0x4] sm:$0xf]
    %v415 = vld [vmem:[#allocation8 + $0x8] sm:$0xf]
    %v416 = vld [vmem:[#allocation8 + $0xc] sm:$0xf]
    %v417 = vld [vmem:[#allocation8 + $0x10] sm:$0xf]
    %v418 = vld [vmem:[#allocation8 + $0x14] sm:$0xf]
    %v419 = vld [vmem:[#allocation8 + $0x18] sm:$0xf]
    %v420 = vld [vmem:[#allocation8 + $0x1c] sm:$0xf]
    %v421 = vld [vmem:[#allocation8 + $0x20] sm:$0xf]
    %v422 = vld [vmem:[#allocation8 + $0x24] sm:$0xf]
    %v423 = vld [vmem:[#allocation8 + $0x28] sm:$0xf]
    %v424 = vld [vmem:[#allocation8 + $0x2c] sm:$0xf]
    %v425 = vld [vmem:[#allocation8 + $0x30] sm:$0xf]
    %v426 = vld [vmem:[#allocation8 + $0x34] sm:$0xf]
    %v427 = vld [vmem:[#allocation8 + $0x38] sm:$0xf]
    %v428 = vld [vmem:[#allocation8 + $0x3c] sm:$0xf]
    %v429 = vld [vmem:[#allocation10] sm:$0xff]
    %v446 = vunpack.c.l.b16 %v413
    %v447 = vunpack.c.l.b16 %v414
    %v448 = vunpack.c.l.b16 %v415
    %v449 = vunpack.c.l.b16 %v416
    %v450 = vunpack.c.l.b16 %v417
    %v451 = vunpack.c.l.b16 %v418
    %v452 = vunpack.c.l.b16 %v419
    %v453 = vunpack.c.l.b16 %v420
    %v454 = vunpack.c.l.b16 %v421
    %v455 = vunpack.c.l.b16 %v422
    %v456 = vunpack.c.l.b16 %v423
    %v457 = vunpack.c.l.b16 %v424
    %v458 = vunpack.c.l.b16 %v425
    %v459 = vunpack.c.l.b16 %v426
    %v460 = vunpack.c.l.b16 %v427
    %v461 = vunpack.c.l.b16 %v428
    %v462 = vpack.c.b16 %v447, %v446
    %v463 = vpack.c.b16 %v449, %v448
    %v464 = vpack.c.b16 %v451, %v450
    %v465 = vpack.c.b16 %v453, %v452
    %v466 = vpack.c.b16 %v455, %v454
    %v467 = vpack.c.b16 %v457, %v456
    %v468 = vpack.c.b16 %v459, %v458
    %v469 = vpack.c.b16 %v461, %v460
    %478 = vmatprep.subr.bf16.mxu0 0
    %479 = vmatpush1.bf16.msra.mxu0 %v462
    %480 = vmatprep.subr.bf16.mxu0 0
    %481 = vmatpush1.bf16.msra.mxu0 %v463
    %482 = vmatprep.subr.bf16.mxu0 0
    %483 = vmatpush1.bf16.msra.mxu0 %v464
    %484 = vmatprep.subr.bf16.mxu0 0
    %485 = vmatpush1.bf16.msra.mxu0 %v465
    %486 = vmatprep.subr.bf16.mxu0 0
    %487 = vmatpush1.bf16.msra.mxu0 %v466
    %488 = vmatprep.subr.bf16.mxu0 0
    %489 = vmatpush1.bf16.msra.mxu0 %v467
    %490 = vmatprep.subr.bf16.mxu0 0
    %491 = vmatpush1.bf16.msra.mxu0 %v468
    %492 = vmatprep.subr.bf16.mxu0 0
    %493 = vmatpush1.bf16.msra.mxu0 %v469
    %494 = vmatprep.subr.bf16.mxu0 0
    %495 = vmatpush1.bf16.msra.mxu0 0
    %496 = vmatprep.subr.bf16.mxu0 0
    %497 = vmatpush1.bf16.msra.mxu0 0
    %498 = vmatprep.subr.bf16.mxu0 0
    %499 = vmatpush1.bf16.msra.mxu0 0
    %500 = vmatprep.subr.bf16.mxu0 0
    %501 = vmatpush1.bf16.msra.mxu0 0
    %502 = vmatprep.subr.bf16.mxu0 0
    %503 = vmatpush1.bf16.msra.mxu0 0
    %504 = vmatprep.subr.bf16.mxu0 0
    %505 = vmatpush1.bf16.msra.mxu0 0
    %506 = vmatprep.subr.bf16.mxu0 0
    %507 = vmatpush1.bf16.msra.mxu0 0
    %508 = vmatprep.subr.bf16.mxu0 0
    %509 = vmatpush1.bf16.msra.mxu0 0
    %510 = vmatprep.mubr.bf16.mxu0 0
    %511 = vmatmul.mubr.bf16.gmra.mrb[0].mxu0 %v412
    %v512 = vpop.f32.mrb[0].mxu0
    %v513 = vadd.f32 %v429, %v512
    %v514 = vpop.f32.mrb[0].mxu0
    %v515 = vpop.f32.mrb[0].mxu0
    %v516 = vpop.f32.mrb[0].mxu0
    %517 = vdwg.mxu0
    %v518 = vadd.f32 %v513, 0.0
    %v519 = vsub.f32 %v518, %v296
    %vm520 = vcmp.gt.f32.partialorder %v519, 0.5
    %v521 = vsel %vm520, 1, 0
    %v522 = vcvt.s32.f32 %v521
    %v523 = vpack.c.bf16 %v522, %v522
    %v524 = vld [vmem:[#allocation11] sm:$0xf]
    %v525 = vld [vmem:[#allocation11 + $0x4] sm:$0xf]
    %v526 = vld [vmem:[#allocation11 + $0x8] sm:$0xf]
    %v527 = vld [vmem:[#allocation11 + $0xc] sm:$0xf]
    %v528 = vld [vmem:[#allocation11 + $0x10] sm:$0xf]
    %v529 = vld [vmem:[#allocation11 + $0x14] sm:$0xf]
    %v530 = vld [vmem:[#allocation11 + $0x18] sm:$0xf]
    %v531 = vld [vmem:[#allocation11 + $0x1c] sm:$0xf]
    %v532 = vld [vmem:[#allocation11 + $0x20] sm:$0xf]
    %v533 = vld [vmem:[#allocation11 + $0x24] sm:$0xf]
    %v534 = vld [vmem:[#allocation11 + $0x28] sm:$0xf]
    %v535 = vld [vmem:[#allocation11 + $0x2c] sm:$0xf]
    %v536 = vld [vmem:[#allocation11 + $0x30] sm:$0xf]
    %v537 = vld [vmem:[#allocation11 + $0x34] sm:$0xf]
    %v538 = vld [vmem:[#allocation11 + $0x38] sm:$0xf]
    %v539 = vld [vmem:[#allocation11 + $0x3c] sm:$0xf]
    %v540 = vld [vmem:[#allocation13] sm:$0xff]
    %v557 = vunpack.c.l.b16 %v524
    %v558 = vunpack.c.l.b16 %v525
    %v559 = vunpack.c.l.b16 %v526
    %v560 = vunpack.c.l.b16 %v527
    %v561 = vunpack.c.l.b16 %v528
    %v562 = vunpack.c.l.b16 %v529
    %v563 = vunpack.c.l.b16 %v530
    %v564 = vunpack.c.l.b16 %v531
    %v565 = vunpack.c.l.b16 %v532
    %v566 = vunpack.c.l.b16 %v533
    %v567 = vunpack.c.l.b16 %v534
    %v568 = vunpack.c.l.b16 %v535
    %v569 = vunpack.c.l.b16 %v536
    %v570 = vunpack.c.l.b16 %v537
    %v571 = vunpack.c.l.b16 %v538
    %v572 = vunpack.c.l.b16 %v539
    %v573 = vpack.c.b16 %v558, %v557
    %v574 = vpack.c.b16 %v560, %v559
    %v575 = vpack.c.b16 %v562, %v561
    %v576 = vpack.c.b16 %v564, %v563
    %v577 = vpack.c.b16 %v566, %v565
    %v578 = vpack.c.b16 %v568, %v567
    %v579 = vpack.c.b16 %v570, %v569
    %v580 = vpack.c.b16 %v572, %v571
    %589 = vmatprep.subr.bf16.mxu0 0
    %590 = vmatpush1.bf16.msra.mxu0 %v573
    %591 = vmatprep.subr.bf16.mxu0 0
    %592 = vmatpush1.bf16.msra.mxu0 %v574
    %593 = vmatprep.subr.bf16.mxu0 0
    %594 = vmatpush1.bf16.msra.mxu0 %v575
    %595 = vmatprep.subr.bf16.mxu0 0
    %596 = vmatpush1.bf16.msra.mxu0 %v576
    %597 = vmatprep.subr.bf16.mxu0 0
    %598 = vmatpush1.bf16.msra.mxu0 %v577
    %599 = vmatprep.subr.bf16.mxu0 0
    %600 = vmatpush1.bf16.msra.mxu0 %v578
    %601 = vmatprep.subr.bf16.mxu0 0
    %602 = vmatpush1.bf16.msra.mxu0 %v579
    %603 = vmatprep.subr.bf16.mxu0 0
    %604 = vmatpush1.bf16.msra.mxu0 %v580
    %605 = vmatprep.subr.bf16.mxu0 0
    %606 = vmatpush1.bf16.msra.mxu0 0
    %607 = vmatprep.subr.bf16.mxu0 0
    %608 = vmatpush1.bf16.msra.mxu0 0
    %609 = vmatprep.subr.bf16.mxu0 0
    %610 = vmatpush1.bf16.msra.mxu0 0
    %611 = vmatprep.subr.bf16.mxu0 0
    %612 = vmatpush1.bf16.msra.mxu0 0
    %613 = vmatprep.subr.bf16.mxu0 0
    %614 = vmatpush1.bf16.msra.mxu0 0
    %615 = vmatprep.subr.bf16.mxu0 0
    %616 = vmatpush1.bf16.msra.mxu0 0
    %617 = vmatprep.subr.bf16.mxu0 0
    %618 = vmatpush1.bf16.msra.mxu0 0
    %619 = vmatprep.subr.bf16.mxu0 0
    %620 = vmatpush1.bf16.msra.mxu0 0
    %621 = vmatprep.mubr.bf16.mxu0 0
    %622 = vmatmul.mubr.bf16.gmra.mrb[0].mxu0 %v523
    %v623 = vpop.f32.mrb[0].mxu0
    %v624 = vadd.f32 %v540, %v623
    %v625 = vpop.f32.mrb[0].mxu0
    %v626 = vpop.f32.mrb[0].mxu0
    %v627 = vpop.f32.mrb[0].mxu0
    %628 = vdwg.mxu0
    %v629 = vadd.f32 %v624, 0.0
    %v630 = vsub.f32 %v629, %v296
    %vm631 = vcmp.gt.f32.partialorder %v630, 0.5
    %v632 = vsel %vm631, 1, 0
    %v633 = vcvt.s32.f32 %v632
    %v634 = vpack.c.bf16 %v633, %v633
    %v635 = vld [vmem:[#allocation14] sm:$0xf]
    %v636 = vld [vmem:[#allocation14 + $0x4] sm:$0xf]
    %v637 = vld [vmem:[#allocation14 + $0x8] sm:$0xf]
    %v638 = vld [vmem:[#allocation14 + $0xc] sm:$0xf]
    %v639 = vld [vmem:[#allocation14 + $0x10] sm:$0xf]
    %v640 = vld [vmem:[#allocation14 + $0x14] sm:$0xf]
    %v641 = vld [vmem:[#allocation14 + $0x18] sm:$0xf]
    %v642 = vld [vmem:[#allocation14 + $0x1c] sm:$0xf]
    %v643 = vld [vmem:[#allocation14 + $0x20] sm:$0xf]
    %v644 = vld [vmem:[#allocation14 + $0x24] sm:$0xf]
    %v645 = vld [vmem:[#allocation14 + $0x28] sm:$0xf]
    %v646 = vld [vmem:[#allocation14 + $0x2c] sm:$0xf]
    %v647 = vld [vmem:[#allocation14 + $0x30] sm:$0xf]
    %v648 = vld [vmem:[#allocation14 + $0x34] sm:$0xf]
    %v649 = vld [vmem:[#allocation14 + $0x38] sm:$0xf]
    %v650 = vld [vmem:[#allocation14 + $0x3c] sm:$0xf]
    %v651 = vld [vmem:[#allocation16] sm:$0xff]
    %v668 = vunpack.c.l.b16 %v635
    %v669 = vunpack.c.l.b16 %v636
    %v670 = vunpack.c.l.b16 %v637
    %v671 = vunpack.c.l.b16 %v638
    %v672 = vunpack.c.l.b16 %v639
    %v673 = vunpack.c.l.b16 %v640
    %v674 = vunpack.c.l.b16 %v641
    %v675 = vunpack.c.l.b16 %v642
    %v676 = vunpack.c.l.b16 %v643
    %v677 = vunpack.c.l.b16 %v644
    %v678 = vunpack.c.l.b16 %v645
    %v679 = vunpack.c.l.b16 %v646
    %v680 = vunpack.c.l.b16 %v647
    %v681 = vunpack.c.l.b16 %v648
    %v682 = vunpack.c.l.b16 %v649
    %v683 = vunpack.c.l.b16 %v650
    %v684 = vpack.c.b16 %v669, %v668
    %v685 = vpack.c.b16 %v671, %v670
    %v686 = vpack.c.b16 %v673, %v672
    %v687 = vpack.c.b16 %v675, %v674
    %v688 = vpack.c.b16 %v677, %v676
    %v689 = vpack.c.b16 %v679, %v678
    %v690 = vpack.c.b16 %v681, %v680
    %v691 = vpack.c.b16 %v683, %v682
    %700 = vmatprep.subr.bf16.mxu0 0
    %701 = vmatpush1.bf16.msra.mxu0 %v684
    %702 = vmatprep.subr.bf16.mxu0 0
    %703 = vmatpush1.bf16.msra.mxu0 %v685
    %704 = vmatprep.subr.bf16.mxu0 0
    %705 = vmatpush1.bf16.msra.mxu0 %v686
    %706 = vmatprep.subr.bf16.mxu0 0
    %707 = vmatpush1.bf16.msra.mxu0 %v687
    %708 = vmatprep.subr.bf16.mxu0 0
    %709 = vmatpush1.bf16.msra.mxu0 %v688
    %710 = vmatprep.subr.bf16.mxu0 0
    %711 = vmatpush1.bf16.msra.mxu0 %v689
    %712 = vmatprep.subr.bf16.mxu0 0
    %713 = vmatpush1.bf16.msra.mxu0 %v690
    %714 = vmatprep.subr.bf16.mxu0 0
    %715 = vmatpush1.bf16.msra.mxu0 %v691
    %716 = vmatprep.subr.bf16.mxu0 0
    %717 = vmatpush1.bf16.msra.mxu0 0
    %718 = vmatprep.subr.bf16.mxu0 0
    %719 = vmatpush1.bf16.msra.mxu0 0
    %720 = vmatprep.subr.bf16.mxu0 0
    %721 = vmatpush1.bf16.msra.mxu0 0
    %722 = vmatprep.subr.bf16.mxu0 0
    %723 = vmatpush1.bf16.msra.mxu0 0
    %724 = vmatprep.subr.bf16.mxu0 0
    %725 = vmatpush1.bf16.msra.mxu0 0
    %726 = vmatprep.subr.bf16.mxu0 0
    %727 = vmatpush1.bf16.msra.mxu0 0
    %728 = vmatprep.subr.bf16.mxu0 0
    %729 = vmatpush1.bf16.msra.mxu0 0
    %730 = vmatprep.subr.bf16.mxu0 0
    %731 = vmatpush1.bf16.msra.mxu0 0
    %732 = vmatprep.mubr.bf16.mxu0 0
    %733 = vmatmul.mubr.bf16.gmra.mrb[0].mxu0 %v634
    %v734 = vpop.f32.mrb[0].mxu0
    %v735 = vadd.f32 %v651, %v734
    %v736 = vpop.f32.mrb[0].mxu0
    %v737 = vpop.f32.mrb[0].mxu0
    %v738 = vpop.f32.mrb[0].mxu0
    %739 = vdwg.mxu0
    %v740 = vadd.f32 %v735, 0.0
    %v741 = vsub.f32 %v740, %v296
    %vm742 = vcmp.gt.f32.partialorder %v741, 0.5
    %v743 = vsel %vm742, 1, 0
    %v744 = vcvt.s32.f32 %v743
    %v745 = vpack.c.bf16 %v744, %v744
    %v746 = vld [vmem:[#allocation17] sm:$0xf]
    %v747 = vld [vmem:[#allocation17 + $0x4] sm:$0xf]
    %v748 = vld [vmem:[#allocation17 + $0x8] sm:$0xf]
    %v749 = vld [vmem:[#allocation17 + $0xc] sm:$0xf]
    %v750 = vld [vmem:[#allocation17 + $0x10] sm:$0xf]
    %v751 = vld [vmem:[#allocation17 + $0x14] sm:$0xf]
    %v752 = vld [vmem:[#allocation17 + $0x18] sm:$0xf]
    %v753 = vld [vmem:[#allocation17 + $0x1c] sm:$0xf]
    %v754 = vld [vmem:[#allocation17 + $0x20] sm:$0xf]
    %v755 = vld [vmem:[#allocation17 + $0x24] sm:$0xf]
    %v756 = vld [vmem:[#allocation17 + $0x28] sm:$0xf]
    %v757 = vld [vmem:[#allocation17 + $0x2c] sm:$0xf]
    %v758 = vld [vmem:[#allocation17 + $0x30] sm:$0xf]
    %v759 = vld [vmem:[#allocation17 + $0x34] sm:$0xf]
    %v760 = vld [vmem:[#allocation17 + $0x38] sm:$0xf]
    %v761 = vld [vmem:[#allocation17 + $0x3c] sm:$0xf]
    %v762 = vld [vmem:[#allocation19] sm:$0xff]
    %v779 = vunpack.c.l.b16 %v746
    %v780 = vunpack.c.l.b16 %v747
    %v781 = vunpack.c.l.b16 %v748
    %v782 = vunpack.c.l.b16 %v749
    %v783 = vunpack.c.l.b16 %v750
    %v784 = vunpack.c.l.b16 %v751
    %v785 = vunpack.c.l.b16 %v752
    %v786 = vunpack.c.l.b16 %v753
    %v787 = vunpack.c.l.b16 %v754
    %v788 = vunpack.c.l.b16 %v755
    %v789 = vunpack.c.l.b16 %v756
    %v790 = vunpack.c.l.b16 %v757
    %v791 = vunpack.c.l.b16 %v758
    %v792 = vunpack.c.l.b16 %v759
    %v793 = vunpack.c.l.b16 %v760
    %v794 = vunpack.c.l.b16 %v761
    %v795 = vpack.c.b16 %v780, %v779
    %v796 = vpack.c.b16 %v782, %v781
    %v797 = vpack.c.b16 %v784, %v783
    %v798 = vpack.c.b16 %v786, %v785
    %v799 = vpack.c.b16 %v788, %v787
    %v800 = vpack.c.b16 %v790, %v789
    %v801 = vpack.c.b16 %v792, %v791
    %v802 = vpack.c.b16 %v794, %v793
    %811 = vmatprep.subr.bf16.mxu0 0
    %812 = vmatpush1.bf16.msra.mxu0 %v795
    %813 = vmatprep.subr.bf16.mxu0 0
    %814 = vmatpush1.bf16.msra.mxu0 %v796
    %815 = vmatprep.subr.bf16.mxu0 0
    %816 = vmatpush1.bf16.msra.mxu0 %v797
    %817 = vmatprep.subr.bf16.mxu0 0
    %818 = vmatpush1.bf16.msra.mxu0 %v798
    %819 = vmatprep.subr.bf16.mxu0 0
    %820 = vmatpush1.bf16.msra.mxu0 %v799
    %821 = vmatprep.subr.bf16.mxu0 0
    %822 = vmatpush1.bf16.msra.mxu0 %v800
    %823 = vmatprep.subr.bf16.mxu0 0
    %824 = vmatpush1.bf16.msra.mxu0 %v801
    %825 = vmatprep.subr.bf16.mxu0 0
    %826 = vmatpush1.bf16.msra.mxu0 %v802
    %827 = vmatprep.subr.bf16.mxu0 0
    %828 = vmatpush1.bf16.msra.mxu0 0
    %829 = vmatprep.subr.bf16.mxu0 0
    %830 = vmatpush1.bf16.msra.mxu0 0
    %831 = vmatprep.subr.bf16.mxu0 0
    %832 = vmatpush1.bf16.msra.mxu0 0
    %833 = vmatprep.subr.bf16.mxu0 0
    %834 = vmatpush1.bf16.msra.mxu0 0
    %835 = vmatprep.subr.bf16.mxu0 0
    %836 = vmatpush1.bf16.msra.mxu0 0
    %837 = vmatprep.subr.bf16.mxu0 0
    %838 = vmatpush1.bf16.msra.mxu0 0
    %839 = vmatprep.subr.bf16.mxu0 0
    %840 = vmatpush1.bf16.msra.mxu0 0
    %841 = vmatprep.subr.bf16.mxu0 0
    %842 = vmatpush1.bf16.msra.mxu0 0
    %843 = vmatprep.mubr.bf16.mxu0 0
    %844 = vmatmul.mubr.bf16.gmra.mrb[0].mxu0 %v745
    %v845 = vpop.f32.mrb[0].mxu0
    %v846 = vadd.f32 %v762, %v845
    %v847 = vpop.f32.mrb[0].mxu0
    %v848 = vpop.f32.mrb[0].mxu0
    %v849 = vpop.f32.mrb[0].mxu0
    %850 = vdwg.mxu0
    %v851 = vadd.f32 %v846, 0.0
    %v852 = vsub.f32 %v851, %v296
    %vm853 = vcmp.gt.f32.partialorder %v852, 0.5
    %v854 = vsel %vm853, 1, 0
    %v855 = vcvt.s32.f32 %v854
    %v856 = vpack.c.bf16 %v855, %v855
    %v857 = vld [vmem:[#allocation20] sm:$0xf]
    %v858 = vld [vmem:[#allocation20 + $0x4] sm:$0xf]
    %v859 = vld [vmem:[#allocation20 + $0x8] sm:$0xf]
    %v860 = vld [vmem:[#allocation20 + $0xc] sm:$0xf]
    %v861 = vld [vmem:[#allocation20 + $0x10] sm:$0xf]
    %v862 = vld [vmem:[#allocation20 + $0x14] sm:$0xf]
    %v863 = vld [vmem:[#allocation20 + $0x18] sm:$0xf]
    %v864 = vld [vmem:[#allocation20 + $0x1c] sm:$0xf]
    %v865 = vld [vmem:[#allocation20 + $0x20] sm:$0xf]
    %v866 = vld [vmem:[#allocation20 + $0x24] sm:$0xf]
    %v867 = vld [vmem:[#allocation20 + $0x28] sm:$0xf]
    %v868 = vld [vmem:[#allocation20 + $0x2c] sm:$0xf]
    %v869 = vld [vmem:[#allocation20 + $0x30] sm:$0xf]
    %v870 = vld [vmem:[#allocation20 + $0x34] sm:$0xf]
    %v871 = vld [vmem:[#allocation20 + $0x38] sm:$0xf]
    %v872 = vld [vmem:[#allocation20 + $0x3c] sm:$0xf]
    %v873 = vld [vmem:[#allocation22] sm:$0xff]
    %v890 = vunpack.c.l.b16 %v857
    %v891 = vunpack.c.l.b16 %v858
    %v892 = vunpack.c.l.b16 %v859
    %v893 = vunpack.c.l.b16 %v860
    %v894 = vunpack.c.l.b16 %v861
    %v895 = vunpack.c.l.b16 %v862
    %v896 = vunpack.c.l.b16 %v863
    %v897 = vunpack.c.l.b16 %v864
    %v898 = vunpack.c.l.b16 %v865
    %v899 = vunpack.c.l.b16 %v866
    %v900 = vunpack.c.l.b16 %v867
    %v901 = vunpack.c.l.b16 %v868
    %v902 = vunpack.c.l.b16 %v869
    %v903 = vunpack.c.l.b16 %v870
    %v904 = vunpack.c.l.b16 %v871
    %v905 = vunpack.c.l.b16 %v872
    %v906 = vpack.c.b16 %v891, %v890
    %v907 = vpack.c.b16 %v893, %v892
    %v908 = vpack.c.b16 %v895, %v894
    %v909 = vpack.c.b16 %v897, %v896
    %v910 = vpack.c.b16 %v899, %v898
    %v911 = vpack.c.b16 %v901, %v900
    %v912 = vpack.c.b16 %v903, %v902
    %v913 = vpack.c.b16 %v905, %v904
    %922 = vmatprep.subr.bf16.mxu0 0
    %923 = vmatpush1.bf16.msra.mxu0 %v906
    %924 = vmatprep.subr.bf16.mxu0 0
    %925 = vmatpush1.bf16.msra.mxu0 %v907
    %926 = vmatprep.subr.bf16.mxu0 0
    %927 = vmatpush1.bf16.msra.mxu0 %v908
    %928 = vmatprep.subr.bf16.mxu0 0
    %929 = vmatpush1.bf16.msra.mxu0 %v909
    %930 = vmatprep.subr.bf16.mxu0 0
    %931 = vmatpush1.bf16.msra.mxu0 %v910
    %932 = vmatprep.subr.bf16.mxu0 0
    %933 = vmatpush1.bf16.msra.mxu0 %v911
    %934 = vmatprep.subr.bf16.mxu0 0
    %935 = vmatpush1.bf16.msra.mxu0 %v912
    %936 = vmatprep.subr.bf16.mxu0 0
    %937 = vmatpush1.bf16.msra.mxu0 %v913
    %938 = vmatprep.subr.bf16.mxu0 0
    %939 = vmatpush1.bf16.msra.mxu0 0
    %940 = vmatprep.subr.bf16.mxu0 0
    %941 = vmatpush1.bf16.msra.mxu0 0
    %942 = vmatprep.subr.bf16.mxu0 0
    %943 = vmatpush1.bf16.msra.mxu0 0
    %944 = vmatprep.subr.bf16.mxu0 0
    %945 = vmatpush1.bf16.msra.mxu0 0
    %946 = vmatprep.subr.bf16.mxu0 0
    %947 = vmatpush1.bf16.msra.mxu0 0
    %948 = vmatprep.subr.bf16.mxu0 0
    %949 = vmatpush1.bf16.msra.mxu0 0
    %950 = vmatprep.subr.bf16.mxu0 0
    %951 = vmatpush1.bf16.msra.mxu0 0
    %952 = vmatprep.subr.bf16.mxu0 0
    %953 = vmatpush1.bf16.msra.mxu0 0
    %954 = vmatprep.mubr.bf16.mxu0 0
    %955 = vmatmul.mubr.bf16.gmra.mrb[0].mxu0 %v856
    %v956 = vpop.f32.mrb[0].mxu0
    %v957 = vadd.f32 %v873, %v956
    %v958 = vpop.f32.mrb[0].mxu0
    %v959 = vpop.f32.mrb[0].mxu0
    %v960 = vpop.f32.mrb[0].mxu0
    %961 = vdwg.mxu0
    %v962 = vadd.f32 %v957, 0.0
    %v963 = vsub.f32 %v962, %v296
    %vm964 = vcmp.gt.f32.partialorder %v963, 0.5
    %v965 = vsel %vm964, 1, 0
    %v966 = vcvt.s32.f32 %v965
    %v967 = vpack.c.bf16 %v966, %v966
    %v968 = vld [vmem:[#allocation23] sm:$0xf]
    %v969 = vld [vmem:[#allocation23 + $0x4] sm:$0xf]
    %v970 = vld [vmem:[#allocation23 + $0x8] sm:$0xf]
    %v971 = vld [vmem:[#allocation23 + $0xc] sm:$0xf]
    %v972 = vld [vmem:[#allocation23 + $0x10] sm:$0xf]
    %v973 = vld [vmem:[#allocation23 + $0x14] sm:$0xf]
    %v974 = vld [vmem:[#allocation23 + $0x18] sm:$0xf]
    %v975 = vld [vmem:[#allocation23 + $0x1c] sm:$0xf]
    %v976 = vld [vmem:[#allocation23 + $0x20] sm:$0xf]
    %v977 = vld [vmem:[#allocation23 + $0x24] sm:$0xf]
    %v978 = vld [vmem:[#allocation23 + $0x28] sm:$0xf]
    %v979 = vld [vmem:[#allocation23 + $0x2c] sm:$0xf]
    %v980 = vld [vmem:[#allocation23 + $0x30] sm:$0xf]
    %v981 = vld [vmem:[#allocation23 + $0x34] sm:$0xf]
    %v982 = vld [vmem:[#allocation23 + $0x38] sm:$0xf]
    %v983 = vld [vmem:[#allocation23 + $0x3c] sm:$0xf]
    %v984 = vld [vmem:[#allocation25] sm:$0xff]
    %v1001 = vunpack.c.l.b16 %v968
    %v1002 = vunpack.c.l.b16 %v969
    %v1003 = vunpack.c.l.b16 %v970
    %v1004 = vunpack.c.l.b16 %v971
    %v1005 = vunpack.c.l.b16 %v972
    %v1006 = vunpack.c.l.b16 %v973
    %v1007 = vunpack.c.l.b16 %v974
    %v1008 = vunpack.c.l.b16 %v975
    %v1009 = vunpack.c.l.b16 %v976
    %v1010 = vunpack.c.l.b16 %v977
    %v1011 = vunpack.c.l.b16 %v978
    %v1012 = vunpack.c.l.b16 %v979
    %v1013 = vunpack.c.l.b16 %v980
    %v1014 = vunpack.c.l.b16 %v981
    %v1015 = vunpack.c.l.b16 %v982
    %v1016 = vunpack.c.l.b16 %v983
    %v1017 = vpack.c.b16 %v1002, %v1001
    %v1018 = vpack.c.b16 %v1004, %v1003
    %v1019 = vpack.c.b16 %v1006, %v1005
    %v1020 = vpack.c.b16 %v1008, %v1007
    %v1021 = vpack.c.b16 %v1010, %v1009
    %v1022 = vpack.c.b16 %v1012, %v1011
    %v1023 = vpack.c.b16 %v1014, %v1013
    %v1024 = vpack.c.b16 %v1016, %v1015
    %1033 = vmatprep.subr.bf16.mxu0 0
    %1034 = vmatpush1.bf16.msra.mxu0 %v1017
    %1035 = vmatprep.subr.bf16.mxu0 0
    %1036 = vmatpush1.bf16.msra.mxu0 %v1018
    %1037 = vmatprep.subr.bf16.mxu0 0
    %1038 = vmatpush1.bf16.msra.mxu0 %v1019
    %1039 = vmatprep.subr.bf16.mxu0 0
    %1040 = vmatpush1.bf16.msra.mxu0 %v1020
    %1041 = vmatprep.subr.bf16.mxu0 0
    %1042 = vmatpush1.bf16.msra.mxu0 %v1021
    %1043 = vmatprep.subr.bf16.mxu0 0
    %1044 = vmatpush1.bf16.msra.mxu0 %v1022
    %1045 = vmatprep.subr.bf16.mxu0 0
    %1046 = vmatpush1.bf16.msra.mxu0 %v1023
    %1047 = vmatprep.subr.bf16.mxu0 0
    %1048 = vmatpush1.bf16.msra.mxu0 %v1024
    %1049 = vmatprep.subr.bf16.mxu0 0
    %1050 = vmatpush1.bf16.msra.mxu0 0
    %1051 = vmatprep.subr.bf16.mxu0 0
    %1052 = vmatpush1.bf16.msra.mxu0 0
    %1053 = vmatprep.subr.bf16.mxu0 0
    %1054 = vmatpush1.bf16.msra.mxu0 0
    %1055 = vmatprep.subr.bf16.mxu0 0
    %1056 = vmatpush1.bf16.msra.mxu0 0
    %1057 = vmatprep.subr.bf16.mxu0 0
    %1058 = vmatpush1.bf16.msra.mxu0 0
    %1059 = vmatprep.subr.bf16.mxu0 0
    %1060 = vmatpush1.bf16.msra.mxu0 0
    %1061 = vmatprep.subr.bf16.mxu0 0
    %1062 = vmatpush1.bf16.msra.mxu0 0
    %1063 = vmatprep.subr.bf16.mxu0 0
    %1064 = vmatpush1.bf16.msra.mxu0 0
    %1065 = vmatprep.mubr.bf16.mxu0 0
    %1066 = vmatmul.mubr.bf16.gmra.mrb[0].mxu0 %v967
    %v1067 = vpop.f32.mrb[0].mxu0
    %v1068 = vadd.f32 %v984, %v1067
    %v1069 = vpop.f32.mrb[0].mxu0
    %v1070 = vpop.f32.mrb[0].mxu0
    %v1071 = vpop.f32.mrb[0].mxu0
    %1072 = vdwg.mxu0
    %v1073 = vadd.f32 %v1068, 0.0
    %v1074 = vsub.f32 %v1073, %v296
    %vm1075 = vcmp.gt.f32.partialorder %v1074, 0.5
    %v1076 = vsel %vm1075, 1, 0
    %v1077 = vcvt.s32.f32 %v1076
    %v1078 = vpack.c.bf16 %v1077, %v1077
    %v1079 = vld [vmem:[#allocation26] sm:$0xf]
    %v1080 = vld [vmem:[#allocation26 + $0x4] sm:$0xf]
    %v1081 = vld [vmem:[#allocation26 + $0x8] sm:$0xf]
    %v1082 = vld [vmem:[#allocation26 + $0xc] sm:$0xf]
    %v1083 = vld [vmem:[#allocation26 + $0x10] sm:$0xf]
    %v1084 = vld [vmem:[#allocation26 + $0x14] sm:$0xf]
    %v1085 = vld [vmem:[#allocation26 + $0x18] sm:$0xf]
    %v1086 = vld [vmem:[#allocation26 + $0x1c] sm:$0xf]
    %v1087 = vld [vmem:[#allocation26 + $0x20] sm:$0xf]
    %v1088 = vld [vmem:[#allocation26 + $0x24] sm:$0xf]
    %v1089 = vld [vmem:[#allocation26 + $0x28] sm:$0xf]
    %v1090 = vld [vmem:[#allocation26 + $0x2c] sm:$0xf]
    %v1091 = vld [vmem:[#allocation26 + $0x30] sm:$0xf]
    %v1092 = vld [vmem:[#allocation26 + $0x34] sm:$0xf]
    %v1093 = vld [vmem:[#allocation26 + $0x38] sm:$0xf]
    %v1094 = vld [vmem:[#allocation26 + $0x3c] sm:$0xf]
    %v1095 = vld [vmem:[#allocation28] sm:$0xff]
    %v1112 = vunpack.c.l.b16 %v1079
    %v1113 = vunpack.c.l.b16 %v1080
    %v1114 = vunpack.c.l.b16 %v1081
    %v1115 = vunpack.c.l.b16 %v1082
    %v1116 = vunpack.c.l.b16 %v1083
    %v1117 = vunpack.c.l.b16 %v1084
    %v1118 = vunpack.c.l.b16 %v1085
    %v1119 = vunpack.c.l.b16 %v1086
    %v1120 = vunpack.c.l.b16 %v1087
    %v1121 = vunpack.c.l.b16 %v1088
    %v1122 = vunpack.c.l.b16 %v1089
    %v1123 = vunpack.c.l.b16 %v1090
    %v1124 = vunpack.c.l.b16 %v1091
    %v1125 = vunpack.c.l.b16 %v1092
    %v1126 = vunpack.c.l.b16 %v1093
    %v1127 = vunpack.c.l.b16 %v1094
    %v1128 = vpack.c.b16 %v1113, %v1112
    %v1129 = vpack.c.b16 %v1115, %v1114
    %v1130 = vpack.c.b16 %v1117, %v1116
    %v1131 = vpack.c.b16 %v1119, %v1118
    %v1132 = vpack.c.b16 %v1121, %v1120
    %v1133 = vpack.c.b16 %v1123, %v1122
    %v1134 = vpack.c.b16 %v1125, %v1124
    %v1135 = vpack.c.b16 %v1127, %v1126
    %1144 = vmatprep.subr.bf16.mxu0 0
    %1145 = vmatpush1.bf16.msra.mxu0 %v1128
    %1146 = vmatprep.subr.bf16.mxu0 0
    %1147 = vmatpush1.bf16.msra.mxu0 %v1129
    %1148 = vmatprep.subr.bf16.mxu0 0
    %1149 = vmatpush1.bf16.msra.mxu0 %v1130
    %1150 = vmatprep.subr.bf16.mxu0 0
    %1151 = vmatpush1.bf16.msra.mxu0 %v1131
    %1152 = vmatprep.subr.bf16.mxu0 0
    %1153 = vmatpush1.bf16.msra.mxu0 %v1132
    %1154 = vmatprep.subr.bf16.mxu0 0
    %1155 = vmatpush1.bf16.msra.mxu0 %v1133
    %1156 = vmatprep.subr.bf16.mxu0 0
    %1157 = vmatpush1.bf16.msra.mxu0 %v1134
    %1158 = vmatprep.subr.bf16.mxu0 0
    %1159 = vmatpush1.bf16.msra.mxu0 %v1135
    %1160 = vmatprep.subr.bf16.mxu0 0
    %1161 = vmatpush1.bf16.msra.mxu0 0
    %1162 = vmatprep.subr.bf16.mxu0 0
    %1163 = vmatpush1.bf16.msra.mxu0 0
    %1164 = vmatprep.subr.bf16.mxu0 0
    %1165 = vmatpush1.bf16.msra.mxu0 0
    %1166 = vmatprep.subr.bf16.mxu0 0
    %1167 = vmatpush1.bf16.msra.mxu0 0
    %1168 = vmatprep.subr.bf16.mxu0 0
    %1169 = vmatpush1.bf16.msra.mxu0 0
    %1170 = vmatprep.subr.bf16.mxu0 0
    %1171 = vmatpush1.bf16.msra.mxu0 0
    %1172 = vmatprep.subr.bf16.mxu0 0
    %1173 = vmatpush1.bf16.msra.mxu0 0
    %1174 = vmatprep.subr.bf16.mxu0 0
    %1175 = vmatpush1.bf16.msra.mxu0 0
    %1176 = vmatprep.mubr.bf16.mxu0 0
    %1177 = vmatmul.mubr.bf16.gmra.mrb[0].mxu0 %v1078
    %v1178 = vpop.f32.mrb[0].mxu0
    %v1179 = vadd.f32 %v1095, %v1178
    %v1180 = vpop.f32.mrb[0].mxu0
    %v1181 = vpop.f32.mrb[0].mxu0
    %v1182 = vpop.f32.mrb[0].mxu0
    %1183 = vdwg.mxu0
    %v1184 = vadd.f32 %v1179, 0.0
    %v1185 = vsub.f32 %v1184, %v296
    %vm1186 = vcmp.gt.f32.partialorder %v1185, 0.5
    %v1187 = vsel %vm1186, 1, 0
    %v1188 = vcvt.s32.f32 %v1187
    %v1189 = vpack.c.bf16 %v1188, %v1188
    %v1190 = vld [vmem:[%s17] sm:$0xf]
    %v1191 = vld [vmem:[%s17 + $0x4] sm:$0xf]
    %v1192 = vld [vmem:[%s17 + $0x8] sm:$0xf]
    %v1193 = vld [vmem:[%s17 + $0xc] sm:$0xf]
    %v1194 = vld [vmem:[%s17 + $0x10] sm:$0xf]
    %v1195 = vld [vmem:[%s17 + $0x14] sm:$0xf]
    %v1196 = vld [vmem:[%s17 + $0x18] sm:$0xf]
    %v1197 = vld [vmem:[%s17 + $0x1c] sm:$0xf]
    %v1198 = vld [vmem:[%s17 + $0x20] sm:$0xf]
    %v1199 = vld [vmem:[%s17 + $0x24] sm:$0xf]
    %v1200 = vld [vmem:[%s17 + $0x28] sm:$0xf]
    %v1201 = vld [vmem:[%s17 + $0x2c] sm:$0xf]
    %v1202 = vld [vmem:[%s17 + $0x30] sm:$0xf]
    %v1203 = vld [vmem:[%s17 + $0x34] sm:$0xf]
    %v1204 = vld [vmem:[%s17 + $0x38] sm:$0xf]
    %v1205 = vld [vmem:[%s17 + $0x3c] sm:$0xf]
    %v1206 = vld [vmem:[#allocation29] sm:$0xff]
    %v1223 = vunpack.c.l.b16 %v1190
    %v1224 = vunpack.c.l.b16 %v1191
    %v1225 = vunpack.c.l.b16 %v1192
    %v1226 = vunpack.c.l.b16 %v1193
    %v1227 = vunpack.c.l.b16 %v1194
    %v1228 = vunpack.c.l.b16 %v1195
    %v1229 = vunpack.c.l.b16 %v1196
    %v1230 = vunpack.c.l.b16 %v1197
    %v1231 = vunpack.c.l.b16 %v1198
    %v1232 = vunpack.c.l.b16 %v1199
    %v1233 = vunpack.c.l.b16 %v1200
    %v1234 = vunpack.c.l.b16 %v1201
    %v1235 = vunpack.c.l.b16 %v1202
    %v1236 = vunpack.c.l.b16 %v1203
    %v1237 = vunpack.c.l.b16 %v1204
    %v1238 = vunpack.c.l.b16 %v1205
    %v1239 = vpack.c.b16 %v1224, %v1223
    %v1240 = vpack.c.b16 %v1226, %v1225
    %v1241 = vpack.c.b16 %v1228, %v1227
    %v1242 = vpack.c.b16 %v1230, %v1229
    %v1243 = vpack.c.b16 %v1232, %v1231
    %v1244 = vpack.c.b16 %v1234, %v1233
    %v1245 = vpack.c.b16 %v1236, %v1235
    %v1246 = vpack.c.b16 %v1238, %v1237
    %1255 = vmatprep.subr.bf16.mxu0 0
    %1256 = vmatpush1.bf16.msra.mxu0 %v1239
    %1257 = vmatprep.subr.bf16.mxu0 0
    %1258 = vmatpush1.bf16.msra.mxu0 %v1240
    %1259 = vmatprep.subr.bf16.mxu0 0
    %1260 = vmatpush1.bf16.msra.mxu0 %v1241
    %1261 = vmatprep.subr.bf16.mxu0 0
    %1262 = vmatpush1.bf16.msra.mxu0 %v1242
    %1263 = vmatprep.subr.bf16.mxu0 0
    %1264 = vmatpush1.bf16.msra.mxu0 %v1243
    %1265 = vmatprep.subr.bf16.mxu0 0
    %1266 = vmatpush1.bf16.msra.mxu0 %v1244
    %1267 = vmatprep.subr.bf16.mxu0 0
    %1268 = vmatpush1.bf16.msra.mxu0 %v1245
    %1269 = vmatprep.subr.bf16.mxu0 0
    %1270 = vmatpush1.bf16.msra.mxu0 %v1246
    %1271 = vmatprep.subr.bf16.mxu0 0
    %1272 = vmatpush1.bf16.msra.mxu0 0
    %1273 = vmatprep.subr.bf16.mxu0 0
    %1274 = vmatpush1.bf16.msra.mxu0 0
    %1275 = vmatprep.subr.bf16.mxu0 0
    %1276 = vmatpush1.bf16.msra.mxu0 0
    %1277 = vmatprep.subr.bf16.mxu0 0
    %1278 = vmatpush1.bf16.msra.mxu0 0
    %1279 = vmatprep.subr.bf16.mxu0 0
    %1280 = vmatpush1.bf16.msra.mxu0 0
    %1281 = vmatprep.subr.bf16.mxu0 0
    %1282 = vmatpush1.bf16.msra.mxu0 0
    %1283 = vmatprep.subr.bf16.mxu0 0
    %1284 = vmatpush1.bf16.msra.mxu0 0
    %1285 = vmatprep.subr.bf16.mxu0 0
    %1286 = vmatpush1.bf16.msra.mxu0 0
    %1287 = vmatprep.mubr.bf16.mxu0 0
    %1288 = vmatmul.mubr.bf16.gmra.mrb[0].mxu0 %v1189
    %v1289 = vpop.f32.mrb[0].mxu0
    %v1290 = vadd.f32 %v1206, %v1289
    %v1291 = vpop.f32.mrb[0].mxu0
    %v1292 = vpop.f32.mrb[0].mxu0
    %v1293 = vpop.f32.mrb[0].mxu0
    %1294 = vdwg.mxu0
    %v1295 = vadd.f32 %v1290, 0.0
    %v1296 = vsub.f32 %v1295, %v296
    %vm1297 = vcmp.gt.f32.partialorder %v1296, 0.5
    %v1298 = vsel %vm1297, 1, 0
    %v1299 = vcvt.s32.f32 %v1298
    %v1300 = vpack.c.bf16 %v1299, %v1299
    %v1301 = vunpack.c.l.bf16 %v1300
    %1302 = vst [vmem:[#allocation31] sm:$0xff] %v1301
    %1303 = vst [vmem:[#allocation32] sm:$0xff] %v1296
    %v1304 = vmul.f32 %v297, 0.95
    %v1305 = vadd.f32 %v1304, %v291
    %v1306 = vmul.f32 %v300, 0.5
    %v1307 = vsub.f32 %v1305, %v1306
    %vm1308 = vcmp.gt.f32.partialorder %v1307, 0.5
    %v1309 = vsel %vm1308, 1, 0
    %v1310 = vcvt.s32.f32 %v1309
    %v1311 = vpack.c.bf16 %v1310, %v1310
    %v1312 = vld [vmem:[#allocation5] sm:$0xf]
    %v1313 = vld [vmem:[#allocation5 + $0x4] sm:$0xf]
    %v1314 = vld [vmem:[#allocation5 + $0x8] sm:$0xf]
    %v1315 = vld [vmem:[#allocation5 + $0xc] sm:$0xf]
    %v1316 = vld [vmem:[#allocation5 + $0x10] sm:$0xf]
    %v1317 = vld [vmem:[#allocation5 + $0x14] sm:$0xf]
    %v1318 = vld [vmem:[#allocation5 + $0x18] sm:$0xf]
    %v1319 = vld [vmem:[#allocation5 + $0x1c] sm:$0xf]
    %v1320 = vld [vmem:[#allocation5 + $0x20] sm:$0xf]
    %v1321 = vld [vmem:[#allocation5 + $0x24] sm:$0xf]
    %v1322 = vld [vmem:[#allocation5 + $0x28] sm:$0xf]
    %v1323 = vld [vmem:[#allocation5 + $0x2c] sm:$0xf]
    %v1324 = vld [vmem:[#allocation5 + $0x30] sm:$0xf]
    %v1325 = vld [vmem:[#allocation5 + $0x34] sm:$0xf]
    %v1326 = vld [vmem:[#allocation5 + $0x38] sm:$0xf]
    %v1327 = vld [vmem:[#allocation5 + $0x3c] sm:$0xf]
    %v1328 = vld [vmem:[#allocation7] sm:$0xff]
    %v1345 = vunpack.c.l.b16 %v1312
    %v1346 = vunpack.c.l.b16 %v1313
    %v1347 = vunpack.c.l.b16 %v1314
    %v1348 = vunpack.c.l.b16 %v1315
    %v1349 = vunpack.c.l.b16 %v1316
    %v1350 = vunpack.c.l.b16 %v1317
    %v1351 = vunpack.c.l.b16 %v1318
    %v1352 = vunpack.c.l.b16 %v1319
    %v1353 = vunpack.c.l.b16 %v1320
    %v1354 = vunpack.c.l.b16 %v1321
    %v1355 = vunpack.c.l.b16 %v1322
    %v1356 = vunpack.c.l.b16 %v1323
    %v1357 = vunpack.c.l.b16 %v1324
    %v1358 = vunpack.c.l.b16 %v1325
    %v1359 = vunpack.c.l.b16 %v1326
    %v1360 = vunpack.c.l.b16 %v1327
    %v1361 = vpack.c.b16 %v1346, %v1345
    %v1362 = vpack.c.b16 %v1348, %v1347
    %v1363 = vpack.c.b16 %v1350, %v1349
    %v1364 = vpack.c.b16 %v1352, %v1351
    %v1365 = vpack.c.b16 %v1354, %v1353
    %v1366 = vpack.c.b16 %v1356, %v1355
    %v1367 = vpack.c.b16 %v1358, %v1357
    %v1368 = vpack.c.b16 %v1360, %v1359
    %1377 = vmatprep.subr.bf16.mxu0 0
    %1378 = vmatpush1.bf16.msra.mxu0 %v1361
    %1379 = vmatprep.subr.bf16.mxu0 0
    %1380 = vmatpush1.bf16.msra.mxu0 %v1362
    %1381 = vmatprep.subr.bf16.mxu0 0
    %1382 = vmatpush1.bf16.msra.mxu0 %v1363
    %1383 = vmatprep.subr.bf16.mxu0 0
    %1384 = vmatpush1.bf16.msra.mxu0 %v1364
    %1385 = vmatprep.subr.bf16.mxu0 0
    %1386 = vmatpush1.bf16.msra.mxu0 %v1365
    %1387 = vmatprep.subr.bf16.mxu0 0
    %1388 = vmatpush1.bf16.msra.mxu0 %v1366
    %1389 = vmatprep.subr.bf16.mxu0 0
    %1390 = vmatpush1.bf16.msra.mxu0 %v1367
    %1391 = vmatprep.subr.bf16.mxu0 0
    %1392 = vmatpush1.bf16.msra.mxu0 %v1368
    %1393 = vmatprep.subr.bf16.mxu0 0
    %1394 = vmatpush1.bf16.msra.mxu0 0
    %1395 = vmatprep.subr.bf16.mxu0 0
    %1396 = vmatpush1.bf16.msra.mxu0 0
    %1397 = vmatprep.subr.bf16.mxu0 0
    %1398 = vmatpush1.bf16.msra.mxu0 0
    %1399 = vmatprep.subr.bf16.mxu0 0
    %1400 = vmatpush1.bf16.msra.mxu0 0
    %1401 = vmatprep.subr.bf16.mxu0 0
    %1402 = vmatpush1.bf16.msra.mxu0 0
    %1403 = vmatprep.subr.bf16.mxu0 0
    %1404 = vmatpush1.bf16.msra.mxu0 0
    %1405 = vmatprep.subr.bf16.mxu0 0
    %1406 = vmatpush1.bf16.msra.mxu0 0
    %1407 = vmatprep.subr.bf16.mxu0 0
    %1408 = vmatpush1.bf16.msra.mxu0 0
    %1409 = vmatprep.mubr.bf16.mxu0 0
    %1410 = vmatmul.mubr.bf16.gmra.mrb[0].mxu0 %v1311
    %v1411 = vpop.f32.mrb[0].mxu0
    %v1412 = vadd.f32 %v1328, %v1411
    %v1413 = vpop.f32.mrb[0].mxu0
    %v1414 = vpop.f32.mrb[0].mxu0
    %v1415 = vpop.f32.mrb[0].mxu0
    %1416 = vdwg.mxu0
    %v1417 = vmul.f32 %v408, 0.95
    %v1418 = vadd.f32 %v1417, %v1412
    %v1419 = vmul.f32 %v411, 0.5
    %v1420 = vsub.f32 %v1418, %v1419
    %vm1421 = vcmp.gt.f32.partialorder %v1420, 0.5
    %v1422 = vsel %vm1421, 1, 0
    %v1423 = vcvt.s32.f32 %v1422
    %v1424 = vpack.c.bf16 %v1423, %v1423
    %v1425 = vld [vmem:[#allocation8] sm:$0xf]
    %v1426 = vld [vmem:[#allocation8 + $0x4] sm:$0xf]
    %v1427 = vld [vmem:[#allocation8 + $0x8] sm:$0xf]
    %v1428 = vld [vmem:[#allocation8 + $0xc] sm:$0xf]
    %v1429 = vld [vmem:[#allocation8 + $0x10] sm:$0xf]
    %v1430 = vld [vmem:[#allocation8 + $0x14] sm:$0xf]
    %v1431 = vld [vmem:[#allocation8 + $0x18] sm:$0xf]
    %v1432 = vld [vmem:[#allocation8 + $0x1c] sm:$0xf]
    %v1433 = vld [vmem:[#allocation8 + $0x20] sm:$0xf]
    %v1434 = vld [vmem:[#allocation8 + $0x24] sm:$0xf]
    %v1435 = vld [vmem:[#allocation8 + $0x28] sm:$0xf]
    %v1436 = vld [vmem:[#allocation8 + $0x2c] sm:$0xf]
    %v1437 = vld [vmem:[#allocation8 + $0x30] sm:$0xf]
    %v1438 = vld [vmem:[#allocation8 + $0x34] sm:$0xf]
    %v1439 = vld [vmem:[#allocation8 + $0x38] sm:$0xf]
    %v1440 = vld [vmem:[#allocation8 + $0x3c] sm:$0xf]
    %v1441 = vld [vmem:[#allocation10] sm:$0xff]
    %v1458 = vunpack.c.l.b16 %v1425
    %v1459 = vunpack.c.l.b16 %v1426
    %v1460 = vunpack.c.l.b16 %v1427
    %v1461 = vunpack.c.l.b16 %v1428
    %v1462 = vunpack.c.l.b16 %v1429
    %v1463 = vunpack.c.l.b16 %v1430
    %v1464 = vunpack.c.l.b16 %v1431
    %v1465 = vunpack.c.l.b16 %v1432
    %v1466 = vunpack.c.l.b16 %v1433
    %v1467 = vunpack.c.l.b16 %v1434
    %v1468 = vunpack.c.l.b16 %v1435
    %v1469 = vunpack.c.l.b16 %v1436
    %v1470 = vunpack.c.l.b16 %v1437
    %v1471 = vunpack.c.l.b16 %v1438
    %v1472 = vunpack.c.l.b16 %v1439
    %v1473 = vunpack.c.l.b16 %v1440
    %v1474 = vpack.c.b16 %v1459, %v1458
    %v1475 = vpack.c.b16 %v1461, %v1460
    %v1476 = vpack.c.b16 %v1463, %v1462
    %v1477 = vpack.c.b16 %v1465, %v1464
    %v1478 = vpack.c.b16 %v1467, %v1466
    %v1479 = vpack.c.b16 %v1469, %v1468
    %v1480 = vpack.c.b16 %v1471, %v1470
    %v1481 = vpack.c.b16 %v1473, %v1472
    %1490 = vmatprep.subr.bf16.mxu0 0
    %1491 = vmatpush1.bf16.msra.mxu0 %v1474
    %1492 = vmatprep.subr.bf16.mxu0 0
    %1493 = vmatpush1.bf16.msra.mxu0 %v1475
    %1494 = vmatprep.subr.bf16.mxu0 0
    %1495 = vmatpush1.bf16.msra.mxu0 %v1476
    %1496 = vmatprep.subr.bf16.mxu0 0
    %1497 = vmatpush1.bf16.msra.mxu0 %v1477
    %1498 = vmatprep.subr.bf16.mxu0 0
    %1499 = vmatpush1.bf16.msra.mxu0 %v1478
    %1500 = vmatprep.subr.bf16.mxu0 0
    %1501 = vmatpush1.bf16.msra.mxu0 %v1479
    %1502 = vmatprep.subr.bf16.mxu0 0
    %1503 = vmatpush1.bf16.msra.mxu0 %v1480
    %1504 = vmatprep.subr.bf16.mxu0 0
    %1505 = vmatpush1.bf16.msra.mxu0 %v1481
    %1506 = vmatprep.subr.bf16.mxu0 0
    %1507 = vmatpush1.bf16.msra.mxu0 0
    %1508 = vmatprep.subr.bf16.mxu0 0
    %1509 = vmatpush1.bf16.msra.mxu0 0
    %1510 = vmatprep.subr.bf16.mxu0 0
    %1511 = vmatpush1.bf16.msra.mxu0 0
    %1512 = vmatprep.subr.bf16.mxu0 0
    %1513 = vmatpush1.bf16.msra.mxu0 0
    %1514 = vmatprep.subr.bf16.mxu0 0
    %1515 = vmatpush1.bf16.msra.mxu0 0
    %1516 = vmatprep.subr.bf16.mxu0 0
    %1517 = vmatpush1.bf16.msra.mxu0 0
    %1518 = vmatprep.subr.bf16.mxu0 0
    %1519 = vmatpush1.bf16.msra.mxu0 0
    %1520 = vmatprep.subr.bf16.mxu0 0
    %1521 = vmatpush1.bf16.msra.mxu0 0
    %1522 = vmatprep.mubr.bf16.mxu0 0
    %1523 = vmatmul.mubr.bf16.gmra.mrb[0].mxu0 %v1424
    %v1524 = vpop.f32.mrb[0].mxu0
    %v1525 = vadd.f32 %v1441, %v1524
    %v1526 = vpop.f32.mrb[0].mxu0
    %v1527 = vpop.f32.mrb[0].mxu0
    %v1528 = vpop.f32.mrb[0].mxu0
    %1529 = vdwg.mxu0
    %v1530 = vmul.f32 %v519, 0.95
    %v1531 = vadd.f32 %v1530, %v1525
    %v1532 = vmul.f32 %v522, 0.5
    %v1533 = vsub.f32 %v1531, %v1532
    %vm1534 = vcmp.gt.f32.partialorder %v1533, 0.5
    %v1535 = vsel %vm1534, 1, 0
    %v1536 = vcvt.s32.f32 %v1535
    %v1537 = vpack.c.bf16 %v1536, %v1536
    %v1538 = vld [vmem:[#allocation11] sm:$0xf]
    %v1539 = vld [vmem:[#allocation11 + $0x4] sm:$0xf]
    %v1540 = vld [vmem:[#allocation11 + $0x8] sm:$0xf]
    %v1541 = vld [vmem:[#allocation11 + $0xc] sm:$0xf]
    %v1542 = vld [vmem:[#allocation11 + $0x10] sm:$0xf]
    %v1543 = vld [vmem:[#allocation11 + $0x14] sm:$0xf]
    %v1544 = vld [vmem:[#allocation11 + $0x18] sm:$0xf]
    %v1545 = vld [vmem:[#allocation11 + $0x1c] sm:$0xf]
    %v1546 = vld [vmem:[#allocation11 + $0x20] sm:$0xf]
    %v1547 = vld [vmem:[#allocation11 + $0x24] sm:$0xf]
    %v1548 = vld [vmem:[#allocation11 + $0x28] sm:$0xf]
    %v1549 = vld [vmem:[#allocation11 + $0x2c] sm:$0xf]
    %v1550 = vld [vmem:[#allocation11 + $0x30] sm:$0xf]
    %v1551 = vld [vmem:[#allocation11 + $0x34] sm:$0xf]
    %v1552 = vld [vmem:[#allocation11 + $0x38] sm:$0xf]
    %v1553 = vld [vmem:[#allocation11 + $0x3c] sm:$0xf]
    %v1554 = vld [vmem:[#allocation13] sm:$0xff]
    %v1571 = vunpack.c.l.b16 %v1538
    %v1572 = vunpack.c.l.b16 %v1539
    %v1573 = vunpack.c.l.b16 %v1540
    %v1574 = vunpack.c.l.b16 %v1541
    %v1575 = vunpack.c.l.b16 %v1542
    %v1576 = vunpack.c.l.b16 %v1543
    %v1577 = vunpack.c.l.b16 %v1544
    %v1578 = vunpack.c.l.b16 %v1545
    %v1579 = vunpack.c.l.b16 %v1546
    %v1580 = vunpack.c.l.b16 %v1547
    %v1581 = vunpack.c.l.b16 %v1548
    %v1582 = vunpack.c.l.b16 %v1549
    %v1583 = vunpack.c.l.b16 %v1550
    %v1584 = vunpack.c.l.b16 %v1551
    %v1585 = vunpack.c.l.b16 %v1552
    %v1586 = vunpack.c.l.b16 %v1553
    %v1587 = vpack.c.b16 %v1572, %v1571
    %v1588 = vpack.c.b16 %v1574, %v1573
    %v1589 = vpack.c.b16 %v1576, %v1575
    %v1590 = vpack.c.b16 %v1578, %v1577
    %v1591 = vpack.c.b16 %v1580, %v1579
    %v1592 = vpack.c.b16 %v1582, %v1581
    %v1593 = vpack.c.b16 %v1584, %v1583
    %v1594 = vpack.c.b16 %v1586, %v1585
    %1603 = vmatprep.subr.bf16.mxu0 0
    %1604 = vmatpush1.bf16.msra.mxu0 %v1587
    %1605 = vmatprep.subr.bf16.mxu0 0
    %1606 = vmatpush1.bf16.msra.mxu0 %v1588
    %1607 = vmatprep.subr.bf16.mxu0 0
    %1608 = vmatpush1.bf16.msra.mxu0 %v1589
    %1609 = vmatprep.subr.bf16.mxu0 0
    %1610 = vmatpush1.bf16.msra.mxu0 %v1590
    %1611 = vmatprep.subr.bf16.mxu0 0
    %1612 = vmatpush1.bf16.msra.mxu0 %v1591
    %1613 = vmatprep.subr.bf16.mxu0 0
    %1614 = vmatpush1.bf16.msra.mxu0 %v1592
    %1615 = vmatprep.subr.bf16.mxu0 0
    %1616 = vmatpush1.bf16.msra.mxu0 %v1593
    %1617 = vmatprep.subr.bf16.mxu0 0
    %1618 = vmatpush1.bf16.msra.mxu0 %v1594
    %1619 = vmatprep.subr.bf16.mxu0 0
    %1620 = vmatpush1.bf16.msra.mxu0 0
    %1621 = vmatprep.subr.bf16.mxu0 0
    %1622 = vmatpush1.bf16.msra.mxu0 0
    %1623 = vmatprep.subr.bf16.mxu0 0
    %1624 = vmatpush1.bf16.msra.mxu0 0
    %1625 = vmatprep.subr.bf16.mxu0 0
    %1626 = vmatpush1.bf16.msra.mxu0 0
    %1627 = vmatprep.subr.bf16.mxu0 0
    %1628 = vmatpush1.bf16.msra.mxu0 0
    %1629 = vmatprep.subr.bf16.mxu0 0
    %1630 = vmatpush1.bf16.msra.mxu0 0
    %1631 = vmatprep.subr.bf16.mxu0 0
    %1632 = vmatpush1.bf16.msra.mxu0 0
    %1633 = vmatprep.subr.bf16.mxu0 0
    %1634 = vmatpush1.bf16.msra.mxu0 0
    %1635 = vmatprep.mubr.bf16.mxu0 0
    %1636 = vmatmul.mubr.bf16.gmra.mrb[0].mxu0 %v1537
    %v1637 = vpop.f32.mrb[0].mxu0
    %v1638 = vadd.f32 %v1554, %v1637
    %v1639 = vpop.f32.mrb[0].mxu0
    %v1640 = vpop.f32.mrb[0].mxu0
    %v1641 = vpop.f32.mrb[0].mxu0
    %1642 = vdwg.mxu0
    %v1643 = vmul.f32 %v630, 0.95
    %v1644 = vadd.f32 %v1643, %v1638
    %v1645 = vmul.f32 %v633, 0.5
    %v1646 = vsub.f32 %v1644, %v1645
    %vm1647 = vcmp.gt.f32.partialorder %v1646, 0.5
    %v1648 = vsel %vm1647, 1, 0
    %v1649 = vcvt.s32.f32 %v1648
    %v1650 = vpack.c.bf16 %v1649, %v1649
    %v1651 = vld [vmem:[#allocation14] sm:$0xf]
    %v1652 = vld [vmem:[#allocation14 + $0x4] sm:$0xf]
    %v1653 = vld [vmem:[#allocation14 + $0x8] sm:$0xf]
    %v1654 = vld [vmem:[#allocation14 + $0xc] sm:$0xf]
    %v1655 = vld [vmem:[#allocation14 + $0x10] sm:$0xf]
    %v1656 = vld [vmem:[#allocation14 + $0x14] sm:$0xf]
    %v1657 = vld [vmem:[#allocation14 + $0x18] sm:$0xf]
    %v1658 = vld [vmem:[#allocation14 + $0x1c] sm:$0xf]
    %v1659 = vld [vmem:[#allocation14 + $0x20] sm:$0xf]
    %v1660 = vld [vmem:[#allocation14 + $0x24] sm:$0xf]
    %v1661 = vld [vmem:[#allocation14 + $0x28] sm:$0xf]
    %v1662 = vld [vmem:[#allocation14 + $0x2c] sm:$0xf]
    %v1663 = vld [vmem:[#allocation14 + $0x30] sm:$0xf]
    %v1664 = vld [vmem:[#allocation14 + $0x34] sm:$0xf]
    %v1665 = vld [vmem:[#allocation14 + $0x38] sm:$0xf]
    %v1666 = vld [vmem:[#allocation14 + $0x3c] sm:$0xf]
    %v1667 = vld [vmem:[#allocation16] sm:$0xff]
    %v1684 = vunpack.c.l.b16 %v1651
    %v1685 = vunpack.c.l.b16 %v1652
    %v1686 = vunpack.c.l.b16 %v1653
    %v1687 = vunpack.c.l.b16 %v1654
    %v1688 = vunpack.c.l.b16 %v1655
    %v1689 = vunpack.c.l.b16 %v1656
    %v1690 = vunpack.c.l.b16 %v1657
    %v1691 = vunpack.c.l.b16 %v1658
    %v1692 = vunpack.c.l.b16 %v1659
    %v1693 = vunpack.c.l.b16 %v1660
    %v1694 = vunpack.c.l.b16 %v1661
    %v1695 = vunpack.c.l.b16 %v1662
    %v1696 = vunpack.c.l.b16 %v1663
    %v1697 = vunpack.c.l.b16 %v1664
    %v1698 = vunpack.c.l.b16 %v1665
    %v1699 = vunpack.c.l.b16 %v1666
    %v1700 = vpack.c.b16 %v1685, %v1684
    %v1701 = vpack.c.b16 %v1687, %v1686
    %v1702 = vpack.c.b16 %v1689, %v1688
    %v1703 = vpack.c.b16 %v1691, %v1690
    %v1704 = vpack.c.b16 %v1693, %v1692
    %v1705 = vpack.c.b16 %v1695, %v1694
    %v1706 = vpack.c.b16 %v1697, %v1696
    %v1707 = vpack.c.b16 %v1699, %v1698
    %1716 = vmatprep.subr.bf16.mxu0 0
    %1717 = vmatpush1.bf16.msra.mxu0 %v1700
    %1718 = vmatprep.subr.bf16.mxu0 0
    %1719 = vmatpush1.bf16.msra.mxu0 %v1701
    %1720 = vmatprep.subr.bf16.mxu0 0
    %1721 = vmatpush1.bf16.msra.mxu0 %v1702
    %1722 = vmatprep.subr.bf16.mxu0 0
    %1723 = vmatpush1.bf16.msra.mxu0 %v1703
    %1724 = vmatprep.subr.bf16.mxu0 0
    %1725 = vmatpush1.bf16.msra.mxu0 %v1704
    %1726 = vmatprep.subr.bf16.mxu0 0
    %1727 = vmatpush1.bf16.msra.mxu0 %v1705
    %1728 = vmatprep.subr.bf16.mxu0 0
    %1729 = vmatpush1.bf16.msra.mxu0 %v1706
    %1730 = vmatprep.subr.bf16.mxu0 0
    %1731 = vmatpush1.bf16.msra.mxu0 %v1707
    %1732 = vmatprep.subr.bf16.mxu0 0
    %1733 = vmatpush1.bf16.msra.mxu0 0
    %1734 = vmatprep.subr.bf16.mxu0 0
    %1735 = vmatpush1.bf16.msra.mxu0 0
    %1736 = vmatprep.subr.bf16.mxu0 0
    %1737 = vmatpush1.bf16.msra.mxu0 0
    %1738 = vmatprep.subr.bf16.mxu0 0
    %1739 = vmatpush1.bf16.msra.mxu0 0
    %1740 = vmatprep.subr.bf16.mxu0 0
    %1741 = vmatpush1.bf16.msra.mxu0 0
    %1742 = vmatprep.subr.bf16.mxu0 0
    %1743 = vmatpush1.bf16.msra.mxu0 0
    %1744 = vmatprep.subr.bf16.mxu0 0
    %1745 = vmatpush1.bf16.msra.mxu0 0
    %1746 = vmatprep.subr.bf16.mxu0 0
    %1747 = vmatpush1.bf16.msra.mxu0 0
    %1748 = vmatprep.mubr.bf16.mxu0 0
    %1749 = vmatmul.mubr.bf16.gmra.mrb[0].mxu0 %v1650
    %v1750 = vpop.f32.mrb[0].mxu0
    %v1751 = vadd.f32 %v1667, %v1750
    %v1752 = vpop.f32.mrb[0].mxu0
    %v1753 = vpop.f32.mrb[0].mxu0
    %v1754 = vpop.f32.mrb[0].mxu0
    %1755 = vdwg.mxu0
    %v1756 = vmul.f32 %v741, 0.95
    %v1757 = vadd.f32 %v1756, %v1751
    %v1758 = vmul.f32 %v744, 0.5
    %v1759 = vsub.f32 %v1757, %v1758
    %vm1760 = vcmp.gt.f32.partialorder %v1759, 0.5
    %v1761 = vsel %vm1760, 1, 0
    %v1762 = vcvt.s32.f32 %v1761
    %v1763 = vpack.c.bf16 %v1762, %v1762
    %v1764 = vld [vmem:[#allocation17] sm:$0xf]
    %v1765 = vld [vmem:[#allocation17 + $0x4] sm:$0xf]
    %v1766 = vld [vmem:[#allocation17 + $0x8] sm:$0xf]
    %v1767 = vld [vmem:[#allocation17 + $0xc] sm:$0xf]
    %v1768 = vld [vmem:[#allocation17 + $0x10] sm:$0xf]
    %v1769 = vld [vmem:[#allocation17 + $0x14] sm:$0xf]
    %v1770 = vld [vmem:[#allocation17 + $0x18] sm:$0xf]
    %v1771 = vld [vmem:[#allocation17 + $0x1c] sm:$0xf]
    %v1772 = vld [vmem:[#allocation17 + $0x20] sm:$0xf]
    %v1773 = vld [vmem:[#allocation17 + $0x24] sm:$0xf]
    %v1774 = vld [vmem:[#allocation17 + $0x28] sm:$0xf]
    %v1775 = vld [vmem:[#allocation17 + $0x2c] sm:$0xf]
    %v1776 = vld [vmem:[#allocation17 + $0x30] sm:$0xf]
    %v1777 = vld [vmem:[#allocation17 + $0x34] sm:$0xf]
    %v1778 = vld [vmem:[#allocation17 + $0x38] sm:$0xf]
    %v1779 = vld [vmem:[#allocation17 + $0x3c] sm:$0xf]
    %v1780 = vld [vmem:[#allocation19] sm:$0xff]
    %v1797 = vunpack.c.l.b16 %v1764
    %v1798 = vunpack.c.l.b16 %v1765
    %v1799 = vunpack.c.l.b16 %v1766
    %v1800 = vunpack.c.l.b16 %v1767
    %v1801 = vunpack.c.l.b16 %v1768
    %v1802 = vunpack.c.l.b16 %v1769
    %v1803 = vunpack.c.l.b16 %v1770
    %v1804 = vunpack.c.l.b16 %v1771
    %v1805 = vunpack.c.l.b16 %v1772
    %v1806 = vunpack.c.l.b16 %v1773
    %v1807 = vunpack.c.l.b16 %v1774
    %v1808 = vunpack.c.l.b16 %v1775
    %v1809 = vunpack.c.l.b16 %v1776
    %v1810 = vunpack.c.l.b16 %v1777
    %v1811 = vunpack.c.l.b16 %v1778
    %v1812 = vunpack.c.l.b16 %v1779
    %v1813 = vpack.c.b16 %v1798, %v1797
    %v1814 = vpack.c.b16 %v1800, %v1799
    %v1815 = vpack.c.b16 %v1802, %v1801
    %v1816 = vpack.c.b16 %v1804, %v1803
    %v1817 = vpack.c.b16 %v1806, %v1805
    %v1818 = vpack.c.b16 %v1808, %v1807
    %v1819 = vpack.c.b16 %v1810, %v1809
    %v1820 = vpack.c.b16 %v1812, %v1811
    %1829 = vmatprep.subr.bf16.mxu0 0
    %1830 = vmatpush1.bf16.msra.mxu0 %v1813
    %1831 = vmatprep.subr.bf16.mxu0 0
    %1832 = vmatpush1.bf16.msra.mxu0 %v1814
    %1833 = vmatprep.subr.bf16.mxu0 0
    %1834 = vmatpush1.bf16.msra.mxu0 %v1815
    %1835 = vmatprep.subr.bf16.mxu0 0
    %1836 = vmatpush1.bf16.msra.mxu0 %v1816
    %1837 = vmatprep.subr.bf16.mxu0 0
    %1838 = vmatpush1.bf16.msra.mxu0 %v1817
    %1839 = vmatprep.subr.bf16.mxu0 0
    %1840 = vmatpush1.bf16.msra.mxu0 %v1818
    %1841 = vmatprep.subr.bf16.mxu0 0
    %1842 = vmatpush1.bf16.msra.mxu0 %v1819
    %1843 = vmatprep.subr.bf16.mxu0 0
    %1844 = vmatpush1.bf16.msra.mxu0 %v1820
    %1845 = vmatprep.subr.bf16.mxu0 0
    %1846 = vmatpush1.bf16.msra.mxu0 0
    %1847 = vmatprep.subr.bf16.mxu0 0
    %1848 = vmatpush1.bf16.msra.mxu0 0
    %1849 = vmatprep.subr.bf16.mxu0 0
    %1850 = vmatpush1.bf16.msra.mxu0 0
    %1851 = vmatprep.subr.bf16.mxu0 0
    %1852 = vmatpush1.bf16.msra.mxu0 0
    %1853 = vmatprep.subr.bf16.mxu0 0
    %1854 = vmatpush1.bf16.msra.mxu0 0
    %1855 = vmatprep.subr.bf16.mxu0 0
    %1856 = vmatpush1.bf16.msra.mxu0 0
    %1857 = vmatprep.subr.bf16.mxu0 0
    %1858 = vmatpush1.bf16.msra.mxu0 0
    %1859 = vmatprep.subr.bf16.mxu0 0
    %1860 = vmatpush1.bf16.msra.mxu0 0
    %1861 = vmatprep.mubr.bf16.mxu0 0
    %1862 = vmatmul.mubr.bf16.gmra.mrb[0].mxu0 %v1763
    %v1863 = vpop.f32.mrb[0].mxu0
    %v1864 = vadd.f32 %v1780, %v1863
    %v1865 = vpop.f32.mrb[0].mxu0
    %v1866 = vpop.f32.mrb[0].mxu0
    %v1867 = vpop.f32.mrb[0].mxu0
    %1868 = vdwg.mxu0
    %v1869 = vmul.f32 %v852, 0.95
    %v1870 = vadd.f32 %v1869, %v1864
    %v1871 = vmul.f32 %v855, 0.5
    %v1872 = vsub.f32 %v1870, %v1871
    %vm1873 = vcmp.gt.f32.partialorder %v1872, 0.5
    %v1874 = vsel %vm1873, 1, 0
    %v1875 = vcvt.s32.f32 %v1874
    %v1876 = vpack.c.bf16 %v1875, %v1875
    %v1877 = vld [vmem:[#allocation20] sm:$0xf]
    %v1878 = vld [vmem:[#allocation20 + $0x4] sm:$0xf]
    %v1879 = vld [vmem:[#allocation20 + $0x8] sm:$0xf]
    %v1880 = vld [vmem:[#allocation20 + $0xc] sm:$0xf]
    %v1881 = vld [vmem:[#allocation20 + $0x10] sm:$0xf]
    %v1882 = vld [vmem:[#allocation20 + $0x14] sm:$0xf]
    %v1883 = vld [vmem:[#allocation20 + $0x18] sm:$0xf]
    %v1884 = vld [vmem:[#allocation20 + $0x1c] sm:$0xf]
    %v1885 = vld [vmem:[#allocation20 + $0x20] sm:$0xf]
    %v1886 = vld [vmem:[#allocation20 + $0x24] sm:$0xf]
    %v1887 = vld [vmem:[#allocation20 + $0x28] sm:$0xf]
    %v1888 = vld [vmem:[#allocation20 + $0x2c] sm:$0xf]
    %v1889 = vld [vmem:[#allocation20 + $0x30] sm:$0xf]
    %v1890 = vld [vmem:[#allocation20 + $0x34] sm:$0xf]
    %v1891 = vld [vmem:[#allocation20 + $0x38] sm:$0xf]
    %v1892 = vld [vmem:[#allocation20 + $0x3c] sm:$0xf]
    %v1893 = vld [vmem:[#allocation22] sm:$0xff]
    %v1910 = vunpack.c.l.b16 %v1877
    %v1911 = vunpack.c.l.b16 %v1878
    %v1912 = vunpack.c.l.b16 %v1879
    %v1913 = vunpack.c.l.b16 %v1880
    %v1914 = vunpack.c.l.b16 %v1881
    %v1915 = vunpack.c.l.b16 %v1882
    %v1916 = vunpack.c.l.b16 %v1883
    %v1917 = vunpack.c.l.b16 %v1884
    %v1918 = vunpack.c.l.b16 %v1885
    %v1919 = vunpack.c.l.b16 %v1886
    %v1920 = vunpack.c.l.b16 %v1887
    %v1921 = vunpack.c.l.b16 %v1888
    %v1922 = vunpack.c.l.b16 %v1889
    %v1923 = vunpack.c.l.b16 %v1890
    %v1924 = vunpack.c.l.b16 %v1891
    %v1925 = vunpack.c.l.b16 %v1892
    %v1926 = vpack.c.b16 %v1911, %v1910
    %v1927 = vpack.c.b16 %v1913, %v1912
    %v1928 = vpack.c.b16 %v1915, %v1914
    %v1929 = vpack.c.b16 %v1917, %v1916
    %v1930 = vpack.c.b16 %v1919, %v1918
    %v1931 = vpack.c.b16 %v1921, %v1920
    %v1932 = vpack.c.b16 %v1923, %v1922
    %v1933 = vpack.c.b16 %v1925, %v1924
    %1942 = vmatprep.subr.bf16.mxu0 0
    %1943 = vmatpush1.bf16.msra.mxu0 %v1926
    %1944 = vmatprep.subr.bf16.mxu0 0
    %1945 = vmatpush1.bf16.msra.mxu0 %v1927
    %1946 = vmatprep.subr.bf16.mxu0 0
    %1947 = vmatpush1.bf16.msra.mxu0 %v1928
    %1948 = vmatprep.subr.bf16.mxu0 0
    %1949 = vmatpush1.bf16.msra.mxu0 %v1929
    %1950 = vmatprep.subr.bf16.mxu0 0
    %1951 = vmatpush1.bf16.msra.mxu0 %v1930
    %1952 = vmatprep.subr.bf16.mxu0 0
    %1953 = vmatpush1.bf16.msra.mxu0 %v1931
    %1954 = vmatprep.subr.bf16.mxu0 0
    %1955 = vmatpush1.bf16.msra.mxu0 %v1932
    %1956 = vmatprep.subr.bf16.mxu0 0
    %1957 = vmatpush1.bf16.msra.mxu0 %v1933
    %1958 = vmatprep.subr.bf16.mxu0 0
    %1959 = vmatpush1.bf16.msra.mxu0 0
    %1960 = vmatprep.subr.bf16.mxu0 0
    %1961 = vmatpush1.bf16.msra.mxu0 0
    %1962 = vmatprep.subr.bf16.mxu0 0
    %1963 = vmatpush1.bf16.msra.mxu0 0
    %1964 = vmatprep.subr.bf16.mxu0 0
    %1965 = vmatpush1.bf16.msra.mxu0 0
    %1966 = vmatprep.subr.bf16.mxu0 0
    %1967 = vmatpush1.bf16.msra.mxu0 0
    %1968 = vmatprep.subr.bf16.mxu0 0
    %1969 = vmatpush1.bf16.msra.mxu0 0
    %1970 = vmatprep.subr.bf16.mxu0 0
    %1971 = vmatpush1.bf16.msra.mxu0 0
    %1972 = vmatprep.subr.bf16.mxu0 0
    %1973 = vmatpush1.bf16.msra.mxu0 0
    %1974 = vmatprep.mubr.bf16.mxu0 0
    %1975 = vmatmul.mubr.bf16.gmra.mrb[0].mxu0 %v1876
    %v1976 = vpop.f32.mrb[0].mxu0
    %v1977 = vadd.f32 %v1893, %v1976
    %v1978 = vpop.f32.mrb[0].mxu0
    %v1979 = vpop.f32.mrb[0].mxu0
    %v1980 = vpop.f32.mrb[0].mxu0
    %1981 = vdwg.mxu0
    %v1982 = vmul.f32 %v963, 0.95
    %v1983 = vadd.f32 %v1982, %v1977
    %v1984 = vmul.f32 %v966, 0.5
    %v1985 = vsub.f32 %v1983, %v1984
    %vm1986 = vcmp.gt.f32.partialorder %v1985, 0.5
    %v1987 = vsel %vm1986, 1, 0
    %v1988 = vcvt.s32.f32 %v1987
    %v1989 = vpack.c.bf16 %v1988, %v1988
    %v1990 = vld [vmem:[#allocation23] sm:$0xf]
    %v1991 = vld [vmem:[#allocation23 + $0x4] sm:$0xf]
    %v1992 = vld [vmem:[#allocation23 + $0x8] sm:$0xf]
    %v1993 = vld [vmem:[#allocation23 + $0xc] sm:$0xf]
    %v1994 = vld [vmem:[#allocation23 + $0x10] sm:$0xf]
    %v1995 = vld [vmem:[#allocation23 + $0x14] sm:$0xf]
    %v1996 = vld [vmem:[#allocation23 + $0x18] sm:$0xf]
    %v1997 = vld [vmem:[#allocation23 + $0x1c] sm:$0xf]
    %v1998 = vld [vmem:[#allocation23 + $0x20] sm:$0xf]
    %v1999 = vld [vmem:[#allocation23 + $0x24] sm:$0xf]
    %v2000 = vld [vmem:[#allocation23 + $0x28] sm:$0xf]
    %v2001 = vld [vmem:[#allocation23 + $0x2c] sm:$0xf]
    %v2002 = vld [vmem:[#allocation23 + $0x30] sm:$0xf]
    %v2003 = vld [vmem:[#allocation23 + $0x34] sm:$0xf]
    %v2004 = vld [vmem:[#allocation23 + $0x38] sm:$0xf]
    %v2005 = vld [vmem:[#allocation23 + $0x3c] sm:$0xf]
    %v2006 = vld [vmem:[#allocation25] sm:$0xff]
    %v2023 = vunpack.c.l.b16 %v1990
    %v2024 = vunpack.c.l.b16 %v1991
    %v2025 = vunpack.c.l.b16 %v1992
    %v2026 = vunpack.c.l.b16 %v1993
    %v2027 = vunpack.c.l.b16 %v1994
    %v2028 = vunpack.c.l.b16 %v1995
    %v2029 = vunpack.c.l.b16 %v1996
    %v2030 = vunpack.c.l.b16 %v1997
    %v2031 = vunpack.c.l.b16 %v1998
    %v2032 = vunpack.c.l.b16 %v1999
    %v2033 = vunpack.c.l.b16 %v2000
    %v2034 = vunpack.c.l.b16 %v2001
    %v2035 = vunpack.c.l.b16 %v2002
    %v2036 = vunpack.c.l.b16 %v2003
    %v2037 = vunpack.c.l.b16 %v2004
    %v2038 = vunpack.c.l.b16 %v2005
    %v2039 = vpack.c.b16 %v2024, %v2023
    %v2040 = vpack.c.b16 %v2026, %v2025
    %v2041 = vpack.c.b16 %v2028, %v2027
    %v2042 = vpack.c.b16 %v2030, %v2029
    %v2043 = vpack.c.b16 %v2032, %v2031
    %v2044 = vpack.c.b16 %v2034, %v2033
    %v2045 = vpack.c.b16 %v2036, %v2035
    %v2046 = vpack.c.b16 %v2038, %v2037
    %2055 = vmatprep.subr.bf16.mxu0 0
    %2056 = vmatpush1.bf16.msra.mxu0 %v2039
    %2057 = vmatprep.subr.bf16.mxu0 0
    %2058 = vmatpush1.bf16.msra.mxu0 %v2040
    %2059 = vmatprep.subr.bf16.mxu0 0
    %2060 = vmatpush1.bf16.msra.mxu0 %v2041
    %2061 = vmatprep.subr.bf16.mxu0 0
    %2062 = vmatpush1.bf16.msra.mxu0 %v2042
    %2063 = vmatprep.subr.bf16.mxu0 0
    %2064 = vmatpush1.bf16.msra.mxu0 %v2043
    %2065 = vmatprep.subr.bf16.mxu0 0
    %2066 = vmatpush1.bf16.msra.mxu0 %v2044
    %2067 = vmatprep.subr.bf16.mxu0 0
    %2068 = vmatpush1.bf16.msra.mxu0 %v2045
    %2069 = vmatprep.subr.bf16.mxu0 0
    %2070 = vmatpush1.bf16.msra.mxu0 %v2046
    %2071 = vmatprep.subr.bf16.mxu0 0
    %2072 = vmatpush1.bf16.msra.mxu0 0
    %2073 = vmatprep.subr.bf16.mxu0 0
    %2074 = vmatpush1.bf16.msra.mxu0 0
    %2075 = vmatprep.subr.bf16.mxu0 0
    %2076 = vmatpush1.bf16.msra.mxu0 0
    %2077 = vmatprep.subr.bf16.mxu0 0
    %2078 = vmatpush1.bf16.msra.mxu0 0
    %2079 = vmatprep.subr.bf16.mxu0 0
    %2080 = vmatpush1.bf16.msra.mxu0 0
    %2081 = vmatprep.subr.bf16.mxu0 0
    %2082 = vmatpush1.bf16.msra.mxu0 0
    %2083 = vmatprep.subr.bf16.mxu0 0
    %2084 = vmatpush1.bf16.msra.mxu0 0
    %2085 = vmatprep.subr.bf16.mxu0 0
    %2086 = vmatpush1.bf16.msra.mxu0 0
    %2087 = vmatprep.mubr.bf16.mxu0 0
    %2088 = vmatmul.mubr.bf16.gmra.mrb[0].mxu0 %v1989
    %v2089 = vpop.f32.mrb[0].mxu0
    %v2090 = vadd.f32 %v2006, %v2089
    %v2091 = vpop.f32.mrb[0].mxu0
    %v2092 = vpop.f32.mrb[0].mxu0
    %v2093 = vpop.f32.mrb[0].mxu0
    %2094 = vdwg.mxu0
    %v2095 = vmul.f32 %v1074, 0.95
    %v2096 = vadd.f32 %v2095, %v2090
    %v2097 = vmul.f32 %v1077, 0.5
    %v2098 = vsub.f32 %v2096, %v2097
    %vm2099 = vcmp.gt.f32.partialorder %v2098, 0.5
    %v2100 = vsel %vm2099, 1, 0
    %v2101 = vcvt.s32.f32 %v2100
    %v2102 = vpack.c.bf16 %v2101, %v2101
    %v2103 = vld [vmem:[#allocation26] sm:$0xf]
    %v2104 = vld [vmem:[#allocation26 + $0x4] sm:$0xf]
    %v2105 = vld [vmem:[#allocation26 + $0x8] sm:$0xf]
    %v2106 = vld [vmem:[#allocation26 + $0xc] sm:$0xf]
    %v2107 = vld [vmem:[#allocation26 + $0x10] sm:$0xf]
    %v2108 = vld [vmem:[#allocation26 + $0x14] sm:$0xf]
    %v2109 = vld [vmem:[#allocation26 + $0x18] sm:$0xf]
    %v2110 = vld [vmem:[#allocation26 + $0x1c] sm:$0xf]
    %v2111 = vld [vmem:[#allocation26 + $0x20] sm:$0xf]
    %v2112 = vld [vmem:[#allocation26 + $0x24] sm:$0xf]
    %v2113 = vld [vmem:[#allocation26 + $0x28] sm:$0xf]
    %v2114 = vld [vmem:[#allocation26 + $0x2c] sm:$0xf]
    %v2115 = vld [vmem:[#allocation26 + $0x30] sm:$0xf]
    %v2116 = vld [vmem:[#allocation26 + $0x34] sm:$0xf]
    %v2117 = vld [vmem:[#allocation26 + $0x38] sm:$0xf]
    %v2118 = vld [vmem:[#allocation26 + $0x3c] sm:$0xf]
    %v2119 = vld [vmem:[#allocation28] sm:$0xff]
    %v2136 = vunpack.c.l.b16 %v2103
    %v2137 = vunpack.c.l.b16 %v2104
    %v2138 = vunpack.c.l.b16 %v2105
    %v2139 = vunpack.c.l.b16 %v2106
    %v2140 = vunpack.c.l.b16 %v2107
    %v2141 = vunpack.c.l.b16 %v2108
    %v2142 = vunpack.c.l.b16 %v2109
    %v2143 = vunpack.c.l.b16 %v2110
    %v2144 = vunpack.c.l.b16 %v2111
    %v2145 = vunpack.c.l.b16 %v2112
    %v2146 = vunpack.c.l.b16 %v2113
    %v2147 = vunpack.c.l.b16 %v2114
    %v2148 = vunpack.c.l.b16 %v2115
    %v2149 = vunpack.c.l.b16 %v2116
    %v2150 = vunpack.c.l.b16 %v2117
    %v2151 = vunpack.c.l.b16 %v2118
    %v2152 = vpack.c.b16 %v2137, %v2136
    %v2153 = vpack.c.b16 %v2139, %v2138
    %v2154 = vpack.c.b16 %v2141, %v2140
    %v2155 = vpack.c.b16 %v2143, %v2142
    %v2156 = vpack.c.b16 %v2145, %v2144
    %v2157 = vpack.c.b16 %v2147, %v2146
    %v2158 = vpack.c.b16 %v2149, %v2148
    %v2159 = vpack.c.b16 %v2151, %v2150
    %2168 = vmatprep.subr.bf16.mxu0 0
    %2169 = vmatpush1.bf16.msra.mxu0 %v2152
    %2170 = vmatprep.subr.bf16.mxu0 0
    %2171 = vmatpush1.bf16.msra.mxu0 %v2153
    %2172 = vmatprep.subr.bf16.mxu0 0
    %2173 = vmatpush1.bf16.msra.mxu0 %v2154
    %2174 = vmatprep.subr.bf16.mxu0 0
    %2175 = vmatpush1.bf16.msra.mxu0 %v2155
    %2176 = vmatprep.subr.bf16.mxu0 0
    %2177 = vmatpush1.bf16.msra.mxu0 %v2156
    %2178 = vmatprep.subr.bf16.mxu0 0
    %2179 = vmatpush1.bf16.msra.mxu0 %v2157
    %2180 = vmatprep.subr.bf16.mxu0 0
    %2181 = vmatpush1.bf16.msra.mxu0 %v2158
    %2182 = vmatprep.subr.bf16.mxu0 0
    %2183 = vmatpush1.bf16.msra.mxu0 %v2159
    %2184 = vmatprep.subr.bf16.mxu0 0
    %2185 = vmatpush1.bf16.msra.mxu0 0
    %2186 = vmatprep.subr.bf16.mxu0 0
    %2187 = vmatpush1.bf16.msra.mxu0 0
    %2188 = vmatprep.subr.bf16.mxu0 0
    %2189 = vmatpush1.bf16.msra.mxu0 0
    %2190 = vmatprep.subr.bf16.mxu0 0
    %2191 = vmatpush1.bf16.msra.mxu0 0
    %2192 = vmatprep.subr.bf16.mxu0 0
    %2193 = vmatpush1.bf16.msra.mxu0 0
    %2194 = vmatprep.subr.bf16.mxu0 0
    %2195 = vmatpush1.bf16.msra.mxu0 0
    %2196 = vmatprep.subr.bf16.mxu0 0
    %2197 = vmatpush1.bf16.msra.mxu0 0
    %2198 = vmatprep.subr.bf16.mxu0 0
    %2199 = vmatpush1.bf16.msra.mxu0 0
    %2200 = vmatprep.mubr.bf16.mxu0 0
    %2201 = vmatmul.mubr.bf16.gmra.mrb[0].mxu0 %v2102
    %v2202 = vpop.f32.mrb[0].mxu0
    %v2203 = vadd.f32 %v2119, %v2202
    %v2204 = vpop.f32.mrb[0].mxu0
    %v2205 = vpop.f32.mrb[0].mxu0
    %v2206 = vpop.f32.mrb[0].mxu0
    %2207 = vdwg.mxu0
    %v2208 = vmul.f32 %v1185, 0.95
    %v2209 = vadd.f32 %v2208, %v2203
    %v2210 = vmul.f32 %v1188, 0.5
    %v2211 = vsub.f32 %v2209, %v2210
    %vm2212 = vcmp.gt.f32.partialorder %v2211, 0.5
    %v2213 = vsel %vm2212, 1, 0
    %v2214 = vcvt.s32.f32 %v2213
    %v2215 = vpack.c.bf16 %v2214, %v2214
    %v2216 = vld [vmem:[%s17] sm:$0xf]
    %v2217 = vld [vmem:[%s17 + $0x4] sm:$0xf]
    %v2218 = vld [vmem:[%s17 + $0x8] sm:$0xf]
    %v2219 = vld [vmem:[%s17 + $0xc] sm:$0xf]
    %v2220 = vld [vmem:[%s17 + $0x10] sm:$0xf]
    %v2221 = vld [vmem:[%s17 + $0x14] sm:$0xf]
    %v2222 = vld [vmem:[%s17 + $0x18] sm:$0xf]
    %v2223 = vld [vmem:[%s17 + $0x1c] sm:$0xf]
    %v2224 = vld [vmem:[%s17 + $0x20] sm:$0xf]
    %v2225 = vld [vmem:[%s17 + $0x24] sm:$0xf]
    %v2226 = vld [vmem:[%s17 + $0x28] sm:$0xf]
    %v2227 = vld [vmem:[%s17 + $0x2c] sm:$0xf]
    %v2228 = vld [vmem:[%s17 + $0x30] sm:$0xf]
    %v2229 = vld [vmem:[%s17 + $0x34] sm:$0xf]
    %v2230 = vld [vmem:[%s17 + $0x38] sm:$0xf]
    %v2231 = vld [vmem:[%s17 + $0x3c] sm:$0xf]
    %v2232 = vld [vmem:[#allocation29] sm:$0xff]
    %v2249 = vunpack.c.l.b16 %v2216
    %v2250 = vunpack.c.l.b16 %v2217
    %v2251 = vunpack.c.l.b16 %v2218
    %v2252 = vunpack.c.l.b16 %v2219
    %v2253 = vunpack.c.l.b16 %v2220
    %v2254 = vunpack.c.l.b16 %v2221
    %v2255 = vunpack.c.l.b16 %v2222
    %v2256 = vunpack.c.l.b16 %v2223
    %v2257 = vunpack.c.l.b16 %v2224
    %v2258 = vunpack.c.l.b16 %v2225
    %v2259 = vunpack.c.l.b16 %v2226
    %v2260 = vunpack.c.l.b16 %v2227
    %v2261 = vunpack.c.l.b16 %v2228
    %v2262 = vunpack.c.l.b16 %v2229
    %v2263 = vunpack.c.l.b16 %v2230
    %v2264 = vunpack.c.l.b16 %v2231
    %v2265 = vpack.c.b16 %v2250, %v2249
    %v2266 = vpack.c.b16 %v2252, %v2251
    %v2267 = vpack.c.b16 %v2254, %v2253
    %v2268 = vpack.c.b16 %v2256, %v2255
    %v2269 = vpack.c.b16 %v2258, %v2257
    %v2270 = vpack.c.b16 %v2260, %v2259
    %v2271 = vpack.c.b16 %v2262, %v2261
    %v2272 = vpack.c.b16 %v2264, %v2263
    %2281 = vmatprep.subr.bf16.mxu0 0
    %2282 = vmatpush1.bf16.msra.mxu0 %v2265
    %2283 = vmatprep.subr.bf16.mxu0 0
    %2284 = vmatpush1.bf16.msra.mxu0 %v2266
    %2285 = vmatprep.subr.bf16.mxu0 0
    %2286 = vmatpush1.bf16.msra.mxu0 %v2267
    %2287 = vmatprep.subr.bf16.mxu0 0
    %2288 = vmatpush1.bf16.msra.mxu0 %v2268
    %2289 = vmatprep.subr.bf16.mxu0 0
    %2290 = vmatpush1.bf16.msra.mxu0 %v2269
    %2291 = vmatprep.subr.bf16.mxu0 0
    %2292 = vmatpush1.bf16.msra.mxu0 %v2270
    %2293 = vmatprep.subr.bf16.mxu0 0
    %2294 = vmatpush1.bf16.msra.mxu0 %v2271
    %2295 = vmatprep.subr.bf16.mxu0 0
    %2296 = vmatpush1.bf16.msra.mxu0 %v2272
    %2297 = vmatprep.subr.bf16.mxu0 0
    %2298 = vmatpush1.bf16.msra.mxu0 0
    %2299 = vmatprep.subr.bf16.mxu0 0
    %2300 = vmatpush1.bf16.msra.mxu0 0
    %2301 = vmatprep.subr.bf16.mxu0 0
    %2302 = vmatpush1.bf16.msra.mxu0 0
    %2303 = vmatprep.subr.bf16.mxu0 0
    %2304 = vmatpush1.bf16.msra.mxu0 0
    %2305 = vmatprep.subr.bf16.mxu0 0
    %2306 = vmatpush1.bf16.msra.mxu0 0
    %2307 = vmatprep.subr.bf16.mxu0 0
    %2308 = vmatpush1.bf16.msra.mxu0 0
    %2309 = vmatprep.subr.bf16.mxu0 0
    %2310 = vmatpush1.bf16.msra.mxu0 0
    %2311 = vmatprep.subr.bf16.mxu0 0
    %2312 = vmatpush1.bf16.msra.mxu0 0
    %2313 = vmatprep.mubr.bf16.mxu0 0
    %2314 = vmatmul.mubr.bf16.gmra.mrb[0].mxu0 %v2215
    %v2315 = vpop.f32.mrb[0].mxu0
    %v2316 = vadd.f32 %v2232, %v2315
    %v2317 = vpop.f32.mrb[0].mxu0
    %v2318 = vpop.f32.mrb[0].mxu0
    %v2319 = vpop.f32.mrb[0].mxu0
    %2320 = vdwg.mxu0
    %v2321 = vmul.f32 %v1296, 0.95
    %v2322 = vadd.f32 %v2321, %v2316
    %v2323 = vmul.f32 %v1299, 0.5
    %v2324 = vsub.f32 %v2322, %v2323
    %vm2325 = vcmp.gt.f32.partialorder %v2324, 0.5
    %v2326 = vsel %vm2325, 1, 0
    %v2327 = vcvt.s32.f32 %v2326
    %v2328 = vpack.c.bf16 %v2327, %v2327
    %v2329 = vunpack.c.l.bf16 %v2328
    %s2330 = scalar_lea.vmem [#allocation31], 8
    %2331 = vst [vmem:[%s2330] sm:$0xff] %v2329
    %s2332 = scalar_lea.vmem [#allocation32], 8
    %2333 = vst [vmem:[%s2332] sm:$0xff] %v2324
    %v2334 = vmul.f32 %v1307, 0.95
    %v2335 = vadd.f32 %v2334, %v291
    %v2336 = vmul.f32 %v1310, 0.5
    %v2337 = vsub.f32 %v2335, %v2336
    %vm2338 = vcmp.gt.f32.partialorder %v2337, 0.5
    %v2339 = vsel %vm2338, 1, 0
    %v2340 = vcvt.s32.f32 %v2339
    %v2341 = vpack.c.bf16 %v2340, %v2340
    %v2342 = vld [vmem:[#allocation5] sm:$0xf]
    %v2343 = vld [vmem:[#allocation5 + $0x4] sm:$0xf]
    %v2344 = vld [vmem:[#allocation5 + $0x8] sm:$0xf]
    %v2345 = vld [vmem:[#allocation5 + $0xc] sm:$0xf]
    %v2346 = vld [vmem:[#allocation5 + $0x10] sm:$0xf]
    %v2347 = vld [vmem:[#allocation5 + $0x14] sm:$0xf]
    %v2348 = vld [vmem:[#allocation5 + $0x18] sm:$0xf]
    %v2349 = vld [vmem:[#allocation5 + $0x1c] sm:$0xf]
    %v2350 = vld [vmem:[#allocation5 + $0x20] sm:$0xf]
    %v2351 = vld [vmem:[#allocation5 + $0x24] sm:$0xf]
    %v2352 = vld [vmem:[#allocation5 + $0x28] sm:$0xf]
    %v2353 = vld [vmem:[#allocation5 + $0x2c] sm:$0xf]
    %v2354 = vld [vmem:[#allocation5 + $0x30] sm:$0xf]
    %v2355 = vld [vmem:[#allocation5 + $0x34] sm:$0xf]
    %v2356 = vld [vmem:[#allocation5 + $0x38] sm:$0xf]
    %v2357 = vld [vmem:[#allocation5 + $0x3c] sm:$0xf]
    %v2358 = vld [vmem:[#allocation7] sm:$0xff]
    %v2375 = vunpack.c.l.b16 %v2342
    %v2376 = vunpack.c.l.b16 %v2343
    %v2377 = vunpack.c.l.b16 %v2344
    %v2378 = vunpack.c.l.b16 %v2345
    %v2379 = vunpack.c.l.b16 %v2346
    %v2380 = vunpack.c.l.b16 %v2347
    %v2381 = vunpack.c.l.b16 %v2348
    %v2382 = vunpack.c.l.b16 %v2349
    %v2383 = vunpack.c.l.b16 %v2350
    %v2384 = vunpack.c.l.b16 %v2351
    %v2385 = vunpack.c.l.b16 %v2352
    %v2386 = vunpack.c.l.b16 %v2353
    %v2387 = vunpack.c.l.b16 %v2354
    %v2388 = vunpack.c.l.b16 %v2355
    %v2389 = vunpack.c.l.b16 %v2356
    %v2390 = vunpack.c.l.b16 %v2357
    %v2391 = vpack.c.b16 %v2376, %v2375
    %v2392 = vpack.c.b16 %v2378, %v2377
    %v2393 = vpack.c.b16 %v2380, %v2379
    %v2394 = vpack.c.b16 %v2382, %v2381
    %v2395 = vpack.c.b16 %v2384, %v2383
    %v2396 = vpack.c.b16 %v2386, %v2385
    %v2397 = vpack.c.b16 %v2388, %v2387
    %v2398 = vpack.c.b16 %v2390, %v2389
    %2407 = vmatprep.subr.bf16.mxu0 0
    %2408 = vmatpush1.bf16.msra.mxu0 %v2391
    %2409 = vmatprep.subr.bf16.mxu0 0
    %2410 = vmatpush1.bf16.msra.mxu0 %v2392
    %2411 = vmatprep.subr.bf16.mxu0 0
    %2412 = vmatpush1.bf16.msra.mxu0 %v2393
    %2413 = vmatprep.subr.bf16.mxu0 0
    %2414 = vmatpush1.bf16.msra.mxu0 %v2394
    %2415 = vmatprep.subr.bf16.mxu0 0
    %2416 = vmatpush1.bf16.msra.mxu0 %v2395
    %2417 = vmatprep.subr.bf16.mxu0 0
    %2418 = vmatpush1.bf16.msra.mxu0 %v2396
    %2419 = vmatprep.subr.bf16.mxu0 0
    %2420 = vmatpush1.bf16.msra.mxu0 %v2397
    %2421 = vmatprep.subr.bf16.mxu0 0
    %2422 = vmatpush1.bf16.msra.mxu0 %v2398
    %2423 = vmatprep.subr.bf16.mxu0 0
    %2424 = vmatpush1.bf16.msra.mxu0 0
    %2425 = vmatprep.subr.bf16.mxu0 0
    %2426 = vmatpush1.bf16.msra.mxu0 0
    %2427 = vmatprep.subr.bf16.mxu0 0
    %2428 = vmatpush1.bf16.msra.mxu0 0
    %2429 = vmatprep.subr.bf16.mxu0 0
    %2430 = vmatpush1.bf16.msra.mxu0 0
    %2431 = vmatprep.subr.bf16.mxu0 0
    %2432 = vmatpush1.bf16.msra.mxu0 0
    %2433 = vmatprep.subr.bf16.mxu0 0
    %2434 = vmatpush1.bf16.msra.mxu0 0
    %2435 = vmatprep.subr.bf16.mxu0 0
    %2436 = vmatpush1.bf16.msra.mxu0 0
    %2437 = vmatprep.subr.bf16.mxu0 0
    %2438 = vmatpush1.bf16.msra.mxu0 0
    %2439 = vmatprep.mubr.bf16.mxu0 0
    %2440 = vmatmul.mubr.bf16.gmra.mrb[0].mxu0 %v2341
    %v2441 = vpop.f32.mrb[0].mxu0
    %v2442 = vadd.f32 %v2358, %v2441
    %v2443 = vpop.f32.mrb[0].mxu0
    %v2444 = vpop.f32.mrb[0].mxu0
    %v2445 = vpop.f32.mrb[0].mxu0
    %2446 = vdwg.mxu0
    %v2447 = vmul.f32 %v1420, 0.95
    %v2448 = vadd.f32 %v2447, %v2442
    %v2449 = vmul.f32 %v1423, 0.5
    %v2450 = vsub.f32 %v2448, %v2449
    %vm2451 = vcmp.gt.f32.partialorder %v2450, 0.5
    %v2452 = vsel %vm2451, 1, 0
    %v2453 = vcvt.s32.f32 %v2452
    %v2454 = vpack.c.bf16 %v2453, %v2453
    %v2455 = vld [vmem:[#allocation8] sm:$0xf]
    %v2456 = vld [vmem:[#allocation8 + $0x4] sm:$0xf]
    %v2457 = vld [vmem:[#allocation8 + $0x8] sm:$0xf]
    %v2458 = vld [vmem:[#allocation8 + $0xc] sm:$0xf]
    %v2459 = vld [vmem:[#allocation8 + $0x10] sm:$0xf]
    %v2460 = vld [vmem:[#allocation8 + $0x14] sm:$0xf]
    %v2461 = vld [vmem:[#allocation8 + $0x18] sm:$0xf]
    %v2462 = vld [vmem:[#allocation8 + $0x1c] sm:$0xf]
    %v2463 = vld [vmem:[#allocation8 + $0x20] sm:$0xf]
    %v2464 = vld [vmem:[#allocation8 + $0x24] sm:$0xf]
    %v2465 = vld [vmem:[#allocation8 + $0x28] sm:$0xf]
    %v2466 = vld [vmem:[#allocation8 + $0x2c] sm:$0xf]
    %v2467 = vld [vmem:[#allocation8 + $0x30] sm:$0xf]
    %v2468 = vld [vmem:[#allocation8 + $0x34] sm:$0xf]
    %v2469 = vld [vmem:[#allocation8 + $0x38] sm:$0xf]
    %v2470 = vld [vmem:[#allocation8 + $0x3c] sm:$0xf]
    %v2471 = vld [vmem:[#allocation10] sm:$0xff]
    %v2488 = vunpack.c.l.b16 %v2455
    %v2489 = vunpack.c.l.b16 %v2456
    %v2490 = vunpack.c.l.b16 %v2457
    %v2491 = vunpack.c.l.b16 %v2458
    %v2492 = vunpack.c.l.b16 %v2459
    %v2493 = vunpack.c.l.b16 %v2460
    %v2494 = vunpack.c.l.b16 %v2461
    %v2495 = vunpack.c.l.b16 %v2462
    %v2496 = vunpack.c.l.b16 %v2463
    %v2497 = vunpack.c.l.b16 %v2464
    %v2498 = vunpack.c.l.b16 %v2465
    %v2499 = vunpack.c.l.b16 %v2466
    %v2500 = vunpack.c.l.b16 %v2467
    %v2501 = vunpack.c.l.b16 %v2468
    %v2502 = vunpack.c.l.b16 %v2469
    %v2503 = vunpack.c.l.b16 %v2470
    %v2504 = vpack.c.b16 %v2489, %v2488
    %v2505 = vpack.c.b16 %v2491, %v2490
    %v2506 = vpack.c.b16 %v2493, %v2492
    %v2507 = vpack.c.b16 %v2495, %v2494
    %v2508 = vpack.c.b16 %v2497, %v2496
    %v2509 = vpack.c.b16 %v2499, %v2498
    %v2510 = vpack.c.b16 %v2501, %v2500
    %v2511 = vpack.c.b16 %v2503, %v2502
    %2520 = vmatprep.subr.bf16.mxu0 0
    %2521 = vmatpush1.bf16.msra.mxu0 %v2504
    %2522 = vmatprep.subr.bf16.mxu0 0
    %2523 = vmatpush1.bf16.msra.mxu0 %v2505
    %2524 = vmatprep.subr.bf16.mxu0 0
    %2525 = vmatpush1.bf16.msra.mxu0 %v2506
    %2526 = vmatprep.subr.bf16.mxu0 0
    %2527 = vmatpush1.bf16.msra.mxu0 %v2507
    %2528 = vmatprep.subr.bf16.mxu0 0
    %2529 = vmatpush1.bf16.msra.mxu0 %v2508
    %2530 = vmatprep.subr.bf16.mxu0 0
    %2531 = vmatpush1.bf16.msra.mxu0 %v2509
    %2532 = vmatprep.subr.bf16.mxu0 0
    %2533 = vmatpush1.bf16.msra.mxu0 %v2510
    %2534 = vmatprep.subr.bf16.mxu0 0
    %2535 = vmatpush1.bf16.msra.mxu0 %v2511
    %2536 = vmatprep.subr.bf16.mxu0 0
    %2537 = vmatpush1.bf16.msra.mxu0 0
    %2538 = vmatprep.subr.bf16.mxu0 0
    %2539 = vmatpush1.bf16.msra.mxu0 0
    %2540 = vmatprep.subr.bf16.mxu0 0
    %2541 = vmatpush1.bf16.msra.mxu0 0
    %2542 = vmatprep.subr.bf16.mxu0 0
    %2543 = vmatpush1.bf16.msra.mxu0 0
    %2544 = vmatprep.subr.bf16.mxu0 0
    %2545 = vmatpush1.bf16.msra.mxu0 0
    %2546 = vmatprep.subr.bf16.mxu0 0
    %2547 = vmatpush1.bf16.msra.mxu0 0
    %2548 = vmatprep.subr.bf16.mxu0 0
    %2549 = vmatpush1.bf16.msra.mxu0 0
    %2550 = vmatprep.subr.bf16.mxu0 0
    %2551 = vmatpush1.bf16.msra.mxu0 0
    %2552 = vmatprep.mubr.bf16.mxu0 0
    %2553 = vmatmul.mubr.bf16.gmra.mrb[0].mxu0 %v2454
    %v2554 = vpop.f32.mrb[0].mxu0
    %v2555 = vadd.f32 %v2471, %v2554
    %v2556 = vpop.f32.mrb[0].mxu0
    %v2557 = vpop.f32.mrb[0].mxu0
    %v2558 = vpop.f32.mrb[0].mxu0
    %2559 = vdwg.mxu0
    %v2560 = vmul.f32 %v1533, 0.95
    %v2561 = vadd.f32 %v2560, %v2555
    %v2562 = vmul.f32 %v1536, 0.5
    %v2563 = vsub.f32 %v2561, %v2562
    %vm2564 = vcmp.gt.f32.partialorder %v2563, 0.5
    %v2565 = vsel %vm2564, 1, 0
    %v2566 = vcvt.s32.f32 %v2565
    %v2567 = vpack.c.bf16 %v2566, %v2566
    %v2568 = vld [vmem:[#allocation11] sm:$0xf]
    %v2569 = vld [vmem:[#allocation11 + $0x4] sm:$0xf]
    %v2570 = vld [vmem:[#allocation11 + $0x8] sm:$0xf]
    %v2571 = vld [vmem:[#allocation11 + $0xc] sm:$0xf]
    %v2572 = vld [vmem:[#allocation11 + $0x10] sm:$0xf]
    %v2573 = vld [vmem:[#allocation11 + $0x14] sm:$0xf]
    %v2574 = vld [vmem:[#allocation11 + $0x18] sm:$0xf]
    %v2575 = vld [vmem:[#allocation11 + $0x1c] sm:$0xf]
    %v2576 = vld [vmem:[#allocation11 + $0x20] sm:$0xf]
    %v2577 = vld [vmem:[#allocation11 + $0x24] sm:$0xf]
    %v2578 = vld [vmem:[#allocation11 + $0x28] sm:$0xf]
    %v2579 = vld [vmem:[#allocation11 + $0x2c] sm:$0xf]
    %v2580 = vld [vmem:[#allocation11 + $0x30] sm:$0xf]
    %v2581 = vld [vmem:[#allocation11 + $0x34] sm:$0xf]
    %v2582 = vld [vmem:[#allocation11 + $0x38] sm:$0xf]
    %v2583 = vld [vmem:[#allocation11 + $0x3c] sm:$0xf]
    %v2584 = vld [vmem:[#allocation13] sm:$0xff]
    %v2601 = vunpack.c.l.b16 %v2568
    %v2602 = vunpack.c.l.b16 %v2569
    %v2603 = vunpack.c.l.b16 %v2570
    %v2604 = vunpack.c.l.b16 %v2571
    %v2605 = vunpack.c.l.b16 %v2572
    %v2606 = vunpack.c.l.b16 %v2573
    %v2607 = vunpack.c.l.b16 %v2574
    %v2608 = vunpack.c.l.b16 %v2575
    %v2609 = vunpack.c.l.b16 %v2576
    %v2610 = vunpack.c.l.b16 %v2577
    %v2611 = vunpack.c.l.b16 %v2578
    %v2612 = vunpack.c.l.b16 %v2579
    %v2613 = vunpack.c.l.b16 %v2580
    %v2614 = vunpack.c.l.b16 %v2581
    %v2615 = vunpack.c.l.b16 %v2582
    %v2616 = vunpack.c.l.b16 %v2583
    %v2617 = vpack.c.b16 %v2602, %v2601
    %v2618 = vpack.c.b16 %v2604, %v2603
    %v2619 = vpack.c.b16 %v2606, %v2605
    %v2620 = vpack.c.b16 %v2608, %v2607
    %v2621 = vpack.c.b16 %v2610, %v2609
    %v2622 = vpack.c.b16 %v2612, %v2611
    %v2623 = vpack.c.b16 %v2614, %v2613
    %v2624 = vpack.c.b16 %v2616, %v2615
    %2633 = vmatprep.subr.bf16.mxu0 0
    %2634 = vmatpush1.bf16.msra.mxu0 %v2617
    %2635 = vmatprep.subr.bf16.mxu0 0
    %2636 = vmatpush1.bf16.msra.mxu0 %v2618
    %2637 = vmatprep.subr.bf16.mxu0 0
    %2638 = vmatpush1.bf16.msra.mxu0 %v2619
    %2639 = vmatprep.subr.bf16.mxu0 0
    %2640 = vmatpush1.bf16.msra.mxu0 %v2620
    %2641 = vmatprep.subr.bf16.mxu0 0
    %2642 = vmatpush1.bf16.msra.mxu0 %v2621
    %2643 = vmatprep.subr.bf16.mxu0 0
    %2644 = vmatpush1.bf16.msra.mxu0 %v2622
    %2645 = vmatprep.subr.bf16.mxu0 0
    %2646 = vmatpush1.bf16.msra.mxu0 %v2623
    %2647 = vmatprep.subr.bf16.mxu0 0
    %2648 = vmatpush1.bf16.msra.mxu0 %v2624
    %2649 = vmatprep.subr.bf16.mxu0 0
    %2650 = vmatpush1.bf16.msra.mxu0 0
    %2651 = vmatprep.subr.bf16.mxu0 0
    %2652 = vmatpush1.bf16.msra.mxu0 0
    %2653 = vmatprep.subr.bf16.mxu0 0
    %2654 = vmatpush1.bf16.msra.mxu0 0
    %2655 = vmatprep.subr.bf16.mxu0 0
    %2656 = vmatpush1.bf16.msra.mxu0 0
    %2657 = vmatprep.subr.bf16.mxu0 0
    %2658 = vmatpush1.bf16.msra.mxu0 0
    %2659 = vmatprep.subr.bf16.mxu0 0
    %2660 = vmatpush1.bf16.msra.mxu0 0
    %2661 = vmatprep.subr.bf16.mxu0 0
    %2662 = vmatpush1.bf16.msra.mxu0 0
    %2663 = vmatprep.subr.bf16.mxu0 0
    %2664 = vmatpush1.bf16.msra.mxu0 0
    %2665 = vmatprep.mubr.bf16.mxu0 0
    %2666 = vmatmul.mubr.bf16.gmra.mrb[0].mxu0 %v2567
    %v2667 = vpop.f32.mrb[0].mxu0
    %v2668 = vadd.f32 %v2584, %v2667
    %v2669 = vpop.f32.mrb[0].mxu0
    %v2670 = vpop.f32.mrb[0].mxu0
    %v2671 = vpop.f32.mrb[0].mxu0
    %2672 = vdwg.mxu0
    %v2673 = vmul.f32 %v1646, 0.95
    %v2674 = vadd.f32 %v2673, %v2668
    %v2675 = vmul.f32 %v1649, 0.5
    %v2676 = vsub.f32 %v2674, %v2675
    %vm2677 = vcmp.gt.f32.partialorder %v2676, 0.5
    %v2678 = vsel %vm2677, 1, 0
    %v2679 = vcvt.s32.f32 %v2678
    %v2680 = vpack.c.bf16 %v2679, %v2679
    %v2681 = vld [vmem:[#allocation14] sm:$0xf]
    %v2682 = vld [vmem:[#allocation14 + $0x4] sm:$0xf]
    %v2683 = vld [vmem:[#allocation14 + $0x8] sm:$0xf]
    %v2684 = vld [vmem:[#allocation14 + $0xc] sm:$0xf]
    %v2685 = vld [vmem:[#allocation14 + $0x10] sm:$0xf]
    %v2686 = vld [vmem:[#allocation14 + $0x14] sm:$0xf]
    %v2687 = vld [vmem:[#allocation14 + $0x18] sm:$0xf]
    %v2688 = vld [vmem:[#allocation14 + $0x1c] sm:$0xf]
    %v2689 = vld [vmem:[#allocation14 + $0x20] sm:$0xf]
    %v2690 = vld [vmem:[#allocation14 + $0x24] sm:$0xf]
    %v2691 = vld [vmem:[#allocation14 + $0x28] sm:$0xf]
    %v2692 = vld [vmem:[#allocation14 + $0x2c] sm:$0xf]
    %v2693 = vld [vmem:[#allocation14 + $0x30] sm:$0xf]
    %v2694 = vld [vmem:[#allocation14 + $0x34] sm:$0xf]
    %v2695 = vld [vmem:[#allocation14 + $0x38] sm:$0xf]
    %v2696 = vld [vmem:[#allocation14 + $0x3c] sm:$0xf]
    %v2697 = vld [vmem:[#allocation16] sm:$0xff]
    %v2714 = vunpack.c.l.b16 %v2681
    %v2715 = vunpack.c.l.b16 %v2682
    %v2716 = vunpack.c.l.b16 %v2683
    %v2717 = vunpack.c.l.b16 %v2684
    %v2718 = vunpack.c.l.b16 %v2685
    %v2719 = vunpack.c.l.b16 %v2686
    %v2720 = vunpack.c.l.b16 %v2687
    %v2721 = vunpack.c.l.b16 %v2688
    %v2722 = vunpack.c.l.b16 %v2689
    %v2723 = vunpack.c.l.b16 %v2690
    %v2724 = vunpack.c.l.b16 %v2691
    %v2725 = vunpack.c.l.b16 %v2692
    %v2726 = vunpack.c.l.b16 %v2693
    %v2727 = vunpack.c.l.b16 %v2694
    %v2728 = vunpack.c.l.b16 %v2695
    %v2729 = vunpack.c.l.b16 %v2696
    %v2730 = vpack.c.b16 %v2715, %v2714
    %v2731 = vpack.c.b16 %v2717, %v2716
    %v2732 = vpack.c.b16 %v2719, %v2718
    %v2733 = vpack.c.b16 %v2721, %v2720
    %v2734 = vpack.c.b16 %v2723, %v2722
    %v2735 = vpack.c.b16 %v2725, %v2724
    %v2736 = vpack.c.b16 %v2727, %v2726
    %v2737 = vpack.c.b16 %v2729, %v2728
    %2746 = vmatprep.subr.bf16.mxu0 0
    %2747 = vmatpush1.bf16.msra.mxu0 %v2730
    %2748 = vmatprep.subr.bf16.mxu0 0
    %2749 = vmatpush1.bf16.msra.mxu0 %v2731
    %2750 = vmatprep.subr.bf16.mxu0 0
    %2751 = vmatpush1.bf16.msra.mxu0 %v2732
    %2752 = vmatprep.subr.bf16.mxu0 0
    %2753 = vmatpush1.bf16.msra.mxu0 %v2733
    %2754 = vmatprep.subr.bf16.mxu0 0
    %2755 = vmatpush1.bf16.msra.mxu0 %v2734
    %2756 = vmatprep.subr.bf16.mxu0 0
    %2757 = vmatpush1.bf16.msra.mxu0 %v2735
    %2758 = vmatprep.subr.bf16.mxu0 0
    %2759 = vmatpush1.bf16.msra.mxu0 %v2736
    %2760 = vmatprep.subr.bf16.mxu0 0
    %2761 = vmatpush1.bf16.msra.mxu0 %v2737
    %2762 = vmatprep.subr.bf16.mxu0 0
    %2763 = vmatpush1.bf16.msra.mxu0 0
    %2764 = vmatprep.subr.bf16.mxu0 0
    %2765 = vmatpush1.bf16.msra.mxu0 0
    %2766 = vmatprep.subr.bf16.mxu0 0
    %2767 = vmatpush1.bf16.msra.mxu0 0
    %2768 = vmatprep.subr.bf16.mxu0 0
    %2769 = vmatpush1.bf16.msra.mxu0 0
    %2770 = vmatprep.subr.bf16.mxu0 0
    %2771 = vmatpush1.bf16.msra.mxu0 0
    %2772 = vmatprep.subr.bf16.mxu0 0
    %2773 = vmatpush1.bf16.msra.mxu0 0
    %2774 = vmatprep.subr.bf16.mxu0 0
    %2775 = vmatpush1.bf16.msra.mxu0 0
    %2776 = vmatprep.subr.bf16.mxu0 0
    %2777 = vmatpush1.bf16.msra.mxu0 0
    %2778 = vmatprep.mubr.bf16.mxu0 0
    %2779 = vmatmul.mubr.bf16.gmra.mrb[0].mxu0 %v2680
    %v2780 = vpop.f32.mrb[0].mxu0
    %v2781 = vadd.f32 %v2697, %v2780
    %v2782 = vpop.f32.mrb[0].mxu0
    %v2783 = vpop.f32.mrb[0].mxu0
    %v2784 = vpop.f32.mrb[0].mxu0
    %2785 = vdwg.mxu0
    %v2786 = vmul.f32 %v1759, 0.95
    %v2787 = vadd.f32 %v2786, %v2781
    %v2788 = vmul.f32 %v1762, 0.5
    %v2789 = vsub.f32 %v2787, %v2788
    %vm2790 = vcmp.gt.f32.partialorder %v2789, 0.5
    %v2791 = vsel %vm2790, 1, 0
    %v2792 = vcvt.s32.f32 %v2791
    %v2793 = vpack.c.bf16 %v2792, %v2792
    %v2794 = vld [vmem:[#allocation17] sm:$0xf]
    %v2795 = vld [vmem:[#allocation17 + $0x4] sm:$0xf]
    %v2796 = vld [vmem:[#allocation17 + $0x8] sm:$0xf]
    %v2797 = vld [vmem:[#allocation17 + $0xc] sm:$0xf]
    %v2798 = vld [vmem:[#allocation17 + $0x10] sm:$0xf]
    %v2799 = vld [vmem:[#allocation17 + $0x14] sm:$0xf]
    %v2800 = vld [vmem:[#allocation17 + $0x18] sm:$0xf]
    %v2801 = vld [vmem:[#allocation17 + $0x1c] sm:$0xf]
    %v2802 = vld [vmem:[#allocation17 + $0x20] sm:$0xf]
    %v2803 = vld [vmem:[#allocation17 + $0x24] sm:$0xf]
    %v2804 = vld [vmem:[#allocation17 + $0x28] sm:$0xf]
    %v2805 = vld [vmem:[#allocation17 + $0x2c] sm:$0xf]
    %v2806 = vld [vmem:[#allocation17 + $0x30] sm:$0xf]
    %v2807 = vld [vmem:[#allocation17 + $0x34] sm:$0xf]
    %v2808 = vld [vmem:[#allocation17 + $0x38] sm:$0xf]
    %v2809 = vld [vmem:[#allocation17 + $0x3c] sm:$0xf]
    %v2810 = vld [vmem:[#allocation19] sm:$0xff]
    %v2827 = vunpack.c.l.b16 %v2794
    %v2828 = vunpack.c.l.b16 %v2795
    %v2829 = vunpack.c.l.b16 %v2796
    %v2830 = vunpack.c.l.b16 %v2797
    %v2831 = vunpack.c.l.b16 %v2798
    %v2832 = vunpack.c.l.b16 %v2799
    %v2833 = vunpack.c.l.b16 %v2800
    %v2834 = vunpack.c.l.b16 %v2801
    %v2835 = vunpack.c.l.b16 %v2802
    %v2836 = vunpack.c.l.b16 %v2803
    %v2837 = vunpack.c.l.b16 %v2804
    %v2838 = vunpack.c.l.b16 %v2805
    %v2839 = vunpack.c.l.b16 %v2806
    %v2840 = vunpack.c.l.b16 %v2807
    %v2841 = vunpack.c.l.b16 %v2808
    %v2842 = vunpack.c.l.b16 %v2809
    %v2843 = vpack.c.b16 %v2828, %v2827
    %v2844 = vpack.c.b16 %v2830, %v2829
    %v2845 = vpack.c.b16 %v2832, %v2831
    %v2846 = vpack.c.b16 %v2834, %v2833
    %v2847 = vpack.c.b16 %v2836, %v2835
    %v2848 = vpack.c.b16 %v2838, %v2837
    %v2849 = vpack.c.b16 %v2840, %v2839
    %v2850 = vpack.c.b16 %v2842, %v2841
    %2859 = vmatprep.subr.bf16.mxu0 0
    %2860 = vmatpush1.bf16.msra.mxu0 %v2843
    %2861 = vmatprep.subr.bf16.mxu0 0
    %2862 = vmatpush1.bf16.msra.mxu0 %v2844
    %2863 = vmatprep.subr.bf16.mxu0 0
    %2864 = vmatpush1.bf16.msra.mxu0 %v2845
    %2865 = vmatprep.subr.bf16.mxu0 0
    %2866 = vmatpush1.bf16.msra.mxu0 %v2846
    %2867 = vmatprep.subr.bf16.mxu0 0
    %2868 = vmatpush1.bf16.msra.mxu0 %v2847
    %2869 = vmatprep.subr.bf16.mxu0 0
    %2870 = vmatpush1.bf16.msra.mxu0 %v2848
    %2871 = vmatprep.subr.bf16.mxu0 0
    %2872 = vmatpush1.bf16.msra.mxu0 %v2849
    %2873 = vmatprep.subr.bf16.mxu0 0
    %2874 = vmatpush1.bf16.msra.mxu0 %v2850
    %2875 = vmatprep.subr.bf16.mxu0 0
    %2876 = vmatpush1.bf16.msra.mxu0 0
    %2877 = vmatprep.subr.bf16.mxu0 0
    %2878 = vmatpush1.bf16.msra.mxu0 0
    %2879 = vmatprep.subr.bf16.mxu0 0
    %2880 = vmatpush1.bf16.msra.mxu0 0
    %2881 = vmatprep.subr.bf16.mxu0 0
    %2882 = vmatpush1.bf16.msra.mxu0 0
    %2883 = vmatprep.subr.bf16.mxu0 0
    %2884 = vmatpush1.bf16.msra.mxu0 0
    %2885 = vmatprep.subr.bf16.mxu0 0
    %2886 = vmatpush1.bf16.msra.mxu0 0
    %2887 = vmatprep.subr.bf16.mxu0 0
    %2888 = vmatpush1.bf16.msra.mxu0 0
    %2889 = vmatprep.subr.bf16.mxu0 0
    %2890 = vmatpush1.bf16.msra.mxu0 0
    %2891 = vmatprep.mubr.bf16.mxu0 0
    %2892 = vmatmul.mubr.bf16.gmra.mrb[0].mxu0 %v2793
    %v2893 = vpop.f32.mrb[0].mxu0
    %v2894 = vadd.f32 %v2810, %v2893
    %v2895 = vpop.f32.mrb[0].mxu0
    %v2896 = vpop.f32.mrb[0].mxu0
    %v2897 = vpop.f32.mrb[0].mxu0
    %2898 = vdwg.mxu0
    %v2899 = vmul.f32 %v1872, 0.95
    %v2900 = vadd.f32 %v2899, %v2894
    %v2901 = vmul.f32 %v1875, 0.5
    %v2902 = vsub.f32 %v2900, %v2901
    %vm2903 = vcmp.gt.f32.partialorder %v2902, 0.5
    %v2904 = vsel %vm2903, 1, 0
    %v2905 = vcvt.s32.f32 %v2904
    %v2906 = vpack.c.bf16 %v2905, %v2905
    %v2907 = vld [vmem:[#allocation20] sm:$0xf]
    %v2908 = vld [vmem:[#allocation20 + $0x4] sm:$0xf]
    %v2909 = vld [vmem:[#allocation20 + $0x8] sm:$0xf]
    %v2910 = vld [vmem:[#allocation20 + $0xc] sm:$0xf]
    %v2911 = vld [vmem:[#allocation20 + $0x10] sm:$0xf]
    %v2912 = vld [vmem:[#allocation20 + $0x14] sm:$0xf]
    %v2913 = vld [vmem:[#allocation20 + $0x18] sm:$0xf]
    %v2914 = vld [vmem:[#allocation20 + $0x1c] sm:$0xf]
    %v2915 = vld [vmem:[#allocation20 + $0x20] sm:$0xf]
    %v2916 = vld [vmem:[#allocation20 + $0x24] sm:$0xf]
    %v2917 = vld [vmem:[#allocation20 + $0x28] sm:$0xf]
    %v2918 = vld [vmem:[#allocation20 + $0x2c] sm:$0xf]
    %v2919 = vld [vmem:[#allocation20 + $0x30] sm:$0xf]
    %v2920 = vld [vmem:[#allocation20 + $0x34] sm:$0xf]
    %v2921 = vld [vmem:[#allocation20 + $0x38] sm:$0xf]
    %v2922 = vld [vmem:[#allocation20 + $0x3c] sm:$0xf]
    %v2923 = vld [vmem:[#allocation22] sm:$0xff]
    %v2940 = vunpack.c.l.b16 %v2907
    %v2941 = vunpack.c.l.b16 %v2908
    %v2942 = vunpack.c.l.b16 %v2909
    %v2943 = vunpack.c.l.b16 %v2910
    %v2944 = vunpack.c.l.b16 %v2911
    %v2945 = vunpack.c.l.b16 %v2912
    %v2946 = vunpack.c.l.b16 %v2913
    %v2947 = vunpack.c.l.b16 %v2914
    %v2948 = vunpack.c.l.b16 %v2915
    %v2949 = vunpack.c.l.b16 %v2916
    %v2950 = vunpack.c.l.b16 %v2917
    %v2951 = vunpack.c.l.b16 %v2918
    %v2952 = vunpack.c.l.b16 %v2919
    %v2953 = vunpack.c.l.b16 %v2920
    %v2954 = vunpack.c.l.b16 %v2921
    %v2955 = vunpack.c.l.b16 %v2922
    %v2956 = vpack.c.b16 %v2941, %v2940
    %v2957 = vpack.c.b16 %v2943, %v2942
    %v2958 = vpack.c.b16 %v2945, %v2944
    %v2959 = vpack.c.b16 %v2947, %v2946
    %v2960 = vpack.c.b16 %v2949, %v2948
    %v2961 = vpack.c.b16 %v2951, %v2950
    %v2962 = vpack.c.b16 %v2953, %v2952
    %v2963 = vpack.c.b16 %v2955, %v2954
    %2972 = vmatprep.subr.bf16.mxu0 0
    %2973 = vmatpush1.bf16.msra.mxu0 %v2956
    %2974 = vmatprep.subr.bf16.mxu0 0
    %2975 = vmatpush1.bf16.msra.mxu0 %v2957
    %2976 = vmatprep.subr.bf16.mxu0 0
    %2977 = vmatpush1.bf16.msra.mxu0 %v2958
    %2978 = vmatprep.subr.bf16.mxu0 0
    %2979 = vmatpush1.bf16.msra.mxu0 %v2959
    %2980 = vmatprep.subr.bf16.mxu0 0
    %2981 = vmatpush1.bf16.msra.mxu0 %v2960
    %2982 = vmatprep.subr.bf16.mxu0 0
    %2983 = vmatpush1.bf16.msra.mxu0 %v2961
    %2984 = vmatprep.subr.bf16.mxu0 0
    %2985 = vmatpush1.bf16.msra.mxu0 %v2962
    %2986 = vmatprep.subr.bf16.mxu0 0
    %2987 = vmatpush1.bf16.msra.mxu0 %v2963
    %2988 = vmatprep.subr.bf16.mxu0 0
    %2989 = vmatpush1.bf16.msra.mxu0 0
    %2990 = vmatprep.subr.bf16.mxu0 0
    %2991 = vmatpush1.bf16.msra.mxu0 0
    %2992 = vmatprep.subr.bf16.mxu0 0
    %2993 = vmatpush1.bf16.msra.mxu0 0
    %2994 = vmatprep.subr.bf16.mxu0 0
    %2995 = vmatpush1.bf16.msra.mxu0 0
    %2996 = vmatprep.subr.bf16.mxu0 0
    %2997 = vmatpush1.bf16.msra.mxu0 0
    %2998 = vmatprep.subr.bf16.mxu0 0
    %2999 = vmatpush1.bf16.msra.mxu0 0
    %3000 = vmatprep.subr.bf16.mxu0 0
    %3001 = vmatpush1.bf16.msra.mxu0 0
    %3002 = vmatprep.subr.bf16.mxu0 0
    %3003 = vmatpush1.bf16.msra.mxu0 0
    %3004 = vmatprep.mubr.bf16.mxu0 0
    %3005 = vmatmul.mubr.bf16.gmra.mrb[0].mxu0 %v2906
    %v3006 = vpop.f32.mrb[0].mxu0
    %v3007 = vadd.f32 %v2923, %v3006
    %v3008 = vpop.f32.mrb[0].mxu0
    %v3009 = vpop.f32.mrb[0].mxu0
    %v3010 = vpop.f32.mrb[0].mxu0
    %3011 = vdwg.mxu0
    %v3012 = vmul.f32 %v1985, 0.95
    %v3013 = vadd.f32 %v3012, %v3007
    %v3014 = vmul.f32 %v1988, 0.5
    %v3015 = vsub.f32 %v3013, %v3014
    %vm3016 = vcmp.gt.f32.partialorder %v3015, 0.5
    %v3017 = vsel %vm3016, 1, 0
    %v3018 = vcvt.s32.f32 %v3017
    %v3019 = vpack.c.bf16 %v3018, %v3018
    %v3020 = vld [vmem:[#allocation23] sm:$0xf]
    %v3021 = vld [vmem:[#allocation23 + $0x4] sm:$0xf]
    %v3022 = vld [vmem:[#allocation23 + $0x8] sm:$0xf]
    %v3023 = vld [vmem:[#allocation23 + $0xc] sm:$0xf]
    %v3024 = vld [vmem:[#allocation23 + $0x10] sm:$0xf]
    %v3025 = vld [vmem:[#allocation23 + $0x14] sm:$0xf]
    %v3026 = vld [vmem:[#allocation23 + $0x18] sm:$0xf]
    %v3027 = vld [vmem:[#allocation23 + $0x1c] sm:$0xf]
    %v3028 = vld [vmem:[#allocation23 + $0x20] sm:$0xf]
    %v3029 = vld [vmem:[#allocation23 + $0x24] sm:$0xf]
    %v3030 = vld [vmem:[#allocation23 + $0x28] sm:$0xf]
    %v3031 = vld [vmem:[#allocation23 + $0x2c] sm:$0xf]
    %v3032 = vld [vmem:[#allocation23 + $0x30] sm:$0xf]
    %v3033 = vld [vmem:[#allocation23 + $0x34] sm:$0xf]
    %v3034 = vld [vmem:[#allocation23 + $0x38] sm:$0xf]
    %v3035 = vld [vmem:[#allocation23 + $0x3c] sm:$0xf]
    %v3036 = vld [vmem:[#allocation25] sm:$0xff]
    %v3053 = vunpack.c.l.b16 %v3020
    %v3054 = vunpack.c.l.b16 %v3021
    %v3055 = vunpack.c.l.b16 %v3022
    %v3056 = vunpack.c.l.b16 %v3023
    %v3057 = vunpack.c.l.b16 %v3024
    %v3058 = vunpack.c.l.b16 %v3025
    %v3059 = vunpack.c.l.b16 %v3026
    %v3060 = vunpack.c.l.b16 %v3027
    %v3061 = vunpack.c.l.b16 %v3028
    %v3062 = vunpack.c.l.b16 %v3029
    %v3063 = vunpack.c.l.b16 %v3030
    %v3064 = vunpack.c.l.b16 %v3031
    %v3065 = vunpack.c.l.b16 %v3032
    %v3066 = vunpack.c.l.b16 %v3033
    %v3067 = vunpack.c.l.b16 %v3034
    %v3068 = vunpack.c.l.b16 %v3035
    %v3069 = vpack.c.b16 %v3054, %v3053
    %v3070 = vpack.c.b16 %v3056, %v3055
    %v3071 = vpack.c.b16 %v3058, %v3057
    %v3072 = vpack.c.b16 %v3060, %v3059
    %v3073 = vpack.c.b16 %v3062, %v3061
    %v3074 = vpack.c.b16 %v3064, %v3063
    %v3075 = vpack.c.b16 %v3066, %v3065
    %v3076 = vpack.c.b16 %v3068, %v3067
    %3085 = vmatprep.subr.bf16.mxu0 0
    %3086 = vmatpush1.bf16.msra.mxu0 %v3069
    %3087 = vmatprep.subr.bf16.mxu0 0
    %3088 = vmatpush1.bf16.msra.mxu0 %v3070
    %3089 = vmatprep.subr.bf16.mxu0 0
    %3090 = vmatpush1.bf16.msra.mxu0 %v3071
    %3091 = vmatprep.subr.bf16.mxu0 0
    %3092 = vmatpush1.bf16.msra.mxu0 %v3072
    %3093 = vmatprep.subr.bf16.mxu0 0
    %3094 = vmatpush1.bf16.msra.mxu0 %v3073
    %3095 = vmatprep.subr.bf16.mxu0 0
    %3096 = vmatpush1.bf16.msra.mxu0 %v3074
    %3097 = vmatprep.subr.bf16.mxu0 0
    %3098 = vmatpush1.bf16.msra.mxu0 %v3075
    %3099 = vmatprep.subr.bf16.mxu0 0
    %3100 = vmatpush1.bf16.msra.mxu0 %v3076
    %3101 = vmatprep.subr.bf16.mxu0 0
    %3102 = vmatpush1.bf16.msra.mxu0 0
    %3103 = vmatprep.subr.bf16.mxu0 0
    %3104 = vmatpush1.bf16.msra.mxu0 0
    %3105 = vmatprep.subr.bf16.mxu0 0
    %3106 = vmatpush1.bf16.msra.mxu0 0
    %3107 = vmatprep.subr.bf16.mxu0 0
    %3108 = vmatpush1.bf16.msra.mxu0 0
    %3109 = vmatprep.subr.bf16.mxu0 0
    %3110 = vmatpush1.bf16.msra.mxu0 0
    %3111 = vmatprep.subr.bf16.mxu0 0
    %3112 = vmatpush1.bf16.msra.mxu0 0
    %3113 = vmatprep.subr.bf16.mxu0 0
    %3114 = vmatpush1.bf16.msra.mxu0 0
    %3115 = vmatprep.subr.bf16.mxu0 0
    %3116 = vmatpush1.bf16.msra.mxu0 0
    %3117 = vmatprep.mubr.bf16.mxu0 0
    %3118 = vmatmul.mubr.bf16.gmra.mrb[0].mxu0 %v3019
    %v3119 = vpop.f32.mrb[0].mxu0
    %v3120 = vadd.f32 %v3036, %v3119
    %v3121 = vpop.f32.mrb[0].mxu0
    %v3122 = vpop.f32.mrb[0].mxu0
    %v3123 = vpop.f32.mrb[0].mxu0
    %3124 = vdwg.mxu0
    %v3125 = vmul.f32 %v2098, 0.95
    %v3126 = vadd.f32 %v3125, %v3120
    %v3127 = vmul.f32 %v2101, 0.5
    %v3128 = vsub.f32 %v3126, %v3127
    %vm3129 = vcmp.gt.f32.partialorder %v3128, 0.5
    %v3130 = vsel %vm3129, 1, 0
    %v3131 = vcvt.s32.f32 %v3130
    %v3132 = vpack.c.bf16 %v3131, %v3131
    %v3133 = vld [vmem:[#allocation26] sm:$0xf]
    %v3134 = vld [vmem:[#allocation26 + $0x4] sm:$0xf]
    %v3135 = vld [vmem:[#allocation26 + $0x8] sm:$0xf]
    %v3136 = vld [vmem:[#allocation26 + $0xc] sm:$0xf]
    %v3137 = vld [vmem:[#allocation26 + $0x10] sm:$0xf]
    %v3138 = vld [vmem:[#allocation26 + $0x14] sm:$0xf]
    %v3139 = vld [vmem:[#allocation26 + $0x18] sm:$0xf]
    %v3140 = vld [vmem:[#allocation26 + $0x1c] sm:$0xf]
    %v3141 = vld [vmem:[#allocation26 + $0x20] sm:$0xf]
    %v3142 = vld [vmem:[#allocation26 + $0x24] sm:$0xf]
    %v3143 = vld [vmem:[#allocation26 + $0x28] sm:$0xf]
    %v3144 = vld [vmem:[#allocation26 + $0x2c] sm:$0xf]
    %v3145 = vld [vmem:[#allocation26 + $0x30] sm:$0xf]
    %v3146 = vld [vmem:[#allocation26 + $0x34] sm:$0xf]
    %v3147 = vld [vmem:[#allocation26 + $0x38] sm:$0xf]
    %v3148 = vld [vmem:[#allocation26 + $0x3c] sm:$0xf]
    %v3149 = vld [vmem:[#allocation28] sm:$0xff]
    %v3166 = vunpack.c.l.b16 %v3133
    %v3167 = vunpack.c.l.b16 %v3134
    %v3168 = vunpack.c.l.b16 %v3135
    %v3169 = vunpack.c.l.b16 %v3136
    %v3170 = vunpack.c.l.b16 %v3137
    %v3171 = vunpack.c.l.b16 %v3138
    %v3172 = vunpack.c.l.b16 %v3139
    %v3173 = vunpack.c.l.b16 %v3140
    %v3174 = vunpack.c.l.b16 %v3141
    %v3175 = vunpack.c.l.b16 %v3142
    %v3176 = vunpack.c.l.b16 %v3143
    %v3177 = vunpack.c.l.b16 %v3144
    %v3178 = vunpack.c.l.b16 %v3145
    %v3179 = vunpack.c.l.b16 %v3146
    %v3180 = vunpack.c.l.b16 %v3147
    %v3181 = vunpack.c.l.b16 %v3148
    %v3182 = vpack.c.b16 %v3167, %v3166
    %v3183 = vpack.c.b16 %v3169, %v3168
    %v3184 = vpack.c.b16 %v3171, %v3170
    %v3185 = vpack.c.b16 %v3173, %v3172
    %v3186 = vpack.c.b16 %v3175, %v3174
    %v3187 = vpack.c.b16 %v3177, %v3176
    %v3188 = vpack.c.b16 %v3179, %v3178
    %v3189 = vpack.c.b16 %v3181, %v3180
    %3198 = vmatprep.subr.bf16.mxu0 0
    %3199 = vmatpush1.bf16.msra.mxu0 %v3182
    %3200 = vmatprep.subr.bf16.mxu0 0
    %3201 = vmatpush1.bf16.msra.mxu0 %v3183
    %3202 = vmatprep.subr.bf16.mxu0 0
    %3203 = vmatpush1.bf16.msra.mxu0 %v3184
    %3204 = vmatprep.subr.bf16.mxu0 0
    %3205 = vmatpush1.bf16.msra.mxu0 %v3185
    %3206 = vmatprep.subr.bf16.mxu0 0
    %3207 = vmatpush1.bf16.msra.mxu0 %v3186
    %3208 = vmatprep.subr.bf16.mxu0 0
    %3209 = vmatpush1.bf16.msra.mxu0 %v3187
    %3210 = vmatprep.subr.bf16.mxu0 0
    %3211 = vmatpush1.bf16.msra.mxu0 %v3188
    %3212 = vmatprep.subr.bf16.mxu0 0
    %3213 = vmatpush1.bf16.msra.mxu0 %v3189
    %3214 = vmatprep.subr.bf16.mxu0 0
    %3215 = vmatpush1.bf16.msra.mxu0 0
    %3216 = vmatprep.subr.bf16.mxu0 0
    %3217 = vmatpush1.bf16.msra.mxu0 0
    %3218 = vmatprep.subr.bf16.mxu0 0
    %3219 = vmatpush1.bf16.msra.mxu0 0
    %3220 = vmatprep.subr.bf16.mxu0 0
    %3221 = vmatpush1.bf16.msra.mxu0 0
    %3222 = vmatprep.subr.bf16.mxu0 0
    %3223 = vmatpush1.bf16.msra.mxu0 0
    %3224 = vmatprep.subr.bf16.mxu0 0
    %3225 = vmatpush1.bf16.msra.mxu0 0
    %3226 = vmatprep.subr.bf16.mxu0 0
    %3227 = vmatpush1.bf16.msra.mxu0 0
    %3228 = vmatprep.subr.bf16.mxu0 0
    %3229 = vmatpush1.bf16.msra.mxu0 0
    %3230 = vmatprep.mubr.bf16.mxu0 0
    %3231 = vmatmul.mubr.bf16.gmra.mrb[0].mxu0 %v3132
    %v3232 = vpop.f32.mrb[0].mxu0
    %v3233 = vadd.f32 %v3149, %v3232
    %v3234 = vpop.f32.mrb[0].mxu0
    %v3235 = vpop.f32.mrb[0].mxu0
    %v3236 = vpop.f32.mrb[0].mxu0
    %3237 = vdwg.mxu0
    %v3238 = vmul.f32 %v2211, 0.95
    %v3239 = vadd.f32 %v3238, %v3233
    %v3240 = vmul.f32 %v2214, 0.5
    %v3241 = vsub.f32 %v3239, %v3240
    %vm3242 = vcmp.gt.f32.partialorder %v3241, 0.5
    %v3243 = vsel %vm3242, 1, 0
    %v3244 = vcvt.s32.f32 %v3243
    %v3245 = vpack.c.bf16 %v3244, %v3244
    %v3246 = vld [vmem:[%s17] sm:$0xf]
    %v3247 = vld [vmem:[%s17 + $0x4] sm:$0xf]
    %v3248 = vld [vmem:[%s17 + $0x8] sm:$0xf]
    %v3249 = vld [vmem:[%s17 + $0xc] sm:$0xf]
    %v3250 = vld [vmem:[%s17 + $0x10] sm:$0xf]
    %v3251 = vld [vmem:[%s17 + $0x14] sm:$0xf]
    %v3252 = vld [vmem:[%s17 + $0x18] sm:$0xf]
    %v3253 = vld [vmem:[%s17 + $0x1c] sm:$0xf]
    %v3254 = vld [vmem:[%s17 + $0x20] sm:$0xf]
    %v3255 = vld [vmem:[%s17 + $0x24] sm:$0xf]
    %v3256 = vld [vmem:[%s17 + $0x28] sm:$0xf]
    %v3257 = vld [vmem:[%s17 + $0x2c] sm:$0xf]
    %v3258 = vld [vmem:[%s17 + $0x30] sm:$0xf]
    %v3259 = vld [vmem:[%s17 + $0x34] sm:$0xf]
    %v3260 = vld [vmem:[%s17 + $0x38] sm:$0xf]
    %v3261 = vld [vmem:[%s17 + $0x3c] sm:$0xf]
    %v3262 = vld [vmem:[#allocation29] sm:$0xff]
    %v3279 = vunpack.c.l.b16 %v3246
    %v3280 = vunpack.c.l.b16 %v3247
    %v3281 = vunpack.c.l.b16 %v3248
    %v3282 = vunpack.c.l.b16 %v3249
    %v3283 = vunpack.c.l.b16 %v3250
    %v3284 = vunpack.c.l.b16 %v3251
    %v3285 = vunpack.c.l.b16 %v3252
    %v3286 = vunpack.c.l.b16 %v3253
    %v3287 = vunpack.c.l.b16 %v3254
    %v3288 = vunpack.c.l.b16 %v3255
    %v3289 = vunpack.c.l.b16 %v3256
    %v3290 = vunpack.c.l.b16 %v3257
    %v3291 = vunpack.c.l.b16 %v3258
    %v3292 = vunpack.c.l.b16 %v3259
    %v3293 = vunpack.c.l.b16 %v3260
    %v3294 = vunpack.c.l.b16 %v3261
    %v3295 = vpack.c.b16 %v3280, %v3279
    %v3296 = vpack.c.b16 %v3282, %v3281
    %v3297 = vpack.c.b16 %v3284, %v3283
    %v3298 = vpack.c.b16 %v3286, %v3285
    %v3299 = vpack.c.b16 %v3288, %v3287
    %v3300 = vpack.c.b16 %v3290, %v3289
    %v3301 = vpack.c.b16 %v3292, %v3291
    %v3302 = vpack.c.b16 %v3294, %v3293
    %3311 = vmatprep.subr.bf16.mxu0 0
    %3312 = vmatpush1.bf16.msra.mxu0 %v3295
    %3313 = vmatprep.subr.bf16.mxu0 0
    %3314 = vmatpush1.bf16.msra.mxu0 %v3296
    %3315 = vmatprep.subr.bf16.mxu0 0
    %3316 = vmatpush1.bf16.msra.mxu0 %v3297
    %3317 = vmatprep.subr.bf16.mxu0 0
    %3318 = vmatpush1.bf16.msra.mxu0 %v3298
    %3319 = vmatprep.subr.bf16.mxu0 0
    %3320 = vmatpush1.bf16.msra.mxu0 %v3299
    %3321 = vmatprep.subr.bf16.mxu0 0
    %3322 = vmatpush1.bf16.msra.mxu0 %v3300
    %3323 = vmatprep.subr.bf16.mxu0 0
    %3324 = vmatpush1.bf16.msra.mxu0 %v3301
    %3325 = vmatprep.subr.bf16.mxu0 0
    %3326 = vmatpush1.bf16.msra.mxu0 %v3302
    %3327 = vmatprep.subr.bf16.mxu0 0
    %3328 = vmatpush1.bf16.msra.mxu0 0
    %3329 = vmatprep.subr.bf16.mxu0 0
    %3330 = vmatpush1.bf16.msra.mxu0 0
    %3331 = vmatprep.subr.bf16.mxu0 0
    %3332 = vmatpush1.bf16.msra.mxu0 0
    %3333 = vmatprep.subr.bf16.mxu0 0
    %3334 = vmatpush1.bf16.msra.mxu0 0
    %3335 = vmatprep.subr.bf16.mxu0 0
    %3336 = vmatpush1.bf16.msra.mxu0 0
    %3337 = vmatprep.subr.bf16.mxu0 0
    %3338 = vmatpush1.bf16.msra.mxu0 0
    %3339 = vmatprep.subr.bf16.mxu0 0
    %3340 = vmatpush1.bf16.msra.mxu0 0
    %3341 = vmatprep.subr.bf16.mxu0 0
    %3342 = vmatpush1.bf16.msra.mxu0 0
    %3343 = vmatprep.mubr.bf16.mxu0 0
    %3344 = vmatmul.mubr.bf16.gmra.mrb[0].mxu0 %v3245
    %v3345 = vpop.f32.mrb[0].mxu0
    %v3346 = vadd.f32 %v3262, %v3345
    %v3347 = vpop.f32.mrb[0].mxu0
    %v3348 = vpop.f32.mrb[0].mxu0
    %v3349 = vpop.f32.mrb[0].mxu0
    %3350 = vdwg.mxu0
    %v3351 = vmul.f32 %v2324, 0.95
    %v3352 = vadd.f32 %v3351, %v3346
    %v3353 = vmul.f32 %v2327, 0.5
    %v3354 = vsub.f32 %v3352, %v3353
    %vm3355 = vcmp.gt.f32.partialorder %v3354, 0.5
    %v3356 = vsel %vm3355, 1, 0
    %v3357 = vcvt.s32.f32 %v3356
    %v3358 = vpack.c.bf16 %v3357, %v3357
    %v3359 = vunpack.c.l.bf16 %v3358
    %s3360 = scalar_lea.vmem [#allocation31], 16
    %3361 = vst [vmem:[%s3360] sm:$0xff] %v3359
    %s3362 = scalar_lea.vmem [#allocation32], 16
    %3363 = vst [vmem:[%s3362] sm:$0xff] %v3354
    %v3364 = vmul.f32 %v2337, 0.95
    %v3365 = vadd.f32 %v3364, %v291
    %v3366 = vmul.f32 %v2340, 0.5
    %v3367 = vsub.f32 %v3365, %v3366
    %vm3368 = vcmp.gt.f32.partialorder %v3367, 0.5
    %v3369 = vsel %vm3368, 1, 0
    %v3370 = vcvt.s32.f32 %v3369
    %v3371 = vpack.c.bf16 %v3370, %v3370
    %v3372 = vld [vmem:[#allocation5] sm:$0xf]
    %v3373 = vld [vmem:[#allocation5 + $0x4] sm:$0xf]
    %v3374 = vld [vmem:[#allocation5 + $0x8] sm:$0xf]
    %v3375 = vld [vmem:[#allocation5 + $0xc] sm:$0xf]
    %v3376 = vld [vmem:[#allocation5 + $0x10] sm:$0xf]
    %v3377 = vld [vmem:[#allocation5 + $0x14] sm:$0xf]
    %v3378 = vld [vmem:[#allocation5 + $0x18] sm:$0xf]
    %v3379 = vld [vmem:[#allocation5 + $0x1c] sm:$0xf]
    %v3380 = vld [vmem:[#allocation5 + $0x20] sm:$0xf]
    %v3381 = vld [vmem:[#allocation5 + $0x24] sm:$0xf]
    %v3382 = vld [vmem:[#allocation5 + $0x28] sm:$0xf]
    %v3383 = vld [vmem:[#allocation5 + $0x2c] sm:$0xf]
    %v3384 = vld [vmem:[#allocation5 + $0x30] sm:$0xf]
    %v3385 = vld [vmem:[#allocation5 + $0x34] sm:$0xf]
    %v3386 = vld [vmem:[#allocation5 + $0x38] sm:$0xf]
    %v3387 = vld [vmem:[#allocation5 + $0x3c] sm:$0xf]
    %v3388 = vld [vmem:[#allocation7] sm:$0xff]
    %v3405 = vunpack.c.l.b16 %v3372
    %v3406 = vunpack.c.l.b16 %v3373
    %v3407 = vunpack.c.l.b16 %v3374
    %v3408 = vunpack.c.l.b16 %v3375
    %v3409 = vunpack.c.l.b16 %v3376
    %v3410 = vunpack.c.l.b16 %v3377
    %v3411 = vunpack.c.l.b16 %v3378
    %v3412 = vunpack.c.l.b16 %v3379
    %v3413 = vunpack.c.l.b16 %v3380
    %v3414 = vunpack.c.l.b16 %v3381
    %v3415 = vunpack.c.l.b16 %v3382
    %v3416 = vunpack.c.l.b16 %v3383
    %v3417 = vunpack.c.l.b16 %v3384
    %v3418 = vunpack.c.l.b16 %v3385
    %v3419 = vunpack.c.l.b16 %v3386
    %v3420 = vunpack.c.l.b16 %v3387
    %v3421 = vpack.c.b16 %v3406, %v3405
    %v3422 = vpack.c.b16 %v3408, %v3407
    %v3423 = vpack.c.b16 %v3410, %v3409
    %v3424 = vpack.c.b16 %v3412, %v3411
    %v3425 = vpack.c.b16 %v3414, %v3413
    %v3426 = vpack.c.b16 %v3416, %v3415
    %v3427 = vpack.c.b16 %v3418, %v3417
    %v3428 = vpack.c.b16 %v3420, %v3419
    %3437 = vmatprep.subr.bf16.mxu0 0
    %3438 = vmatpush1.bf16.msra.mxu0 %v3421
    %3439 = vmatprep.subr.bf16.mxu0 0
    %3440 = vmatpush1.bf16.msra.mxu0 %v3422
    %3441 = vmatprep.subr.bf16.mxu0 0
    %3442 = vmatpush1.bf16.msra.mxu0 %v3423
    %3443 = vmatprep.subr.bf16.mxu0 0
    %3444 = vmatpush1.bf16.msra.mxu0 %v3424
    %3445 = vmatprep.subr.bf16.mxu0 0
    %3446 = vmatpush1.bf16.msra.mxu0 %v3425
    %3447 = vmatprep.subr.bf16.mxu0 0
    %3448 = vmatpush1.bf16.msra.mxu0 %v3426
    %3449 = vmatprep.subr.bf16.mxu0 0
    %3450 = vmatpush1.bf16.msra.mxu0 %v3427
    %3451 = vmatprep.subr.bf16.mxu0 0
    %3452 = vmatpush1.bf16.msra.mxu0 %v3428
    %3453 = vmatprep.subr.bf16.mxu0 0
    %3454 = vmatpush1.bf16.msra.mxu0 0
    %3455 = vmatprep.subr.bf16.mxu0 0
    %3456 = vmatpush1.bf16.msra.mxu0 0
    %3457 = vmatprep.subr.bf16.mxu0 0
    %3458 = vmatpush1.bf16.msra.mxu0 0
    %3459 = vmatprep.subr.bf16.mxu0 0
    %3460 = vmatpush1.bf16.msra.mxu0 0
    %3461 = vmatprep.subr.bf16.mxu0 0
    %3462 = vmatpush1.bf16.msra.mxu0 0
    %3463 = vmatprep.subr.bf16.mxu0 0
    %3464 = vmatpush1.bf16.msra.mxu0 0
    %3465 = vmatprep.subr.bf16.mxu0 0
    %3466 = vmatpush1.bf16.msra.mxu0 0
    %3467 = vmatprep.subr.bf16.mxu0 0
    %3468 = vmatpush1.bf16.msra.mxu0 0
    %3469 = vmatprep.mubr.bf16.mxu0 0
    %3470 = vmatmul.mubr.bf16.gmra.mrb[0].mxu0 %v3371
    %v3471 = vpop.f32.mrb[0].mxu0
    %v3472 = vadd.f32 %v3388, %v3471
    %v3473 = vpop.f32.mrb[0].mxu0
    %v3474 = vpop.f32.mrb[0].mxu0
    %v3475 = vpop.f32.mrb[0].mxu0
    %3476 = vdwg.mxu0
    %v3477 = vmul.f32 %v2450, 0.95
    %v3478 = vadd.f32 %v3477, %v3472
    %v3479 = vmul.f32 %v2453, 0.5
    %v3480 = vsub.f32 %v3478, %v3479
    %vm3481 = vcmp.gt.f32.partialorder %v3480, 0.5
    %v3482 = vsel %vm3481, 1, 0
    %v3483 = vcvt.s32.f32 %v3482
    %v3484 = vpack.c.bf16 %v3483, %v3483
    %v3485 = vld [vmem:[#allocation8] sm:$0xf]
    %v3486 = vld [vmem:[#allocation8 + $0x4] sm:$0xf]
    %v3487 = vld [vmem:[#allocation8 + $0x8] sm:$0xf]
    %v3488 = vld [vmem:[#allocation8 + $0xc] sm:$0xf]
    %v3489 = vld [vmem:[#allocation8 + $0x10] sm:$0xf]
    %v3490 = vld [vmem:[#allocation8 + $0x14] sm:$0xf]
    %v3491 = vld [vmem:[#allocation8 + $0x18] sm:$0xf]
    %v3492 = vld [vmem:[#allocation8 + $0x1c] sm:$0xf]
    %v3493 = vld [vmem:[#allocation8 + $0x20] sm:$0xf]
    %v3494 = vld [vmem:[#allocation8 + $0x24] sm:$0xf]
    %v3495 = vld [vmem:[#allocation8 + $0x28] sm:$0xf]
    %v3496 = vld [vmem:[#allocation8 + $0x2c] sm:$0xf]
    %v3497 = vld [vmem:[#allocation8 + $0x30] sm:$0xf]
    %v3498 = vld [vmem:[#allocation8 + $0x34] sm:$0xf]
    %v3499 = vld [vmem:[#allocation8 + $0x38] sm:$0xf]
    %v3500 = vld [vmem:[#allocation8 + $0x3c] sm:$0xf]
    %v3501 = vld [vmem:[#allocation10] sm:$0xff]
    %v3518 = vunpack.c.l.b16 %v3485
    %v3519 = vunpack.c.l.b16 %v3486
    %v3520 = vunpack.c.l.b16 %v3487
    %v3521 = vunpack.c.l.b16 %v3488
    %v3522 = vunpack.c.l.b16 %v3489
    %v3523 = vunpack.c.l.b16 %v3490
    %v3524 = vunpack.c.l.b16 %v3491
    %v3525 = vunpack.c.l.b16 %v3492
    %v3526 = vunpack.c.l.b16 %v3493
    %v3527 = vunpack.c.l.b16 %v3494
    %v3528 = vunpack.c.l.b16 %v3495
    %v3529 = vunpack.c.l.b16 %v3496
    %v3530 = vunpack.c.l.b16 %v3497
    %v3531 = vunpack.c.l.b16 %v3498
    %v3532 = vunpack.c.l.b16 %v3499
    %v3533 = vunpack.c.l.b16 %v3500
    %v3534 = vpack.c.b16 %v3519, %v3518
    %v3535 = vpack.c.b16 %v3521, %v3520
    %v3536 = vpack.c.b16 %v3523, %v3522
    %v3537 = vpack.c.b16 %v3525, %v3524
    %v3538 = vpack.c.b16 %v3527, %v3526
    %v3539 = vpack.c.b16 %v3529, %v3528
    %v3540 = vpack.c.b16 %v3531, %v3530
    %v3541 = vpack.c.b16 %v3533, %v3532
    %3550 = vmatprep.subr.bf16.mxu0 0
    %3551 = vmatpush1.bf16.msra.mxu0 %v3534
    %3552 = vmatprep.subr.bf16.mxu0 0
    %3553 = vmatpush1.bf16.msra.mxu0 %v3535
    %3554 = vmatprep.subr.bf16.mxu0 0
    %3555 = vmatpush1.bf16.msra.mxu0 %v3536
    %3556 = vmatprep.subr.bf16.mxu0 0
    %3557 = vmatpush1.bf16.msra.mxu0 %v3537
    %3558 = vmatprep.subr.bf16.mxu0 0
    %3559 = vmatpush1.bf16.msra.mxu0 %v3538
    %3560 = vmatprep.subr.bf16.mxu0 0
    %3561 = vmatpush1.bf16.msra.mxu0 %v3539
    %3562 = vmatprep.subr.bf16.mxu0 0
    %3563 = vmatpush1.bf16.msra.mxu0 %v3540
    %3564 = vmatprep.subr.bf16.mxu0 0
    %3565 = vmatpush1.bf16.msra.mxu0 %v3541
    %3566 = vmatprep.subr.bf16.mxu0 0
    %3567 = vmatpush1.bf16.msra.mxu0 0
    %3568 = vmatprep.subr.bf16.mxu0 0
    %3569 = vmatpush1.bf16.msra.mxu0 0
    %3570 = vmatprep.subr.bf16.mxu0 0
    %3571 = vmatpush1.bf16.msra.mxu0 0
    %3572 = vmatprep.subr.bf16.mxu0 0
    %3573 = vmatpush1.bf16.msra.mxu0 0
    %3574 = vmatprep.subr.bf16.mxu0 0
    %3575 = vmatpush1.bf16.msra.mxu0 0
    %3576 = vmatprep.subr.bf16.mxu0 0
    %3577 = vmatpush1.bf16.msra.mxu0 0
    %3578 = vmatprep.subr.bf16.mxu0 0
    %3579 = vmatpush1.bf16.msra.mxu0 0
    %3580 = vmatprep.subr.bf16.mxu0 0
    %3581 = vmatpush1.bf16.msra.mxu0 0
    %3582 = vmatprep.mubr.bf16.mxu0 0
    %3583 = vmatmul.mubr.bf16.gmra.mrb[0].mxu0 %v3484
    %v3584 = vpop.f32.mrb[0].mxu0
    %v3585 = vadd.f32 %v3501, %v3584
    %v3586 = vpop.f32.mrb[0].mxu0
    %v3587 = vpop.f32.mrb[0].mxu0
    %v3588 = vpop.f32.mrb[0].mxu0
    %3589 = vdwg.mxu0
    %v3590 = vmul.f32 %v2563, 0.95
    %v3591 = vadd.f32 %v3590, %v3585
    %v3592 = vmul.f32 %v2566, 0.5
    %v3593 = vsub.f32 %v3591, %v3592
    %vm3594 = vcmp.gt.f32.partialorder %v3593, 0.5
    %v3595 = vsel %vm3594, 1, 0
    %v3596 = vcvt.s32.f32 %v3595
    %v3597 = vpack.c.bf16 %v3596, %v3596
    %v3598 = vld [vmem:[#allocation11] sm:$0xf]
    %v3599 = vld [vmem:[#allocation11 + $0x4] sm:$0xf]
    %v3600 = vld [vmem:[#allocation11 + $0x8] sm:$0xf]
    %v3601 = vld [vmem:[#allocation11 + $0xc] sm:$0xf]
    %v3602 = vld [vmem:[#allocation11 + $0x10] sm:$0xf]
    %v3603 = vld [vmem:[#allocation11 + $0x14] sm:$0xf]
    %v3604 = vld [vmem:[#allocation11 + $0x18] sm:$0xf]
    %v3605 = vld [vmem:[#allocation11 + $0x1c] sm:$0xf]
    %v3606 = vld [vmem:[#allocation11 + $0x20] sm:$0xf]
    %v3607 = vld [vmem:[#allocation11 + $0x24] sm:$0xf]
    %v3608 = vld [vmem:[#allocation11 + $0x28] sm:$0xf]
    %v3609 = vld [vmem:[#allocation11 + $0x2c] sm:$0xf]
    %v3610 = vld [vmem:[#allocation11 + $0x30] sm:$0xf]
    %v3611 = vld [vmem:[#allocation11 + $0x34] sm:$0xf]
    %v3612 = vld [vmem:[#allocation11 + $0x38] sm:$0xf]
    %v3613 = vld [vmem:[#allocation11 + $0x3c] sm:$0xf]
    %v3614 = vld [vmem:[#allocation13] sm:$0xff]
    %v3631 = vunpack.c.l.b16 %v3598
    %v3632 = vunpack.c.l.b16 %v3599
    %v3633 = vunpack.c.l.b16 %v3600
    %v3634 = vunpack.c.l.b16 %v3601
    %v3635 = vunpack.c.l.b16 %v3602
    %v3636 = vunpack.c.l.b16 %v3603
    %v3637 = vunpack.c.l.b16 %v3604
    %v3638 = vunpack.c.l.b16 %v3605
    %v3639 = vunpack.c.l.b16 %v3606
    %v3640 = vunpack.c.l.b16 %v3607
    %v3641 = vunpack.c.l.b16 %v3608
    %v3642 = vunpack.c.l.b16 %v3609
    %v3643 = vunpack.c.l.b16 %v3610
    %v3644 = vunpack.c.l.b16 %v3611
    %v3645 = vunpack.c.l.b16 %v3612
    %v3646 = vunpack.c.l.b16 %v3613
    %v3647 = vpack.c.b16 %v3632, %v3631
    %v3648 = vpack.c.b16 %v3634, %v3633
    %v3649 = vpack.c.b16 %v3636, %v3635
    %v3650 = vpack.c.b16 %v3638, %v3637
    %v3651 = vpack.c.b16 %v3640, %v3639
    %v3652 = vpack.c.b16 %v3642, %v3641
    %v3653 = vpack.c.b16 %v3644, %v3643
    %v3654 = vpack.c.b16 %v3646, %v3645
    %3663 = vmatprep.subr.bf16.mxu0 0
    %3664 = vmatpush1.bf16.msra.mxu0 %v3647
    %3665 = vmatprep.subr.bf16.mxu0 0
    %3666 = vmatpush1.bf16.msra.mxu0 %v3648
    %3667 = vmatprep.subr.bf16.mxu0 0
    %3668 = vmatpush1.bf16.msra.mxu0 %v3649
    %3669 = vmatprep.subr.bf16.mxu0 0
    %3670 = vmatpush1.bf16.msra.mxu0 %v3650
    %3671 = vmatprep.subr.bf16.mxu0 0
    %3672 = vmatpush1.bf16.msra.mxu0 %v3651
    %3673 = vmatprep.subr.bf16.mxu0 0
    %3674 = vmatpush1.bf16.msra.mxu0 %v3652
    %3675 = vmatprep.subr.bf16.mxu0 0
    %3676 = vmatpush1.bf16.msra.mxu0 %v3653
    %3677 = vmatprep.subr.bf16.mxu0 0
    %3678 = vmatpush1.bf16.msra.mxu0 %v3654
    %3679 = vmatprep.subr.bf16.mxu0 0
    %3680 = vmatpush1.bf16.msra.mxu0 0
    %3681 = vmatprep.subr.bf16.mxu0 0
    %3682 = vmatpush1.bf16.msra.mxu0 0
    %3683 = vmatprep.subr.bf16.mxu0 0
    %3684 = vmatpush1.bf16.msra.mxu0 0
    %3685 = vmatprep.subr.bf16.mxu0 0
    %3686 = vmatpush1.bf16.msra.mxu0 0
    %3687 = vmatprep.subr.bf16.mxu0 0
    %3688 = vmatpush1.bf16.msra.mxu0 0
    %3689 = vmatprep.subr.bf16.mxu0 0
    %3690 = vmatpush1.bf16.msra.mxu0 0
    %3691 = vmatprep.subr.bf16.mxu0 0
    %3692 = vmatpush1.bf16.msra.mxu0 0
    %3693 = vmatprep.subr.bf16.mxu0 0
    %3694 = vmatpush1.bf16.msra.mxu0 0
    %3695 = vmatprep.mubr.bf16.mxu0 0
    %3696 = vmatmul.mubr.bf16.gmra.mrb[0].mxu0 %v3597
    %v3697 = vpop.f32.mrb[0].mxu0
    %v3698 = vadd.f32 %v3614, %v3697
    %v3699 = vpop.f32.mrb[0].mxu0
    %v3700 = vpop.f32.mrb[0].mxu0
    %v3701 = vpop.f32.mrb[0].mxu0
    %3702 = vdwg.mxu0
    %v3703 = vmul.f32 %v2676, 0.95
    %v3704 = vadd.f32 %v3703, %v3698
    %v3705 = vmul.f32 %v2679, 0.5
    %v3706 = vsub.f32 %v3704, %v3705
    %vm3707 = vcmp.gt.f32.partialorder %v3706, 0.5
    %v3708 = vsel %vm3707, 1, 0
    %v3709 = vcvt.s32.f32 %v3708
    %v3710 = vpack.c.bf16 %v3709, %v3709
    %v3711 = vld [vmem:[#allocation14] sm:$0xf]
    %v3712 = vld [vmem:[#allocation14 + $0x4] sm:$0xf]
    %v3713 = vld [vmem:[#allocation14 + $0x8] sm:$0xf]
    %v3714 = vld [vmem:[#allocation14 + $0xc] sm:$0xf]
    %v3715 = vld [vmem:[#allocation14 + $0x10] sm:$0xf]
    %v3716 = vld [vmem:[#allocation14 + $0x14] sm:$0xf]
    %v3717 = vld [vmem:[#allocation14 + $0x18] sm:$0xf]
    %v3718 = vld [vmem:[#allocation14 + $0x1c] sm:$0xf]
    %v3719 = vld [vmem:[#allocation14 + $0x20] sm:$0xf]
    %v3720 = vld [vmem:[#allocation14 + $0x24] sm:$0xf]
    %v3721 = vld [vmem:[#allocation14 + $0x28] sm:$0xf]
    %v3722 = vld [vmem:[#allocation14 + $0x2c] sm:$0xf]
    %v3723 = vld [vmem:[#allocation14 + $0x30] sm:$0xf]
    %v3724 = vld [vmem:[#allocation14 + $0x34] sm:$0xf]
    %v3725 = vld [vmem:[#allocation14 + $0x38] sm:$0xf]
    %v3726 = vld [vmem:[#allocation14 + $0x3c] sm:$0xf]
    %v3727 = vld [vmem:[#allocation16] sm:$0xff]
    %v3744 = vunpack.c.l.b16 %v3711
    %v3745 = vunpack.c.l.b16 %v3712
    %v3746 = vunpack.c.l.b16 %v3713
    %v3747 = vunpack.c.l.b16 %v3714
    %v3748 = vunpack.c.l.b16 %v3715
    %v3749 = vunpack.c.l.b16 %v3716
    %v3750 = vunpack.c.l.b16 %v3717
    %v3751 = vunpack.c.l.b16 %v3718
    %v3752 = vunpack.c.l.b16 %v3719
    %v3753 = vunpack.c.l.b16 %v3720
    %v3754 = vunpack.c.l.b16 %v3721
    %v3755 = vunpack.c.l.b16 %v3722
    %v3756 = vunpack.c.l.b16 %v3723
    %v3757 = vunpack.c.l.b16 %v3724
    %v3758 = vunpack.c.l.b16 %v3725
    %v3759 = vunpack.c.l.b16 %v3726
    %v3760 = vpack.c.b16 %v3745, %v3744
    %v3761 = vpack.c.b16 %v3747, %v3746
    %v3762 = vpack.c.b16 %v3749, %v3748
    %v3763 = vpack.c.b16 %v3751, %v3750
    %v3764 = vpack.c.b16 %v3753, %v3752
    %v3765 = vpack.c.b16 %v3755, %v3754
    %v3766 = vpack.c.b16 %v3757, %v3756
    %v3767 = vpack.c.b16 %v3759, %v3758
    %3776 = vmatprep.subr.bf16.mxu0 0
    %3777 = vmatpush1.bf16.msra.mxu0 %v3760
    %3778 = vmatprep.subr.bf16.mxu0 0
    %3779 = vmatpush1.bf16.msra.mxu0 %v3761
    %3780 = vmatprep.subr.bf16.mxu0 0
    %3781 = vmatpush1.bf16.msra.mxu0 %v3762
    %3782 = vmatprep.subr.bf16.mxu0 0
    %3783 = vmatpush1.bf16.msra.mxu0 %v3763
    %3784 = vmatprep.subr.bf16.mxu0 0
    %3785 = vmatpush1.bf16.msra.mxu0 %v3764
    %3786 = vmatprep.subr.bf16.mxu0 0
    %3787 = vmatpush1.bf16.msra.mxu0 %v3765
    %3788 = vmatprep.subr.bf16.mxu0 0
    %3789 = vmatpush1.bf16.msra.mxu0 %v3766
    %3790 = vmatprep.subr.bf16.mxu0 0
    %3791 = vmatpush1.bf16.msra.mxu0 %v3767
    %3792 = vmatprep.subr.bf16.mxu0 0
    %3793 = vmatpush1.bf16.msra.mxu0 0
    %3794 = vmatprep.subr.bf16.mxu0 0
    %3795 = vmatpush1.bf16.msra.mxu0 0
    %3796 = vmatprep.subr.bf16.mxu0 0
    %3797 = vmatpush1.bf16.msra.mxu0 0
    %3798 = vmatprep.subr.bf16.mxu0 0
    %3799 = vmatpush1.bf16.msra.mxu0 0
    %3800 = vmatprep.subr.bf16.mxu0 0
    %3801 = vmatpush1.bf16.msra.mxu0 0
    %3802 = vmatprep.subr.bf16.mxu0 0
    %3803 = vmatpush1.bf16.msra.mxu0 0
    %3804 = vmatprep.subr.bf16.mxu0 0
    %3805 = vmatpush1.bf16.msra.mxu0 0
    %3806 = vmatprep.subr.bf16.mxu0 0
    %3807 = vmatpush1.bf16.msra.mxu0 0
    %3808 = vmatprep.mubr.bf16.mxu0 0
    %3809 = vmatmul.mubr.bf16.gmra.mrb[0].mxu0 %v3710
    %v3810 = vpop.f32.mrb[0].mxu0
    %v3811 = vadd.f32 %v3727, %v3810
    %v3812 = vpop.f32.mrb[0].mxu0
    %v3813 = vpop.f32.mrb[0].mxu0
    %v3814 = vpop.f32.mrb[0].mxu0
    %3815 = vdwg.mxu0
    %v3816 = vmul.f32 %v2789, 0.95
    %v3817 = vadd.f32 %v3816, %v3811
    %v3818 = vmul.f32 %v2792, 0.5
    %v3819 = vsub.f32 %v3817, %v3818
    %vm3820 = vcmp.gt.f32.partialorder %v3819, 0.5
    %v3821 = vsel %vm3820, 1, 0
    %v3822 = vcvt.s32.f32 %v3821
    %v3823 = vpack.c.bf16 %v3822, %v3822
    %v3824 = vld [vmem:[#allocation17] sm:$0xf]
    %v3825 = vld [vmem:[#allocation17 + $0x4] sm:$0xf]
    %v3826 = vld [vmem:[#allocation17 + $0x8] sm:$0xf]
    %v3827 = vld [vmem:[#allocation17 + $0xc] sm:$0xf]
    %v3828 = vld [vmem:[#allocation17 + $0x10] sm:$0xf]
    %v3829 = vld [vmem:[#allocation17 + $0x14] sm:$0xf]
    %v3830 = vld [vmem:[#allocation17 + $0x18] sm:$0xf]
    %v3831 = vld [vmem:[#allocation17 + $0x1c] sm:$0xf]
    %v3832 = vld [vmem:[#allocation17 + $0x20] sm:$0xf]
    %v3833 = vld [vmem:[#allocation17 + $0x24] sm:$0xf]
    %v3834 = vld [vmem:[#allocation17 + $0x28] sm:$0xf]
    %v3835 = vld [vmem:[#allocation17 + $0x2c] sm:$0xf]
    %v3836 = vld [vmem:[#allocation17 + $0x30] sm:$0xf]
    %v3837 = vld [vmem:[#allocation17 + $0x34] sm:$0xf]
    %v3838 = vld [vmem:[#allocation17 + $0x38] sm:$0xf]
    %v3839 = vld [vmem:[#allocation17 + $0x3c] sm:$0xf]
    %v3840 = vld [vmem:[#allocation19] sm:$0xff]
    %v3857 = vunpack.c.l.b16 %v3824
    %v3858 = vunpack.c.l.b16 %v3825
    %v3859 = vunpack.c.l.b16 %v3826
    %v3860 = vunpack.c.l.b16 %v3827
    %v3861 = vunpack.c.l.b16 %v3828
    %v3862 = vunpack.c.l.b16 %v3829
    %v3863 = vunpack.c.l.b16 %v3830
    %v3864 = vunpack.c.l.b16 %v3831
    %v3865 = vunpack.c.l.b16 %v3832
    %v3866 = vunpack.c.l.b16 %v3833
    %v3867 = vunpack.c.l.b16 %v3834
    %v3868 = vunpack.c.l.b16 %v3835
    %v3869 = vunpack.c.l.b16 %v3836
    %v3870 = vunpack.c.l.b16 %v3837
    %v3871 = vunpack.c.l.b16 %v3838
    %v3872 = vunpack.c.l.b16 %v3839
    %v3873 = vpack.c.b16 %v3858, %v3857
    %v3874 = vpack.c.b16 %v3860, %v3859
    %v3875 = vpack.c.b16 %v3862, %v3861
    %v3876 = vpack.c.b16 %v3864, %v3863
    %v3877 = vpack.c.b16 %v3866, %v3865
    %v3878 = vpack.c.b16 %v3868, %v3867
    %v3879 = vpack.c.b16 %v3870, %v3869
    %v3880 = vpack.c.b16 %v3872, %v3871
    %3889 = vmatprep.subr.bf16.mxu0 0
    %3890 = vmatpush1.bf16.msra.mxu0 %v3873
    %3891 = vmatprep.subr.bf16.mxu0 0
    %3892 = vmatpush1.bf16.msra.mxu0 %v3874
    %3893 = vmatprep.subr.bf16.mxu0 0
    %3894 = vmatpush1.bf16.msra.mxu0 %v3875
    %3895 = vmatprep.subr.bf16.mxu0 0
    %3896 = vmatpush1.bf16.msra.mxu0 %v3876
    %3897 = vmatprep.subr.bf16.mxu0 0
    %3898 = vmatpush1.bf16.msra.mxu0 %v3877
    %3899 = vmatprep.subr.bf16.mxu0 0
    %3900 = vmatpush1.bf16.msra.mxu0 %v3878
    %3901 = vmatprep.subr.bf16.mxu0 0
    %3902 = vmatpush1.bf16.msra.mxu0 %v3879
    %3903 = vmatprep.subr.bf16.mxu0 0
    %3904 = vmatpush1.bf16.msra.mxu0 %v3880
    %3905 = vmatprep.subr.bf16.mxu0 0
    %3906 = vmatpush1.bf16.msra.mxu0 0
    %3907 = vmatprep.subr.bf16.mxu0 0
    %3908 = vmatpush1.bf16.msra.mxu0 0
    %3909 = vmatprep.subr.bf16.mxu0 0
    %3910 = vmatpush1.bf16.msra.mxu0 0
    %3911 = vmatprep.subr.bf16.mxu0 0
    %3912 = vmatpush1.bf16.msra.mxu0 0
    %3913 = vmatprep.subr.bf16.mxu0 0
    %3914 = vmatpush1.bf16.msra.mxu0 0
    %3915 = vmatprep.subr.bf16.mxu0 0
    %3916 = vmatpush1.bf16.msra.mxu0 0
    %3917 = vmatprep.subr.bf16.mxu0 0
    %3918 = vmatpush1.bf16.msra.mxu0 0
    %3919 = vmatprep.subr.bf16.mxu0 0
    %3920 = vmatpush1.bf16.msra.mxu0 0
    %3921 = vmatprep.mubr.bf16.mxu0 0
    %3922 = vmatmul.mubr.bf16.gmra.mrb[0].mxu0 %v3823
    %v3923 = vpop.f32.mrb[0].mxu0
    %v3924 = vadd.f32 %v3840, %v3923
    %v3925 = vpop.f32.mrb[0].mxu0
    %v3926 = vpop.f32.mrb[0].mxu0
    %v3927 = vpop.f32.mrb[0].mxu0
    %3928 = vdwg.mxu0
    %v3929 = vmul.f32 %v2902, 0.95
    %v3930 = vadd.f32 %v3929, %v3924
    %v3931 = vmul.f32 %v2905, 0.5
    %v3932 = vsub.f32 %v3930, %v3931
    %vm3933 = vcmp.gt.f32.partialorder %v3932, 0.5
    %v3934 = vsel %vm3933, 1, 0
    %v3935 = vcvt.s32.f32 %v3934
    %v3936 = vpack.c.bf16 %v3935, %v3935
    %v3937 = vld [vmem:[#allocation20] sm:$0xf]
    %v3938 = vld [vmem:[#allocation20 + $0x4] sm:$0xf]
    %v3939 = vld [vmem:[#allocation20 + $0x8] sm:$0xf]
    %v3940 = vld [vmem:[#allocation20 + $0xc] sm:$0xf]
    %v3941 = vld [vmem:[#allocation20 + $0x10] sm:$0xf]
    %v3942 = vld [vmem:[#allocation20 + $0x14] sm:$0xf]
    %v3943 = vld [vmem:[#allocation20 + $0x18] sm:$0xf]
    %v3944 = vld [vmem:[#allocation20 + $0x1c] sm:$0xf]
    %v3945 = vld [vmem:[#allocation20 + $0x20] sm:$0xf]
    %v3946 = vld [vmem:[#allocation20 + $0x24] sm:$0xf]
    %v3947 = vld [vmem:[#allocation20 + $0x28] sm:$0xf]
    %v3948 = vld [vmem:[#allocation20 + $0x2c] sm:$0xf]
    %v3949 = vld [vmem:[#allocation20 + $0x30] sm:$0xf]
    %v3950 = vld [vmem:[#allocation20 + $0x34] sm:$0xf]
    %v3951 = vld [vmem:[#allocation20 + $0x38] sm:$0xf]
    %v3952 = vld [vmem:[#allocation20 + $0x3c] sm:$0xf]
    %v3953 = vld [vmem:[#allocation22] sm:$0xff]
    %v3970 = vunpack.c.l.b16 %v3937
    %v3971 = vunpack.c.l.b16 %v3938
    %v3972 = vunpack.c.l.b16 %v3939
    %v3973 = vunpack.c.l.b16 %v3940
    %v3974 = vunpack.c.l.b16 %v3941
    %v3975 = vunpack.c.l.b16 %v3942
    %v3976 = vunpack.c.l.b16 %v3943
    %v3977 = vunpack.c.l.b16 %v3944
    %v3978 = vunpack.c.l.b16 %v3945
    %v3979 = vunpack.c.l.b16 %v3946
    %v3980 = vunpack.c.l.b16 %v3947
    %v3981 = vunpack.c.l.b16 %v3948
    %v3982 = vunpack.c.l.b16 %v3949
    %v3983 = vunpack.c.l.b16 %v3950
    %v3984 = vunpack.c.l.b16 %v3951
    %v3985 = vunpack.c.l.b16 %v3952
    %v3986 = vpack.c.b16 %v3971, %v3970
    %v3987 = vpack.c.b16 %v3973, %v3972
    %v3988 = vpack.c.b16 %v3975, %v3974
    %v3989 = vpack.c.b16 %v3977, %v3976
    %v3990 = vpack.c.b16 %v3979, %v3978
    %v3991 = vpack.c.b16 %v3981, %v3980
    %v3992 = vpack.c.b16 %v3983, %v3982
    %v3993 = vpack.c.b16 %v3985, %v3984
    %4002 = vmatprep.subr.bf16.mxu0 0
    %4003 = vmatpush1.bf16.msra.mxu0 %v3986
    %4004 = vmatprep.subr.bf16.mxu0 0
    %4005 = vmatpush1.bf16.msra.mxu0 %v3987
    %4006 = vmatprep.subr.bf16.mxu0 0
    %4007 = vmatpush1.bf16.msra.mxu0 %v3988
    %4008 = vmatprep.subr.bf16.mxu0 0
    %4009 = vmatpush1.bf16.msra.mxu0 %v3989
    %4010 = vmatprep.subr.bf16.mxu0 0
    %4011 = vmatpush1.bf16.msra.mxu0 %v3990
    %4012 = vmatprep.subr.bf16.mxu0 0
    %4013 = vmatpush1.bf16.msra.mxu0 %v3991
    %4014 = vmatprep.subr.bf16.mxu0 0
    %4015 = vmatpush1.bf16.msra.mxu0 %v3992
    %4016 = vmatprep.subr.bf16.mxu0 0
    %4017 = vmatpush1.bf16.msra.mxu0 %v3993
    %4018 = vmatprep.subr.bf16.mxu0 0
    %4019 = vmatpush1.bf16.msra.mxu0 0
    %4020 = vmatprep.subr.bf16.mxu0 0
    %4021 = vmatpush1.bf16.msra.mxu0 0
    %4022 = vmatprep.subr.bf16.mxu0 0
    %4023 = vmatpush1.bf16.msra.mxu0 0
    %4024 = vmatprep.subr.bf16.mxu0 0
    %4025 = vmatpush1.bf16.msra.mxu0 0
    %4026 = vmatprep.subr.bf16.mxu0 0
    %4027 = vmatpush1.bf16.msra.mxu0 0
    %4028 = vmatprep.subr.bf16.mxu0 0
    %4029 = vmatpush1.bf16.msra.mxu0 0
    %4030 = vmatprep.subr.bf16.mxu0 0
    %4031 = vmatpush1.bf16.msra.mxu0 0
    %4032 = vmatprep.subr.bf16.mxu0 0
    %4033 = vmatpush1.bf16.msra.mxu0 0
    %4034 = vmatprep.mubr.bf16.mxu0 0
    %4035 = vmatmul.mubr.bf16.gmra.mrb[0].mxu0 %v3936
    %v4036 = vpop.f32.mrb[0].mxu0
    %v4037 = vadd.f32 %v3953, %v4036
    %v4038 = vpop.f32.mrb[0].mxu0
    %v4039 = vpop.f32.mrb[0].mxu0
    %v4040 = vpop.f32.mrb[0].mxu0
    %4041 = vdwg.mxu0
    %v4042 = vmul.f32 %v3015, 0.95
    %v4043 = vadd.f32 %v4042, %v4037
    %v4044 = vmul.f32 %v3018, 0.5
    %v4045 = vsub.f32 %v4043, %v4044
    %vm4046 = vcmp.gt.f32.partialorder %v4045, 0.5
    %v4047 = vsel %vm4046, 1, 0
    %v4048 = vcvt.s32.f32 %v4047
    %v4049 = vpack.c.bf16 %v4048, %v4048
    %v4050 = vld [vmem:[#allocation23] sm:$0xf]
    %v4051 = vld [vmem:[#allocation23 + $0x4] sm:$0xf]
    %v4052 = vld [vmem:[#allocation23 + $0x8] sm:$0xf]
    %v4053 = vld [vmem:[#allocation23 + $0xc] sm:$0xf]
    %v4054 = vld [vmem:[#allocation23 + $0x10] sm:$0xf]
    %v4055 = vld [vmem:[#allocation23 + $0x14] sm:$0xf]
    %v4056 = vld [vmem:[#allocation23 + $0x18] sm:$0xf]
    %v4057 = vld [vmem:[#allocation23 + $0x1c] sm:$0xf]
    %v4058 = vld [vmem:[#allocation23 + $0x20] sm:$0xf]
    %v4059 = vld [vmem:[#allocation23 + $0x24] sm:$0xf]
    %v4060 = vld [vmem:[#allocation23 + $0x28] sm:$0xf]
    %v4061 = vld [vmem:[#allocation23 + $0x2c] sm:$0xf]
    %v4062 = vld [vmem:[#allocation23 + $0x30] sm:$0xf]
    %v4063 = vld [vmem:[#allocation23 + $0x34] sm:$0xf]
    %v4064 = vld [vmem:[#allocation23 + $0x38] sm:$0xf]
    %v4065 = vld [vmem:[#allocation23 + $0x3c] sm:$0xf]
    %v4066 = vld [vmem:[#allocation25] sm:$0xff]
    %v4083 = vunpack.c.l.b16 %v4050
    %v4084 = vunpack.c.l.b16 %v4051
    %v4085 = vunpack.c.l.b16 %v4052
    %v4086 = vunpack.c.l.b16 %v4053
    %v4087 = vunpack.c.l.b16 %v4054
    %v4088 = vunpack.c.l.b16 %v4055
    %v4089 = vunpack.c.l.b16 %v4056
    %v4090 = vunpack.c.l.b16 %v4057
    %v4091 = vunpack.c.l.b16 %v4058
    %v4092 = vunpack.c.l.b16 %v4059
    %v4093 = vunpack.c.l.b16 %v4060
    %v4094 = vunpack.c.l.b16 %v4061
    %v4095 = vunpack.c.l.b16 %v4062
    %v4096 = vunpack.c.l.b16 %v4063
    %v4097 = vunpack.c.l.b16 %v4064
    %v4098 = vunpack.c.l.b16 %v4065
    %v4099 = vpack.c.b16 %v4084, %v4083
    %v4100 = vpack.c.b16 %v4086, %v4085
    %v4101 = vpack.c.b16 %v4088, %v4087
    %v4102 = vpack.c.b16 %v4090, %v4089
    %v4103 = vpack.c.b16 %v4092, %v4091
    %v4104 = vpack.c.b16 %v4094, %v4093
    %v4105 = vpack.c.b16 %v4096, %v4095
    %v4106 = vpack.c.b16 %v4098, %v4097
    %4115 = vmatprep.subr.bf16.mxu0 0
    %4116 = vmatpush1.bf16.msra.mxu0 %v4099
    %4117 = vmatprep.subr.bf16.mxu0 0
    %4118 = vmatpush1.bf16.msra.mxu0 %v4100
    %4119 = vmatprep.subr.bf16.mxu0 0
    %4120 = vmatpush1.bf16.msra.mxu0 %v4101
    %4121 = vmatprep.subr.bf16.mxu0 0
    %4122 = vmatpush1.bf16.msra.mxu0 %v4102
    %4123 = vmatprep.subr.bf16.mxu0 0
    %4124 = vmatpush1.bf16.msra.mxu0 %v4103
    %4125 = vmatprep.subr.bf16.mxu0 0
    %4126 = vmatpush1.bf16.msra.mxu0 %v4104
    %4127 = vmatprep.subr.bf16.mxu0 0
    %4128 = vmatpush1.bf16.msra.mxu0 %v4105
    %4129 = vmatprep.subr.bf16.mxu0 0
    %4130 = vmatpush1.bf16.msra.mxu0 %v4106
    %4131 = vmatprep.subr.bf16.mxu0 0
    %4132 = vmatpush1.bf16.msra.mxu0 0
    %4133 = vmatprep.subr.bf16.mxu0 0
    %4134 = vmatpush1.bf16.msra.mxu0 0
    %4135 = vmatprep.subr.bf16.mxu0 0
    %4136 = vmatpush1.bf16.msra.mxu0 0
    %4137 = vmatprep.subr.bf16.mxu0 0
    %4138 = vmatpush1.bf16.msra.mxu0 0
    %4139 = vmatprep.subr.bf16.mxu0 0
    %4140 = vmatpush1.bf16.msra.mxu0 0
    %4141 = vmatprep.subr.bf16.mxu0 0
    %4142 = vmatpush1.bf16.msra.mxu0 0
    %4143 = vmatprep.subr.bf16.mxu0 0
    %4144 = vmatpush1.bf16.msra.mxu0 0
    %4145 = vmatprep.subr.bf16.mxu0 0
    %4146 = vmatpush1.bf16.msra.mxu0 0
    %4147 = vmatprep.mubr.bf16.mxu0 0
    %4148 = vmatmul.mubr.bf16.gmra.mrb[0].mxu0 %v4049
    %v4149 = vpop.f32.mrb[0].mxu0
    %v4150 = vadd.f32 %v4066, %v4149
    %v4151 = vpop.f32.mrb[0].mxu0
    %v4152 = vpop.f32.mrb[0].mxu0
    %v4153 = vpop.f32.mrb[0].mxu0
    %4154 = vdwg.mxu0
    %v4155 = vmul.f32 %v3128, 0.95
    %v4156 = vadd.f32 %v4155, %v4150
    %v4157 = vmul.f32 %v3131, 0.5
    %v4158 = vsub.f32 %v4156, %v4157
    %vm4159 = vcmp.gt.f32.partialorder %v4158, 0.5
    %v4160 = vsel %vm4159, 1, 0
    %v4161 = vcvt.s32.f32 %v4160
    %v4162 = vpack.c.bf16 %v4161, %v4161
    %v4163 = vld [vmem:[#allocation26] sm:$0xf]
    %v4164 = vld [vmem:[#allocation26 + $0x4] sm:$0xf]
    %v4165 = vld [vmem:[#allocation26 + $0x8] sm:$0xf]
    %v4166 = vld [vmem:[#allocation26 + $0xc] sm:$0xf]
    %v4167 = vld [vmem:[#allocation26 + $0x10] sm:$0xf]
    %v4168 = vld [vmem:[#allocation26 + $0x14] sm:$0xf]
    %v4169 = vld [vmem:[#allocation26 + $0x18] sm:$0xf]
    %v4170 = vld [vmem:[#allocation26 + $0x1c] sm:$0xf]
    %v4171 = vld [vmem:[#allocation26 + $0x20] sm:$0xf]
    %v4172 = vld [vmem:[#allocation26 + $0x24] sm:$0xf]
    %v4173 = vld [vmem:[#allocation26 + $0x28] sm:$0xf]
    %v4174 = vld [vmem:[#allocation26 + $0x2c] sm:$0xf]
    %v4175 = vld [vmem:[#allocation26 + $0x30] sm:$0xf]
    %v4176 = vld [vmem:[#allocation26 + $0x34] sm:$0xf]
    %v4177 = vld [vmem:[#allocation26 + $0x38] sm:$0xf]
    %v4178 = vld [vmem:[#allocation26 + $0x3c] sm:$0xf]
    %v4179 = vld [vmem:[#allocation28] sm:$0xff]
    %v4196 = vunpack.c.l.b16 %v4163
    %v4197 = vunpack.c.l.b16 %v4164
    %v4198 = vunpack.c.l.b16 %v4165
    %v4199 = vunpack.c.l.b16 %v4166
    %v4200 = vunpack.c.l.b16 %v4167
    %v4201 = vunpack.c.l.b16 %v4168
    %v4202 = vunpack.c.l.b16 %v4169
    %v4203 = vunpack.c.l.b16 %v4170
    %v4204 = vunpack.c.l.b16 %v4171
    %v4205 = vunpack.c.l.b16 %v4172
    %v4206 = vunpack.c.l.b16 %v4173
    %v4207 = vunpack.c.l.b16 %v4174
    %v4208 = vunpack.c.l.b16 %v4175
    %v4209 = vunpack.c.l.b16 %v4176
    %v4210 = vunpack.c.l.b16 %v4177
    %v4211 = vunpack.c.l.b16 %v4178
    %v4212 = vpack.c.b16 %v4197, %v4196
    %v4213 = vpack.c.b16 %v4199, %v4198
    %v4214 = vpack.c.b16 %v4201, %v4200
    %v4215 = vpack.c.b16 %v4203, %v4202
    %v4216 = vpack.c.b16 %v4205, %v4204
    %v4217 = vpack.c.b16 %v4207, %v4206
    %v4218 = vpack.c.b16 %v4209, %v4208
    %v4219 = vpack.c.b16 %v4211, %v4210
    %4228 = vmatprep.subr.bf16.mxu0 0
    %4229 = vmatpush1.bf16.msra.mxu0 %v4212
    %4230 = vmatprep.subr.bf16.mxu0 0
    %4231 = vmatpush1.bf16.msra.mxu0 %v4213
    %4232 = vmatprep.subr.bf16.mxu0 0
    %4233 = vmatpush1.bf16.msra.mxu0 %v4214
    %4234 = vmatprep.subr.bf16.mxu0 0
    %4235 = vmatpush1.bf16.msra.mxu0 %v4215
    %4236 = vmatprep.subr.bf16.mxu0 0
    %4237 = vmatpush1.bf16.msra.mxu0 %v4216
    %4238 = vmatprep.subr.bf16.mxu0 0
    %4239 = vmatpush1.bf16.msra.mxu0 %v4217
    %4240 = vmatprep.subr.bf16.mxu0 0
    %4241 = vmatpush1.bf16.msra.mxu0 %v4218
    %4242 = vmatprep.subr.bf16.mxu0 0
    %4243 = vmatpush1.bf16.msra.mxu0 %v4219
    %4244 = vmatprep.subr.bf16.mxu0 0
    %4245 = vmatpush1.bf16.msra.mxu0 0
    %4246 = vmatprep.subr.bf16.mxu0 0
    %4247 = vmatpush1.bf16.msra.mxu0 0
    %4248 = vmatprep.subr.bf16.mxu0 0
    %4249 = vmatpush1.bf16.msra.mxu0 0
    %4250 = vmatprep.subr.bf16.mxu0 0
    %4251 = vmatpush1.bf16.msra.mxu0 0
    %4252 = vmatprep.subr.bf16.mxu0 0
    %4253 = vmatpush1.bf16.msra.mxu0 0
    %4254 = vmatprep.subr.bf16.mxu0 0
    %4255 = vmatpush1.bf16.msra.mxu0 0
    %4256 = vmatprep.subr.bf16.mxu0 0
    %4257 = vmatpush1.bf16.msra.mxu0 0
    %4258 = vmatprep.subr.bf16.mxu0 0
    %4259 = vmatpush1.bf16.msra.mxu0 0
    %4260 = vmatprep.mubr.bf16.mxu0 0
    %4261 = vmatmul.mubr.bf16.gmra.mrb[0].mxu0 %v4162
    %v4262 = vpop.f32.mrb[0].mxu0
    %v4263 = vadd.f32 %v4179, %v4262
    %v4264 = vpop.f32.mrb[0].mxu0
    %v4265 = vpop.f32.mrb[0].mxu0
    %v4266 = vpop.f32.mrb[0].mxu0
    %4267 = vdwg.mxu0
    %v4268 = vmul.f32 %v3241, 0.95
    %v4269 = vadd.f32 %v4268, %v4263
    %v4270 = vmul.f32 %v3244, 0.5
    %v4271 = vsub.f32 %v4269, %v4270
    %vm4272 = vcmp.gt.f32.partialorder %v4271, 0.5
    %v4273 = vsel %vm4272, 1, 0
    %v4274 = vcvt.s32.f32 %v4273
    %v4275 = vpack.c.bf16 %v4274, %v4274
    %v4276 = vld [vmem:[%s17] sm:$0xf]
    %v4277 = vld [vmem:[%s17 + $0x4] sm:$0xf]
    %v4278 = vld [vmem:[%s17 + $0x8] sm:$0xf]
    %v4279 = vld [vmem:[%s17 + $0xc] sm:$0xf]
    %v4280 = vld [vmem:[%s17 + $0x10] sm:$0xf]
    %v4281 = vld [vmem:[%s17 + $0x14] sm:$0xf]
    %v4282 = vld [vmem:[%s17 + $0x18] sm:$0xf]
    %v4283 = vld [vmem:[%s17 + $0x1c] sm:$0xf]
    %v4284 = vld [vmem:[%s17 + $0x20] sm:$0xf]
    %v4285 = vld [vmem:[%s17 + $0x24] sm:$0xf]
    %v4286 = vld [vmem:[%s17 + $0x28] sm:$0xf]
    %v4287 = vld [vmem:[%s17 + $0x2c] sm:$0xf]
    %v4288 = vld [vmem:[%s17 + $0x30] sm:$0xf]
    %v4289 = vld [vmem:[%s17 + $0x34] sm:$0xf]
    %v4290 = vld [vmem:[%s17 + $0x38] sm:$0xf]
    %v4291 = vld [vmem:[%s17 + $0x3c] sm:$0xf]
    %v4292 = vld [vmem:[#allocation29] sm:$0xff]
    %v4309 = vunpack.c.l.b16 %v4276
    %v4310 = vunpack.c.l.b16 %v4277
    %v4311 = vunpack.c.l.b16 %v4278
    %v4312 = vunpack.c.l.b16 %v4279
    %v4313 = vunpack.c.l.b16 %v4280
    %v4314 = vunpack.c.l.b16 %v4281
    %v4315 = vunpack.c.l.b16 %v4282
    %v4316 = vunpack.c.l.b16 %v4283
    %v4317 = vunpack.c.l.b16 %v4284
    %v4318 = vunpack.c.l.b16 %v4285
    %v4319 = vunpack.c.l.b16 %v4286
    %v4320 = vunpack.c.l.b16 %v4287
    %v4321 = vunpack.c.l.b16 %v4288
    %v4322 = vunpack.c.l.b16 %v4289
    %v4323 = vunpack.c.l.b16 %v4290
    %v4324 = vunpack.c.l.b16 %v4291
    %v4325 = vpack.c.b16 %v4310, %v4309
    %v4326 = vpack.c.b16 %v4312, %v4311
    %v4327 = vpack.c.b16 %v4314, %v4313
    %v4328 = vpack.c.b16 %v4316, %v4315
    %v4329 = vpack.c.b16 %v4318, %v4317
    %v4330 = vpack.c.b16 %v4320, %v4319
    %v4331 = vpack.c.b16 %v4322, %v4321
    %v4332 = vpack.c.b16 %v4324, %v4323
    %4341 = vmatprep.subr.bf16.mxu0 0
    %4342 = vmatpush1.bf16.msra.mxu0 %v4325
    %4343 = vmatprep.subr.bf16.mxu0 0
    %4344 = vmatpush1.bf16.msra.mxu0 %v4326
    %4345 = vmatprep.subr.bf16.mxu0 0
    %4346 = vmatpush1.bf16.msra.mxu0 %v4327
    %4347 = vmatprep.subr.bf16.mxu0 0
    %4348 = vmatpush1.bf16.msra.mxu0 %v4328
    %4349 = vmatprep.subr.bf16.mxu0 0
    %4350 = vmatpush1.bf16.msra.mxu0 %v4329
    %4351 = vmatprep.subr.bf16.mxu0 0
    %4352 = vmatpush1.bf16.msra.mxu0 %v4330
    %4353 = vmatprep.subr.bf16.mxu0 0
    %4354 = vmatpush1.bf16.msra.mxu0 %v4331
    %4355 = vmatprep.subr.bf16.mxu0 0
    %4356 = vmatpush1.bf16.msra.mxu0 %v4332
    %4357 = vmatprep.subr.bf16.mxu0 0
    %4358 = vmatpush1.bf16.msra.mxu0 0
    %4359 = vmatprep.subr.bf16.mxu0 0
    %4360 = vmatpush1.bf16.msra.mxu0 0
    %4361 = vmatprep.subr.bf16.mxu0 0
    %4362 = vmatpush1.bf16.msra.mxu0 0
    %4363 = vmatprep.subr.bf16.mxu0 0
    %4364 = vmatpush1.bf16.msra.mxu0 0
    %4365 = vmatprep.subr.bf16.mxu0 0
    %4366 = vmatpush1.bf16.msra.mxu0 0
    %4367 = vmatprep.subr.bf16.mxu0 0
    %4368 = vmatpush1.bf16.msra.mxu0 0
    %4369 = vmatprep.subr.bf16.mxu0 0
    %4370 = vmatpush1.bf16.msra.mxu0 0
    %4371 = vmatprep.subr.bf16.mxu0 0
    %4372 = vmatpush1.bf16.msra.mxu0 0
    %4373 = vmatprep.mubr.bf16.mxu0 0
    %4374 = vmatmul.mubr.bf16.gmra.mrb[0].mxu0 %v4275
    %v4375 = vpop.f32.mrb[0].mxu0
    %v4376 = vadd.f32 %v4292, %v4375
    %v4377 = vpop.f32.mrb[0].mxu0
    %v4378 = vpop.f32.mrb[0].mxu0
    %v4379 = vpop.f32.mrb[0].mxu0
    %4380 = vdwg.mxu0
    %v4381 = vmul.f32 %v3354, 0.95
    %v4382 = vadd.f32 %v4381, %v4376
    %v4383 = vmul.f32 %v3357, 0.5
    %v4384 = vsub.f32 %v4382, %v4383
    %vm4385 = vcmp.gt.f32.partialorder %v4384, 0.5
    %v4386 = vsel %vm4385, 1, 0
    %v4387 = vcvt.s32.f32 %v4386
    %v4388 = vpack.c.bf16 %v4387, %v4387
    %v4389 = vunpack.c.l.bf16 %v4388
    %s4390 = scalar_lea.vmem [#allocation31], 24
    %4391 = vst [vmem:[%s4390] sm:$0xff] %v4389
    %s4392 = scalar_lea.vmem [#allocation32], 24
    %4393 = vst [vmem:[%s4392] sm:$0xff] %v4384
    %v4394 = vmul.f32 %v3367, 0.95
    %v4395 = vadd.f32 %v4394, %v291
    %v4396 = vmul.f32 %v3370, 0.5
    %v4397 = vsub.f32 %v4395, %v4396
    %vm4398 = vcmp.gt.f32.partialorder %v4397, 0.5
    %v4399 = vsel %vm4398, 1, 0
    %v4400 = vcvt.s32.f32 %v4399
    %v4401 = vpack.c.bf16 %v4400, %v4400
    %v4402 = vld [vmem:[#allocation5] sm:$0xf]
    %v4403 = vld [vmem:[#allocation5 + $0x4] sm:$0xf]
    %v4404 = vld [vmem:[#allocation5 + $0x8] sm:$0xf]
    %v4405 = vld [vmem:[#allocation5 + $0xc] sm:$0xf]
    %v4406 = vld [vmem:[#allocation5 + $0x10] sm:$0xf]
    %v4407 = vld [vmem:[#allocation5 + $0x14] sm:$0xf]
    %v4408 = vld [vmem:[#allocation5 + $0x18] sm:$0xf]
    %v4409 = vld [vmem:[#allocation5 + $0x1c] sm:$0xf]
    %v4410 = vld [vmem:[#allocation5 + $0x20] sm:$0xf]
    %v4411 = vld [vmem:[#allocation5 + $0x24] sm:$0xf]
    %v4412 = vld [vmem:[#allocation5 + $0x28] sm:$0xf]
    %v4413 = vld [vmem:[#allocation5 + $0x2c] sm:$0xf]
    %v4414 = vld [vmem:[#allocation5 + $0x30] sm:$0xf]
    %v4415 = vld [vmem:[#allocation5 + $0x34] sm:$0xf]
    %v4416 = vld [vmem:[#allocation5 + $0x38] sm:$0xf]
    %v4417 = vld [vmem:[#allocation5 + $0x3c] sm:$0xf]
    %v4418 = vld [vmem:[#allocation7] sm:$0xff]
    %v4435 = vunpack.c.l.b16 %v4402
    %v4436 = vunpack.c.l.b16 %v4403
    %v4437 = vunpack.c.l.b16 %v4404
    %v4438 = vunpack.c.l.b16 %v4405
    %v4439 = vunpack.c.l.b16 %v4406
    %v4440 = vunpack.c.l.b16 %v4407
    %v4441 = vunpack.c.l.b16 %v4408
    %v4442 = vunpack.c.l.b16 %v4409
    %v4443 = vunpack.c.l.b16 %v4410
    %v4444 = vunpack.c.l.b16 %v4411
    %v4445 = vunpack.c.l.b16 %v4412
    %v4446 = vunpack.c.l.b16 %v4413
    %v4447 = vunpack.c.l.b16 %v4414
    %v4448 = vunpack.c.l.b16 %v4415
    %v4449 = vunpack.c.l.b16 %v4416
    %v4450 = vunpack.c.l.b16 %v4417
    %v4451 = vpack.c.b16 %v4436, %v4435
    %v4452 = vpack.c.b16 %v4438, %v4437
    %v4453 = vpack.c.b16 %v4440, %v4439
    %v4454 = vpack.c.b16 %v4442, %v4441
    %v4455 = vpack.c.b16 %v4444, %v4443
    %v4456 = vpack.c.b16 %v4446, %v4445
    %v4457 = vpack.c.b16 %v4448, %v4447
    %v4458 = vpack.c.b16 %v4450, %v4449
    %4467 = vmatprep.subr.bf16.mxu0 0
    %4468 = vmatpush1.bf16.msra.mxu0 %v4451
    %4469 = vmatprep.subr.bf16.mxu0 0
    %4470 = vmatpush1.bf16.msra.mxu0 %v4452
    %4471 = vmatprep.subr.bf16.mxu0 0
    %4472 = vmatpush1.bf16.msra.mxu0 %v4453
    %4473 = vmatprep.subr.bf16.mxu0 0
    %4474 = vmatpush1.bf16.msra.mxu0 %v4454
    %4475 = vmatprep.subr.bf16.mxu0 0
    %4476 = vmatpush1.bf16.msra.mxu0 %v4455
    %4477 = vmatprep.subr.bf16.mxu0 0
    %4478 = vmatpush1.bf16.msra.mxu0 %v4456
    %4479 = vmatprep.subr.bf16.mxu0 0
    %4480 = vmatpush1.bf16.msra.mxu0 %v4457
    %4481 = vmatprep.subr.bf16.mxu0 0
    %4482 = vmatpush1.bf16.msra.mxu0 %v4458
    %4483 = vmatprep.subr.bf16.mxu0 0
    %4484 = vmatpush1.bf16.msra.mxu0 0
    %4485 = vmatprep.subr.bf16.mxu0 0
    %4486 = vmatpush1.bf16.msra.mxu0 0
    %4487 = vmatprep.subr.bf16.mxu0 0
    %4488 = vmatpush1.bf16.msra.mxu0 0
    %4489 = vmatprep.subr.bf16.mxu0 0
    %4490 = vmatpush1.bf16.msra.mxu0 0
    %4491 = vmatprep.subr.bf16.mxu0 0
    %4492 = vmatpush1.bf16.msra.mxu0 0
    %4493 = vmatprep.subr.bf16.mxu0 0
    %4494 = vmatpush1.bf16.msra.mxu0 0
    %4495 = vmatprep.subr.bf16.mxu0 0
    %4496 = vmatpush1.bf16.msra.mxu0 0
    %4497 = vmatprep.subr.bf16.mxu0 0
    %4498 = vmatpush1.bf16.msra.mxu0 0
    %4499 = vmatprep.mubr.bf16.mxu0 0
    %4500 = vmatmul.mubr.bf16.gmra.mrb[0].mxu0 %v4401
    %v4501 = vpop.f32.mrb[0].mxu0
    %v4502 = vadd.f32 %v4418, %v4501
    %v4503 = vpop.f32.mrb[0].mxu0
    %v4504 = vpop.f32.mrb[0].mxu0
    %v4505 = vpop.f32.mrb[0].mxu0
    %4506 = vdwg.mxu0
    %v4507 = vmul.f32 %v3480, 0.95
    %v4508 = vadd.f32 %v4507, %v4502
    %v4509 = vmul.f32 %v3483, 0.5
    %v4510 = vsub.f32 %v4508, %v4509
    %vm4511 = vcmp.gt.f32.partialorder %v4510, 0.5
    %v4512 = vsel %vm4511, 1, 0
    %v4513 = vcvt.s32.f32 %v4512
    %v4514 = vpack.c.bf16 %v4513, %v4513
    %v4515 = vld [vmem:[#allocation8] sm:$0xf]
    %v4516 = vld [vmem:[#allocation8 + $0x4] sm:$0xf]
    %v4517 = vld [vmem:[#allocation8 + $0x8] sm:$0xf]
    %v4518 = vld [vmem:[#allocation8 + $0xc] sm:$0xf]
    %v4519 = vld [vmem:[#allocation8 + $0x10] sm:$0xf]
    %v4520 = vld [vmem:[#allocation8 + $0x14] sm:$0xf]
    %v4521 = vld [vmem:[#allocation8 + $0x18] sm:$0xf]
    %v4522 = vld [vmem:[#allocation8 + $0x1c] sm:$0xf]
    %v4523 = vld [vmem:[#allocation8 + $0x20] sm:$0xf]
    %v4524 = vld [vmem:[#allocation8 + $0x24] sm:$0xf]
    %v4525 = vld [vmem:[#allocation8 + $0x28] sm:$0xf]
    %v4526 = vld [vmem:[#allocation8 + $0x2c] sm:$0xf]
    %v4527 = vld [vmem:[#allocation8 + $0x30] sm:$0xf]
    %v4528 = vld [vmem:[#allocation8 + $0x34] sm:$0xf]
    %v4529 = vld [vmem:[#allocation8 + $0x38] sm:$0xf]
    %v4530 = vld [vmem:[#allocation8 + $0x3c] sm:$0xf]
    %v4531 = vld [vmem:[#allocation10] sm:$0xff]
    %v4548 = vunpack.c.l.b16 %v4515
    %v4549 = vunpack.c.l.b16 %v4516
    %v4550 = vunpack.c.l.b16 %v4517
    %v4551 = vunpack.c.l.b16 %v4518
    %v4552 = vunpack.c.l.b16 %v4519
    %v4553 = vunpack.c.l.b16 %v4520
    %v4554 = vunpack.c.l.b16 %v4521
    %v4555 = vunpack.c.l.b16 %v4522
    %v4556 = vunpack.c.l.b16 %v4523
    %v4557 = vunpack.c.l.b16 %v4524
    %v4558 = vunpack.c.l.b16 %v4525
    %v4559 = vunpack.c.l.b16 %v4526
    %v4560 = vunpack.c.l.b16 %v4527
    %v4561 = vunpack.c.l.b16 %v4528
    %v4562 = vunpack.c.l.b16 %v4529
    %v4563 = vunpack.c.l.b16 %v4530
    %v4564 = vpack.c.b16 %v4549, %v4548
    %v4565 = vpack.c.b16 %v4551, %v4550
    %v4566 = vpack.c.b16 %v4553, %v4552
    %v4567 = vpack.c.b16 %v4555, %v4554
    %v4568 = vpack.c.b16 %v4557, %v4556
    %v4569 = vpack.c.b16 %v4559, %v4558
    %v4570 = vpack.c.b16 %v4561, %v4560
    %v4571 = vpack.c.b16 %v4563, %v4562
    %4580 = vmatprep.subr.bf16.mxu0 0
    %4581 = vmatpush1.bf16.msra.mxu0 %v4564
    %4582 = vmatprep.subr.bf16.mxu0 0
    %4583 = vmatpush1.bf16.msra.mxu0 %v4565
    %4584 = vmatprep.subr.bf16.mxu0 0
    %4585 = vmatpush1.bf16.msra.mxu0 %v4566
    %4586 = vmatprep.subr.bf16.mxu0 0
    %4587 = vmatpush1.bf16.msra.mxu0 %v4567
    %4588 = vmatprep.subr.bf16.mxu0 0
    %4589 = vmatpush1.bf16.msra.mxu0 %v4568
    %4590 = vmatprep.subr.bf16.mxu0 0
    %4591 = vmatpush1.bf16.msra.mxu0 %v4569
    %4592 = vmatprep.subr.bf16.mxu0 0
    %4593 = vmatpush1.bf16.msra.mxu0 %v4570
    %4594 = vmatprep.subr.bf16.mxu0 0
    %4595 = vmatpush1.bf16.msra.mxu0 %v4571
    %4596 = vmatprep.subr.bf16.mxu0 0
    %4597 = vmatpush1.bf16.msra.mxu0 0
    %4598 = vmatprep.subr.bf16.mxu0 0
    %4599 = vmatpush1.bf16.msra.mxu0 0
    %4600 = vmatprep.subr.bf16.mxu0 0
    %4601 = vmatpush1.bf16.msra.mxu0 0
    %4602 = vmatprep.subr.bf16.mxu0 0
    %4603 = vmatpush1.bf16.msra.mxu0 0
    %4604 = vmatprep.subr.bf16.mxu0 0
    %4605 = vmatpush1.bf16.msra.mxu0 0
    %4606 = vmatprep.subr.bf16.mxu0 0
    %4607 = vmatpush1.bf16.msra.mxu0 0
    %4608 = vmatprep.subr.bf16.mxu0 0
    %4609 = vmatpush1.bf16.msra.mxu0 0
    %4610 = vmatprep.subr.bf16.mxu0 0
    %4611 = vmatpush1.bf16.msra.mxu0 0
    %4612 = vmatprep.mubr.bf16.mxu0 0
    %4613 = vmatmul.mubr.bf16.gmra.mrb[0].mxu0 %v4514
    %v4614 = vpop.f32.mrb[0].mxu0
    %v4615 = vadd.f32 %v4531, %v4614
    %v4616 = vpop.f32.mrb[0].mxu0
    %v4617 = vpop.f32.mrb[0].mxu0
    %v4618 = vpop.f32.mrb[0].mxu0
    %4619 = vdwg.mxu0
    %v4620 = vmul.f32 %v3593, 0.95
    %v4621 = vadd.f32 %v4620, %v4615
    %v4622 = vmul.f32 %v3596, 0.5
    %v4623 = vsub.f32 %v4621, %v4622
    %vm4624 = vcmp.gt.f32.partialorder %v4623, 0.5
    %v4625 = vsel %vm4624, 1, 0
    %v4626 = vcvt.s32.f32 %v4625
    %v4627 = vpack.c.bf16 %v4626, %v4626
    %v4628 = vld [vmem:[#allocation11] sm:$0xf]
    %v4629 = vld [vmem:[#allocation11 + $0x4] sm:$0xf]
    %v4630 = vld [vmem:[#allocation11 + $0x8] sm:$0xf]
    %v4631 = vld [vmem:[#allocation11 + $0xc] sm:$0xf]
    %v4632 = vld [vmem:[#allocation11 + $0x10] sm:$0xf]
    %v4633 = vld [vmem:[#allocation11 + $0x14] sm:$0xf]
    %v4634 = vld [vmem:[#allocation11 + $0x18] sm:$0xf]
    %v4635 = vld [vmem:[#allocation11 + $0x1c] sm:$0xf]
    %v4636 = vld [vmem:[#allocation11 + $0x20] sm:$0xf]
    %v4637 = vld [vmem:[#allocation11 + $0x24] sm:$0xf]
    %v4638 = vld [vmem:[#allocation11 + $0x28] sm:$0xf]
    %v4639 = vld [vmem:[#allocation11 + $0x2c] sm:$0xf]
    %v4640 = vld [vmem:[#allocation11 + $0x30] sm:$0xf]
    %v4641 = vld [vmem:[#allocation11 + $0x34] sm:$0xf]
    %v4642 = vld [vmem:[#allocation11 + $0x38] sm:$0xf]
    %v4643 = vld [vmem:[#allocation11 + $0x3c] sm:$0xf]
    %v4644 = vld [vmem:[#allocation13] sm:$0xff]
    %v4661 = vunpack.c.l.b16 %v4628
    %v4662 = vunpack.c.l.b16 %v4629
    %v4663 = vunpack.c.l.b16 %v4630
    %v4664 = vunpack.c.l.b16 %v4631
    %v4665 = vunpack.c.l.b16 %v4632
    %v4666 = vunpack.c.l.b16 %v4633
    %v4667 = vunpack.c.l.b16 %v4634
    %v4668 = vunpack.c.l.b16 %v4635
    %v4669 = vunpack.c.l.b16 %v4636
    %v4670 = vunpack.c.l.b16 %v4637
    %v4671 = vunpack.c.l.b16 %v4638
    %v4672 = vunpack.c.l.b16 %v4639
    %v4673 = vunpack.c.l.b16 %v4640
    %v4674 = vunpack.c.l.b16 %v4641
    %v4675 = vunpack.c.l.b16 %v4642
    %v4676 = vunpack.c.l.b16 %v4643
    %v4677 = vpack.c.b16 %v4662, %v4661
    %v4678 = vpack.c.b16 %v4664, %v4663
    %v4679 = vpack.c.b16 %v4666, %v4665
    %v4680 = vpack.c.b16 %v4668, %v4667
    %v4681 = vpack.c.b16 %v4670, %v4669
    %v4682 = vpack.c.b16 %v4672, %v4671
    %v4683 = vpack.c.b16 %v4674, %v4673
    %v4684 = vpack.c.b16 %v4676, %v4675
    %4693 = vmatprep.subr.bf16.mxu0 0
    %4694 = vmatpush1.bf16.msra.mxu0 %v4677
    %4695 = vmatprep.subr.bf16.mxu0 0
    %4696 = vmatpush1.bf16.msra.mxu0 %v4678
    %4697 = vmatprep.subr.bf16.mxu0 0
    %4698 = vmatpush1.bf16.msra.mxu0 %v4679
    %4699 = vmatprep.subr.bf16.mxu0 0
    %4700 = vmatpush1.bf16.msra.mxu0 %v4680
    %4701 = vmatprep.subr.bf16.mxu0 0
    %4702 = vmatpush1.bf16.msra.mxu0 %v4681
    %4703 = vmatprep.subr.bf16.mxu0 0
    %4704 = vmatpush1.bf16.msra.mxu0 %v4682
    %4705 = vmatprep.subr.bf16.mxu0 0
    %4706 = vmatpush1.bf16.msra.mxu0 %v4683
    %4707 = vmatprep.subr.bf16.mxu0 0
    %4708 = vmatpush1.bf16.msra.mxu0 %v4684
    %4709 = vmatprep.subr.bf16.mxu0 0
    %4710 = vmatpush1.bf16.msra.mxu0 0
    %4711 = vmatprep.subr.bf16.mxu0 0
    %4712 = vmatpush1.bf16.msra.mxu0 0
    %4713 = vmatprep.subr.bf16.mxu0 0
    %4714 = vmatpush1.bf16.msra.mxu0 0
    %4715 = vmatprep.subr.bf16.mxu0 0
    %4716 = vmatpush1.bf16.msra.mxu0 0
    %4717 = vmatprep.subr.bf16.mxu0 0
    %4718 = vmatpush1.bf16.msra.mxu0 0
    %4719 = vmatprep.subr.bf16.mxu0 0
    %4720 = vmatpush1.bf16.msra.mxu0 0
    %4721 = vmatprep.subr.bf16.mxu0 0
    %4722 = vmatpush1.bf16.msra.mxu0 0
    %4723 = vmatprep.subr.bf16.mxu0 0
    %4724 = vmatpush1.bf16.msra.mxu0 0
    %4725 = vmatprep.mubr.bf16.mxu0 0
    %4726 = vmatmul.mubr.bf16.gmra.mrb[0].mxu0 %v4627
    %v4727 = vpop.f32.mrb[0].mxu0
    %v4728 = vadd.f32 %v4644, %v4727
    %v4729 = vpop.f32.mrb[0].mxu0
    %v4730 = vpop.f32.mrb[0].mxu0
    %v4731 = vpop.f32.mrb[0].mxu0
    %4732 = vdwg.mxu0
    %v4733 = vmul.f32 %v3706, 0.95
    %v4734 = vadd.f32 %v4733, %v4728
    %v4735 = vmul.f32 %v3709, 0.5
    %v4736 = vsub.f32 %v4734, %v4735
    %vm4737 = vcmp.gt.f32.partialorder %v4736, 0.5
    %v4738 = vsel %vm4737, 1, 0
    %v4739 = vcvt.s32.f32 %v4738
    %v4740 = vpack.c.bf16 %v4739, %v4739
    %v4741 = vld [vmem:[#allocation14] sm:$0xf]
    %v4742 = vld [vmem:[#allocation14 + $0x4] sm:$0xf]
    %v4743 = vld [vmem:[#allocation14 + $0x8] sm:$0xf]
    %v4744 = vld [vmem:[#allocation14 + $0xc] sm:$0xf]
    %v4745 = vld [vmem:[#allocation14 + $0x10] sm:$0xf]
    %v4746 = vld [vmem:[#allocation14 + $0x14] sm:$0xf]
    %v4747 = vld [vmem:[#allocation14 + $0x18] sm:$0xf]
    %v4748 = vld [vmem:[#allocation14 + $0x1c] sm:$0xf]
    %v4749 = vld [vmem:[#allocation14 + $0x20] sm:$0xf]
    %v4750 = vld [vmem:[#allocation14 + $0x24] sm:$0xf]
    %v4751 = vld [vmem:[#allocation14 + $0x28] sm:$0xf]
    %v4752 = vld [vmem:[#allocation14 + $0x2c] sm:$0xf]
    %v4753 = vld [vmem:[#allocation14 + $0x30] sm:$0xf]
    %v4754 = vld [vmem:[#allocation14 + $0x34] sm:$0xf]
    %v4755 = vld [vmem:[#allocation14 + $0x38] sm:$0xf]
    %v4756 = vld [vmem:[#allocation14 + $0x3c] sm:$0xf]
    %v4757 = vld [vmem:[#allocation16] sm:$0xff]
    %v4774 = vunpack.c.l.b16 %v4741
    %v4775 = vunpack.c.l.b16 %v4742
    %v4776 = vunpack.c.l.b16 %v4743
    %v4777 = vunpack.c.l.b16 %v4744
    %v4778 = vunpack.c.l.b16 %v4745
    %v4779 = vunpack.c.l.b16 %v4746
    %v4780 = vunpack.c.l.b16 %v4747
    %v4781 = vunpack.c.l.b16 %v4748
    %v4782 = vunpack.c.l.b16 %v4749
    %v4783 = vunpack.c.l.b16 %v4750
    %v4784 = vunpack.c.l.b16 %v4751
    %v4785 = vunpack.c.l.b16 %v4752
    %v4786 = vunpack.c.l.b16 %v4753
    %v4787 = vunpack.c.l.b16 %v4754
    %v4788 = vunpack.c.l.b16 %v4755
    %v4789 = vunpack.c.l.b16 %v4756
    %v4790 = vpack.c.b16 %v4775, %v4774
    %v4791 = vpack.c.b16 %v4777, %v4776
    %v4792 = vpack.c.b16 %v4779, %v4778
    %v4793 = vpack.c.b16 %v4781, %v4780
    %v4794 = vpack.c.b16 %v4783, %v4782
    %v4795 = vpack.c.b16 %v4785, %v4784
    %v4796 = vpack.c.b16 %v4787, %v4786
    %v4797 = vpack.c.b16 %v4789, %v4788
    %4806 = vmatprep.subr.bf16.mxu0 0
    %4807 = vmatpush1.bf16.msra.mxu0 %v4790
    %4808 = vmatprep.subr.bf16.mxu0 0
    %4809 = vmatpush1.bf16.msra.mxu0 %v4791
    %4810 = vmatprep.subr.bf16.mxu0 0
    %4811 = vmatpush1.bf16.msra.mxu0 %v4792
    %4812 = vmatprep.subr.bf16.mxu0 0
    %4813 = vmatpush1.bf16.msra.mxu0 %v4793
    %4814 = vmatprep.subr.bf16.mxu0 0
    %4815 = vmatpush1.bf16.msra.mxu0 %v4794
    %4816 = vmatprep.subr.bf16.mxu0 0
    %4817 = vmatpush1.bf16.msra.mxu0 %v4795
    %4818 = vmatprep.subr.bf16.mxu0 0
    %4819 = vmatpush1.bf16.msra.mxu0 %v4796
    %4820 = vmatprep.subr.bf16.mxu0 0
    %4821 = vmatpush1.bf16.msra.mxu0 %v4797
    %4822 = vmatprep.subr.bf16.mxu0 0
    %4823 = vmatpush1.bf16.msra.mxu0 0
    %4824 = vmatprep.subr.bf16.mxu0 0
    %4825 = vmatpush1.bf16.msra.mxu0 0
    %4826 = vmatprep.subr.bf16.mxu0 0
    %4827 = vmatpush1.bf16.msra.mxu0 0
    %4828 = vmatprep.subr.bf16.mxu0 0
    %4829 = vmatpush1.bf16.msra.mxu0 0
    %4830 = vmatprep.subr.bf16.mxu0 0
    %4831 = vmatpush1.bf16.msra.mxu0 0
    %4832 = vmatprep.subr.bf16.mxu0 0
    %4833 = vmatpush1.bf16.msra.mxu0 0
    %4834 = vmatprep.subr.bf16.mxu0 0
    %4835 = vmatpush1.bf16.msra.mxu0 0
    %4836 = vmatprep.subr.bf16.mxu0 0
    %4837 = vmatpush1.bf16.msra.mxu0 0
    %4838 = vmatprep.mubr.bf16.mxu0 0
    %4839 = vmatmul.mubr.bf16.gmra.mrb[0].mxu0 %v4740
    %v4840 = vpop.f32.mrb[0].mxu0
    %v4841 = vadd.f32 %v4757, %v4840
    %v4842 = vpop.f32.mrb[0].mxu0
    %v4843 = vpop.f32.mrb[0].mxu0
    %v4844 = vpop.f32.mrb[0].mxu0
    %4845 = vdwg.mxu0
    %v4846 = vmul.f32 %v3819, 0.95
    %v4847 = vadd.f32 %v4846, %v4841
    %v4848 = vmul.f32 %v3822, 0.5
    %v4849 = vsub.f32 %v4847, %v4848
    %vm4850 = vcmp.gt.f32.partialorder %v4849, 0.5
    %v4851 = vsel %vm4850, 1, 0
    %v4852 = vcvt.s32.f32 %v4851
    %v4853 = vpack.c.bf16 %v4852, %v4852
    %v4854 = vld [vmem:[#allocation17] sm:$0xf]
    %v4855 = vld [vmem:[#allocation17 + $0x4] sm:$0xf]
    %v4856 = vld [vmem:[#allocation17 + $0x8] sm:$0xf]
    %v4857 = vld [vmem:[#allocation17 + $0xc] sm:$0xf]
    %v4858 = vld [vmem:[#allocation17 + $0x10] sm:$0xf]
    %v4859 = vld [vmem:[#allocation17 + $0x14] sm:$0xf]
    %v4860 = vld [vmem:[#allocation17 + $0x18] sm:$0xf]
    %v4861 = vld [vmem:[#allocation17 + $0x1c] sm:$0xf]
    %v4862 = vld [vmem:[#allocation17 + $0x20] sm:$0xf]
    %v4863 = vld [vmem:[#allocation17 + $0x24] sm:$0xf]
    %v4864 = vld [vmem:[#allocation17 + $0x28] sm:$0xf]
    %v4865 = vld [vmem:[#allocation17 + $0x2c] sm:$0xf]
    %v4866 = vld [vmem:[#allocation17 + $0x30] sm:$0xf]
    %v4867 = vld [vmem:[#allocation17 + $0x34] sm:$0xf]
    %v4868 = vld [vmem:[#allocation17 + $0x38] sm:$0xf]
    %v4869 = vld [vmem:[#allocation17 + $0x3c] sm:$0xf]
    %v4870 = vld [vmem:[#allocation19] sm:$0xff]
    %v4887 = vunpack.c.l.b16 %v4854
    %v4888 = vunpack.c.l.b16 %v4855
    %v4889 = vunpack.c.l.b16 %v4856
    %v4890 = vunpack.c.l.b16 %v4857
    %v4891 = vunpack.c.l.b16 %v4858
    %v4892 = vunpack.c.l.b16 %v4859
    %v4893 = vunpack.c.l.b16 %v4860
    %v4894 = vunpack.c.l.b16 %v4861
    %v4895 = vunpack.c.l.b16 %v4862
    %v4896 = vunpack.c.l.b16 %v4863
    %v4897 = vunpack.c.l.b16 %v4864
    %v4898 = vunpack.c.l.b16 %v4865
    %v4899 = vunpack.c.l.b16 %v4866
    %v4900 = vunpack.c.l.b16 %v4867
    %v4901 = vunpack.c.l.b16 %v4868
    %v4902 = vunpack.c.l.b16 %v4869
    %v4903 = vpack.c.b16 %v4888, %v4887
    %v4904 = vpack.c.b16 %v4890, %v4889
    %v4905 = vpack.c.b16 %v4892, %v4891
    %v4906 = vpack.c.b16 %v4894, %v4893
    %v4907 = vpack.c.b16 %v4896, %v4895
    %v4908 = vpack.c.b16 %v4898, %v4897
    %v4909 = vpack.c.b16 %v4900, %v4899
    %v4910 = vpack.c.b16 %v4902, %v4901
    %4919 = vmatprep.subr.bf16.mxu0 0
    %4920 = vmatpush1.bf16.msra.mxu0 %v4903
    %4921 = vmatprep.subr.bf16.mxu0 0
    %4922 = vmatpush1.bf16.msra.mxu0 %v4904
    %4923 = vmatprep.subr.bf16.mxu0 0
    %4924 = vmatpush1.bf16.msra.mxu0 %v4905
    %4925 = vmatprep.subr.bf16.mxu0 0
    %4926 = vmatpush1.bf16.msra.mxu0 %v4906
    %4927 = vmatprep.subr.bf16.mxu0 0
    %4928 = vmatpush1.bf16.msra.mxu0 %v4907
    %4929 = vmatprep.subr.bf16.mxu0 0
    %4930 = vmatpush1.bf16.msra.mxu0 %v4908
    %4931 = vmatprep.subr.bf16.mxu0 0
    %4932 = vmatpush1.bf16.msra.mxu0 %v4909
    %4933 = vmatprep.subr.bf16.mxu0 0
    %4934 = vmatpush1.bf16.msra.mxu0 %v4910
    %4935 = vmatprep.subr.bf16.mxu0 0
    %4936 = vmatpush1.bf16.msra.mxu0 0
    %4937 = vmatprep.subr.bf16.mxu0 0
    %4938 = vmatpush1.bf16.msra.mxu0 0
    %4939 = vmatprep.subr.bf16.mxu0 0
    %4940 = vmatpush1.bf16.msra.mxu0 0
    %4941 = vmatprep.subr.bf16.mxu0 0
    %4942 = vmatpush1.bf16.msra.mxu0 0
    %4943 = vmatprep.subr.bf16.mxu0 0
    %4944 = vmatpush1.bf16.msra.mxu0 0
    %4945 = vmatprep.subr.bf16.mxu0 0
    %4946 = vmatpush1.bf16.msra.mxu0 0
    %4947 = vmatprep.subr.bf16.mxu0 0
    %4948 = vmatpush1.bf16.msra.mxu0 0
    %4949 = vmatprep.subr.bf16.mxu0 0
    %4950 = vmatpush1.bf16.msra.mxu0 0
    %4951 = vmatprep.mubr.bf16.mxu0 0
    %4952 = vmatmul.mubr.bf16.gmra.mrb[0].mxu0 %v4853
    %v4953 = vpop.f32.mrb[0].mxu0
    %v4954 = vadd.f32 %v4870, %v4953
    %v4955 = vpop.f32.mrb[0].mxu0
    %v4956 = vpop.f32.mrb[0].mxu0
    %v4957 = vpop.f32.mrb[0].mxu0
    %4958 = vdwg.mxu0
    %v4959 = vmul.f32 %v3932, 0.95
    %v4960 = vadd.f32 %v4959, %v4954
    %v4961 = vmul.f32 %v3935, 0.5
    %v4962 = vsub.f32 %v4960, %v4961
    %vm4963 = vcmp.gt.f32.partialorder %v4962, 0.5
    %v4964 = vsel %vm4963, 1, 0
    %v4965 = vcvt.s32.f32 %v4964
    %v4966 = vpack.c.bf16 %v4965, %v4965
    %v4967 = vld [vmem:[#allocation20] sm:$0xf]
    %v4968 = vld [vmem:[#allocation20 + $0x4] sm:$0xf]
    %v4969 = vld [vmem:[#allocation20 + $0x8] sm:$0xf]
    %v4970 = vld [vmem:[#allocation20 + $0xc] sm:$0xf]
    %v4971 = vld [vmem:[#allocation20 + $0x10] sm:$0xf]
    %v4972 = vld [vmem:[#allocation20 + $0x14] sm:$0xf]
    %v4973 = vld [vmem:[#allocation20 + $0x18] sm:$0xf]
    %v4974 = vld [vmem:[#allocation20 + $0x1c] sm:$0xf]
    %v4975 = vld [vmem:[#allocation20 + $0x20] sm:$0xf]
    %v4976 = vld [vmem:[#allocation20 + $0x24] sm:$0xf]
    %v4977 = vld [vmem:[#allocation20 + $0x28] sm:$0xf]
    %v4978 = vld [vmem:[#allocation20 + $0x2c] sm:$0xf]
    %v4979 = vld [vmem:[#allocation20 + $0x30] sm:$0xf]
    %v4980 = vld [vmem:[#allocation20 + $0x34] sm:$0xf]
    %v4981 = vld [vmem:[#allocation20 + $0x38] sm:$0xf]
    %v4982 = vld [vmem:[#allocation20 + $0x3c] sm:$0xf]
    %v4983 = vld [vmem:[#allocation22] sm:$0xff]
    %v5000 = vunpack.c.l.b16 %v4967
    %v5001 = vunpack.c.l.b16 %v4968
    %v5002 = vunpack.c.l.b16 %v4969
    %v5003 = vunpack.c.l.b16 %v4970
    %v5004 = vunpack.c.l.b16 %v4971
    %v5005 = vunpack.c.l.b16 %v4972
    %v5006 = vunpack.c.l.b16 %v4973
    %v5007 = vunpack.c.l.b16 %v4974
    %v5008 = vunpack.c.l.b16 %v4975
    %v5009 = vunpack.c.l.b16 %v4976
    %v5010 = vunpack.c.l.b16 %v4977
    %v5011 = vunpack.c.l.b16 %v4978
    %v5012 = vunpack.c.l.b16 %v4979
    %v5013 = vunpack.c.l.b16 %v4980
    %v5014 = vunpack.c.l.b16 %v4981
    %v5015 = vunpack.c.l.b16 %v4982
    %v5016 = vpack.c.b16 %v5001, %v5000
    %v5017 = vpack.c.b16 %v5003, %v5002
    %v5018 = vpack.c.b16 %v5005, %v5004
    %v5019 = vpack.c.b16 %v5007, %v5006
    %v5020 = vpack.c.b16 %v5009, %v5008
    %v5021 = vpack.c.b16 %v5011, %v5010
    %v5022 = vpack.c.b16 %v5013, %v5012
    %v5023 = vpack.c.b16 %v5015, %v5014
    %5032 = vmatprep.subr.bf16.mxu0 0
    %5033 = vmatpush1.bf16.msra.mxu0 %v5016
    %5034 = vmatprep.subr.bf16.mxu0 0
    %5035 = vmatpush1.bf16.msra.mxu0 %v5017
    %5036 = vmatprep.subr.bf16.mxu0 0
    %5037 = vmatpush1.bf16.msra.mxu0 %v5018
    %5038 = vmatprep.subr.bf16.mxu0 0
    %5039 = vmatpush1.bf16.msra.mxu0 %v5019
    %5040 = vmatprep.subr.bf16.mxu0 0
    %5041 = vmatpush1.bf16.msra.mxu0 %v5020
    %5042 = vmatprep.subr.bf16.mxu0 0
    %5043 = vmatpush1.bf16.msra.mxu0 %v5021
    %5044 = vmatprep.subr.bf16.mxu0 0
    %5045 = vmatpush1.bf16.msra.mxu0 %v5022
    %5046 = vmatprep.subr.bf16.mxu0 0
    %5047 = vmatpush1.bf16.msra.mxu0 %v5023
    %5048 = vmatprep.subr.bf16.mxu0 0
    %5049 = vmatpush1.bf16.msra.mxu0 0
    %5050 = vmatprep.subr.bf16.mxu0 0
    %5051 = vmatpush1.bf16.msra.mxu0 0
    %5052 = vmatprep.subr.bf16.mxu0 0
    %5053 = vmatpush1.bf16.msra.mxu0 0
    %5054 = vmatprep.subr.bf16.mxu0 0
    %5055 = vmatpush1.bf16.msra.mxu0 0
    %5056 = vmatprep.subr.bf16.mxu0 0
    %5057 = vmatpush1.bf16.msra.mxu0 0
    %5058 = vmatprep.subr.bf16.mxu0 0
    %5059 = vmatpush1.bf16.msra.mxu0 0
    %5060 = vmatprep.subr.bf16.mxu0 0
    %5061 = vmatpush1.bf16.msra.mxu0 0
    %5062 = vmatprep.subr.bf16.mxu0 0
    %5063 = vmatpush1.bf16.msra.mxu0 0
    %5064 = vmatprep.mubr.bf16.mxu0 0
    %5065 = vmatmul.mubr.bf16.gmra.mrb[0].mxu0 %v4966
    %v5066 = vpop.f32.mrb[0].mxu0
    %v5067 = vadd.f32 %v4983, %v5066
    %v5068 = vpop.f32.mrb[0].mxu0
    %v5069 = vpop.f32.mrb[0].mxu0
    %v5070 = vpop.f32.mrb[0].mxu0
    %5071 = vdwg.mxu0
    %v5072 = vmul.f32 %v4045, 0.95
    %v5073 = vadd.f32 %v5072, %v5067
    %v5074 = vmul.f32 %v4048, 0.5
    %v5075 = vsub.f32 %v5073, %v5074
    %vm5076 = vcmp.gt.f32.partialorder %v5075, 0.5
    %v5077 = vsel %vm5076, 1, 0
    %v5078 = vcvt.s32.f32 %v5077
    %v5079 = vpack.c.bf16 %v5078, %v5078
    %v5080 = vld [vmem:[#allocation23] sm:$0xf]
    %v5081 = vld [vmem:[#allocation23 + $0x4] sm:$0xf]
    %v5082 = vld [vmem:[#allocation23 + $0x8] sm:$0xf]
    %v5083 = vld [vmem:[#allocation23 + $0xc] sm:$0xf]
    %v5084 = vld [vmem:[#allocation23 + $0x10] sm:$0xf]
    %v5085 = vld [vmem:[#allocation23 + $0x14] sm:$0xf]
    %v5086 = vld [vmem:[#allocation23 + $0x18] sm:$0xf]
    %v5087 = vld [vmem:[#allocation23 + $0x1c] sm:$0xf]
    %v5088 = vld [vmem:[#allocation23 + $0x20] sm:$0xf]
    %v5089 = vld [vmem:[#allocation23 + $0x24] sm:$0xf]
    %v5090 = vld [vmem:[#allocation23 + $0x28] sm:$0xf]
    %v5091 = vld [vmem:[#allocation23 + $0x2c] sm:$0xf]
    %v5092 = vld [vmem:[#allocation23 + $0x30] sm:$0xf]
    %v5093 = vld [vmem:[#allocation23 + $0x34] sm:$0xf]
    %v5094 = vld [vmem:[#allocation23 + $0x38] sm:$0xf]
    %v5095 = vld [vmem:[#allocation23 + $0x3c] sm:$0xf]
    %v5096 = vld [vmem:[#allocation25] sm:$0xff]
    %v5113 = vunpack.c.l.b16 %v5080
    %v5114 = vunpack.c.l.b16 %v5081
    %v5115 = vunpack.c.l.b16 %v5082
    %v5116 = vunpack.c.l.b16 %v5083
    %v5117 = vunpack.c.l.b16 %v5084
    %v5118 = vunpack.c.l.b16 %v5085
    %v5119 = vunpack.c.l.b16 %v5086
    %v5120 = vunpack.c.l.b16 %v5087
    %v5121 = vunpack.c.l.b16 %v5088
    %v5122 = vunpack.c.l.b16 %v5089
    %v5123 = vunpack.c.l.b16 %v5090
    %v5124 = vunpack.c.l.b16 %v5091
    %v5125 = vunpack.c.l.b16 %v5092
    %v5126 = vunpack.c.l.b16 %v5093
    %v5127 = vunpack.c.l.b16 %v5094
    %v5128 = vunpack.c.l.b16 %v5095
    %v5129 = vpack.c.b16 %v5114, %v5113
    %v5130 = vpack.c.b16 %v5116, %v5115
    %v5131 = vpack.c.b16 %v5118, %v5117
    %v5132 = vpack.c.b16 %v5120, %v5119
    %v5133 = vpack.c.b16 %v5122, %v5121
    %v5134 = vpack.c.b16 %v5124, %v5123
    %v5135 = vpack.c.b16 %v5126, %v5125
    %v5136 = vpack.c.b16 %v5128, %v5127
    %5145 = vmatprep.subr.bf16.mxu0 0
    %5146 = vmatpush1.bf16.msra.mxu0 %v5129
    %5147 = vmatprep.subr.bf16.mxu0 0
    %5148 = vmatpush1.bf16.msra.mxu0 %v5130
    %5149 = vmatprep.subr.bf16.mxu0 0
    %5150 = vmatpush1.bf16.msra.mxu0 %v5131
    %5151 = vmatprep.subr.bf16.mxu0 0
    %5152 = vmatpush1.bf16.msra.mxu0 %v5132
    %5153 = vmatprep.subr.bf16.mxu0 0
    %5154 = vmatpush1.bf16.msra.mxu0 %v5133
    %5155 = vmatprep.subr.bf16.mxu0 0
    %5156 = vmatpush1.bf16.msra.mxu0 %v5134
    %5157 = vmatprep.subr.bf16.mxu0 0
    %5158 = vmatpush1.bf16.msra.mxu0 %v5135
    %5159 = vmatprep.subr.bf16.mxu0 0
    %5160 = vmatpush1.bf16.msra.mxu0 %v5136
    %5161 = vmatprep.subr.bf16.mxu0 0
    %5162 = vmatpush1.bf16.msra.mxu0 0
    %5163 = vmatprep.subr.bf16.mxu0 0
    %5164 = vmatpush1.bf16.msra.mxu0 0
    %5165 = vmatprep.subr.bf16.mxu0 0
    %5166 = vmatpush1.bf16.msra.mxu0 0
    %5167 = vmatprep.subr.bf16.mxu0 0
    %5168 = vmatpush1.bf16.msra.mxu0 0
    %5169 = vmatprep.subr.bf16.mxu0 0
    %5170 = vmatpush1.bf16.msra.mxu0 0
    %5171 = vmatprep.subr.bf16.mxu0 0
    %5172 = vmatpush1.bf16.msra.mxu0 0
    %5173 = vmatprep.subr.bf16.mxu0 0
    %5174 = vmatpush1.bf16.msra.mxu0 0
    %5175 = vmatprep.subr.bf16.mxu0 0
    %5176 = vmatpush1.bf16.msra.mxu0 0
    %5177 = vmatprep.mubr.bf16.mxu0 0
    %5178 = vmatmul.mubr.bf16.gmra.mrb[0].mxu0 %v5079
    %v5179 = vpop.f32.mrb[0].mxu0
    %v5180 = vadd.f32 %v5096, %v5179
    %v5181 = vpop.f32.mrb[0].mxu0
    %v5182 = vpop.f32.mrb[0].mxu0
    %v5183 = vpop.f32.mrb[0].mxu0
    %5184 = vdwg.mxu0
    %v5185 = vmul.f32 %v4158, 0.95
    %v5186 = vadd.f32 %v5185, %v5180
    %v5187 = vmul.f32 %v4161, 0.5
    %v5188 = vsub.f32 %v5186, %v5187
    %vm5189 = vcmp.gt.f32.partialorder %v5188, 0.5
    %v5190 = vsel %vm5189, 1, 0
    %v5191 = vcvt.s32.f32 %v5190
    %v5192 = vpack.c.bf16 %v5191, %v5191
    %v5193 = vld [vmem:[#allocation26] sm:$0xf]
    %v5194 = vld [vmem:[#allocation26 + $0x4] sm:$0xf]
    %v5195 = vld [vmem:[#allocation26 + $0x8] sm:$0xf]
    %v5196 = vld [vmem:[#allocation26 + $0xc] sm:$0xf]
    %v5197 = vld [vmem:[#allocation26 + $0x10] sm:$0xf]
    %v5198 = vld [vmem:[#allocation26 + $0x14] sm:$0xf]
    %v5199 = vld [vmem:[#allocation26 + $0x18] sm:$0xf]
    %v5200 = vld [vmem:[#allocation26 + $0x1c] sm:$0xf]
    %v5201 = vld [vmem:[#allocation26 + $0x20] sm:$0xf]
    %v5202 = vld [vmem:[#allocation26 + $0x24] sm:$0xf]
    %v5203 = vld [vmem:[#allocation26 + $0x28] sm:$0xf]
    %v5204 = vld [vmem:[#allocation26 + $0x2c] sm:$0xf]
    %v5205 = vld [vmem:[#allocation26 + $0x30] sm:$0xf]
    %v5206 = vld [vmem:[#allocation26 + $0x34] sm:$0xf]
    %v5207 = vld [vmem:[#allocation26 + $0x38] sm:$0xf]
    %v5208 = vld [vmem:[#allocation26 + $0x3c] sm:$0xf]
    %v5209 = vld [vmem:[#allocation28] sm:$0xff]
    %v5226 = vunpack.c.l.b16 %v5193
    %v5227 = vunpack.c.l.b16 %v5194
    %v5228 = vunpack.c.l.b16 %v5195
    %v5229 = vunpack.c.l.b16 %v5196
    %v5230 = vunpack.c.l.b16 %v5197
    %v5231 = vunpack.c.l.b16 %v5198
    %v5232 = vunpack.c.l.b16 %v5199
    %v5233 = vunpack.c.l.b16 %v5200
    %v5234 = vunpack.c.l.b16 %v5201
    %v5235 = vunpack.c.l.b16 %v5202
    %v5236 = vunpack.c.l.b16 %v5203
    %v5237 = vunpack.c.l.b16 %v5204
    %v5238 = vunpack.c.l.b16 %v5205
    %v5239 = vunpack.c.l.b16 %v5206
    %v5240 = vunpack.c.l.b16 %v5207
    %v5241 = vunpack.c.l.b16 %v5208
    %v5242 = vpack.c.b16 %v5227, %v5226
    %v5243 = vpack.c.b16 %v5229, %v5228
    %v5244 = vpack.c.b16 %v5231, %v5230
    %v5245 = vpack.c.b16 %v5233, %v5232
    %v5246 = vpack.c.b16 %v5235, %v5234
    %v5247 = vpack.c.b16 %v5237, %v5236
    %v5248 = vpack.c.b16 %v5239, %v5238
    %v5249 = vpack.c.b16 %v5241, %v5240
    %5258 = vmatprep.subr.bf16.mxu0 0
    %5259 = vmatpush1.bf16.msra.mxu0 %v5242
    %5260 = vmatprep.subr.bf16.mxu0 0
    %5261 = vmatpush1.bf16.msra.mxu0 %v5243
    %5262 = vmatprep.subr.bf16.mxu0 0
    %5263 = vmatpush1.bf16.msra.mxu0 %v5244
    %5264 = vmatprep.subr.bf16.mxu0 0
    %5265 = vmatpush1.bf16.msra.mxu0 %v5245
    %5266 = vmatprep.subr.bf16.mxu0 0
    %5267 = vmatpush1.bf16.msra.mxu0 %v5246
    %5268 = vmatprep.subr.bf16.mxu0 0
    %5269 = vmatpush1.bf16.msra.mxu0 %v5247
    %5270 = vmatprep.subr.bf16.mxu0 0
    %5271 = vmatpush1.bf16.msra.mxu0 %v5248
    %5272 = vmatprep.subr.bf16.mxu0 0
    %5273 = vmatpush1.bf16.msra.mxu0 %v5249
    %5274 = vmatprep.subr.bf16.mxu0 0
    %5275 = vmatpush1.bf16.msra.mxu0 0
    %5276 = vmatprep.subr.bf16.mxu0 0
    %5277 = vmatpush1.bf16.msra.mxu0 0
    %5278 = vmatprep.subr.bf16.mxu0 0
    %5279 = vmatpush1.bf16.msra.mxu0 0
    %5280 = vmatprep.subr.bf16.mxu0 0
    %5281 = vmatpush1.bf16.msra.mxu0 0
    %5282 = vmatprep.subr.bf16.mxu0 0
    %5283 = vmatpush1.bf16.msra.mxu0 0
    %5284 = vmatprep.subr.bf16.mxu0 0
    %5285 = vmatpush1.bf16.msra.mxu0 0
    %5286 = vmatprep.subr.bf16.mxu0 0
    %5287 = vmatpush1.bf16.msra.mxu0 0
    %5288 = vmatprep.subr.bf16.mxu0 0
    %5289 = vmatpush1.bf16.msra.mxu0 0
    %5290 = vmatprep.mubr.bf16.mxu0 0
    %5291 = vmatmul.mubr.bf16.gmra.mrb[0].mxu0 %v5192
    %v5292 = vpop.f32.mrb[0].mxu0
    %v5293 = vadd.f32 %v5209, %v5292
    %v5294 = vpop.f32.mrb[0].mxu0
    %v5295 = vpop.f32.mrb[0].mxu0
    %v5296 = vpop.f32.mrb[0].mxu0
    %5297 = vdwg.mxu0
    %v5298 = vmul.f32 %v4271, 0.95
    %v5299 = vadd.f32 %v5298, %v5293
    %v5300 = vmul.f32 %v4274, 0.5
    %v5301 = vsub.f32 %v5299, %v5300
    %vm5302 = vcmp.gt.f32.partialorder %v5301, 0.5
    %v5303 = vsel %vm5302, 1, 0
    %v5304 = vcvt.s32.f32 %v5303
    %v5305 = vpack.c.bf16 %v5304, %v5304
    %v5306 = vld [vmem:[%s17] sm:$0xf]
    %v5307 = vld [vmem:[%s17 + $0x4] sm:$0xf]
    %v5308 = vld [vmem:[%s17 + $0x8] sm:$0xf]
    %v5309 = vld [vmem:[%s17 + $0xc] sm:$0xf]
    %v5310 = vld [vmem:[%s17 + $0x10] sm:$0xf]
    %v5311 = vld [vmem:[%s17 + $0x14] sm:$0xf]
    %v5312 = vld [vmem:[%s17 + $0x18] sm:$0xf]
    %v5313 = vld [vmem:[%s17 + $0x1c] sm:$0xf]
    %v5314 = vld [vmem:[%s17 + $0x20] sm:$0xf]
    %v5315 = vld [vmem:[%s17 + $0x24] sm:$0xf]
    %v5316 = vld [vmem:[%s17 + $0x28] sm:$0xf]
    %v5317 = vld [vmem:[%s17 + $0x2c] sm:$0xf]
    %v5318 = vld [vmem:[%s17 + $0x30] sm:$0xf]
    %v5319 = vld [vmem:[%s17 + $0x34] sm:$0xf]
    %v5320 = vld [vmem:[%s17 + $0x38] sm:$0xf]
    %v5321 = vld [vmem:[%s17 + $0x3c] sm:$0xf]
    %v5322 = vld [vmem:[#allocation29] sm:$0xff]
    %v5339 = vunpack.c.l.b16 %v5306
    %v5340 = vunpack.c.l.b16 %v5307
    %v5341 = vunpack.c.l.b16 %v5308
    %v5342 = vunpack.c.l.b16 %v5309
    %v5343 = vunpack.c.l.b16 %v5310
    %v5344 = vunpack.c.l.b16 %v5311
    %v5345 = vunpack.c.l.b16 %v5312
    %v5346 = vunpack.c.l.b16 %v5313
    %v5347 = vunpack.c.l.b16 %v5314
    %v5348 = vunpack.c.l.b16 %v5315
    %v5349 = vunpack.c.l.b16 %v5316
    %v5350 = vunpack.c.l.b16 %v5317
    %v5351 = vunpack.c.l.b16 %v5318
    %v5352 = vunpack.c.l.b16 %v5319
    %v5353 = vunpack.c.l.b16 %v5320
    %v5354 = vunpack.c.l.b16 %v5321
    %v5355 = vpack.c.b16 %v5340, %v5339
    %v5356 = vpack.c.b16 %v5342, %v5341
    %v5357 = vpack.c.b16 %v5344, %v5343
    %v5358 = vpack.c.b16 %v5346, %v5345
    %v5359 = vpack.c.b16 %v5348, %v5347
    %v5360 = vpack.c.b16 %v5350, %v5349
    %v5361 = vpack.c.b16 %v5352, %v5351
    %v5362 = vpack.c.b16 %v5354, %v5353
    %5371 = vmatprep.subr.bf16.mxu0 0
    %5372 = vmatpush1.bf16.msra.mxu0 %v5355
    %5373 = vmatprep.subr.bf16.mxu0 0
    %5374 = vmatpush1.bf16.msra.mxu0 %v5356
    %5375 = vmatprep.subr.bf16.mxu0 0
    %5376 = vmatpush1.bf16.msra.mxu0 %v5357
    %5377 = vmatprep.subr.bf16.mxu0 0
    %5378 = vmatpush1.bf16.msra.mxu0 %v5358
    %5379 = vmatprep.subr.bf16.mxu0 0
    %5380 = vmatpush1.bf16.msra.mxu0 %v5359
    %5381 = vmatprep.subr.bf16.mxu0 0
    %5382 = vmatpush1.bf16.msra.mxu0 %v5360
    %5383 = vmatprep.subr.bf16.mxu0 0
    %5384 = vmatpush1.bf16.msra.mxu0 %v5361
    %5385 = vmatprep.subr.bf16.mxu0 0
    %5386 = vmatpush1.bf16.msra.mxu0 %v5362
    %5387 = vmatprep.subr.bf16.mxu0 0
    %5388 = vmatpush1.bf16.msra.mxu0 0
    %5389 = vmatprep.subr.bf16.mxu0 0
    %5390 = vmatpush1.bf16.msra.mxu0 0
    %5391 = vmatprep.subr.bf16.mxu0 0
    %5392 = vmatpush1.bf16.msra.mxu0 0
    %5393 = vmatprep.subr.bf16.mxu0 0
    %5394 = vmatpush1.bf16.msra.mxu0 0
    %5395 = vmatprep.subr.bf16.mxu0 0
    %5396 = vmatpush1.bf16.msra.mxu0 0
    %5397 = vmatprep.subr.bf16.mxu0 0
    %5398 = vmatpush1.bf16.msra.mxu0 0
    %5399 = vmatprep.subr.bf16.mxu0 0
    %5400 = vmatpush1.bf16.msra.mxu0 0
    %5401 = vmatprep.subr.bf16.mxu0 0
    %5402 = vmatpush1.bf16.msra.mxu0 0
    %5403 = vmatprep.mubr.bf16.mxu0 0
    %5404 = vmatmul.mubr.bf16.gmra.mrb[0].mxu0 %v5305
    %v5405 = vpop.f32.mrb[0].mxu0
    %v5406 = vadd.f32 %v5322, %v5405
    %v5407 = vpop.f32.mrb[0].mxu0
    %v5408 = vpop.f32.mrb[0].mxu0
    %v5409 = vpop.f32.mrb[0].mxu0
    %5410 = vdwg.mxu0
    %v5411 = vmul.f32 %v4384, 0.95
    %v5412 = vadd.f32 %v5411, %v5406
    %v5413 = vmul.f32 %v4387, 0.5
    %v5414 = vsub.f32 %v5412, %v5413
    %vm5415 = vcmp.gt.f32.partialorder %v5414, 0.5
    %v5416 = vsel %vm5415, 1, 0
    %v5417 = vcvt.s32.f32 %v5416
    %v5418 = vpack.c.bf16 %v5417, %v5417
    %v5419 = vunpack.c.l.bf16 %v5418
    %s5420 = scalar_lea.vmem [#allocation31], 32
    %5421 = vst [vmem:[%s5420] sm:$0xff] %v5419
    %s5422 = scalar_lea.vmem [#allocation32], 32
    %5423 = vst [vmem:[%s5422] sm:$0xff] %v5414
    // Predicated region
    $region150: #{tpu_custom_call.1} parent=1 // pred_check
      _
    $region151: #{tpu_custom_call.1} parent=1 // pred_check_branch
      %5425 = sbr.rel (0) target = $region153
    $region152: #{tpu_custom_call.1} parent=1 // pred_region
      %s5427 = ssub.s32 640, 640
      %5428 = vsyncadd [#allocation4], %s5427
      %s5429 = sshll.u32 [#allocation31], 4
      %s5430 = int_to_ptr.vmem [resolvable:$true] %s5429
      %5435 = dma.vmem_to_hbm [thread:$0]  %s5430, 640, %s19, [#allocation4], 128, 128, 8
    $region153: #{tpu_custom_call.1} parent=1 // pred_fallthru
      _
    // Predicated region
    $region154: #{tpu_custom_call.1} parent=1 // pred_check
      _
    $region155: #{tpu_custom_call.1} parent=1 // pred_check_branch
      %5437 = sbr.rel (0) target = $region157
    $region156: #{tpu_custom_call.1} parent=1 // pred_region
      %s5439 = ssub.s32 640, 640
      %5440 = vsyncadd [#allocation33], %s5439
      %s5441 = sshll.u32 [#allocation32], 4
      %s5442 = int_to_ptr.vmem [resolvable:$true] %s5441
      %5447 = dma.vmem_to_hbm [thread:$0]  %s5442, 640, %s20, [#allocation33], 128, 128, 8
    $region157: #{tpu_custom_call.1} parent=1 // pred_fallthru
      _
    // Predicated region
    $region158: #{tpu_custom_call.1} parent=1 // pred_check
      _
    $region159: #{tpu_custom_call.1} parent=1 // pred_check_branch
      %5449 = sbr.rel (0) target = $region161
    $region160: #{tpu_custom_call.1} parent=1 // pred_region
      %5450 = dma.done [#allocation4], 640
    $region161: #{tpu_custom_call.1} parent=1 // pred_fallthru
      _
    // Predicated region
    $region162: #{tpu_custom_call.1} parent=1 // pred_check
      _
    $region163: #{tpu_custom_call.1} parent=1 // pred_check_branch
      %5452 = sbr.rel (0) target = $region165
    $region164: #{tpu_custom_call.1} parent=1 // pred_region
      %5453 = dma.done [#allocation33], 640
    $region165: #{tpu_custom_call.1} parent=1 // pred_fallthru
      _
    %5454 = vsyncpa [#allocation3], 1
    %5455 = vsyncpa [#allocation6], 1
    %5456 = vsyncpa [#allocation9], 1
    %5457 = vsyncpa [#allocation12], 1
    %5458 = vsyncpa [#allocation15], 1
    %5459 = vsyncpa [#allocation18], 1
    %5460 = vsyncpa [#allocation21], 1
    %5461 = vsyncpa [#allocation24], 1
    %5462 = vsyncpa [#allocation27], 1
    %5463 = vsyncpa [#allocation30], 1
    %5464 = vsyncpa [#allocation4], 1
    %5465 = vsyncpa [#allocation33], 1

</llo_original>
